<compile_context>
chip_gen: v7x
topology: tpu7x:2x2x1
jax: 0.10.0
libtpu: 0.0.40
codegen_flags: <defaults>
</compile_context>

<pallas_src>
import functools
import math

import jax
import jax.numpy as jnp
from jax.experimental import pallas as pl
from jax.experimental.pallas import tpu as pltpu

K = 4                   # every ConvTranspose2d in the Generator uses kernel_size=4
BN_EPS = 1e-5
LRELU_SLOPE = 0.2
# kernel-row taps used by output phase r (r = oh % 2); tap d reads the padded
# input at row q + r + d (q = oh // 2):   r=0 -> kh in (3,1),  r=1 -> (2,0)
KH_TAPS = ((3, 1), (2, 0))

VMEM_BUDGET = 24 * 1024 * 1024     # byte budget for per-column pipelined blocks
VMEM_LIMIT = 48 * 1024 * 1024      # explicit scoped-VMEM limit (fits v5e/v6e/v7x)


def _pick_tile(m, bytes_per_col, budget=VMEM_BUDGET):
    """Largest lane tile dividing m whose pipelined VMEM footprint fits budget."""
    for t in (8192, 4096, 2048, 1024, 512, 256, 128):
        if m % t == 0 and t * bytes_per_col <= budget:
            return t
    return m          # small layers: single (legal) full-extent block


# ------------------- layer 0: ConvT(k=4, s=1, p=0) on 1x1 -------------------
# out[n, co*16 + khw] = b[co] + sum_ci z[n, ci] * W[ci, co, khw]
# => one lane-dense GEMM (N, Ci) @ (Ci, Co*16)  (output last dim = Co*16).

def _fc_kernel(z_ref, w_ref, b_ref, o_ref):
    o_ref[...] = (jnp.dot(z_ref[...], w_ref[...],
                          preferred_element_type=jnp.float32) + b_ref[...])


def convt_1x1_to_4x4(z, w, b):
    """z: (N, Ci) f32, w: (Ci, Co, 4, 4), b: (Co,) -> (N, Co*16) f32."""
    n, ci = z.shape
    co = w.shape[1]
    wmat = w.reshape(ci, co * K * K).astype(jnp.bfloat16)
    brow = jnp.repeat(b.astype(jnp.float32), K * K).reshape(1, co * K * K)
    return pl.pallas_call(
        _fc_kernel,
        out_shape=jax.ShapeDtypeStruct((n, co * K * K), jnp.float32),
    )(z.astype(jnp.bfloat16), wmat, brow)


# ----------------- stride-2 ConvTranspose2d (phase decomposed) ----------------

def _make_shifted_inputs(x):
    """x: (Ci, N, H, W) bf16 -> (3, 3, Ci, N*H*W) bf16.
    Copy (a, b) holds the zero-padded (pad=1) window xp[:, :, a:a+H, b:b+W]."""
    ci, n, h, w = x.shape
    xp = jnp.pad(x, ((0, 0), (0, 0), (1, 1), (1, 1)))
    rows = []
    for a in range(3):
        cols = [xp[:, :, a:a + h, b:b + w] for b in range(3)]
        rows.append(jnp.stack(cols, axis=0))
    return jnp.stack(rows, axis=0).reshape(3, 3, ci, n * h * w)


def _make_slice_weights(w):
    """w: (Ci, Co, 4, 4) -> (3, 3, 4*Co, Ci) bf16.
    Slice (a, b) gets the 4 phase blocks stacked; phase (ph, pw) rows are the
    (Co, Ci) tap weights if that phase consumes slice (a, b), else zeros."""
    ci, co = w.shape[0], w.shape[1]
    zero = jnp.zeros((co, ci), w.dtype)
    rows_a = []
    for a in range(3):
        cols_b = []
        for b in range(3):
            phase_blocks = []
            for ph in range(2):
                for pw in range(2):
                    dh, dw = a - ph, b - pw
                    if 0 <= dh <= 1 and 0 <= dw <= 1:
                        kh, kw = KH_TAPS[ph][dh], KH_TAPS[pw][dw]
                        phase_blocks.append(w[:, :, kh, kw].T)   # (Co, Ci)
                    else:
                        phase_blocks.append(zero)
            cols_b.append(jnp.concatenate(phase_blocks, axis=0))  # (4Co, Ci)
        rows_a.append(jnp.stack(cols_b, axis=0))
    return jnp.stack(rows_a, axis=0).astype(jnp.bfloat16)


def convt_stride2(x, w, b, *, with_stats, act=None, out_dtype=jnp.bfloat16):
    """ConvTranspose2d(kernel=4, stride=2, padding=1), phase decomposed.

    x: (Ci, N, H, W) bf16, w: (Ci, Co, 4, 4) f32, b: (Co,) f32.
    Returns (yp, ch_sum, ch_sq):
      yp           : (4*Co, N*H*W) phase-major, lane-dense (row = p*Co + co)
      ch_sum/ch_sq : per-channel stats over the full (N, 2H, 2W) output
                     (None when with_stats=False).
    """
    ci, n, h, wdim = x.shape
    co = w.shape[1]
    m = n * h * wdim
    # per lane-column VMEM: 2x bf16 input buf (4ci) + 2x bf16 out buf + f32 acc (32co)
    tm = _pick_tile(m, 4 * ci + 32 * co)
    n_m = m // tm

    s = _make_shifted_inputs(x)                  # (3, 3, Ci, M)    bf16
    w9 = _make_slice_weights(w)                  # (3, 3, 4Co, Ci)  bf16
    b4 = jnp.tile(b.astype(jnp.float32), (4,)).reshape(4 * co, 1)

    def kernel(s_ref, w_ref, b_ref, *rest):
        if with_stats:
            y_ref, sum_ref, sq_ref, acc_ref = rest
        else:
            y_ref, acc_ref = rest
        a = pl.program_id(1)
        bb = pl.program_id(2)

        @pl.when(jnp.logical_and(a == 0, bb == 0))
        def _():
            acc_ref[...] = jnp.zeros_like(acc_ref)

        # one stacked (4Co, Ci) @ (Ci, TM) matmul per shifted slice
        acc_ref[...] += jnp.dot(w_ref[0, 0], s_ref[0, 0],
                                preferred_element_type=jnp.float32)

        @pl.when(jnp.logical_and(a == 2, bb == 2))
        def _():
            y = acc_ref[...] + b_ref[...]
            if with_stats:
                sum_ref[0] = jnp.sum(y, axis=1, keepdims=True)
                sq_ref[0] = jnp.sum(y * y, axis=1, keepdims=True)
            if act == "tanh":
                y = jnp.tanh(y)
            y_ref[...] = y.astype(y_ref.dtype)

    y_shape = jax.ShapeDtypeStruct((4 * co, m), out_dtype)
    y_spec = pl.BlockSpec((4 * co, tm), lambda mi, a, b: (0, mi))
    if with_stats:
        stat_shape = jax.ShapeDtypeStruct((n_m, 4 * co, 1), jnp.float32)
        stat_spec = pl.BlockSpec((1, 4 * co, 1), lambda mi, a, b: (mi, 0, 0))
        out_shape = (y_shape, stat_shape, stat_shape)
        out_specs = (y_spec, stat_spec, stat_spec)
    else:
        out_shape = y_shape
        out_specs = y_spec

    outs = pl.pallas_call(
        kernel,
        out_shape=out_shape,
        grid=(n_m, 3, 3),
        in_specs=[
            pl.BlockSpec((1, 1, ci, tm), lambda mi, a, b: (a, b, 0, mi)),
            pl.BlockSpec((1, 1, 4 * co, ci), lambda mi, a, b: (a, b, 0, 0)),
            pl.BlockSpec((4 * co, 1), lambda mi, a, b: (0, 0)),
        ],
        out_specs=out_specs,
        scratch_shapes=[pltpu.VMEM((4 * co, tm), jnp.float32)],
        compiler_params=pltpu.CompilerParams(
            dimension_semantics=("parallel", "arbitrary", "arbitrary"),
            vmem_limit_bytes=VMEM_LIMIT),
    )(s, w9, b4)

    if with_stats:
        yp, ssum, ssq = outs
        ch_sum = ssum.sum(axis=(0, 2)).reshape(4, co).sum(axis=0)
        ch_sq = ssq.sum(axis=(0, 2)).reshape(4, co).sum(axis=0)
        return yp, ch_sum, ch_sq
    return outs, None, None


# --------------------- BatchNorm(apply) + LeakyReLU(0.2) ---------------------

def _bn_scale_shift(ch_sum, ch_sq, gamma, beta, count):
    """Training-mode BatchNorm (biased batch var, eps=1e-5) -> (scale, shift)."""
    mean = ch_sum / count
    var = jnp.maximum(ch_sq / count - mean * mean, 0.0)   # guard cancellation
    inv = jax.lax.rsqrt(var + BN_EPS)
    scale = gamma * inv
    shift = beta - mean * scale
    # TODO(synk): running_mean/running_var bookkeeping is training-only state
    # and does not affect the forward output, so it is not materialized here.
    return scale, shift


def _bn_lrelu_kernel(x_ref, scale_ref, shift_ref, o_ref):
    t = x_ref[...].astype(jnp.float32) * scale_ref[...] + shift_ref[...]
    o_ref[...] = jnp.where(t >= 0, t, LRELU_SLOPE * t).astype(o_ref.dtype)


def bn_lrelu(x, scale, shift, *, out_dtype=jnp.bfloat16):
    """Lane-dense BN-apply + LeakyReLU on (R, M); scale/shift broadcast either
    per-row as (R, 1) or per-column as (1, M)."""
    r, m = x.shape
    tm = _pick_tile(m, 8 * r)
    if scale.shape == (r, 1):
        sspec = pl.BlockSpec((r, 1), lambda i: (0, 0))
    else:
        sspec = pl.BlockSpec((1, tm), lambda i: (0, i))
    return pl.pallas_call(
        _bn_lrelu_kernel,
        out_shape=jax.ShapeDtypeStruct((r, m), out_dtype),
        grid=(m // tm,),
        in_specs=[pl.BlockSpec((r, tm), lambda i: (0, i)), sspec, sspec],
        out_specs=pl.BlockSpec((r, tm), lambda i: (0, i)),
        compiler_params=pltpu.CompilerParams(
            dimension_semantics=("parallel",),
            vmem_limit_bytes=VMEM_LIMIT),
    )(x, scale.astype(jnp.float32), shift.astype(jnp.float32))


# ------------------------------ layout helpers -------------------------------

def _assemble_phases(y2d, co, n, h, w):
    """Phase-major activations (4*Co, M) -> (Co, N, 2H, 2W) (dtype preserved)."""
    y = y2d.reshape(2, 2, co, n, h, w)
    y = y.transpose(2, 3, 4, 0, 5, 1)                 # (Co, N, H, ph, W, pw)
    return y.reshape(co, n, 2 * h, 2 * w)


# -------------------------------- Generator ----------------------------------

def init_params(key, z_dim, base_dim):
    chs = [z_dim, base_dim * 32, base_dim * 16, base_dim * 8,
           base_dim * 4, base_dim * 2, 3]
    blocks = []
    for i in range(5):
        ci, co = chs[i], chs[i + 1]
        key, kw, kb = jax.random.split(key, 3)
        bound = 1.0 / math.sqrt(ci * K * K)
        blocks.append({
            "W": jax.random.uniform(kw, (ci, co, K, K), jnp.float32, -bound, bound),
            "b": jax.random.uniform(kb, (co,), jnp.float32, -bound, bound),
            "gamma": jnp.ones((co,), jnp.float32),    # BatchNorm2d default init
            "beta": jnp.zeros((co,), jnp.float32),
        })
    ci, co = chs[5], chs[6]
    key, kw, kb = jax.random.split(key, 3)
    bound = 1.0 / math.sqrt(ci * K * K)
    final = {
        "W": jax.random.uniform(kw, (ci, co, K, K), jnp.float32, -bound, bound),
        "b": jax.random.uniform(kb, (co,), jnp.float32, -bound, bound),
    }
    return {"blocks": blocks, "final": final}


def generator_forward(noise, params, *, z_dim):
    n = noise.shape[0]
    # noise.view(len(noise), z_dim, 1, 1)
    z = noise.reshape(n, z_dim)

    # block 0: ConvT(z_dim -> c0, k=4, s=1, p=0) + BN + LeakyReLU
    blk = params["blocks"][0]
    co = blk["W"].shape[1]
    y0 = convt_1x1_to_4x4(z, blk["W"], blk["b"])               # (N, Co*16) f32
    y0c = y0.reshape(n, co, K * K)                             # tiny: stats in XLA
    ch_sum = y0c.sum(axis=(0, 2))
    ch_sq = (y0c * y0c).sum(axis=(0, 2))
    scale, shift = _bn_scale_shift(ch_sum, ch_sq, blk["gamma"], blk["beta"],
                                   count=n * K * K)
    scale_cols = jnp.repeat(scale, K * K).reshape(1, co * K * K)
    shift_cols = jnp.repeat(shift, K * K).reshape(1, co * K * K)
    ybn = bn_lrelu(y0, scale_cols, shift_cols)                 # (N, Co*16) bf16
    x = ybn.reshape(n, co, K, K).transpose(1, 0, 2, 3)         # (Co, N, 4, 4) bf16

    # blocks 1..4: ConvT(k=4, s=2, p=1) + BN + LeakyReLU (all bf16 intermediates)
    for blk in params["blocks"][1:]:
        co = blk["W"].shape[1]
        _, _, h, wdim = x.shape
        m = n * h * wdim
        yp, ch_sum, ch_sq = convt_stride2(x, blk["W"], blk["b"], with_stats=True)
        scale, shift = _bn_scale_shift(ch_sum, ch_sq, blk["gamma"], blk["beta"],
                                       count=4 * m)
        scale_rows = jnp.tile(scale, (4,)).reshape(4 * co, 1)
        shift_rows = jnp.tile(shift, (4,)).reshape(4 * co, 1)
        ybn = bn_lrelu(yp, scale_rows, shift_rows)             # (4Co, M) bf16
        x = _assemble_phases(ybn, co, n, h, wdim)              # (Co, N, 2H, 2W) bf16

    # final: ConvT(k=4, s=2, p=1) with Tanh fused into the conv epilogue
    fw, fb = params["final"]["W"], params["final"]["b"]
    co = fw.shape[1]
    _, _, h, wdim = x.shape
    yp, _, _ = convt_stride2(x, fw, fb, with_stats=False, act="tanh",
                             out_dtype=jnp.float32)
    img = _assemble_phases(yp, co, n, h, wdim)                 # (3, N, 2H, 2W)
    return img.transpose(1, 0, 2, 3)                           # NCHW, matches PyTorch


# ----------------------------------- main ------------------------------------

if __name__ == "__main__":
    Z_DIM = 16       # small instantiation of Generator(z_dim=16, base_dim=2)
    BASE_DIM = 2
    N = 2

    key = jax.random.PRNGKey(0)
    key, knoise = jax.random.split(key)
    noise = jax.random.uniform(knoise, (N, Z_DIM), dtype=jnp.float32)  # torch.rand analog
    params = init_params(key, Z_DIM, BASE_DIM)

    fwd = jax.jit(functools.partial(generator_forward, z_dim=Z_DIM))
    out = jax.block_until_ready(fwd(noise, params))

    assert out.shape == (N, 3, 128, 128), out.shape
    assert bool(jnp.all(jnp.isfinite(out)))
    assert bool(jnp.all(jnp.abs(out) <= 1.0 + 1e-6))   # tanh range
    print("KERNEL_OK")
</pallas_src>

<mosaic_0001>
module attributes {stable_mosaic.version = 11 : i64} {
  func.func @_fc_kernel(%arg0: memref<2x16xbf16, #tpu.memory_space<vmem>>, %arg1: memref<16x1024xbf16, #tpu.memory_space<vmem>>, %arg2: memref<1x1024xf32, #tpu.memory_space<vmem>>, %arg3: memref<2x1024xf32, #tpu.memory_space<vmem>>) attributes {dimension_semantics = [], scalar_prefetch = 0 : i64, scratch_operands = 0 : i64, tpu.core_type = #tpu.core_type<tc>} {
    %c0 = arith.constant 0 : index
    %c0_0 = arith.constant 0 : index
    %0 = vector.load %arg0[%c0, %c0_0] : memref<2x16xbf16, #tpu.memory_space<vmem>>, vector<2x16xbf16>
    %c0_1 = arith.constant 0 : index
    %c0_2 = arith.constant 0 : index
    %1 = vector.load %arg1[%c0_1, %c0_2] : memref<16x1024xbf16, #tpu.memory_space<vmem>>, vector<16x1024xbf16>
    %cst = arith.constant dense<0.000000e+00> : vector<2x1024xf32>
    %2 = tpu.matmul %0, %1, %cst {dimension_numbers = #tpu.dot_dimension_numbers<[1], [0], [0], [1], [0, 0, 1, 1], [], []>} : vector<2x16xbf16>, vector<16x1024xbf16>, vector<2x1024xf32> -> vector<2x1024xf32>
    %c0_3 = arith.constant 0 : index
    %c0_4 = arith.constant 0 : index
    %3 = vector.load %arg2[%c0_3, %c0_4] : memref<1x1024xf32, #tpu.memory_space<vmem>>, vector<1x1024xf32>
    %4 = vector.broadcast %3 : vector<1x1024xf32> to vector<2x1024xf32>
    %5 = arith.addf %2, %4 : vector<2x1024xf32>
    %c0_5 = arith.constant 0 : index
    %c0_6 = arith.constant 0 : index
    %6 = vector.load %arg3[%c0_5, %c0_6] : memref<2x1024xf32, #tpu.memory_space<vmem>>, vector<2x1024xf32>
    tpu.vector_store %arg3[%c0_5, %c0_6], %5 {strides = array<i32>} : memref<2x1024xf32, #tpu.memory_space<vmem>>, vector<2x1024xf32>,
    return
  }
}

module attributes {stable_mosaic.version = 11 : i64} {
  func.func @_bn_lrelu_kernel(%arg0: i32, %arg1: memref<2x1024xf32, #tpu.memory_space<vmem>>, %arg2: memref<1x1024xf32, #tpu.memory_space<vmem>>, %arg3: memref<1x1024xf32, #tpu.memory_space<vmem>>, %arg4: memref<2x1024xbf16, #tpu.memory_space<vmem>>) attributes {dimension_semantics = [#tpu.dimension_semantics<parallel>], iteration_bounds = array<i64: 1>, scalar_prefetch = 0 : i64, scratch_operands = 0 : i64, tpu.core_type = #tpu.core_type<tc>, window_params = [{transform_indices = @transform_0, window_bounds = array<i64: 2, 1024>}, {transform_indices = @transform_1, window_bounds = array<i64: 1, 1024>}, {transform_indices = @transform_2, window_bounds = array<i64: 1, 1024>}, {transform_indices = @transform_3, window_bounds = array<i64: 2, 1024>}]} {
    %c0 = arith.constant 0 : index
    %c0_0 = arith.constant 0 : index
    %0 = vector.load %arg1[%c0, %c0_0] : memref<2x1024xf32, #tpu.memory_space<vmem>>, vector<2x1024xf32>
    %c0_1 = arith.constant 0 : index
    %c0_2 = arith.constant 0 : index
    %1 = vector.load %arg2[%c0_1, %c0_2] : memref<1x1024xf32, #tpu.memory_space<vmem>>, vector<1x1024xf32>
    %2 = vector.broadcast %1 : vector<1x1024xf32> to vector<2x1024xf32>
    %3 = arith.mulf %0, %2 : vector<2x1024xf32>
    %c0_3 = arith.constant 0 : index
    %c0_4 = arith.constant 0 : index
    %4 = vector.load %arg3[%c0_3, %c0_4] : memref<1x1024xf32, #tpu.memory_space<vmem>>, vector<1x1024xf32>
    %5 = vector.broadcast %4 : vector<1x1024xf32> to vector<2x1024xf32>
    %6 = arith.addf %3, %5 : vector<2x1024xf32>
    %cst = arith.constant 0.000000e+00 : f32
    %7 = vector.broadcast %cst : f32 to vector<2x1024xf32>
    %8 = arith.cmpf oge, %6, %7 : vector<2x1024xf32>
    %cst_5 = arith.constant 2.000000e-01 : f32
    %9 = vector.broadcast %cst_5 : f32 to vector<2x1024xf32>
    %10 = arith.mulf %9, %6 : vector<2x1024xf32>
    %11 = arith.select %8, %6, %10 : vector<2x1024xi1>, vector<2x1024xf32>
    %12 = arith.truncf %11 : vector<2x1024xf32> to vector<2x1024xbf16>
    %c0_6 = arith.constant 0 : index
    %c0_7 = arith.constant 0 : index
    %13 = vector.load %arg4[%c0_6, %c0_7] : memref<2x1024xbf16, #tpu.memory_space<vmem>>, vector<2x1024xbf16>
    tpu.vector_store %arg4[%c0_6, %c0_7], %12 {strides = array<i32>} : memref<2x1024xbf16, #tpu.memory_space<vmem>>, vector<2x1024xbf16>,
    return
  }
  func.func @transform_0(%arg0: i32) -> (i32, i32) {
    %c0_i32 = arith.constant 0 : i32
    %c0_i32_0 = arith.constant 0 : i32
    return %c0_i32, %arg0 : i32, i32
  }
  func.func @transform_1(%arg0: i32) -> (i32, i32) {
    %c0_i32 = arith.constant 0 : i32
    %c0_i32_0 = arith.constant 0 : i32
    return %c0_i32, %arg0 : i32, i32
  }
  func.func @transform_2(%arg0: i32) -> (i32, i32) {
    %c0_i32 = arith.constant 0 : i32
    %c0_i32_0 = arith.constant 0 : i32
    return %c0_i32, %arg0 : i32, i32
  }
  func.func @transform_3(%arg0: i32) -> (i32, i32) {
    %c0_i32 = arith.constant 0 : i32
    %c0_i32_0 = arith.constant 0 : i32
    return %c0_i32, %arg0 : i32, i32
  }
}

module attributes {stable_mosaic.version = 11 : i64} {
  func.func @kernel(%arg0: i32, %arg1: i32, %arg2: i32, %arg3: memref<1x1x64x32xbf16, #tpu.memory_space<vmem>>, %arg4: memref<1x1x128x64xbf16, #tpu.memory_space<vmem>>, %arg5: memref<128x1xf32, #tpu.memory_space<vmem>>, %arg6: memref<128x32xbf16, #tpu.memory_space<vmem>>, %arg7: memref<1x128x1xf32, #tpu.memory_space<vmem>>, %arg8: memref<1x128x1xf32, #tpu.memory_space<vmem>>, %arg9: memref<128x32xf32, #tpu.memory_space<vmem>>) attributes {dimension_semantics = [#tpu.dimension_semantics<parallel>, #tpu.dimension_semantics<arbitrary>, #tpu.dimension_semantics<arbitrary>], iteration_bounds = array<i64: 1, 3, 3>, scalar_prefetch = 0 : i64, scratch_operands = 1 : i64, tpu.core_type = #tpu.core_type<tc>, window_params = [{transform_indices = @transform_0, window_bounds = array<i64: 1, 1, 64, 32>}, {transform_indices = @transform_1, window_bounds = array<i64: 1, 1, 128, 64>}, {pipeline_mode = #tpu.pipeline_mode<synchronous>, transform_indices = @transform_2, window_bounds = array<i64: 128, 1>}, {transform_indices = @transform_3, window_bounds = array<i64: 128, 32>}, {transform_indices = @transform_4, window_bounds = array<i64: 1, 128, 1>}, {transform_indices = @transform_5, window_bounds = array<i64: 1, 128, 1>}]} {
    %c0_i32 = arith.constant 0 : i32
    %0 = arith.cmpi eq, %arg1, %c0_i32 : i32
    %c0_i32_0 = arith.constant 0 : i32
    %1 = arith.cmpi eq, %arg2, %c0_i32_0 : i32
    %2 = arith.andi %0, %1 : i1
    %3 = arith.extui %2 : i1 to i32
    %c0_i32_1 = arith.constant 0 : i32
    %4 = arith.cmpi ne, %3, %c0_i32_1 : i32
    scf.if %4 {
      %cst_15 = arith.constant 0.000000e+00 : f32
      %18 = vector.broadcast %cst_15 : f32 to vector<128x32xf32>
      %c0_16 = arith.constant 0 : index
      %c0_17 = arith.constant 0 : index
      %19 = vector.load %arg9[%c0_16, %c0_17] : memref<128x32xf32, #tpu.memory_space<vmem>>, vector<128x32xf32>
      tpu.vector_store %arg9[%c0_16, %c0_17], %18 {strides = array<i32>} : memref<128x32xf32, #tpu.memory_space<vmem>>, vector<128x32xf32>,
    } else {
    }
    %c0 = arith.constant 0 : index
    %c0_2 = arith.constant 0 : index
    %5 = vector.load %arg9[%c0, %c0_2] : memref<128x32xf32, #tpu.memory_space<vmem>>, vector<128x32xf32>
    %c0_3 = arith.constant 0 : index
    %c0_4 = arith.constant 0 : index
    %c0_5 = arith.constant 0 : index
    %c0_6 = arith.constant 0 : index
    %6 = vector.load %arg4[%c0_3, %c0_4, %c0_5, %c0_6] : memref<1x1x128x64xbf16, #tpu.memory_space<vmem>>, vector<1x1x128x64xbf16>
    %7 = vector.shape_cast %6 : vector<1x1x128x64xbf16> to vector<128x64xbf16>
    %c0_7 = arith.constant 0 : index
    %c0_8 = arith.constant 0 : index
    %c0_9 = arith.constant 0 : index
    %c0_10 = arith.constant 0 : index
    %8 = vector.load %arg3[%c0_7, %c0_8, %c0_9, %c0_10] : memref<1x1x64x32xbf16, #tpu.memory_space<vmem>>, vector<1x1x64x32xbf16>
    %9 = vector.shape_cast %8 : vector<1x1x64x32xbf16> to vector<64x32xbf16>
    %cst = arith.constant dense<0.000000e+00> : vector<128x32xf32>
    %10 = tpu.matmul %7, %9, %cst {dimension_numbers = #tpu.dot_dimension_numbers<[1], [0], [0], [1], [0, 0, 1, 1], [], []>} : vector<128x64xbf16>, vector<64x32xbf16>, vector<128x32xf32> -> vector<128x32xf32>
    %11 = arith.addf %5, %10 : vector<128x32xf32>
    %c0_11 = arith.constant 0 : index
    %c0_12 = arith.constant 0 : index
    %12 = vector.load %arg9[%c0_11, %c0_12] : memref<128x32xf32, #tpu.memory_space<vmem>>, vector<128x32xf32>
    tpu.vector_store %arg9[%c0_11, %c0_12], %11 {strides = array<i32>} : memref<128x32xf32, #tpu.memory_space<vmem>>, vector<128x32xf32>,
    %c2_i32 = arith.constant 2 : i32
    %13 = arith.cmpi eq, %arg1, %c2_i32 : i32
    %c2_i32_13 = arith.constant 2 : i32
    %14 = arith.cmpi eq, %arg2, %c2_i32_13 : i32
    %15 = arith.andi %13, %14 : i1
    %16 = arith.extui %15 : i1 to i32
    %c0_i32_14 = arith.constant 0 : i32
    %17 = arith.cmpi ne, %16, %c0_i32_14 : i32
    scf.if %17 {
      %c0_15 = arith.constant 0 : index
      %c0_16 = arith.constant 0 : index
      %18 = vector.load %arg9[%c0_15, %c0_16] : memref<128x32xf32, #tpu.memory_space<vmem>>, vector<128x32xf32>
      %c0_17 = arith.constant 0 : index
      %c0_18 = arith.constant 0 : index
      %19 = vector.load %arg5[%c0_17, %c0_18] : memref<128x1xf32, #tpu.memory_space<vmem>>, vector<128x1xf32>
      %20 = vector.broadcast %19 : vector<128x1xf32> to vector<128x32xf32>
      %21 = arith.addf %18, %20 : vector<128x32xf32>
      %cst_19 = arith.constant dense<0.000000e+00> : vector<128xf32>
      %22 = vector.multi_reduction <add>, %21, %cst_19 [1] : vector<128x32xf32> to vector<128xf32>
      %23 = vector.shape_cast %22 : vector<128xf32> to vector<128x1xf32>
      %c0_20 = arith.constant 0 : index
      %c0_21 = arith.constant 0 : index
      %c0_22 = arith.constant 0 : index
      %24 = vector.load %arg7[%c0_20, %c0_21, %c0_22] : memref<1x128x1xf32, #tpu.memory_space<vmem>>, vector<1x128x1xf32>
      %25 = vector.shape_cast %24 : vector<1x128x1xf32> to vector<128x1xf32>
      %26 = vector.shape_cast %23 : vector<128x1xf32> to vector<1x128x1xf32>
      tpu.vector_store %arg7[%c0_20, %c0_21, %c0_22], %26 {strides = array<i32>} : memref<1x128x1xf32, #tpu.memory_space<vmem>>, vector<1x128x1xf32>,
      %27 = arith.mulf %21, %21 : vector<128x32xf32>
      %cst_23 = arith.constant dense<0.000000e+00> : vector<128xf32>
      %28 = vector.multi_reduction <add>, %27, %cst_23 [1] : vector<128x32xf32> to vector<128xf32>
      %29 = vector.shape_cast %28 : vector<128xf32> to vector<128x1xf32>
      %c0_24 = arith.constant 0 : index
      %c0_25 = arith.constant 0 : index
      %c0_26 = arith.constant 0 : index
      %30 = vector.load %arg8[%c0_24, %c0_25, %c0_26] : memref<1x128x1xf32, #tpu.memory_space<vmem>>, vector<1x128x1xf32>
      %31 = vector.shape_cast %30 : vector<1x128x1xf32> to vector<128x1xf32>
      %32 = vector.shape_cast %29 : vector<128x1xf32> to vector<1x128x1xf32>
      tpu.vector_store %arg8[%c0_24, %c0_25, %c0_26], %32 {strides = array<i32>} : memref<1x128x1xf32, #tpu.memory_space<vmem>>, vector<1x128x1xf32>,
      %33 = arith.truncf %21 : vector<128x32xf32> to vector<128x32xbf16>
      %c0_27 = arith.constant 0 : index
      %c0_28 = arith.constant 0 : index
      %34 = vector.load %arg6[%c0_27, %c0_28] : memref<128x32xbf16, #tpu.memory_space<vmem>>, vector<128x32xbf16>
      tpu.vector_store %arg6[%c0_27, %c0_28], %33 {strides = array<i32>} : memref<128x32xbf16, #tpu.memory_space<vmem>>, vector<128x32xbf16>,
    } else {
    }
    return
  }
  func.func @transform_0(%arg0: i32, %arg1: i32, %arg2: i32) -> (i32, i32, i32, i32) {
    %c0_i32 = arith.constant 0 : i32
    %c0_i32_0 = arith.constant 0 : i32
    return %arg1, %arg2, %c0_i32, %arg0 : i32, i32, i32, i32
  }
  func.func @transform_1(%arg0: i32, %arg1: i32, %arg2: i32) -> (i32, i32, i32, i32) {
    %c0_i32 = arith.constant 0 : i32
    %c0_i32_0 = arith.constant 0 : i32
    %c0_i32_1 = arith.constant 0 : i32
    return %arg1, %arg2, %c0_i32, %c0_i32_0 : i32, i32, i32, i32
  }
  func.func @transform_2(%arg0: i32, %arg1: i32, %arg2: i32) -> (i32, i32) {
    %c0_i32 = arith.constant 0 : i32
    %c0_i32_0 = arith.constant 0 : i32
    %c0_i32_1 = arith.constant 0 : i32
    return %c0_i32, %c0_i32_0 : i32, i32
  }
  func.func @transform_3(%arg0: i32, %arg1: i32, %arg2: i32) -> (i32, i32) {
    %c0_i32 = arith.constant 0 : i32
    %c0_i32_0 = arith.constant 0 : i32
    return %c0_i32, %arg0 : i32, i32
  }
  func.func @transform_4(%arg0: i32, %arg1: i32, %arg2: i32) -> (i32, i32, i32) {
    %c0_i32 = arith.constant 0 : i32
    %c0_i32_0 = arith.constant 0 : i32
    %c0_i32_1 = arith.constant 0 : i32
    return %arg0, %c0_i32, %c0_i32_0 : i32, i32, i32
  }
  func.func @transform_5(%arg0: i32, %arg1: i32, %arg2: i32) -> (i32, i32, i32) {
    %c0_i32 = arith.constant 0 : i32
    %c0_i32_0 = arith.constant 0 : i32
    %c0_i32_1 = arith.constant 0 : i32
    return %arg0, %c0_i32, %c0_i32_0 : i32, i32, i32
  }
}

module attributes {stable_mosaic.version = 11 : i64} {
  func.func @_bn_lrelu_kernel(%arg0: i32, %arg1: memref<128x32xbf16, #tpu.memory_space<vmem>>, %arg2: memref<128x1xf32, #tpu.memory_space<vmem>>, %arg3: memref<128x1xf32, #tpu.memory_space<vmem>>, %arg4: memref<128x32xbf16, #tpu.memory_space<vmem>>) attributes {dimension_semantics = [#tpu.dimension_semantics<parallel>], iteration_bounds = array<i64: 1>, scalar_prefetch = 0 : i64, scratch_operands = 0 : i64, tpu.core_type = #tpu.core_type<tc>, window_params = [{transform_indices = @transform_0, window_bounds = array<i64: 128, 32>}, {pipeline_mode = #tpu.pipeline_mode<synchronous>, transform_indices = @transform_1, window_bounds = array<i64: 128, 1>}, {pipeline_mode = #tpu.pipeline_mode<synchronous>, transform_indices = @transform_2, window_bounds = array<i64: 128, 1>}, {transform_indices = @transform_3, window_bounds = array<i64: 128, 32>}]} {
    %c0 = arith.constant 0 : index
    %c0_0 = arith.constant 0 : index
    %0 = vector.load %arg1[%c0, %c0_0] : memref<128x32xbf16, #tpu.memory_space<vmem>>, vector<128x32xbf16>
    %1 = arith.extf %0 : vector<128x32xbf16> to vector<128x32xf32>
    %c0_1 = arith.constant 0 : index
    %c0_2 = arith.constant 0 : index
    %2 = vector.load %arg2[%c0_1, %c0_2] : memref<128x1xf32, #tpu.memory_space<vmem>>, vector<128x1xf32>
    %3 = vector.broadcast %2 : vector<128x1xf32> to vector<128x32xf32>
    %4 = arith.mulf %1, %3 : vector<128x32xf32>
    %c0_3 = arith.constant 0 : index
    %c0_4 = arith.constant 0 : index
    %5 = vector.load %arg3[%c0_3, %c0_4] : memref<128x1xf32, #tpu.memory_space<vmem>>, vector<128x1xf32>
    %6 = vector.broadcast %5 : vector<128x1xf32> to vector<128x32xf32>
    %7 = arith.addf %4, %6 : vector<128x32xf32>
    %cst = arith.constant 0.000000e+00 : f32
    %8 = vector.broadcast %cst : f32 to vector<128x32xf32>
    %9 = arith.cmpf oge, %7, %8 : vector<128x32xf32>
    %cst_5 = arith.constant 2.000000e-01 : f32
    %10 = vector.broadcast %cst_5 : f32 to vector<128x32xf32>
    %11 = arith.mulf %10, %7 : vector<128x32xf32>
    %12 = arith.select %9, %7, %11 : vector<128x32xi1>, vector<128x32xf32>
    %13 = arith.truncf %12 : vector<128x32xf32> to vector<128x32xbf16>
    %c0_6 = arith.constant 0 : index
    %c0_7 = arith.constant 0 : index
    %14 = vector.load %arg4[%c0_6, %c0_7] : memref<128x32xbf16, #tpu.memory_space<vmem>>, vector<128x32xbf16>
    tpu.vector_store %arg4[%c0_6, %c0_7], %13 {strides = array<i32>} : memref<128x32xbf16, #tpu.memory_space<vmem>>, vector<128x32xbf16>,
    return
  }
  func.func @transform_0(%arg0: i32) -> (i32, i32) {
    %c0_i32 = arith.constant 0 : i32
    %c0_i32_0 = arith.constant 0 : i32
    return %c0_i32, %arg0 : i32, i32
  }
  func.func @transform_1(%arg0: i32) -> (i32, i32) {
    %c0_i32 = arith.constant 0 : i32
    %c0_i32_0 = arith.constant 0 : i32
    %c0_i32_1 = arith.constant 0 : i32
    return %c0_i32, %c0_i32_0 : i32, i32
  }
  func.func @transform_2(%arg0: i32) -> (i32, i32) {
    %c0_i32 = arith.constant 0 : i32
    %c0_i32_0 = arith.constant 0 : i32
    %c0_i32_1 = arith.constant 0 : i32
    return %c0_i32, %c0_i32_0 : i32, i32
  }
  func.func @transform_3(%arg0: i32) -> (i32, i32) {
    %c0_i32 = arith.constant 0 : i32
    %c0_i32_0 = arith.constant 0 : i32
    return %c0_i32, %arg0 : i32, i32
  }
}

module attributes {stable_mosaic.version = 11 : i64} {
  func.func @kernel(%arg0: i32, %arg1: i32, %arg2: i32, %arg3: memref<1x1x32x128xbf16, #tpu.memory_space<vmem>>, %arg4: memref<1x1x64x32xbf16, #tpu.memory_space<vmem>>, %arg5: memref<64x1xf32, #tpu.memory_space<vmem>>, %arg6: memref<64x128xbf16, #tpu.memory_space<vmem>>, %arg7: memref<1x64x1xf32, #tpu.memory_space<vmem>>, %arg8: memref<1x64x1xf32, #tpu.memory_space<vmem>>, %arg9: memref<64x128xf32, #tpu.memory_space<vmem>>) attributes {dimension_semantics = [#tpu.dimension_semantics<parallel>, #tpu.dimension_semantics<arbitrary>, #tpu.dimension_semantics<arbitrary>], iteration_bounds = array<i64: 1, 3, 3>, scalar_prefetch = 0 : i64, scratch_operands = 1 : i64, tpu.core_type = #tpu.core_type<tc>, window_params = [{transform_indices = @transform_0, window_bounds = array<i64: 1, 1, 32, 128>}, {transform_indices = @transform_1, window_bounds = array<i64: 1, 1, 64, 32>}, {pipeline_mode = #tpu.pipeline_mode<synchronous>, transform_indices = @transform_2, window_bounds = array<i64: 64, 1>}, {transform_indices = @transform_3, window_bounds = array<i64: 64, 128>}, {transform_indices = @transform_4, window_bounds = array<i64: 1, 64, 1>}, {transform_indices = @transform_5, window_bounds = array<i64: 1, 64, 1>}]} {
    %c0_i32 = arith.constant 0 : i32
    %0 = arith.cmpi eq, %arg1, %c0_i32 : i32
    %c0_i32_0 = arith.constant 0 : i32
    %1 = arith.cmpi eq, %arg2, %c0_i32_0 : i32
    %2 = arith.andi %0, %1 : i1
    %3 = arith.extui %2 : i1 to i32
    %c0_i32_1 = arith.constant 0 : i32
    %4 = arith.cmpi ne, %3, %c0_i32_1 : i32
    scf.if %4 {
      %cst_15 = arith.constant 0.000000e+00 : f32
      %18 = vector.broadcast %cst_15 : f32 to vector<64x128xf32>
      %c0_16 = arith.constant 0 : index
      %c0_17 = arith.constant 0 : index
      %19 = vector.load %arg9[%c0_16, %c0_17] : memref<64x128xf32, #tpu.memory_space<vmem>>, vector<64x128xf32>
      tpu.vector_store %arg9[%c0_16, %c0_17], %18 {strides = array<i32>} : memref<64x128xf32, #tpu.memory_space<vmem>>, vector<64x128xf32>,
    } else {
    }
    %c0 = arith.constant 0 : index
    %c0_2 = arith.constant 0 : index
    %5 = vector.load %arg9[%c0, %c0_2] : memref<64x128xf32, #tpu.memory_space<vmem>>, vector<64x128xf32>
    %c0_3 = arith.constant 0 : index
    %c0_4 = arith.constant 0 : index
    %c0_5 = arith.constant 0 : index
    %c0_6 = arith.constant 0 : index
    %6 = vector.load %arg4[%c0_3, %c0_4, %c0_5, %c0_6] : memref<1x1x64x32xbf16, #tpu.memory_space<vmem>>, vector<1x1x64x32xbf16>
    %7 = vector.shape_cast %6 : vector<1x1x64x32xbf16> to vector<64x32xbf16>
    %c0_7 = arith.constant 0 : index
    %c0_8 = arith.constant 0 : index
    %c0_9 = arith.constant 0 : index
    %c0_10 = arith.constant 0 : index
    %8 = vector.load %arg3[%c0_7, %c0_8, %c0_9, %c0_10] : memref<1x1x32x128xbf16, #tpu.memory_space<vmem>>, vector<1x1x32x128xbf16>
    %9 = vector.shape_cast %8 : vector<1x1x32x128xbf16> to vector<32x128xbf16>
    %cst = arith.constant dense<0.000000e+00> : vector<64x128xf32>
    %10 = tpu.matmul %7, %9, %cst {dimension_numbers = #tpu.dot_dimension_numbers<[1], [0], [0], [1], [0, 0, 1, 1], [], []>} : vector<64x32xbf16>, vector<32x128xbf16>, vector<64x128xf32> -> vector<64x128xf32>
    %11 = arith.addf %5, %10 : vector<64x128xf32>
    %c0_11 = arith.constant 0 : index
    %c0_12 = arith.constant 0 : index
    %12 = vector.load %arg9[%c0_11, %c0_12] : memref<64x128xf32, #tpu.memory_space<vmem>>, vector<64x128xf32>
    tpu.vector_store %arg9[%c0_11, %c0_12], %11 {strides = array<i32>} : memref<64x128xf32, #tpu.memory_space<vmem>>, vector<64x128xf32>,
    %c2_i32 = arith.constant 2 : i32
    %13 = arith.cmpi eq, %arg1, %c2_i32 : i32
    %c2_i32_13 = arith.constant 2 : i32
    %14 = arith.cmpi eq, %arg2, %c2_i32_13 : i32
    %15 = arith.andi %13, %14 : i1
    %16 = arith.extui %15 : i1 to i32
    %c0_i32_14 = arith.constant 0 : i32
    %17 = arith.cmpi ne, %16, %c0_i32_14 : i32
    scf.if %17 {
      %c0_15 = arith.constant 0 : index
      %c0_16 = arith.constant 0 : index
      %18 = vector.load %arg9[%c0_15, %c0_16] : memref<64x128xf32, #tpu.memory_space<vmem>>, vector<64x128xf32>
      %c0_17 = arith.constant 0 : index
      %c0_18 = arith.constant 0 : index
      %19 = vector.load %arg5[%c0_17, %c0_18] : memref<64x1xf32, #tpu.memory_space<vmem>>, vector<64x1xf32>
      %20 = vector.broadcast %19 : vector<64x1xf32> to vector<64x128xf32>
      %21 = arith.addf %18, %20 : vector<64x128xf32>
      %cst_19 = arith.constant dense<0.000000e+00> : vector<64xf32>
      %22 = vector.multi_reduction <add>, %21, %cst_19 [1] : vector<64x128xf32> to vector<64xf32>
      %23 = vector.shape_cast %22 : vector<64xf32> to vector<64x1xf32>
      %c0_20 = arith.constant 0 : index
      %c0_21 = arith.constant 0 : index
      %c0_22 = arith.constant 0 : index
      %24 = vector.load %arg7[%c0_20, %c0_21, %c0_22] : memref<1x64x1xf32, #tpu.memory_space<vmem>>, vector<1x64x1xf32>
      %25 = vector.shape_cast %24 : vector<1x64x1xf32> to vector<64x1xf32>
      %26 = vector.shape_cast %23 : vector<64x1xf32> to vector<1x64x1xf32>
      tpu.vector_store %arg7[%c0_20, %c0_21, %c0_22], %26 {strides = array<i32>} : memref<1x64x1xf32, #tpu.memory_space<vmem>>, vector<1x64x1xf32>,
      %27 = arith.mulf %21, %21 : vector<64x128xf32>
      %cst_23 = arith.constant dense<0.000000e+00> : vector<64xf32>
      %28 = vector.multi_reduction <add>, %27, %cst_23 [1] : vector<64x128xf32> to vector<64xf32>
      %29 = vector.shape_cast %28 : vector<64xf32> to vector<64x1xf32>
      %c0_24 = arith.constant 0 : index
      %c0_25 = arith.constant 0 : index
      %c0_26 = arith.constant 0 : index
      %30 = vector.load %arg8[%c0_24, %c0_25, %c0_26] : memref<1x64x1xf32, #tpu.memory_space<vmem>>, vector<1x64x1xf32>
      %31 = vector.shape_cast %30 : vector<1x64x1xf32> to vector<64x1xf32>
      %32 = vector.shape_cast %29 : vector<64x1xf32> to vector<1x64x1xf32>
      tpu.vector_store %arg8[%c0_24, %c0_25, %c0_26], %32 {strides = array<i32>} : memref<1x64x1xf32, #tpu.memory_space<vmem>>, vector<1x64x1xf32>,
      %33 = arith.truncf %21 : vector<64x128xf32> to vector<64x128xbf16>
      %c0_27 = arith.constant 0 : index
      %c0_28 = arith.constant 0 : index
      %34 = vector.load %arg6[%c0_27, %c0_28] : memref<64x128xbf16, #tpu.memory_space<vmem>>, vector<64x128xbf16>
      tpu.vector_store %arg6[%c0_27, %c0_28], %33 {strides = array<i32>} : memref<64x128xbf16, #tpu.memory_space<vmem>>, vector<64x128xbf16>,
    } else {
    }
    return
  }
  func.func @transform_0(%arg0: i32, %arg1: i32, %arg2: i32) -> (i32, i32, i32, i32) {
    %c0_i32 = arith.constant 0 : i32
    %c0_i32_0 = arith.constant 0 : i32
    return %arg1, %arg2, %c0_i32, %arg0 : i32, i32, i32, i32
  }
  func.func @transform_1(%arg0: i32, %arg1: i32, %arg2: i32) -> (i32, i32, i32, i32) {
    %c0_i32 = arith.constant 0 : i32
    %c0_i32_0 = arith.constant 0 : i32
    %c0_i32_1 = arith.constant 0 : i32
    return %arg1, %arg2, %c0_i32, %c0_i32_0 : i32, i32, i32, i32
  }
  func.func @transform_2(%arg0: i32, %arg1: i32, %arg2: i32) -> (i32, i32) {
    %c0_i32 = arith.constant 0 : i32
    %c0_i32_0 = arith.constant 0 : i32
    %c0_i32_1 = arith.constant 0 : i32
    return %c0_i32, %c0_i32_0 : i32, i32
  }
  func.func @transform_3(%arg0: i32, %arg1: i32, %arg2: i32) -> (i32, i32) {
    %c0_i32 = arith.constant 0 : i32
    %c0_i32_0 = arith.constant 0 : i32
    return %c0_i32, %arg0 : i32, i32
  }
  func.func @transform_4(%arg0: i32, %arg1: i32, %arg2: i32) -> (i32, i32, i32) {
    %c0_i32 = arith.constant 0 : i32
    %c0_i32_0 = arith.constant 0 : i32
    %c0_i32_1 = arith.constant 0 : i32
    return %arg0, %c0_i32, %c0_i32_0 : i32, i32, i32
  }
  func.func @transform_5(%arg0: i32, %arg1: i32, %arg2: i32) -> (i32, i32, i32) {
    %c0_i32 = arith.constant 0 : i32
    %c0_i32_0 = arith.constant 0 : i32
    %c0_i32_1 = arith.constant 0 : i32
    return %arg0, %c0_i32, %c0_i32_0 : i32, i32, i32
  }
}

module attributes {stable_mosaic.version = 11 : i64} {
  func.func @_bn_lrelu_kernel(%arg0: i32, %arg1: memref<64x128xbf16, #tpu.memory_space<vmem>>, %arg2: memref<64x1xf32, #tpu.memory_space<vmem>>, %arg3: memref<64x1xf32, #tpu.memory_space<vmem>>, %arg4: memref<64x128xbf16, #tpu.memory_space<vmem>>) attributes {dimension_semantics = [#tpu.dimension_semantics<parallel>], iteration_bounds = array<i64: 1>, scalar_prefetch = 0 : i64, scratch_operands = 0 : i64, tpu.core_type = #tpu.core_type<tc>, window_params = [{transform_indices = @transform_0, window_bounds = array<i64: 64, 128>}, {pipeline_mode = #tpu.pipeline_mode<synchronous>, transform_indices = @transform_1, window_bounds = array<i64: 64, 1>}, {pipeline_mode = #tpu.pipeline_mode<synchronous>, transform_indices = @transform_2, window_bounds = array<i64: 64, 1>}, {transform_indices = @transform_3, window_bounds = array<i64: 64, 128>}]} {
    %c0 = arith.constant 0 : index
    %c0_0 = arith.constant 0 : index
    %0 = vector.load %arg1[%c0, %c0_0] : memref<64x128xbf16, #tpu.memory_space<vmem>>, vector<64x128xbf16>
    %1 = arith.extf %0 : vector<64x128xbf16> to vector<64x128xf32>
    %c0_1 = arith.constant 0 : index
    %c0_2 = arith.constant 0 : index
    %2 = vector.load %arg2[%c0_1, %c0_2] : memref<64x1xf32, #tpu.memory_space<vmem>>, vector<64x1xf32>
    %3 = vector.broadcast %2 : vector<64x1xf32> to vector<64x128xf32>
    %4 = arith.mulf %1, %3 : vector<64x128xf32>
    %c0_3 = arith.constant 0 : index
    %c0_4 = arith.constant 0 : index
    %5 = vector.load %arg3[%c0_3, %c0_4] : memref<64x1xf32, #tpu.memory_space<vmem>>, vector<64x1xf32>
    %6 = vector.broadcast %5 : vector<64x1xf32> to vector<64x128xf32>
    %7 = arith.addf %4, %6 : vector<64x128xf32>
    %cst = arith.constant 0.000000e+00 : f32
    %8 = vector.broadcast %cst : f32 to vector<64x128xf32>
    %9 = arith.cmpf oge, %7, %8 : vector<64x128xf32>
    %cst_5 = arith.constant 2.000000e-01 : f32
    %10 = vector.broadcast %cst_5 : f32 to vector<64x128xf32>
    %11 = arith.mulf %10, %7 : vector<64x128xf32>
    %12 = arith.select %9, %7, %11 : vector<64x128xi1>, vector<64x128xf32>
    %13 = arith.truncf %12 : vector<64x128xf32> to vector<64x128xbf16>
    %c0_6 = arith.constant 0 : index
    %c0_7 = arith.constant 0 : index
    %14 = vector.load %arg4[%c0_6, %c0_7] : memref<64x128xbf16, #tpu.memory_space<vmem>>, vector<64x128xbf16>
    tpu.vector_store %arg4[%c0_6, %c0_7], %13 {strides = array<i32>} : memref<64x128xbf16, #tpu.memory_space<vmem>>, vector<64x128xbf16>,
    return
  }
  func.func @transform_0(%arg0: i32) -> (i32, i32) {
    %c0_i32 = arith.constant 0 : i32
    %c0_i32_0 = arith.constant 0 : i32
    return %c0_i32, %arg0 : i32, i32
  }
  func.func @transform_1(%arg0: i32) -> (i32, i32) {
    %c0_i32 = arith.constant 0 : i32
    %c0_i32_0 = arith.constant 0 : i32
    %c0_i32_1 = arith.constant 0 : i32
    return %c0_i32, %c0_i32_0 : i32, i32
  }
  func.func @transform_2(%arg0: i32) -> (i32, i32) {
    %c0_i32 = arith.constant 0 : i32
    %c0_i32_0 = arith.constant 0 : i32
    %c0_i32_1 = arith.constant 0 : i32
    return %c0_i32, %c0_i32_0 : i32, i32
  }
  func.func @transform_3(%arg0: i32) -> (i32, i32) {
    %c0_i32 = arith.constant 0 : i32
    %c0_i32_0 = arith.constant 0 : i32
    return %c0_i32, %arg0 : i32, i32
  }
}

module attributes {stable_mosaic.version = 11 : i64} {
  func.func @kernel(%arg0: i32, %arg1: i32, %arg2: i32, %arg3: memref<1x1x16x512xbf16, #tpu.memory_space<vmem>>, %arg4: memref<1x1x32x16xbf16, #tpu.memory_space<vmem>>, %arg5: memref<32x1xf32, #tpu.memory_space<vmem>>, %arg6: memref<32x512xbf16, #tpu.memory_space<vmem>>, %arg7: memref<1x32x1xf32, #tpu.memory_space<vmem>>, %arg8: memref<1x32x1xf32, #tpu.memory_space<vmem>>, %arg9: memref<32x512xf32, #tpu.memory_space<vmem>>) attributes {dimension_semantics = [#tpu.dimension_semantics<parallel>, #tpu.dimension_semantics<arbitrary>, #tpu.dimension_semantics<arbitrary>], iteration_bounds = array<i64: 1, 3, 3>, scalar_prefetch = 0 : i64, scratch_operands = 1 : i64, tpu.core_type = #tpu.core_type<tc>, window_params = [{transform_indices = @transform_0, window_bounds = array<i64: 1, 1, 16, 512>}, {transform_indices = @transform_1, window_bounds = array<i64: 1, 1, 32, 16>}, {pipeline_mode = #tpu.pipeline_mode<synchronous>, transform_indices = @transform_2, window_bounds = array<i64: 32, 1>}, {transform_indices = @transform_3, window_bounds = array<i64: 32, 512>}, {transform_indices = @transform_4, window_bounds = array<i64: 1, 32, 1>}, {transform_indices = @transform_5, window_bounds = array<i64: 1, 32, 1>}]} {
    %c0_i32 = arith.constant 0 : i32
    %0 = arith.cmpi eq, %arg1, %c0_i32 : i32
    %c0_i32_0 = arith.constant 0 : i32
    %1 = arith.cmpi eq, %arg2, %c0_i32_0 : i32
    %2 = arith.andi %0, %1 : i1
    %3 = arith.extui %2 : i1 to i32
    %c0_i32_1 = arith.constant 0 : i32
    %4 = arith.cmpi ne, %3, %c0_i32_1 : i32
    scf.if %4 {
      %cst_15 = arith.constant 0.000000e+00 : f32
      %18 = vector.broadcast %cst_15 : f32 to vector<32x512xf32>
      %c0_16 = arith.constant 0 : index
      %c0_17 = arith.constant 0 : index
      %19 = vector.load %arg9[%c0_16, %c0_17] : memref<32x512xf32, #tpu.memory_space<vmem>>, vector<32x512xf32>
      tpu.vector_store %arg9[%c0_16, %c0_17], %18 {strides = array<i32>} : memref<32x512xf32, #tpu.memory_space<vmem>>, vector<32x512xf32>,
    } else {
    }
    %c0 = arith.constant 0 : index
    %c0_2 = arith.constant 0 : index
    %5 = vector.load %arg9[%c0, %c0_2] : memref<32x512xf32, #tpu.memory_space<vmem>>, vector<32x512xf32>
    %c0_3 = arith.constant 0 : index
    %c0_4 = arith.constant 0 : index
    %c0_5 = arith.constant 0 : index
    %c0_6 = arith.constant 0 : index
    %6 = vector.load %arg4[%c0_3, %c0_4, %c0_5, %c0_6] : memref<1x1x32x16xbf16, #tpu.memory_space<vmem>>, vector<1x1x32x16xbf16>
    %7 = vector.shape_cast %6 : vector<1x1x32x16xbf16> to vector<32x16xbf16>
    %c0_7 = arith.constant 0 : index
    %c0_8 = arith.constant 0 : index
    %c0_9 = arith.constant 0 : index
    %c0_10 = arith.constant 0 : index
    %8 = vector.load %arg3[%c0_7, %c0_8, %c0_9, %c0_10] : memref<1x1x16x512xbf16, #tpu.memory_space<vmem>>, vector<1x1x16x512xbf16>
    %9 = vector.shape_cast %8 : vector<1x1x16x512xbf16> to vector<16x512xbf16>
    %cst = arith.constant dense<0.000000e+00> : vector<32x512xf32>
    %10 = tpu.matmul %7, %9, %cst {dimension_numbers = #tpu.dot_dimension_numbers<[1], [0], [0], [1], [0, 0, 1, 1], [], []>} : vector<32x16xbf16>, vector<16x512xbf16>, vector<32x512xf32> -> vector<32x512xf32>
    %11 = arith.addf %5, %10 : vector<32x512xf32>
    %c0_11 = arith.constant 0 : index
    %c0_12 = arith.constant 0 : index
    %12 = vector.load %arg9[%c0_11, %c0_12] : memref<32x512xf32, #tpu.memory_space<vmem>>, vector<32x512xf32>
    tpu.vector_store %arg9[%c0_11, %c0_12], %11 {strides = array<i32>} : memref<32x512xf32, #tpu.memory_space<vmem>>, vector<32x512xf32>,
    %c2_i32 = arith.constant 2 : i32
    %13 = arith.cmpi eq, %arg1, %c2_i32 : i32
    %c2_i32_13 = arith.constant 2 : i32
    %14 = arith.cmpi eq, %arg2, %c2_i32_13 : i32
    %15 = arith.andi %13, %14 : i1
    %16 = arith.extui %15 : i1 to i32
    %c0_i32_14 = arith.constant 0 : i32
    %17 = arith.cmpi ne, %16, %c0_i32_14 : i32
    scf.if %17 {
      %c0_15 = arith.constant 0 : index
      %c0_16 = arith.constant 0 : index
      %18 = vector.load %arg9[%c0_15, %c0_16] : memref<32x512xf32, #tpu.memory_space<vmem>>, vector<32x512xf32>
      %c0_17 = arith.constant 0 : index
      %c0_18 = arith.constant 0 : index
      %19 = vector.load %arg5[%c0_17, %c0_18] : memref<32x1xf32, #tpu.memory_space<vmem>>, vector<32x1xf32>
      %20 = vector.broadcast %19 : vector<32x1xf32> to vector<32x512xf32>
      %21 = arith.addf %18, %20 : vector<32x512xf32>
      %cst_19 = arith.constant dense<0.000000e+00> : vector<32xf32>
      %22 = vector.multi_reduction <add>, %21, %cst_19 [1] : vector<32x512xf32> to vector<32xf32>
      %23 = vector.shape_cast %22 : vector<32xf32> to vector<32x1xf32>
      %c0_20 = arith.constant 0 : index
      %c0_21 = arith.constant 0 : index
      %c0_22 = arith.constant 0 : index
      %24 = vector.load %arg7[%c0_20, %c0_21, %c0_22] : memref<1x32x1xf32, #tpu.memory_space<vmem>>, vector<1x32x1xf32>
      %25 = vector.shape_cast %24 : vector<1x32x1xf32> to vector<32x1xf32>
      %26 = vector.shape_cast %23 : vector<32x1xf32> to vector<1x32x1xf32>
      tpu.vector_store %arg7[%c0_20, %c0_21, %c0_22], %26 {strides = array<i32>} : memref<1x32x1xf32, #tpu.memory_space<vmem>>, vector<1x32x1xf32>,
      %27 = arith.mulf %21, %21 : vector<32x512xf32>
      %cst_23 = arith.constant dense<0.000000e+00> : vector<32xf32>
      %28 = vector.multi_reduction <add>, %27, %cst_23 [1] : vector<32x512xf32> to vector<32xf32>
      %29 = vector.shape_cast %28 : vector<32xf32> to vector<32x1xf32>
      %c0_24 = arith.constant 0 : index
      %c0_25 = arith.constant 0 : index
      %c0_26 = arith.constant 0 : index
      %30 = vector.load %arg8[%c0_24, %c0_25, %c0_26] : memref<1x32x1xf32, #tpu.memory_space<vmem>>, vector<1x32x1xf32>
      %31 = vector.shape_cast %30 : vector<1x32x1xf32> to vector<32x1xf32>
      %32 = vector.shape_cast %29 : vector<32x1xf32> to vector<1x32x1xf32>
      tpu.vector_store %arg8[%c0_24, %c0_25, %c0_26], %32 {strides = array<i32>} : memref<1x32x1xf32, #tpu.memory_space<vmem>>, vector<1x32x1xf32>,
      %33 = arith.truncf %21 : vector<32x512xf32> to vector<32x512xbf16>
      %c0_27 = arith.constant 0 : index
      %c0_28 = arith.constant 0 : index
      %34 = vector.load %arg6[%c0_27, %c0_28] : memref<32x512xbf16, #tpu.memory_space<vmem>>, vector<32x512xbf16>
      tpu.vector_store %arg6[%c0_27, %c0_28], %33 {strides = array<i32>} : memref<32x512xbf16, #tpu.memory_space<vmem>>, vector<32x512xbf16>,
    } else {
    }
    return
  }
  func.func @transform_0(%arg0: i32, %arg1: i32, %arg2: i32) -> (i32, i32, i32, i32) {
    %c0_i32 = arith.constant 0 : i32
    %c0_i32_0 = arith.constant 0 : i32
    return %arg1, %arg2, %c0_i32, %arg0 : i32, i32, i32, i32
  }
  func.func @transform_1(%arg0: i32, %arg1: i32, %arg2: i32) -> (i32, i32, i32, i32) {
    %c0_i32 = arith.constant 0 : i32
    %c0_i32_0 = arith.constant 0 : i32
    %c0_i32_1 = arith.constant 0 : i32
    return %arg1, %arg2, %c0_i32, %c0_i32_0 : i32, i32, i32, i32
  }
  func.func @transform_2(%arg0: i32, %arg1: i32, %arg2: i32) -> (i32, i32) {
    %c0_i32 = arith.constant 0 : i32
    %c0_i32_0 = arith.constant 0 : i32
    %c0_i32_1 = arith.constant 0 : i32
    return %c0_i32, %c0_i32_0 : i32, i32
  }
  func.func @transform_3(%arg0: i32, %arg1: i32, %arg2: i32) -> (i32, i32) {
    %c0_i32 = arith.constant 0 : i32
    %c0_i32_0 = arith.constant 0 : i32
    return %c0_i32, %arg0 : i32, i32
  }
  func.func @transform_4(%arg0: i32, %arg1: i32, %arg2: i32) -> (i32, i32, i32) {
    %c0_i32 = arith.constant 0 : i32
    %c0_i32_0 = arith.constant 0 : i32
    %c0_i32_1 = arith.constant 0 : i32
    return %arg0, %c0_i32, %c0_i32_0 : i32, i32, i32
  }
  func.func @transform_5(%arg0: i32, %arg1: i32, %arg2: i32) -> (i32, i32, i32) {
    %c0_i32 = arith.constant 0 : i32
    %c0_i32_0 = arith.constant 0 : i32
    %c0_i32_1 = arith.constant 0 : i32
    return %arg0, %c0_i32, %c0_i32_0 : i32, i32, i32
  }
}

module attributes {stable_mosaic.version = 11 : i64} {
  func.func @_bn_lrelu_kernel(%arg0: i32, %arg1: memref<32x512xbf16, #tpu.memory_space<vmem>>, %arg2: memref<32x1xf32, #tpu.memory_space<vmem>>, %arg3: memref<32x1xf32, #tpu.memory_space<vmem>>, %arg4: memref<32x512xbf16, #tpu.memory_space<vmem>>) attributes {dimension_semantics = [#tpu.dimension_semantics<parallel>], iteration_bounds = array<i64: 1>, scalar_prefetch = 0 : i64, scratch_operands = 0 : i64, tpu.core_type = #tpu.core_type<tc>, window_params = [{transform_indices = @transform_0, window_bounds = array<i64: 32, 512>}, {pipeline_mode = #tpu.pipeline_mode<synchronous>, transform_indices = @transform_1, window_bounds = array<i64: 32, 1>}, {pipeline_mode = #tpu.pipeline_mode<synchronous>, transform_indices = @transform_2, window_bounds = array<i64: 32, 1>}, {transform_indices = @transform_3, window_bounds = array<i64: 32, 512>}]} {
    %c0 = arith.constant 0 : index
    %c0_0 = arith.constant 0 : index
    %0 = vector.load %arg1[%c0, %c0_0] : memref<32x512xbf16, #tpu.memory_space<vmem>>, vector<32x512xbf16>
    %1 = arith.extf %0 : vector<32x512xbf16> to vector<32x512xf32>
    %c0_1 = arith.constant 0 : index
    %c0_2 = arith.constant 0 : index
    %2 = vector.load %arg2[%c0_1, %c0_2] : memref<32x1xf32, #tpu.memory_space<vmem>>, vector<32x1xf32>
    %3 = vector.broadcast %2 : vector<32x1xf32> to vector<32x512xf32>
    %4 = arith.mulf %1, %3 : vector<32x512xf32>
    %c0_3 = arith.constant 0 : index
    %c0_4 = arith.constant 0 : index
    %5 = vector.load %arg3[%c0_3, %c0_4] : memref<32x1xf32, #tpu.memory_space<vmem>>, vector<32x1xf32>
    %6 = vector.broadcast %5 : vector<32x1xf32> to vector<32x512xf32>
    %7 = arith.addf %4, %6 : vector<32x512xf32>
    %cst = arith.constant 0.000000e+00 : f32
    %8 = vector.broadcast %cst : f32 to vector<32x512xf32>
    %9 = arith.cmpf oge, %7, %8 : vector<32x512xf32>
    %cst_5 = arith.constant 2.000000e-01 : f32
    %10 = vector.broadcast %cst_5 : f32 to vector<32x512xf32>
    %11 = arith.mulf %10, %7 : vector<32x512xf32>
    %12 = arith.select %9, %7, %11 : vector<32x512xi1>, vector<32x512xf32>
    %13 = arith.truncf %12 : vector<32x512xf32> to vector<32x512xbf16>
    %c0_6 = arith.constant 0 : index
    %c0_7 = arith.constant 0 : index
    %14 = vector.load %arg4[%c0_6, %c0_7] : memref<32x512xbf16, #tpu.memory_space<vmem>>, vector<32x512xbf16>
    tpu.vector_store %arg4[%c0_6, %c0_7], %13 {strides = array<i32>} : memref<32x512xbf16, #tpu.memory_space<vmem>>, vector<32x512xbf16>,
    return
  }
  func.func @transform_0(%arg0: i32) -> (i32, i32) {
    %c0_i32 = arith.constant 0 : i32
    %c0_i32_0 = arith.constant 0 : i32
    return %c0_i32, %arg0 : i32, i32
  }
  func.func @transform_1(%arg0: i32) -> (i32, i32) {
    %c0_i32 = arith.constant 0 : i32
    %c0_i32_0 = arith.constant 0 : i32
    %c0_i32_1 = arith.constant 0 : i32
    return %c0_i32, %c0_i32_0 : i32, i32
  }
  func.func @transform_2(%arg0: i32) -> (i32, i32) {
    %c0_i32 = arith.constant 0 : i32
    %c0_i32_0 = arith.constant 0 : i32
    %c0_i32_1 = arith.constant 0 : i32
    return %c0_i32, %c0_i32_0 : i32, i32
  }
  func.func @transform_3(%arg0: i32) -> (i32, i32) {
    %c0_i32 = arith.constant 0 : i32
    %c0_i32_0 = arith.constant 0 : i32
    return %c0_i32, %arg0 : i32, i32
  }
}

module attributes {stable_mosaic.version = 11 : i64} {
  func.func @kernel(%arg0: i32, %arg1: i32, %arg2: i32, %arg3: memref<1x1x8x2048xbf16, #tpu.memory_space<vmem>>, %arg4: memref<1x1x16x8xbf16, #tpu.memory_space<vmem>>, %arg5: memref<16x1xf32, #tpu.memory_space<vmem>>, %arg6: memref<16x2048xbf16, #tpu.memory_space<vmem>>, %arg7: memref<1x16x1xf32, #tpu.memory_space<vmem>>, %arg8: memref<1x16x1xf32, #tpu.memory_space<vmem>>, %arg9: memref<16x2048xf32, #tpu.memory_space<vmem>>) attributes {dimension_semantics = [#tpu.dimension_semantics<parallel>, #tpu.dimension_semantics<arbitrary>, #tpu.dimension_semantics<arbitrary>], iteration_bounds = array<i64: 1, 3, 3>, scalar_prefetch = 0 : i64, scratch_operands = 1 : i64, tpu.core_type = #tpu.core_type<tc>, window_params = [{transform_indices = @transform_0, window_bounds = array<i64: 1, 1, 8, 2048>}, {transform_indices = @transform_1, window_bounds = array<i64: 1, 1, 16, 8>}, {pipeline_mode = #tpu.pipeline_mode<synchronous>, transform_indices = @transform_2, window_bounds = array<i64: 16, 1>}, {transform_indices = @transform_3, window_bounds = array<i64: 16, 2048>}, {transform_indices = @transform_4, window_bounds = array<i64: 1, 16, 1>}, {transform_indices = @transform_5, window_bounds = array<i64: 1, 16, 1>}]} {
    %c0_i32 = arith.constant 0 : i32
    %0 = arith.cmpi eq, %arg1, %c0_i32 : i32
    %c0_i32_0 = arith.constant 0 : i32
    %1 = arith.cmpi eq, %arg2, %c0_i32_0 : i32
    %2 = arith.andi %0, %1 : i1
    %3 = arith.extui %2 : i1 to i32
    %c0_i32_1 = arith.constant 0 : i32
    %4 = arith.cmpi ne, %3, %c0_i32_1 : i32
    scf.if %4 {
      %cst_15 = arith.constant 0.000000e+00 : f32
      %18 = vector.broadcast %cst_15 : f32 to vector<16x2048xf32>
      %c0_16 = arith.constant 0 : index
      %c0_17 = arith.constant 0 : index
      %19 = vector.load %arg9[%c0_16, %c0_17] : memref<16x2048xf32, #tpu.memory_space<vmem>>, vector<16x2048xf32>
      tpu.vector_store %arg9[%c0_16, %c0_17], %18 {strides = array<i32>} : memref<16x2048xf32, #tpu.memory_space<vmem>>, vector<16x2048xf32>,
    } else {
    }
    %c0 = arith.constant 0 : index
    %c0_2 = arith.constant 0 : index
    %5 = vector.load %arg9[%c0, %c0_2] : memref<16x2048xf32, #tpu.memory_space<vmem>>, vector<16x2048xf32>
    %c0_3 = arith.constant 0 : index
    %c0_4 = arith.constant 0 : index
    %c0_5 = arith.constant 0 : index
    %c0_6 = arith.constant 0 : index
    %6 = vector.load %arg4[%c0_3, %c0_4, %c0_5, %c0_6] : memref<1x1x16x8xbf16, #tpu.memory_space<vmem>>, vector<1x1x16x8xbf16>
    %7 = vector.shape_cast %6 : vector<1x1x16x8xbf16> to vector<16x8xbf16>
    %c0_7 = arith.constant 0 : index
    %c0_8 = arith.constant 0 : index
    %c0_9 = arith.constant 0 : index
    %c0_10 = arith.constant 0 : index
    %8 = vector.load %arg3[%c0_7, %c0_8, %c0_9, %c0_10] : memref<1x1x8x2048xbf16, #tpu.memory_space<vmem>>, vector<1x1x8x2048xbf16>
    %9 = vector.shape_cast %8 : vector<1x1x8x2048xbf16> to vector<8x2048xbf16>
    %cst = arith.constant dense<0.000000e+00> : vector<16x2048xf32>
    %10 = tpu.matmul %7, %9, %cst {dimension_numbers = #tpu.dot_dimension_numbers<[1], [0], [0], [1], [0, 0, 1, 1], [], []>} : vector<16x8xbf16>, vector<8x2048xbf16>, vector<16x2048xf32> -> vector<16x2048xf32>
    %11 = arith.addf %5, %10 : vector<16x2048xf32>
    %c0_11 = arith.constant 0 : index
    %c0_12 = arith.constant 0 : index
    %12 = vector.load %arg9[%c0_11, %c0_12] : memref<16x2048xf32, #tpu.memory_space<vmem>>, vector<16x2048xf32>
    tpu.vector_store %arg9[%c0_11, %c0_12], %11 {strides = array<i32>} : memref<16x2048xf32, #tpu.memory_space<vmem>>, vector<16x2048xf32>,
    %c2_i32 = arith.constant 2 : i32
    %13 = arith.cmpi eq, %arg1, %c2_i32 : i32
    %c2_i32_13 = arith.constant 2 : i32
    %14 = arith.cmpi eq, %arg2, %c2_i32_13 : i32
    %15 = arith.andi %13, %14 : i1
    %16 = arith.extui %15 : i1 to i32
    %c0_i32_14 = arith.constant 0 : i32
    %17 = arith.cmpi ne, %16, %c0_i32_14 : i32
    scf.if %17 {
      %c0_15 = arith.constant 0 : index
      %c0_16 = arith.constant 0 : index
      %18 = vector.load %arg9[%c0_15, %c0_16] : memref<16x2048xf32, #tpu.memory_space<vmem>>, vector<16x2048xf32>
      %c0_17 = arith.constant 0 : index
      %c0_18 = arith.constant 0 : index
      %19 = vector.load %arg5[%c0_17, %c0_18] : memref<16x1xf32, #tpu.memory_space<vmem>>, vector<16x1xf32>
      %20 = vector.broadcast %19 : vector<16x1xf32> to vector<16x2048xf32>
      %21 = arith.addf %18, %20 : vector<16x2048xf32>
      %cst_19 = arith.constant dense<0.000000e+00> : vector<16xf32>
      %22 = vector.multi_reduction <add>, %21, %cst_19 [1] : vector<16x2048xf32> to vector<16xf32>
      %23 = vector.shape_cast %22 : vector<16xf32> to vector<16x1xf32>
      %c0_20 = arith.constant 0 : index
      %c0_21 = arith.constant 0 : index
      %c0_22 = arith.constant 0 : index
      %24 = vector.load %arg7[%c0_20, %c0_21, %c0_22] : memref<1x16x1xf32, #tpu.memory_space<vmem>>, vector<1x16x1xf32>
      %25 = vector.shape_cast %24 : vector<1x16x1xf32> to vector<16x1xf32>
      %26 = vector.shape_cast %23 : vector<16x1xf32> to vector<1x16x1xf32>
      tpu.vector_store %arg7[%c0_20, %c0_21, %c0_22], %26 {strides = array<i32>} : memref<1x16x1xf32, #tpu.memory_space<vmem>>, vector<1x16x1xf32>,
      %27 = arith.mulf %21, %21 : vector<16x2048xf32>
      %cst_23 = arith.constant dense<0.000000e+00> : vector<16xf32>
      %28 = vector.multi_reduction <add>, %27, %cst_23 [1] : vector<16x2048xf32> to vector<16xf32>
      %29 = vector.shape_cast %28 : vector<16xf32> to vector<16x1xf32>
      %c0_24 = arith.constant 0 : index
      %c0_25 = arith.constant 0 : index
      %c0_26 = arith.constant 0 : index
      %30 = vector.load %arg8[%c0_24, %c0_25, %c0_26] : memref<1x16x1xf32, #tpu.memory_space<vmem>>, vector<1x16x1xf32>
      %31 = vector.shape_cast %30 : vector<1x16x1xf32> to vector<16x1xf32>
      %32 = vector.shape_cast %29 : vector<16x1xf32> to vector<1x16x1xf32>
      tpu.vector_store %arg8[%c0_24, %c0_25, %c0_26], %32 {strides = array<i32>} : memref<1x16x1xf32, #tpu.memory_space<vmem>>, vector<1x16x1xf32>,
      %33 = arith.truncf %21 : vector<16x2048xf32> to vector<16x2048xbf16>
      %c0_27 = arith.constant 0 : index
      %c0_28 = arith.constant 0 : index
      %34 = vector.load %arg6[%c0_27, %c0_28] : memref<16x2048xbf16, #tpu.memory_space<vmem>>, vector<16x2048xbf16>
      tpu.vector_store %arg6[%c0_27, %c0_28], %33 {strides = array<i32>} : memref<16x2048xbf16, #tpu.memory_space<vmem>>, vector<16x2048xbf16>,
    } else {
    }
    return
  }
  func.func @transform_0(%arg0: i32, %arg1: i32, %arg2: i32) -> (i32, i32, i32, i32) {
    %c0_i32 = arith.constant 0 : i32
    %c0_i32_0 = arith.constant 0 : i32
    return %arg1, %arg2, %c0_i32, %arg0 : i32, i32, i32, i32
  }
  func.func @transform_1(%arg0: i32, %arg1: i32, %arg2: i32) -> (i32, i32, i32, i32) {
    %c0_i32 = arith.constant 0 : i32
    %c0_i32_0 = arith.constant 0 : i32
    %c0_i32_1 = arith.constant 0 : i32
    return %arg1, %arg2, %c0_i32, %c0_i32_0 : i32, i32, i32, i32
  }
  func.func @transform_2(%arg0: i32, %arg1: i32, %arg2: i32) -> (i32, i32) {
    %c0_i32 = arith.constant 0 : i32
    %c0_i32_0 = arith.constant 0 : i32
    %c0_i32_1 = arith.constant 0 : i32
    return %c0_i32, %c0_i32_0 : i32, i32
  }
  func.func @transform_3(%arg0: i32, %arg1: i32, %arg2: i32) -> (i32, i32) {
    %c0_i32 = arith.constant 0 : i32
    %c0_i32_0 = arith.constant 0 : i32
    return %c0_i32, %arg0 : i32, i32
  }
  func.func @transform_4(%arg0: i32, %arg1: i32, %arg2: i32) -> (i32, i32, i32) {
    %c0_i32 = arith.constant 0 : i32
    %c0_i32_0 = arith.constant 0 : i32
    %c0_i32_1 = arith.constant 0 : i32
    return %arg0, %c0_i32, %c0_i32_0 : i32, i32, i32
  }
  func.func @transform_5(%arg0: i32, %arg1: i32, %arg2: i32) -> (i32, i32, i32) {
    %c0_i32 = arith.constant 0 : i32
    %c0_i32_0 = arith.constant 0 : i32
    %c0_i32_1 = arith.constant 0 : i32
    return %arg0, %c0_i32, %c0_i32_0 : i32, i32, i32
  }
}

module attributes {stable_mosaic.version = 11 : i64} {
  func.func @_bn_lrelu_kernel(%arg0: i32, %arg1: memref<16x2048xbf16, #tpu.memory_space<vmem>>, %arg2: memref<16x1xf32, #tpu.memory_space<vmem>>, %arg3: memref<16x1xf32, #tpu.memory_space<vmem>>, %arg4: memref<16x2048xbf16, #tpu.memory_space<vmem>>) attributes {dimension_semantics = [#tpu.dimension_semantics<parallel>], iteration_bounds = array<i64: 1>, scalar_prefetch = 0 : i64, scratch_operands = 0 : i64, tpu.core_type = #tpu.core_type<tc>, window_params = [{transform_indices = @transform_0, window_bounds = array<i64: 16, 2048>}, {pipeline_mode = #tpu.pipeline_mode<synchronous>, transform_indices = @transform_1, window_bounds = array<i64: 16, 1>}, {pipeline_mode = #tpu.pipeline_mode<synchronous>, transform_indices = @transform_2, window_bounds = array<i64: 16, 1>}, {transform_indices = @transform_3, window_bounds = array<i64: 16, 2048>}]} {
    %c0 = arith.constant 0 : index
    %c0_0 = arith.constant 0 : index
    %0 = vector.load %arg1[%c0, %c0_0] : memref<16x2048xbf16, #tpu.memory_space<vmem>>, vector<16x2048xbf16>
    %1 = arith.extf %0 : vector<16x2048xbf16> to vector<16x2048xf32>
    %c0_1 = arith.constant 0 : index
    %c0_2 = arith.constant 0 : index
    %2 = vector.load %arg2[%c0_1, %c0_2] : memref<16x1xf32, #tpu.memory_space<vmem>>, vector<16x1xf32>
    %3 = vector.broadcast %2 : vector<16x1xf32> to vector<16x2048xf32>
    %4 = arith.mulf %1, %3 : vector<16x2048xf32>
    %c0_3 = arith.constant 0 : index
    %c0_4 = arith.constant 0 : index
    %5 = vector.load %arg3[%c0_3, %c0_4] : memref<16x1xf32, #tpu.memory_space<vmem>>, vector<16x1xf32>
    %6 = vector.broadcast %5 : vector<16x1xf32> to vector<16x2048xf32>
    %7 = arith.addf %4, %6 : vector<16x2048xf32>
    %cst = arith.constant 0.000000e+00 : f32
    %8 = vector.broadcast %cst : f32 to vector<16x2048xf32>
    %9 = arith.cmpf oge, %7, %8 : vector<16x2048xf32>
    %cst_5 = arith.constant 2.000000e-01 : f32
    %10 = vector.broadcast %cst_5 : f32 to vector<16x2048xf32>
    %11 = arith.mulf %10, %7 : vector<16x2048xf32>
    %12 = arith.select %9, %7, %11 : vector<16x2048xi1>, vector<16x2048xf32>
    %13 = arith.truncf %12 : vector<16x2048xf32> to vector<16x2048xbf16>
    %c0_6 = arith.constant 0 : index
    %c0_7 = arith.constant 0 : index
    %14 = vector.load %arg4[%c0_6, %c0_7] : memref<16x2048xbf16, #tpu.memory_space<vmem>>, vector<16x2048xbf16>
    tpu.vector_store %arg4[%c0_6, %c0_7], %13 {strides = array<i32>} : memref<16x2048xbf16, #tpu.memory_space<vmem>>, vector<16x2048xbf16>,
    return
  }
  func.func @transform_0(%arg0: i32) -> (i32, i32) {
    %c0_i32 = arith.constant 0 : i32
    %c0_i32_0 = arith.constant 0 : i32
    return %c0_i32, %arg0 : i32, i32
  }
  func.func @transform_1(%arg0: i32) -> (i32, i32) {
    %c0_i32 = arith.constant 0 : i32
    %c0_i32_0 = arith.constant 0 : i32
    %c0_i32_1 = arith.constant 0 : i32
    return %c0_i32, %c0_i32_0 : i32, i32
  }
  func.func @transform_2(%arg0: i32) -> (i32, i32) {
    %c0_i32 = arith.constant 0 : i32
    %c0_i32_0 = arith.constant 0 : i32
    %c0_i32_1 = arith.constant 0 : i32
    return %c0_i32, %c0_i32_0 : i32, i32
  }
  func.func @transform_3(%arg0: i32) -> (i32, i32) {
    %c0_i32 = arith.constant 0 : i32
    %c0_i32_0 = arith.constant 0 : i32
    return %c0_i32, %arg0 : i32, i32
  }
}

module attributes {stable_mosaic.version = 11 : i64} {
  func.func @kernel(%arg0: i32, %arg1: i32, %arg2: i32, %arg3: memref<1x1x4x8192xbf16, #tpu.memory_space<vmem>>, %arg4: memref<1x1x12x4xbf16, #tpu.memory_space<vmem>>, %arg5: memref<12x1xf32, #tpu.memory_space<vmem>>, %arg6: memref<12x8192xf32, #tpu.memory_space<vmem>>, %arg7: memref<12x8192xf32, #tpu.memory_space<vmem>>) attributes {dimension_semantics = [#tpu.dimension_semantics<parallel>, #tpu.dimension_semantics<arbitrary>, #tpu.dimension_semantics<arbitrary>], iteration_bounds = array<i64: 1, 3, 3>, scalar_prefetch = 0 : i64, scratch_operands = 1 : i64, tpu.core_type = #tpu.core_type<tc>, window_params = [{transform_indices = @transform_0, window_bounds = array<i64: 1, 1, 4, 8192>}, {transform_indices = @transform_1, window_bounds = array<i64: 1, 1, 12, 4>}, {pipeline_mode = #tpu.pipeline_mode<synchronous>, transform_indices = @transform_2, window_bounds = array<i64: 12, 1>}, {transform_indices = @transform_3, window_bounds = array<i64: 12, 8192>}]} {
    %c0_i32 = arith.constant 0 : i32
    %0 = arith.cmpi eq, %arg1, %c0_i32 : i32
    %c0_i32_0 = arith.constant 0 : i32
    %1 = arith.cmpi eq, %arg2, %c0_i32_0 : i32
    %2 = arith.andi %0, %1 : i1
    %3 = arith.extui %2 : i1 to i32
    %c0_i32_1 = arith.constant 0 : i32
    %4 = arith.cmpi ne, %3, %c0_i32_1 : i32
    scf.if %4 {
      %cst_15 = arith.constant 0.000000e+00 : f32
      %18 = vector.broadcast %cst_15 : f32 to vector<12x8192xf32>
      %c0_16 = arith.constant 0 : index
      %c0_17 = arith.constant 0 : index
      %19 = vector.load %arg7[%c0_16, %c0_17] : memref<12x8192xf32, #tpu.memory_space<vmem>>, vector<12x8192xf32>
      tpu.vector_store %arg7[%c0_16, %c0_17], %18 {strides = array<i32>} : memref<12x8192xf32, #tpu.memory_space<vmem>>, vector<12x8192xf32>,
    } else {
    }
    %c0 = arith.constant 0 : index
    %c0_2 = arith.constant 0 : index
    %5 = vector.load %arg7[%c0, %c0_2] : memref<12x8192xf32, #tpu.memory_space<vmem>>, vector<12x8192xf32>
    %c0_3 = arith.constant 0 : index
    %c0_4 = arith.constant 0 : index
    %c0_5 = arith.constant 0 : index
    %c0_6 = arith.constant 0 : index
    %6 = vector.load %arg4[%c0_3, %c0_4, %c0_5, %c0_6] : memref<1x1x12x4xbf16, #tpu.memory_space<vmem>>, vector<1x1x12x4xbf16>
    %7 = vector.shape_cast %6 : vector<1x1x12x4xbf16> to vector<12x4xbf16>
    %c0_7 = arith.constant 0 : index
    %c0_8 = arith.constant 0 : index
    %c0_9 = arith.constant 0 : index
    %c0_10 = arith.constant 0 : index
    %8 = vector.load %arg3[%c0_7, %c0_8, %c0_9, %c0_10] : memref<1x1x4x8192xbf16, #tpu.memory_space<vmem>>, vector<1x1x4x8192xbf16>
    %9 = vector.shape_cast %8 : vector<1x1x4x8192xbf16> to vector<4x8192xbf16>
    %cst = arith.constant dense<0.000000e+00> : vector<12x8192xf32>
    %10 = tpu.matmul %7, %9, %cst {dimension_numbers = #tpu.dot_dimension_numbers<[1], [0], [0], [1], [0, 0, 1, 1], [], []>} : vector<12x4xbf16>, vector<4x8192xbf16>, vector<12x8192xf32> -> vector<12x8192xf32>
    %11 = arith.addf %5, %10 : vector<12x8192xf32>
    %c0_11 = arith.constant 0 : index
    %c0_12 = arith.constant 0 : index
    %12 = vector.load %arg7[%c0_11, %c0_12] : memref<12x8192xf32, #tpu.memory_space<vmem>>, vector<12x8192xf32>
    tpu.vector_store %arg7[%c0_11, %c0_12], %11 {strides = array<i32>} : memref<12x8192xf32, #tpu.memory_space<vmem>>, vector<12x8192xf32>,
    %c2_i32 = arith.constant 2 : i32
    %13 = arith.cmpi eq, %arg1, %c2_i32 : i32
    %c2_i32_13 = arith.constant 2 : i32
    %14 = arith.cmpi eq, %arg2, %c2_i32_13 : i32
    %15 = arith.andi %13, %14 : i1
    %16 = arith.extui %15 : i1 to i32
    %c0_i32_14 = arith.constant 0 : i32
    %17 = arith.cmpi ne, %16, %c0_i32_14 : i32
    scf.if %17 {
      %c0_15 = arith.constant 0 : index
      %c0_16 = arith.constant 0 : index
      %18 = vector.load %arg7[%c0_15, %c0_16] : memref<12x8192xf32, #tpu.memory_space<vmem>>, vector<12x8192xf32>
      %c0_17 = arith.constant 0 : index
      %c0_18 = arith.constant 0 : index
      %19 = vector.load %arg5[%c0_17, %c0_18] : memref<12x1xf32, #tpu.memory_space<vmem>>, vector<12x1xf32>
      %20 = vector.broadcast %19 : vector<12x1xf32> to vector<12x8192xf32>
      %21 = arith.addf %18, %20 : vector<12x8192xf32>
      %22 = math.tanh %21 : vector<12x8192xf32>
      %c0_19 = arith.constant 0 : index
      %c0_20 = arith.constant 0 : index
      %23 = vector.load %arg6[%c0_19, %c0_20] : memref<12x8192xf32, #tpu.memory_space<vmem>>, vector<12x8192xf32>
      tpu.vector_store %arg6[%c0_19, %c0_20], %22 {strides = array<i32>} : memref<12x8192xf32, #tpu.memory_space<vmem>>, vector<12x8192xf32>,
    } else {
    }
    return
  }
  func.func @transform_0(%arg0: i32, %arg1: i32, %arg2: i32) -> (i32, i32, i32, i32) {
    %c0_i32 = arith.constant 0 : i32
    %c0_i32_0 = arith.constant 0 : i32
    return %arg1, %arg2, %c0_i32, %arg0 : i32, i32, i32, i32
  }
  func.func @transform_1(%arg0: i32, %arg1: i32, %arg2: i32) -> (i32, i32, i32, i32) {
    %c0_i32 = arith.constant 0 : i32
    %c0_i32_0 = arith.constant 0 : i32
    %c0_i32_1 = arith.constant 0 : i32
    return %arg1, %arg2, %c0_i32, %c0_i32_0 : i32, i32, i32, i32
  }
  func.func @transform_2(%arg0: i32, %arg1: i32, %arg2: i32) -> (i32, i32) {
    %c0_i32 = arith.constant 0 : i32
    %c0_i32_0 = arith.constant 0 : i32
    %c0_i32_1 = arith.constant 0 : i32
    return %c0_i32, %c0_i32_0 : i32, i32
  }
  func.func @transform_3(%arg0: i32, %arg1: i32, %arg2: i32) -> (i32, i32) {
    %c0_i32 = arith.constant 0 : i32
    %c0_i32_0 = arith.constant 0 : i32
    return %c0_i32, %arg0 : i32, i32
  }
}

</mosaic_0001>

<llo_original>
// kernel: tile.68
$region0: #{tile.68}
  #allocation2 [shape = 's32[1]{0}', space=sflag, size = 0x4, scoped, tag = 'scoped memory for tile.68']
  %s0 = inlined_call_operand.hbm [shape: f32[32], index: 0, kind: input, shape index: {}]
  %s1 = inlined_call_operand.vmem [shape: f32[4,32], index: 1, kind: output, shape index: {}]
  $region1: #{tile.68} parent=0
    #allocation0 [shape = 'u8[512]{0}', space=vmem, size = 0x400, scoped, tag = 'operand span for operand 0']
    #allocation1 [shape = 's32[1]{0}', space=sflag, size = 0x4, scoped, tag = 'scoped memory for tile.68']
    %2 = vsyncpa [#allocation1], 0
    // Predicated region
    $region2: #{tile.68} parent=1 // pred_check
      _
    $region3: #{tile.68} parent=1 // pred_check_branch
      %4 = sbr.rel (0) target = $region5
    $region4: #{tile.68} parent=1 // pred_region
      %s6 = ssub.s32 16, 16
      %7 = vsyncadd [#allocation1], %s6
      %s9 = sshll.u32 [#allocation0], 4
      %s10 = int_to_ptr.vmem [resolvable:$true] %s9
      %12 = dma.hbm_to_vmem [thread:$0]  %s0, 16, %s10, [#allocation1]
    $region5: #{tile.68} parent=1 // pred_fallthru
      _
    // Predicated region
    $region6: #{tile.68} parent=1 // pred_check
      _
    $region7: #{tile.68} parent=1 // pred_check_branch
      %14 = sbr.rel (0) target = $region9
    $region8: #{tile.68} parent=1 // pred_region
      %15 = dma.done [#allocation1], 16
    $region9: #{tile.68} parent=1 // pred_fallthru
      _
    %v16 = vld [vmem:[#allocation0] ss:$0 sm:$0xff]
    %17 = vst [vmem:[%s1] sm:$0xf] %v16
    %18 = vsyncpa [#allocation1], 1

// kernel: tile.98
$region0: #{tile.98}
  #allocation2 [shape = 's32[1]{0}', space=sflag, size = 0x4, scoped, tag = 'scoped memory for tile.98']
  %s0 = inlined_call_operand.hbm [shape: f32[8], index: 0, kind: input, shape index: {}]
  %s1 = inlined_call_operand.vmem [shape: f32[4,8], index: 1, kind: output, shape index: {}]
  $region1: #{tile.98} parent=0
    #allocation0 [shape = 'u8[512]{0}', space=vmem, size = 0x400, scoped, tag = 'operand span for operand 0']
    #allocation1 [shape = 's32[1]{0}', space=sflag, size = 0x4, scoped, tag = 'scoped memory for tile.98']
    %2 = vsyncpa [#allocation1], 0
    // Predicated region
    $region2: #{tile.98} parent=1 // pred_check
      _
    $region3: #{tile.98} parent=1 // pred_check_branch
      %4 = sbr.rel (0) target = $region5
    $region4: #{tile.98} parent=1 // pred_region
      %s6 = ssub.s32 16, 16
      %7 = vsyncadd [#allocation1], %s6
      %s9 = sshll.u32 [#allocation0], 4
      %s10 = int_to_ptr.vmem [resolvable:$true] %s9
      %12 = dma.hbm_to_vmem [thread:$0]  %s0, 16, %s10, [#allocation1]
    $region5: #{tile.98} parent=1 // pred_fallthru
      _
    // Predicated region
    $region6: #{tile.98} parent=1 // pred_check
      _
    $region7: #{tile.98} parent=1 // pred_check_branch
      %14 = sbr.rel (0) target = $region9
    $region8: #{tile.98} parent=1 // pred_region
      %15 = dma.done [#allocation1], 16
    $region9: #{tile.98} parent=1 // pred_fallthru
      _
    %v16 = vld [vmem:[#allocation0] ss:$0 sm:$0xff]
    %17 = vst [vmem:[%s1] sm:$0xf] %v16
    %18 = vsyncpa [#allocation1], 1

// kernel: tile.83
$region0: #{tile.83}
  #allocation2 [shape = 's32[1]{0}', space=sflag, size = 0x4, scoped, tag = 'scoped memory for tile.83']
  %s0 = inlined_call_operand.hbm [shape: f32[16], index: 0, kind: input, shape index: {}]
  %s1 = inlined_call_operand.vmem [shape: f32[4,16], index: 1, kind: output, shape index: {}]
  $region1: #{tile.83} parent=0
    #allocation0 [shape = 'u8[512]{0}', space=vmem, size = 0x400, scoped, tag = 'operand span for operand 0']
    #allocation1 [shape = 's32[1]{0}', space=sflag, size = 0x4, scoped, tag = 'scoped memory for tile.83']
    %2 = vsyncpa [#allocation1], 0
    // Predicated region
    $region2: #{tile.83} parent=1 // pred_check
      _
    $region3: #{tile.83} parent=1 // pred_check_branch
      %4 = sbr.rel (0) target = $region5
    $region4: #{tile.83} parent=1 // pred_region
      %s6 = ssub.s32 16, 16
      %7 = vsyncadd [#allocation1], %s6
      %s9 = sshll.u32 [#allocation0], 4
      %s10 = int_to_ptr.vmem [resolvable:$true] %s9
      %12 = dma.hbm_to_vmem [thread:$0]  %s0, 16, %s10, [#allocation1]
    $region5: #{tile.83} parent=1 // pred_fallthru
      _
    // Predicated region
    $region6: #{tile.83} parent=1 // pred_check
      _
    $region7: #{tile.83} parent=1 // pred_check_branch
      %14 = sbr.rel (0) target = $region9
    $region8: #{tile.83} parent=1 // pred_region
      %15 = dma.done [#allocation1], 16
    $region9: #{tile.83} parent=1 // pred_fallthru
      _
    %v16 = vld [vmem:[#allocation0] ss:$0 sm:$0xff]
    %17 = vst [vmem:[%s1] sm:$0xf] %v16
    %18 = vsyncpa [#allocation1], 1

// kernel: tile.128
$region0: #{tile.128}
  #allocation2 [shape = 's32[1]{0}', space=sflag, size = 0x4, scoped, tag = 'scoped memory for tile.128']
  %s0 = inlined_call_operand.hbm [shape: f32[3], index: 0, kind: input, shape index: {}]
  %s1 = inlined_call_operand.vmem [shape: f32[4,3], index: 1, kind: output, shape index: {}]
  $region1: #{tile.128} parent=0
    #allocation0 [shape = 'u8[512]{0}', space=vmem, size = 0x400, scoped, tag = 'operand span for operand 0']
    #allocation1 [shape = 's32[1]{0}', space=sflag, size = 0x4, scoped, tag = 'scoped memory for tile.128']
    %2 = vsyncpa [#allocation1], 0
    // Predicated region
    $region2: #{tile.128} parent=1 // pred_check
      _
    $region3: #{tile.128} parent=1 // pred_check_branch
      %4 = sbr.rel (0) target = $region5
    $region4: #{tile.128} parent=1 // pred_region
      %s6 = ssub.s32 16, 16
      %7 = vsyncadd [#allocation1], %s6
      %s9 = sshll.u32 [#allocation0], 4
      %s10 = int_to_ptr.vmem [resolvable:$true] %s9
      %12 = dma.hbm_to_vmem [thread:$0]  %s0, 16, %s10, [#allocation1]
    $region5: #{tile.128} parent=1 // pred_fallthru
      _
    // Predicated region
    $region6: #{tile.128} parent=1 // pred_check
      _
    $region7: #{tile.128} parent=1 // pred_check_branch
      %14 = sbr.rel (0) target = $region9
    $region8: #{tile.128} parent=1 // pred_region
      %15 = dma.done [#allocation1], 16
    $region9: #{tile.128} parent=1 // pred_fallthru
      _
    %v16 = vld [vmem:[#allocation0] ss:$0 sm:$0xff]
    %17 = vst [vmem:[%s1] sm:$0xf] %v16
    %18 = vsyncpa [#allocation1], 1

// kernel: tile.113
$region0: #{tile.113}
  #allocation2 [shape = 's32[1]{0}', space=sflag, size = 0x4, scoped, tag = 'scoped memory for tile.113']
  %s0 = inlined_call_operand.hbm [shape: f32[4], index: 0, kind: input, shape index: {}]
  %s1 = inlined_call_operand.vmem [shape: f32[4,4], index: 1, kind: output, shape index: {}]
  $region1: #{tile.113} parent=0
    #allocation0 [shape = 'u8[512]{0}', space=vmem, size = 0x400, scoped, tag = 'operand span for operand 0']
    #allocation1 [shape = 's32[1]{0}', space=sflag, size = 0x4, scoped, tag = 'scoped memory for tile.113']
    %2 = vsyncpa [#allocation1], 0
    // Predicated region
    $region2: #{tile.113} parent=1 // pred_check
      _
    $region3: #{tile.113} parent=1 // pred_check_branch
      %4 = sbr.rel (0) target = $region5
    $region4: #{tile.113} parent=1 // pred_region
      %s6 = ssub.s32 16, 16
      %7 = vsyncadd [#allocation1], %s6
      %s9 = sshll.u32 [#allocation0], 4
      %s10 = int_to_ptr.vmem [resolvable:$true] %s9
      %12 = dma.hbm_to_vmem [thread:$0]  %s0, 16, %s10, [#allocation1]
    $region5: #{tile.113} parent=1 // pred_fallthru
      _
    // Predicated region
    $region6: #{tile.113} parent=1 // pred_check
      _
    $region7: #{tile.113} parent=1 // pred_check_branch
      %14 = sbr.rel (0) target = $region9
    $region8: #{tile.113} parent=1 // pred_region
      %15 = dma.done [#allocation1], 16
    $region9: #{tile.113} parent=1 // pred_fallthru
      _
    %v16 = vld [vmem:[#allocation0] ss:$0 sm:$0xff]
    %17 = vst [vmem:[%s1] sm:$0xf] %v16
    %18 = vsyncpa [#allocation1], 1

// kernel: tile.12
$region0: #{tile.12}
  %s0 = inlined_call_operand.vmem [shape: f32[4,3], index: 0, kind: input, shape index: {}]
  %s1 = inlined_call_operand.vmem [shape: f32[12,1], index: 1, kind: output, shape index: {}]
  $region1: #{tile.12} parent=0
    #allocation0 [shape = 'u8[4096]{0}', space=vmem, size = 0x1000, scoped, tag = 'scoped mem for input reshape']
    %s3 = sshllo.u32 0, 4
    %v4 = vld [vmem:[%s0] sm:%s3]
    %5 = vst [vmem:[#allocation0] sm:%s3] %v4
    %v6 = vld [vmem:[#allocation0] sm:$0xf]
    %vm7 = vcmask 7168
    %8 = vst.msk [vmem:[%s1] ss:$3 sm:$0xf] %vm7, %v6
    %v9 = vld [vmem:[#allocation0] sm:$0xf]
    %10 = vrot.lane.b32.xlu0 %v9, 127
    %v11 = vpop.permute.xlu0 %10
    %vm12 = vcmask 7168
    %s13 = scalar_lea.vmem %s1, 1
    %14 = vst.msk [vmem:[%s13] ss:$3 sm:$0xf] %vm12, %v11
    %v15 = vld [vmem:[#allocation0] sm:$0xf]
    %16 = vrot.lane.b32.xlu0 %v15, 126
    %v17 = vpop.permute.xlu0 %16
    %vm18 = vcmask 7168
    %s19 = scalar_lea.vmem %s1, 2
    %20 = vst.msk [vmem:[%s19] ss:$3 sm:$0xf] %vm18, %v17

// kernel: tile.9
$region0: #{tile.9}
  %s0 = inlined_call_operand.vmem [shape: f32[4,4], index: 0, kind: input, shape index: {}]
  %s1 = inlined_call_operand.vmem [shape: f32[16,1], index: 1, kind: output, shape index: {}]
  $region1: #{tile.9} parent=0
    #allocation0 [shape = 'u8[4096]{0}', space=vmem, size = 0x1000, scoped, tag = 'scoped mem for input reshape']
    %s3 = sshllo.u32 0, 4
    %v4 = vld [vmem:[%s0] sm:%s3]
    %5 = vst [vmem:[#allocation0] sm:%s3] %v4
    %v6 = vld [vmem:[#allocation0] sm:$0xf]
    %vm7 = vcmask 7168
    %8 = vst.msk [vmem:[%s1] ss:$4 sm:$0xf] %vm7, %v6
    %v9 = vld [vmem:[#allocation0] sm:$0xf]
    %10 = vrot.lane.b32.xlu0 %v9, 127
    %v11 = vpop.permute.xlu0 %10
    %vm12 = vcmask 7168
    %s13 = scalar_lea.vmem %s1, 1
    %14 = vst.msk [vmem:[%s13] ss:$4 sm:$0xf] %vm12, %v11
    %v15 = vld [vmem:[#allocation0] sm:$0xf]
    %16 = vrot.lane.b32.xlu0 %v15, 126
    %v17 = vpop.permute.xlu0 %16
    %vm18 = vcmask 7168
    %s19 = scalar_lea.vmem %s1, 2
    %20 = vst.msk [vmem:[%s19] ss:$4 sm:$0xf] %vm18, %v17
    %v21 = vld [vmem:[#allocation0] sm:$0xf]
    %22 = vrot.lane.b32.xlu0 %v21, 125
    %v23 = vpop.permute.xlu0 %22
    %vm24 = vcmask 7168
    %s25 = scalar_lea.vmem %s1, 3
    %26 = vst.msk [vmem:[%s25] ss:$4 sm:$0xf] %vm24, %v23

// kernel: tile.6
$region0: #{tile.6}
  %s0 = inlined_call_operand.vmem [shape: f32[4,8], index: 0, kind: input, shape index: {}]
  %s1 = inlined_call_operand.vmem [shape: f32[32,1], index: 1, kind: output, shape index: {}]
  $region1: #{tile.6} parent=0
    #allocation0 [shape = 'u8[4096]{0}', space=vmem, size = 0x1000, scoped, tag = 'scoped mem for input reshape']
    %s3 = sshllo.u32 0, 4
    %v4 = vld [vmem:[%s0] sm:%s3]
    %5 = vst [vmem:[#allocation0] sm:%s3] %v4
    %v6 = vld [vmem:[#allocation0] sm:$0xf]
    %vm7 = vcmask 7168
    %8 = vst.msk [vmem:[%s1] ss:$8 sm:$0xf] %vm7, %v6
    %v9 = vld [vmem:[#allocation0] sm:$0xf]
    %10 = vrot.lane.b32.xlu0 %v9, 127
    %v11 = vpop.permute.xlu0 %10
    %vm12 = vcmask 7168
    %s13 = scalar_lea.vmem %s1, 1
    %14 = vst.msk [vmem:[%s13] ss:$8 sm:$0xf] %vm12, %v11
    %v15 = vld [vmem:[#allocation0] sm:$0xf]
    %16 = vrot.lane.b32.xlu0 %v15, 126
    %v17 = vpop.permute.xlu0 %16
    %vm18 = vcmask 7168
    %s19 = scalar_lea.vmem %s1, 2
    %20 = vst.msk [vmem:[%s19] ss:$8 sm:$0xf] %vm18, %v17
    %v21 = vld [vmem:[#allocation0] sm:$0xf]
    %22 = vrot.lane.b32.xlu0 %v21, 125
    %v23 = vpop.permute.xlu0 %22
    %vm24 = vcmask 7168
    %s25 = scalar_lea.vmem %s1, 3
    %26 = vst.msk [vmem:[%s25] ss:$8 sm:$0xf] %vm24, %v23
    %v27 = vld [vmem:[#allocation0] sm:$0xf]
    %28 = vrot.lane.b32.xlu0 %v27, 124
    %v29 = vpop.permute.xlu0 %28
    %vm30 = vcmask 7168
    %s31 = scalar_lea.vmem %s1, 4
    %32 = vst.msk [vmem:[%s31] ss:$8 sm:$0xf] %vm30, %v29
    %v33 = vld [vmem:[#allocation0] sm:$0xf]
    %34 = vrot.lane.b32.xlu0 %v33, 123
    %v35 = vpop.permute.xlu0 %34
    %vm36 = vcmask 7168
    %s37 = scalar_lea.vmem %s1, 5
    %38 = vst.msk [vmem:[%s37] ss:$8 sm:$0xf] %vm36, %v35
    %v39 = vld [vmem:[#allocation0] sm:$0xf]
    %40 = vrot.lane.b32.xlu0 %v39, 122
    %v41 = vpop.permute.xlu0 %40
    %vm42 = vcmask 7168
    %s43 = scalar_lea.vmem %s1, 6
    %44 = vst.msk [vmem:[%s43] ss:$8 sm:$0xf] %vm42, %v41
    %v45 = vld [vmem:[#allocation0] sm:$0xf]
    %46 = vrot.lane.b32.xlu0 %v45, 121
    %v47 = vpop.permute.xlu0 %46
    %vm48 = vcmask 7168
    %s49 = scalar_lea.vmem %s1, 7
    %50 = vst.msk [vmem:[%s49] ss:$8 sm:$0xf] %vm48, %v47

// kernel: tile.3
$region0: #{tile.3}
  %s0 = inlined_call_operand.vmem [shape: f32[4,16], index: 0, kind: input, shape index: {}]
  %s1 = inlined_call_operand.vmem [shape: f32[64,1], index: 1, kind: output, shape index: {}]
  $region1: #{tile.3} parent=0
    #allocation0 [shape = 'u8[4096]{0}', space=vmem, size = 0x1000, scoped, tag = 'scoped mem for input reshape']
    %s3 = sshllo.u32 0, 4
    %v4 = vld [vmem:[%s0] sm:%s3]
    %5 = vst [vmem:[#allocation0] sm:%s3] %v4
    %v6 = vld [vmem:[#allocation0] sm:$0xf]
    %vm7 = vcmask 7168
    %8 = vst.msk [vmem:[%s1] ss:$16 sm:$0x3] %vm7, %v6
    %9 = vst.msk [vmem:[%s1] ss:$16 sm:$0xc] %vm7, %v6
    %v10 = vld [vmem:[#allocation0] sm:$0xf]
    %11 = vrot.lane.b32.xlu0 %v10, 127
    %v12 = vpop.permute.xlu0 %11
    %vm13 = vcmask 7168
    %s14 = scalar_lea.vmem %s1, 1
    %15 = vst.msk [vmem:[%s14] ss:$16 sm:$0x3] %vm13, %v12
    %s16 = scalar_lea.vmem %s1, 1
    %17 = vst.msk [vmem:[%s16] ss:$16 sm:$0xc] %vm13, %v12
    %v18 = vld [vmem:[#allocation0] sm:$0xf]
    %19 = vrot.lane.b32.xlu0 %v18, 126
    %v20 = vpop.permute.xlu0 %19
    %vm21 = vcmask 7168
    %s22 = scalar_lea.vmem %s1, 2
    %23 = vst.msk [vmem:[%s22] ss:$16 sm:$0x3] %vm21, %v20
    %s24 = scalar_lea.vmem %s1, 2
    %25 = vst.msk [vmem:[%s24] ss:$16 sm:$0xc] %vm21, %v20
    %v26 = vld [vmem:[#allocation0] sm:$0xf]
    %27 = vrot.lane.b32.xlu0 %v26, 125
    %v28 = vpop.permute.xlu0 %27
    %vm29 = vcmask 7168
    %s30 = scalar_lea.vmem %s1, 3
    %31 = vst.msk [vmem:[%s30] ss:$16 sm:$0x3] %vm29, %v28
    %s32 = scalar_lea.vmem %s1, 3
    %33 = vst.msk [vmem:[%s32] ss:$16 sm:$0xc] %vm29, %v28
    %v34 = vld [vmem:[#allocation0] sm:$0xf]
    %35 = vrot.lane.b32.xlu0 %v34, 124
    %v36 = vpop.permute.xlu0 %35
    %vm37 = vcmask 7168
    %s38 = scalar_lea.vmem %s1, 4
    %39 = vst.msk [vmem:[%s38] ss:$16 sm:$0x3] %vm37, %v36
    %s40 = scalar_lea.vmem %s1, 4
    %41 = vst.msk [vmem:[%s40] ss:$16 sm:$0xc] %vm37, %v36
    %v42 = vld [vmem:[#allocation0] sm:$0xf]
    %43 = vrot.lane.b32.xlu0 %v42, 123
    %v44 = vpop.permute.xlu0 %43
    %vm45 = vcmask 7168
    %s46 = scalar_lea.vmem %s1, 5
    %47 = vst.msk [vmem:[%s46] ss:$16 sm:$0x3] %vm45, %v44
    %s48 = scalar_lea.vmem %s1, 5
    %49 = vst.msk [vmem:[%s48] ss:$16 sm:$0xc] %vm45, %v44
    %v50 = vld [vmem:[#allocation0] sm:$0xf]
    %51 = vrot.lane.b32.xlu0 %v50, 122
    %v52 = vpop.permute.xlu0 %51
    %vm53 = vcmask 7168
    %s54 = scalar_lea.vmem %s1, 6
    %55 = vst.msk [vmem:[%s54] ss:$16 sm:$0x3] %vm53, %v52
    %s56 = scalar_lea.vmem %s1, 6
    %57 = vst.msk [vmem:[%s56] ss:$16 sm:$0xc] %vm53, %v52
    %v58 = vld [vmem:[#allocation0] sm:$0xf]
    %59 = vrot.lane.b32.xlu0 %v58, 121
    %v60 = vpop.permute.xlu0 %59
    %vm61 = vcmask 7168
    %s62 = scalar_lea.vmem %s1, 7
    %63 = vst.msk [vmem:[%s62] ss:$16 sm:$0x3] %vm61, %v60
    %s64 = scalar_lea.vmem %s1, 7
    %65 = vst.msk [vmem:[%s64] ss:$16 sm:$0xc] %vm61, %v60
    %v66 = vld [vmem:[#allocation0] sm:$0xf]
    %67 = vrot.lane.b32.xlu0 %v66, 120
    %v68 = vpop.permute.xlu0 %67
    %vm69 = vcmask 7168
    %s70 = scalar_lea.vmem %s1, 8
    %71 = vst.msk [vmem:[%s70] ss:$16 sm:$0x3] %vm69, %v68
    %s72 = scalar_lea.vmem %s1, 8
    %73 = vst.msk [vmem:[%s72] ss:$16 sm:$0xc] %vm69, %v68
    %v74 = vld [vmem:[#allocation0] sm:$0xf]
    %75 = vrot.lane.b32.xlu0 %v74, 119
    %v76 = vpop.permute.xlu0 %75
    %vm77 = vcmask 7168
    %s78 = scalar_lea.vmem %s1, 9
    %79 = vst.msk [vmem:[%s78] ss:$16 sm:$0x3] %vm77, %v76
    %s80 = scalar_lea.vmem %s1, 9
    %81 = vst.msk [vmem:[%s80] ss:$16 sm:$0xc] %vm77, %v76
    %v82 = vld [vmem:[#allocation0] sm:$0xf]
    %83 = vrot.lane.b32.xlu0 %v82, 118
    %v84 = vpop.permute.xlu0 %83
    %vm85 = vcmask 7168
    %s86 = scalar_lea.vmem %s1, 10
    %87 = vst.msk [vmem:[%s86] ss:$16 sm:$0x3] %vm85, %v84
    %s88 = scalar_lea.vmem %s1, 10
    %89 = vst.msk [vmem:[%s88] ss:$16 sm:$0xc] %vm85, %v84
    %v90 = vld [vmem:[#allocation0] sm:$0xf]
    %91 = vrot.lane.b32.xlu0 %v90, 117
    %v92 = vpop.permute.xlu0 %91
    %vm93 = vcmask 7168
    %s94 = scalar_lea.vmem %s1, 11
    %95 = vst.msk [vmem:[%s94] ss:$16 sm:$0x3] %vm93, %v92
    %s96 = scalar_lea.vmem %s1, 11
    %97 = vst.msk [vmem:[%s96] ss:$16 sm:$0xc] %vm93, %v92
    %v98 = vld [vmem:[#allocation0] sm:$0xf]
    %99 = vrot.lane.b32.xlu0 %v98, 116
    %v100 = vpop.permute.xlu0 %99
    %vm101 = vcmask 7168
    %s102 = scalar_lea.vmem %s1, 12
    %103 = vst.msk [vmem:[%s102] ss:$16 sm:$0x3] %vm101, %v100
    %s104 = scalar_lea.vmem %s1, 12
    %105 = vst.msk [vmem:[%s104] ss:$16 sm:$0xc] %vm101, %v100
    %v106 = vld [vmem:[#allocation0] sm:$0xf]
    %107 = vrot.lane.b32.xlu0 %v106, 115
    %v108 = vpop.permute.xlu0 %107
    %vm109 = vcmask 7168
    %s110 = scalar_lea.vmem %s1, 13
    %111 = vst.msk [vmem:[%s110] ss:$16 sm:$0x3] %vm109, %v108
    %s112 = scalar_lea.vmem %s1, 13
    %113 = vst.msk [vmem:[%s112] ss:$16 sm:$0xc] %vm109, %v108
    %v114 = vld [vmem:[#allocation0] sm:$0xf]
    %115 = vrot.lane.b32.xlu0 %v114, 114
    %v116 = vpop.permute.xlu0 %115
    %vm117 = vcmask 7168
    %s118 = scalar_lea.vmem %s1, 14
    %119 = vst.msk [vmem:[%s118] ss:$16 sm:$0x3] %vm117, %v116
    %s120 = scalar_lea.vmem %s1, 14
    %121 = vst.msk [vmem:[%s120] ss:$16 sm:$0xc] %vm117, %v116
    %v122 = vld [vmem:[#allocation0] sm:$0xf]
    %123 = vrot.lane.b32.xlu0 %v122, 113
    %v124 = vpop.permute.xlu0 %123
    %vm125 = vcmask 7168
    %s126 = scalar_lea.vmem %s1, 15
    %127 = vst.msk [vmem:[%s126] ss:$16 sm:$0x3] %vm125, %v124
    %s128 = scalar_lea.vmem %s1, 15
    %129 = vst.msk [vmem:[%s128] ss:$16 sm:$0xc] %vm125, %v124

// kernel: tile.0
$region0: #{tile.0}
  %s0 = inlined_call_operand.vmem [shape: f32[4,32], index: 0, kind: input, shape index: {}]
  %s1 = inlined_call_operand.vmem [shape: f32[128,1], index: 1, kind: output, shape index: {}]
  $region1: #{tile.0} parent=0
    #allocation0 [shape = 'u8[4096]{0}', space=vmem, size = 0x1000, scoped, tag = 'scoped mem for input reshape']
    %s3 = sshllo.u32 0, 4
    %v4 = vld [vmem:[%s0] sm:%s3]
    %5 = vst [vmem:[#allocation0] sm:%s3] %v4
    %v6 = vld [vmem:[#allocation0] sm:$0xf]
    %vm7 = vcmask 7168
    %8 = vst.msk [vmem:[%s1] sm:$0x1] %vm7, %v6
    %s9 = scalar_lea.vmem %s1, 31
    %10 = vst.msk [vmem:[%s9] sm:$0x2] %vm7, %v6
    %s11 = scalar_lea.vmem %s1, 62
    %12 = vst.msk [vmem:[%s11] sm:$0x4] %vm7, %v6
    %s13 = scalar_lea.vmem %s1, 93
    %14 = vst.msk [vmem:[%s13] sm:$0x8] %vm7, %v6
    %v15 = vld [vmem:[#allocation0] sm:$0xf]
    %16 = vrot.lane.b32.xlu0 %v15, 127
    %v17 = vpop.permute.xlu0 %16
    %vm18 = vcmask 7168
    %s19 = scalar_lea.vmem %s1, 1
    %20 = vst.msk [vmem:[%s19] sm:$0x1] %vm18, %v17
    %s21 = scalar_lea.vmem %s1, 32
    %22 = vst.msk [vmem:[%s21] sm:$0x2] %vm18, %v17
    %s23 = scalar_lea.vmem %s1, 63
    %24 = vst.msk [vmem:[%s23] sm:$0x4] %vm18, %v17
    %s25 = scalar_lea.vmem %s1, 94
    %26 = vst.msk [vmem:[%s25] sm:$0x8] %vm18, %v17
    %v27 = vld [vmem:[#allocation0] sm:$0xf]
    %28 = vrot.lane.b32.xlu0 %v27, 126
    %v29 = vpop.permute.xlu0 %28
    %vm30 = vcmask 7168
    %s31 = scalar_lea.vmem %s1, 2
    %32 = vst.msk [vmem:[%s31] sm:$0x1] %vm30, %v29
    %s33 = scalar_lea.vmem %s1, 33
    %34 = vst.msk [vmem:[%s33] sm:$0x2] %vm30, %v29
    %s35 = scalar_lea.vmem %s1, 64
    %36 = vst.msk [vmem:[%s35] sm:$0x4] %vm30, %v29
    %s37 = scalar_lea.vmem %s1, 95
    %38 = vst.msk [vmem:[%s37] sm:$0x8] %vm30, %v29
    %v39 = vld [vmem:[#allocation0] sm:$0xf]
    %40 = vrot.lane.b32.xlu0 %v39, 125
    %v41 = vpop.permute.xlu0 %40
    %vm42 = vcmask 7168
    %s43 = scalar_lea.vmem %s1, 3
    %44 = vst.msk [vmem:[%s43] sm:$0x1] %vm42, %v41
    %s45 = scalar_lea.vmem %s1, 34
    %46 = vst.msk [vmem:[%s45] sm:$0x2] %vm42, %v41
    %s47 = scalar_lea.vmem %s1, 65
    %48 = vst.msk [vmem:[%s47] sm:$0x4] %vm42, %v41
    %s49 = scalar_lea.vmem %s1, 96
    %50 = vst.msk [vmem:[%s49] sm:$0x8] %vm42, %v41
    %v51 = vld [vmem:[#allocation0] sm:$0xf]
    %52 = vrot.lane.b32.xlu0 %v51, 124
    %v53 = vpop.permute.xlu0 %52
    %vm54 = vcmask 7168
    %s55 = scalar_lea.vmem %s1, 4
    %56 = vst.msk [vmem:[%s55] sm:$0x1] %vm54, %v53
    %s57 = scalar_lea.vmem %s1, 35
    %58 = vst.msk [vmem:[%s57] sm:$0x2] %vm54, %v53
    %s59 = scalar_lea.vmem %s1, 66
    %60 = vst.msk [vmem:[%s59] sm:$0x4] %vm54, %v53
    %s61 = scalar_lea.vmem %s1, 97
    %62 = vst.msk [vmem:[%s61] sm:$0x8] %vm54, %v53
    %v63 = vld [vmem:[#allocation0] sm:$0xf]
    %64 = vrot.lane.b32.xlu0 %v63, 123
    %v65 = vpop.permute.xlu0 %64
    %vm66 = vcmask 7168
    %s67 = scalar_lea.vmem %s1, 5
    %68 = vst.msk [vmem:[%s67] sm:$0x1] %vm66, %v65
    %s69 = scalar_lea.vmem %s1, 36
    %70 = vst.msk [vmem:[%s69] sm:$0x2] %vm66, %v65
    %s71 = scalar_lea.vmem %s1, 67
    %72 = vst.msk [vmem:[%s71] sm:$0x4] %vm66, %v65
    %s73 = scalar_lea.vmem %s1, 98
    %74 = vst.msk [vmem:[%s73] sm:$0x8] %vm66, %v65
    %v75 = vld [vmem:[#allocation0] sm:$0xf]
    %76 = vrot.lane.b32.xlu0 %v75, 122
    %v77 = vpop.permute.xlu0 %76
    %vm78 = vcmask 7168
    %s79 = scalar_lea.vmem %s1, 6
    %80 = vst.msk [vmem:[%s79] sm:$0x1] %vm78, %v77
    %s81 = scalar_lea.vmem %s1, 37
    %82 = vst.msk [vmem:[%s81] sm:$0x2] %vm78, %v77
    %s83 = scalar_lea.vmem %s1, 68
    %84 = vst.msk [vmem:[%s83] sm:$0x4] %vm78, %v77
    %s85 = scalar_lea.vmem %s1, 99
    %86 = vst.msk [vmem:[%s85] sm:$0x8] %vm78, %v77
    %v87 = vld [vmem:[#allocation0] sm:$0xf]
    %88 = vrot.lane.b32.xlu0 %v87, 121
    %v89 = vpop.permute.xlu0 %88
    %vm90 = vcmask 7168
    %s91 = scalar_lea.vmem %s1, 7
    %92 = vst.msk [vmem:[%s91] sm:$0x1] %vm90, %v89
    %s93 = scalar_lea.vmem %s1, 38
    %94 = vst.msk [vmem:[%s93] sm:$0x2] %vm90, %v89
    %s95 = scalar_lea.vmem %s1, 69
    %96 = vst.msk [vmem:[%s95] sm:$0x4] %vm90, %v89
    %s97 = scalar_lea.vmem %s1, 100
    %98 = vst.msk [vmem:[%s97] sm:$0x8] %vm90, %v89
    %v99 = vld [vmem:[#allocation0] sm:$0xf]
    %100 = vrot.lane.b32.xlu0 %v99, 120
    %v101 = vpop.permute.xlu0 %100
    %vm102 = vcmask 7168
    %s103 = scalar_lea.vmem %s1, 8
    %104 = vst.msk [vmem:[%s103] sm:$0x1] %vm102, %v101
    %s105 = scalar_lea.vmem %s1, 39
    %106 = vst.msk [vmem:[%s105] sm:$0x2] %vm102, %v101
    %s107 = scalar_lea.vmem %s1, 70
    %108 = vst.msk [vmem:[%s107] sm:$0x4] %vm102, %v101
    %s109 = scalar_lea.vmem %s1, 101
    %110 = vst.msk [vmem:[%s109] sm:$0x8] %vm102, %v101
    %v111 = vld [vmem:[#allocation0] sm:$0xf]
    %112 = vrot.lane.b32.xlu0 %v111, 119
    %v113 = vpop.permute.xlu0 %112
    %vm114 = vcmask 7168
    %s115 = scalar_lea.vmem %s1, 9
    %116 = vst.msk [vmem:[%s115] sm:$0x1] %vm114, %v113
    %s117 = scalar_lea.vmem %s1, 40
    %118 = vst.msk [vmem:[%s117] sm:$0x2] %vm114, %v113
    %s119 = scalar_lea.vmem %s1, 71
    %120 = vst.msk [vmem:[%s119] sm:$0x4] %vm114, %v113
    %s121 = scalar_lea.vmem %s1, 102
    %122 = vst.msk [vmem:[%s121] sm:$0x8] %vm114, %v113
    %v123 = vld [vmem:[#allocation0] sm:$0xf]
    %124 = vrot.lane.b32.xlu0 %v123, 118
    %v125 = vpop.permute.xlu0 %124
    %vm126 = vcmask 7168
    %s127 = scalar_lea.vmem %s1, 10
    %128 = vst.msk [vmem:[%s127] sm:$0x1] %vm126, %v125
    %s129 = scalar_lea.vmem %s1, 41
    %130 = vst.msk [vmem:[%s129] sm:$0x2] %vm126, %v125
    %s131 = scalar_lea.vmem %s1, 72
    %132 = vst.msk [vmem:[%s131] sm:$0x4] %vm126, %v125
    %s133 = scalar_lea.vmem %s1, 103
    %134 = vst.msk [vmem:[%s133] sm:$0x8] %vm126, %v125
    %v135 = vld [vmem:[#allocation0] sm:$0xf]
    %136 = vrot.lane.b32.xlu0 %v135, 117
    %v137 = vpop.permute.xlu0 %136
    %vm138 = vcmask 7168
    %s139 = scalar_lea.vmem %s1, 11
    %140 = vst.msk [vmem:[%s139] sm:$0x1] %vm138, %v137
    %s141 = scalar_lea.vmem %s1, 42
    %142 = vst.msk [vmem:[%s141] sm:$0x2] %vm138, %v137
    %s143 = scalar_lea.vmem %s1, 73
    %144 = vst.msk [vmem:[%s143] sm:$0x4] %vm138, %v137
    %s145 = scalar_lea.vmem %s1, 104
    %146 = vst.msk [vmem:[%s145] sm:$0x8] %vm138, %v137
    %v147 = vld [vmem:[#allocation0] sm:$0xf]
    %148 = vrot.lane.b32.xlu0 %v147, 116
    %v149 = vpop.permute.xlu0 %148
    %vm150 = vcmask 7168
    %s151 = scalar_lea.vmem %s1, 12
    %152 = vst.msk [vmem:[%s151] sm:$0x1] %vm150, %v149
    %s153 = scalar_lea.vmem %s1, 43
    %154 = vst.msk [vmem:[%s153] sm:$0x2] %vm150, %v149
    %s155 = scalar_lea.vmem %s1, 74
    %156 = vst.msk [vmem:[%s155] sm:$0x4] %vm150, %v149
    %s157 = scalar_lea.vmem %s1, 105
    %158 = vst.msk [vmem:[%s157] sm:$0x8] %vm150, %v149
    %v159 = vld [vmem:[#allocation0] sm:$0xf]
    %160 = vrot.lane.b32.xlu0 %v159, 115
    %v161 = vpop.permute.xlu0 %160
    %vm162 = vcmask 7168
    %s163 = scalar_lea.vmem %s1, 13
    %164 = vst.msk [vmem:[%s163] sm:$0x1] %vm162, %v161
    %s165 = scalar_lea.vmem %s1, 44
    %166 = vst.msk [vmem:[%s165] sm:$0x2] %vm162, %v161
    %s167 = scalar_lea.vmem %s1, 75
    %168 = vst.msk [vmem:[%s167] sm:$0x4] %vm162, %v161
    %s169 = scalar_lea.vmem %s1, 106
    %170 = vst.msk [vmem:[%s169] sm:$0x8] %vm162, %v161
    %v171 = vld [vmem:[#allocation0] sm:$0xf]
    %172 = vrot.lane.b32.xlu0 %v171, 114
    %v173 = vpop.permute.xlu0 %172
    %vm174 = vcmask 7168
    %s175 = scalar_lea.vmem %s1, 14
    %176 = vst.msk [vmem:[%s175] sm:$0x1] %vm174, %v173
    %s177 = scalar_lea.vmem %s1, 45
    %178 = vst.msk [vmem:[%s177] sm:$0x2] %vm174, %v173
    %s179 = scalar_lea.vmem %s1, 76
    %180 = vst.msk [vmem:[%s179] sm:$0x4] %vm174, %v173
    %s181 = scalar_lea.vmem %s1, 107
    %182 = vst.msk [vmem:[%s181] sm:$0x8] %vm174, %v173
    %v183 = vld [vmem:[#allocation0] sm:$0xf]
    %184 = vrot.lane.b32.xlu0 %v183, 113
    %v185 = vpop.permute.xlu0 %184
    %vm186 = vcmask 7168
    %s187 = scalar_lea.vmem %s1, 15
    %188 = vst.msk [vmem:[%s187] sm:$0x1] %vm186, %v185
    %s189 = scalar_lea.vmem %s1, 46
    %190 = vst.msk [vmem:[%s189] sm:$0x2] %vm186, %v185
    %s191 = scalar_lea.vmem %s1, 77
    %192 = vst.msk [vmem:[%s191] sm:$0x4] %vm186, %v185
    %s193 = scalar_lea.vmem %s1, 108
    %194 = vst.msk [vmem:[%s193] sm:$0x8] %vm186, %v185
    %v195 = vld [vmem:[#allocation0] sm:$0xf]
    %196 = vrot.lane.b32.xlu0 %v195, 112
    %v197 = vpop.permute.xlu0 %196
    %vm198 = vcmask 7168
    %s199 = scalar_lea.vmem %s1, 16
    %200 = vst.msk [vmem:[%s199] sm:$0x1] %vm198, %v197
    %s201 = scalar_lea.vmem %s1, 47
    %202 = vst.msk [vmem:[%s201] sm:$0x2] %vm198, %v197
    %s203 = scalar_lea.vmem %s1, 78
    %204 = vst.msk [vmem:[%s203] sm:$0x4] %vm198, %v197
    %s205 = scalar_lea.vmem %s1, 109
    %206 = vst.msk [vmem:[%s205] sm:$0x8] %vm198, %v197
    %v207 = vld [vmem:[#allocation0] sm:$0xf]
    %208 = vrot.lane.b32.xlu0 %v207, 111
    %v209 = vpop.permute.xlu0 %208
    %vm210 = vcmask 7168
    %s211 = scalar_lea.vmem %s1, 17
    %212 = vst.msk [vmem:[%s211] sm:$0x1] %vm210, %v209
    %s213 = scalar_lea.vmem %s1, 48
    %214 = vst.msk [vmem:[%s213] sm:$0x2] %vm210, %v209
    %s215 = scalar_lea.vmem %s1, 79
    %216 = vst.msk [vmem:[%s215] sm:$0x4] %vm210, %v209
    %s217 = scalar_lea.vmem %s1, 110
    %218 = vst.msk [vmem:[%s217] sm:$0x8] %vm210, %v209
    %v219 = vld [vmem:[#allocation0] sm:$0xf]
    %220 = vrot.lane.b32.xlu0 %v219, 110
    %v221 = vpop.permute.xlu0 %220
    %vm222 = vcmask 7168
    %s223 = scalar_lea.vmem %s1, 18
    %224 = vst.msk [vmem:[%s223] sm:$0x1] %vm222, %v221
    %s225 = scalar_lea.vmem %s1, 49
    %226 = vst.msk [vmem:[%s225] sm:$0x2] %vm222, %v221
    %s227 = scalar_lea.vmem %s1, 80
    %228 = vst.msk [vmem:[%s227] sm:$0x4] %vm222, %v221
    %s229 = scalar_lea.vmem %s1, 111
    %230 = vst.msk [vmem:[%s229] sm:$0x8] %vm222, %v221
    %v231 = vld [vmem:[#allocation0] sm:$0xf]
    %232 = vrot.lane.b32.xlu0 %v231, 109
    %v233 = vpop.permute.xlu0 %232
    %vm234 = vcmask 7168
    %s235 = scalar_lea.vmem %s1, 19
    %236 = vst.msk [vmem:[%s235] sm:$0x1] %vm234, %v233
    %s237 = scalar_lea.vmem %s1, 50
    %238 = vst.msk [vmem:[%s237] sm:$0x2] %vm234, %v233
    %s239 = scalar_lea.vmem %s1, 81
    %240 = vst.msk [vmem:[%s239] sm:$0x4] %vm234, %v233
    %s241 = scalar_lea.vmem %s1, 112
    %242 = vst.msk [vmem:[%s241] sm:$0x8] %vm234, %v233
    %v243 = vld [vmem:[#allocation0] sm:$0xf]
    %244 = vrot.lane.b32.xlu0 %v243, 108
    %v245 = vpop.permute.xlu0 %244
    %vm246 = vcmask 7168
    %s247 = scalar_lea.vmem %s1, 20
    %248 = vst.msk [vmem:[%s247] sm:$0x1] %vm246, %v245
    %s249 = scalar_lea.vmem %s1, 51
    %250 = vst.msk [vmem:[%s249] sm:$0x2] %vm246, %v245
    %s251 = scalar_lea.vmem %s1, 82
    %252 = vst.msk [vmem:[%s251] sm:$0x4] %vm246, %v245
    %s253 = scalar_lea.vmem %s1, 113
    %254 = vst.msk [vmem:[%s253] sm:$0x8] %vm246, %v245
    %v255 = vld [vmem:[#allocation0] sm:$0xf]
    %256 = vrot.lane.b32.xlu0 %v255, 107
    %v257 = vpop.permute.xlu0 %256
    %vm258 = vcmask 7168
    %s259 = scalar_lea.vmem %s1, 21
    %260 = vst.msk [vmem:[%s259] sm:$0x1] %vm258, %v257
    %s261 = scalar_lea.vmem %s1, 52
    %262 = vst.msk [vmem:[%s261] sm:$0x2] %vm258, %v257
    %s263 = scalar_lea.vmem %s1, 83
    %264 = vst.msk [vmem:[%s263] sm:$0x4] %vm258, %v257
    %s265 = scalar_lea.vmem %s1, 114
    %266 = vst.msk [vmem:[%s265] sm:$0x8] %vm258, %v257
    %v267 = vld [vmem:[#allocation0] sm:$0xf]
    %268 = vrot.lane.b32.xlu0 %v267, 106
    %v269 = vpop.permute.xlu0 %268
    %vm270 = vcmask 7168
    %s271 = scalar_lea.vmem %s1, 22
    %272 = vst.msk [vmem:[%s271] sm:$0x1] %vm270, %v269
    %s273 = scalar_lea.vmem %s1, 53
    %274 = vst.msk [vmem:[%s273] sm:$0x2] %vm270, %v269
    %s275 = scalar_lea.vmem %s1, 84
    %276 = vst.msk [vmem:[%s275] sm:$0x4] %vm270, %v269
    %s277 = scalar_lea.vmem %s1, 115
    %278 = vst.msk [vmem:[%s277] sm:$0x8] %vm270, %v269
    %v279 = vld [vmem:[#allocation0] sm:$0xf]
    %280 = vrot.lane.b32.xlu0 %v279, 105
    %v281 = vpop.permute.xlu0 %280
    %vm282 = vcmask 7168
    %s283 = scalar_lea.vmem %s1, 23
    %284 = vst.msk [vmem:[%s283] sm:$0x1] %vm282, %v281
    %s285 = scalar_lea.vmem %s1, 54
    %286 = vst.msk [vmem:[%s285] sm:$0x2] %vm282, %v281
    %s287 = scalar_lea.vmem %s1, 85
    %288 = vst.msk [vmem:[%s287] sm:$0x4] %vm282, %v281
    %s289 = scalar_lea.vmem %s1, 116
    %290 = vst.msk [vmem:[%s289] sm:$0x8] %vm282, %v281
    %v291 = vld [vmem:[#allocation0] sm:$0xf]
    %292 = vrot.lane.b32.xlu0 %v291, 104
    %v293 = vpop.permute.xlu0 %292
    %vm294 = vcmask 7168
    %s295 = scalar_lea.vmem %s1, 24
    %296 = vst.msk [vmem:[%s295] sm:$0x1] %vm294, %v293
    %s297 = scalar_lea.vmem %s1, 55
    %298 = vst.msk [vmem:[%s297] sm:$0x2] %vm294, %v293
    %s299 = scalar_lea.vmem %s1, 86
    %300 = vst.msk [vmem:[%s299] sm:$0x4] %vm294, %v293
    %s301 = scalar_lea.vmem %s1, 117
    %302 = vst.msk [vmem:[%s301] sm:$0x8] %vm294, %v293
    %v303 = vld [vmem:[#allocation0] sm:$0xf]
    %304 = vrot.lane.b32.xlu0 %v303, 103
    %v305 = vpop.permute.xlu0 %304
    %vm306 = vcmask 7168
    %s307 = scalar_lea.vmem %s1, 25
    %308 = vst.msk [vmem:[%s307] sm:$0x1] %vm306, %v305
    %s309 = scalar_lea.vmem %s1, 56
    %310 = vst.msk [vmem:[%s309] sm:$0x2] %vm306, %v305
    %s311 = scalar_lea.vmem %s1, 87
    %312 = vst.msk [vmem:[%s311] sm:$0x4] %vm306, %v305
    %s313 = scalar_lea.vmem %s1, 118
    %314 = vst.msk [vmem:[%s313] sm:$0x8] %vm306, %v305
    %v315 = vld [vmem:[#allocation0] sm:$0xf]
    %316 = vrot.lane.b32.xlu0 %v315, 102
    %v317 = vpop.permute.xlu0 %316
    %vm318 = vcmask 7168
    %s319 = scalar_lea.vmem %s1, 26
    %320 = vst.msk [vmem:[%s319] sm:$0x1] %vm318, %v317
    %s321 = scalar_lea.vmem %s1, 57
    %322 = vst.msk [vmem:[%s321] sm:$0x2] %vm318, %v317
    %s323 = scalar_lea.vmem %s1, 88
    %324 = vst.msk [vmem:[%s323] sm:$0x4] %vm318, %v317
    %s325 = scalar_lea.vmem %s1, 119
    %326 = vst.msk [vmem:[%s325] sm:$0x8] %vm318, %v317
    %v327 = vld [vmem:[#allocation0] sm:$0xf]
    %328 = vrot.lane.b32.xlu0 %v327, 101
    %v329 = vpop.permute.xlu0 %328
    %vm330 = vcmask 7168
    %s331 = scalar_lea.vmem %s1, 27
    %332 = vst.msk [vmem:[%s331] sm:$0x1] %vm330, %v329
    %s333 = scalar_lea.vmem %s1, 58
    %334 = vst.msk [vmem:[%s333] sm:$0x2] %vm330, %v329
    %s335 = scalar_lea.vmem %s1, 89
    %336 = vst.msk [vmem:[%s335] sm:$0x4] %vm330, %v329
    %s337 = scalar_lea.vmem %s1, 120
    %338 = vst.msk [vmem:[%s337] sm:$0x8] %vm330, %v329
    %v339 = vld [vmem:[#allocation0] sm:$0xf]
    %340 = vrot.lane.b32.xlu0 %v339, 100
    %v341 = vpop.permute.xlu0 %340
    %vm342 = vcmask 7168
    %s343 = scalar_lea.vmem %s1, 28
    %344 = vst.msk [vmem:[%s343] sm:$0x1] %vm342, %v341
    %s345 = scalar_lea.vmem %s1, 59
    %346 = vst.msk [vmem:[%s345] sm:$0x2] %vm342, %v341
    %s347 = scalar_lea.vmem %s1, 90
    %348 = vst.msk [vmem:[%s347] sm:$0x4] %vm342, %v341
    %s349 = scalar_lea.vmem %s1, 121
    %350 = vst.msk [vmem:[%s349] sm:$0x8] %vm342, %v341
    %v351 = vld [vmem:[#allocation0] sm:$0xf]
    %352 = vrot.lane.b32.xlu0 %v351, 99
    %v353 = vpop.permute.xlu0 %352
    %vm354 = vcmask 7168
    %s355 = scalar_lea.vmem %s1, 29
    %356 = vst.msk [vmem:[%s355] sm:$0x1] %vm354, %v353
    %s357 = scalar_lea.vmem %s1, 60
    %358 = vst.msk [vmem:[%s357] sm:$0x2] %vm354, %v353
    %s359 = scalar_lea.vmem %s1, 91
    %360 = vst.msk [vmem:[%s359] sm:$0x4] %vm354, %v353
    %s361 = scalar_lea.vmem %s1, 122
    %362 = vst.msk [vmem:[%s361] sm:$0x8] %vm354, %v353
    %v363 = vld [vmem:[#allocation0] sm:$0xf]
    %364 = vrot.lane.b32.xlu0 %v363, 98
    %v365 = vpop.permute.xlu0 %364
    %vm366 = vcmask 7168
    %s367 = scalar_lea.vmem %s1, 30
    %368 = vst.msk [vmem:[%s367] sm:$0x1] %vm366, %v365
    %s369 = scalar_lea.vmem %s1, 61
    %370 = vst.msk [vmem:[%s369] sm:$0x2] %vm366, %v365
    %s371 = scalar_lea.vmem %s1, 92
    %372 = vst.msk [vmem:[%s371] sm:$0x4] %vm366, %v365
    %s373 = scalar_lea.vmem %s1, 123
    %374 = vst.msk [vmem:[%s373] sm:$0x8] %vm366, %v365
    %v375 = vld [vmem:[#allocation0] sm:$0xf]
    %376 = vrot.lane.b32.xlu0 %v375, 97
    %v377 = vpop.permute.xlu0 %376
    %vm378 = vcmask 7168
    %s379 = scalar_lea.vmem %s1, 31
    %380 = vst.msk [vmem:[%s379] sm:$0x1] %vm378, %v377
    %s381 = scalar_lea.vmem %s1, 62
    %382 = vst.msk [vmem:[%s381] sm:$0x2] %vm378, %v377
    %s383 = scalar_lea.vmem %s1, 93
    %384 = vst.msk [vmem:[%s383] sm:$0x4] %vm378, %v377
    %s385 = scalar_lea.vmem %s1, 124
    %386 = vst.msk [vmem:[%s385] sm:$0x8] %vm378, %v377

// kernel: generator_forward.11
$region0: #{generator_forward.11}
  #allocation0 [shape = 'u32[]', space=smem, size = 0x4, offset = 0x4, fixed_abs, tag = 'smem constant byte address 0x4 - core index']
  #allocation1 [shape = 'u32[144,128]{1,0:T(1,128)}', space=vmem, size = 0x12000, scoped, tag = 'internal scratch']
  %s0 = inlined_call_operand.vmem [shape: bf16[2,16], index: 0, kind: input, shape index: {}]
  %s1 = inlined_call_operand.vmem [shape: bf16[16,1024], index: 1, kind: input, shape index: {}]
  %s2 = inlined_call_operand.vmem [shape: f32[1,1024], index: 2, kind: input, shape index: {}]
  %s3 = inlined_call_operand.vmem [shape: f32[2,1024], index: 3, kind: output, shape index: {}]
  %s4 = sld [smem:[#allocation0]]
  $region22: #{generator_forward.11} parent=0
    _
  %s6 = ssub.s32 1, %s4
  %s7 = scalar_select 0, %s6, %s4
  // Predicated region
  $region2: #{generator_forward.11} parent=0 // pred_check
    _
  $region3: #{generator_forward.11} parent=0 // pred_check_branch
    %9 = sbr.rel (0) target = $region5
  $region4: #{generator_forward.11} parent=0 // pred_region
    _
  $region5: #{generator_forward.11} parent=0 // pred_fallthru
    _
  // Predicated region
  $region6: #{generator_forward.11} parent=0 // pred_check
    _
  $region7: #{generator_forward.11} parent=0 // pred_check_branch
    %11 = sbr.rel (0) target = $region9
  $region8: #{generator_forward.11} parent=0 // pred_region
    _
  $region9: #{generator_forward.11} parent=0 // pred_fallthru
    _
  // Predicated region
  $region10: #{generator_forward.11} parent=0 // pred_check
    _
  $region11: #{generator_forward.11} parent=0 // pred_check_branch
    %13 = sbr.rel (0) target = $region13
  $region12: #{generator_forward.11} parent=0 // pred_region
    _
  $region13: #{generator_forward.11} parent=0 // pred_fallthru
    _
  %v15 = vld [vmem:[%s0] sm:$0x1]
  %v16 = vld [vmem:[%s1] sm:$0xff]
  %v17 = vld [vmem:[%s1 + $0x8] sm:$0xff]
  %v18 = vld [vmem:[%s1 + $0x10] sm:$0xff]
  %v19 = vld [vmem:[%s1 + $0x18] sm:$0xff]
  %v20 = vld [vmem:[%s1 + $0x20] sm:$0xff]
  %v21 = vld [vmem:[%s1 + $0x28] sm:$0xff]
  %v22 = vld [vmem:[%s1 + $0x30] sm:$0xff]
  %v23 = vld [vmem:[%s1 + $0x38] sm:$0xff]
  %v24 = vld [vmem:[%s2] sm:$0xff]
  %v26 = vlaneseq
  %v27 = vshrl.u32 %v26, 7
  %v28 = vsub.s32 0, %v27
  %v29 = vrot.slane %v24, %v28
  %v30 = vlaneseq
  %v31 = vshrl.u32 %v30, 7
  %v32 = vsub.s32 1, %v31
  %v33 = vrot.slane %v24, %v32
  %v34 = vlaneseq
  %v35 = vshrl.u32 %v34, 7
  %v36 = vsub.s32 2, %v35
  %v37 = vrot.slane %v24, %v36
  %v38 = vlaneseq
  %v39 = vshrl.u32 %v38, 7
  %v40 = vsub.s32 3, %v39
  %v41 = vrot.slane %v24, %v40
  %v42 = vlaneseq
  %v43 = vshrl.u32 %v42, 7
  %v44 = vsub.s32 4, %v43
  %v45 = vrot.slane %v24, %v44
  %v46 = vlaneseq
  %v47 = vshrl.u32 %v46, 7
  %v48 = vsub.s32 5, %v47
  %v49 = vrot.slane %v24, %v48
  %v50 = vlaneseq
  %v51 = vshrl.u32 %v50, 7
  %v52 = vsub.s32 6, %v51
  %v53 = vrot.slane %v24, %v52
  %v54 = vlaneseq
  %v55 = vshrl.u32 %v54, 7
  %v56 = vsub.s32 7, %v55
  %v57 = vrot.slane %v24, %v56
  %v74 = vunpack.c.l.b16 %v16
  %v75 = vunpack.c.h.b16 %v16
  %v76 = vunpack.c.l.b16 %v17
  %v77 = vunpack.c.h.b16 %v17
  %v78 = vunpack.c.l.b16 %v18
  %v79 = vunpack.c.h.b16 %v18
  %v80 = vunpack.c.l.b16 %v19
  %v81 = vunpack.c.h.b16 %v19
  %v82 = vunpack.c.l.b16 %v20
  %v83 = vunpack.c.h.b16 %v20
  %v84 = vunpack.c.l.b16 %v21
  %v85 = vunpack.c.h.b16 %v21
  %v86 = vunpack.c.l.b16 %v22
  %v87 = vunpack.c.h.b16 %v22
  %v88 = vunpack.c.l.b16 %v23
  %v89 = vunpack.c.h.b16 %v23
  %v90 = vpack.c.b16 %v82, %v74
  %v91 = vpack.c.b16 %v83, %v75
  %v92 = vpack.c.b16 %v84, %v76
  %v93 = vpack.c.b16 %v85, %v77
  %v94 = vpack.c.b16 %v86, %v78
  %v95 = vpack.c.b16 %v87, %v79
  %v96 = vpack.c.b16 %v88, %v80
  %v97 = vpack.c.b16 %v89, %v81
  %vm106 = vcmask 130048
  %v108 = vsel %vm106, %v15, 0
  %110 = vmatprep.subr.bf16.mxu0 %v91
  %111 = vmatpush1.bf16.msra.mxu0 %v90
  %112 = vmatprep.subr.bf16.mxu0 0
  %113 = vmatpush1.bf16.msra.mxu0 0
  %114 = vmatprep.subr.bf16.mxu0 0
  %115 = vmatpush1.bf16.msra.mxu0 0
  %116 = vmatprep.subr.bf16.mxu0 0
  %117 = vmatpush1.bf16.msra.mxu0 0
  %118 = vmatprep.subr.bf16.mxu0 0
  %119 = vmatpush1.bf16.msra.mxu0 0
  %120 = vmatprep.subr.bf16.mxu0 0
  %121 = vmatpush1.bf16.msra.mxu0 0
  %122 = vmatprep.subr.bf16.mxu0 0
  %123 = vmatpush1.bf16.msra.mxu0 0
  %124 = vmatprep.subr.bf16.mxu0 0
  %125 = vmatpush1.bf16.msra.mxu0 0
  %126 = vmatprep.subr.bf16.mxu0 0
  %127 = vmatpush1.bf16.msra.mxu0 0
  %128 = vmatprep.subr.bf16.mxu0 0
  %129 = vmatpush1.bf16.msra.mxu0 0
  %130 = vmatprep.subr.bf16.mxu0 0
  %131 = vmatpush1.bf16.msra.mxu0 0
  %132 = vmatprep.subr.bf16.mxu0 0
  %133 = vmatpush1.bf16.msra.mxu0 0
  %134 = vmatprep.subr.bf16.mxu0 0
  %135 = vmatpush1.bf16.msra.mxu0 0
  %136 = vmatprep.subr.bf16.mxu0 0
  %137 = vmatpush1.bf16.msra.mxu0 0
  %138 = vmatprep.subr.bf16.mxu0 0
  %139 = vmatpush1.bf16.msra.mxu0 0
  %140 = vmatprep.subr.bf16.mxu0 0
  %141 = vmatpush1.bf16.msra.mxu0 0
  %142 = vmatprep.mubr.bf16.mxu0 0
  %143 = vmatmul.mubr.bf16.gmra.mrb[0].mxu0 %v108
  %v144 = vpop.f32.mrb[0].mxu0
  %v145 = vadd.f32 %v29, %v144
  %v146 = vpop.f32.mrb[0].mxu0
  %v147 = vadd.f32 %v33, %v146
  %v148 = vpop.f32.mrb[0].mxu0
  %v149 = vpop.f32.mrb[0].mxu0
  %150 = vdwg.mxu0
  %151 = vmatprep.subr.bf16.mxu0 %v93
  %152 = vmatpush1.bf16.msra.mxu0 %v92
  %153 = vmatprep.subr.bf16.mxu0 0
  %154 = vmatpush1.bf16.msra.mxu0 0
  %155 = vmatprep.subr.bf16.mxu0 0
  %156 = vmatpush1.bf16.msra.mxu0 0
  %157 = vmatprep.subr.bf16.mxu0 0
  %158 = vmatpush1.bf16.msra.mxu0 0
  %159 = vmatprep.subr.bf16.mxu0 0
  %160 = vmatpush1.bf16.msra.mxu0 0
  %161 = vmatprep.subr.bf16.mxu0 0
  %162 = vmatpush1.bf16.msra.mxu0 0
  %163 = vmatprep.subr.bf16.mxu0 0
  %164 = vmatpush1.bf16.msra.mxu0 0
  %165 = vmatprep.subr.bf16.mxu0 0
  %166 = vmatpush1.bf16.msra.mxu0 0
  %167 = vmatprep.subr.bf16.mxu0 0
  %168 = vmatpush1.bf16.msra.mxu0 0
  %169 = vmatprep.subr.bf16.mxu0 0
  %170 = vmatpush1.bf16.msra.mxu0 0
  %171 = vmatprep.subr.bf16.mxu0 0
  %172 = vmatpush1.bf16.msra.mxu0 0
  %173 = vmatprep.subr.bf16.mxu0 0
  %174 = vmatpush1.bf16.msra.mxu0 0
  %175 = vmatprep.subr.bf16.mxu0 0
  %176 = vmatpush1.bf16.msra.mxu0 0
  %177 = vmatprep.subr.bf16.mxu0 0
  %178 = vmatpush1.bf16.msra.mxu0 0
  %179 = vmatprep.subr.bf16.mxu0 0
  %180 = vmatpush1.bf16.msra.mxu0 0
  %181 = vmatprep.subr.bf16.mxu0 0
  %182 = vmatpush1.bf16.msra.mxu0 0
  %183 = vmatprep.mubr.bf16.mxu0 0
  %184 = vmatmul.mubr.bf16.gmra.mrb[0].mxu0 %v108
  %v185 = vpop.f32.mrb[0].mxu0
  %v186 = vadd.f32 %v37, %v185
  %v187 = vpop.f32.mrb[0].mxu0
  %v188 = vadd.f32 %v41, %v187
  %v189 = vpop.f32.mrb[0].mxu0
  %v190 = vpop.f32.mrb[0].mxu0
  %191 = vdwg.mxu0
  %192 = vmatprep.subr.bf16.mxu0 %v95
  %193 = vmatpush1.bf16.msra.mxu0 %v94
  %194 = vmatprep.subr.bf16.mxu0 0
  %195 = vmatpush1.bf16.msra.mxu0 0
  %196 = vmatprep.subr.bf16.mxu0 0
  %197 = vmatpush1.bf16.msra.mxu0 0
  %198 = vmatprep.subr.bf16.mxu0 0
  %199 = vmatpush1.bf16.msra.mxu0 0
  %200 = vmatprep.subr.bf16.mxu0 0
  %201 = vmatpush1.bf16.msra.mxu0 0
  %202 = vmatprep.subr.bf16.mxu0 0
  %203 = vmatpush1.bf16.msra.mxu0 0
  %204 = vmatprep.subr.bf16.mxu0 0
  %205 = vmatpush1.bf16.msra.mxu0 0
  %206 = vmatprep.subr.bf16.mxu0 0
  %207 = vmatpush1.bf16.msra.mxu0 0
  %208 = vmatprep.subr.bf16.mxu0 0
  %209 = vmatpush1.bf16.msra.mxu0 0
  %210 = vmatprep.subr.bf16.mxu0 0
  %211 = vmatpush1.bf16.msra.mxu0 0
  %212 = vmatprep.subr.bf16.mxu0 0
  %213 = vmatpush1.bf16.msra.mxu0 0
  %214 = vmatprep.subr.bf16.mxu0 0
  %215 = vmatpush1.bf16.msra.mxu0 0
  %216 = vmatprep.subr.bf16.mxu0 0
  %217 = vmatpush1.bf16.msra.mxu0 0
  %218 = vmatprep.subr.bf16.mxu0 0
  %219 = vmatpush1.bf16.msra.mxu0 0
  %220 = vmatprep.subr.bf16.mxu0 0
  %221 = vmatpush1.bf16.msra.mxu0 0
  %222 = vmatprep.subr.bf16.mxu0 0
  %223 = vmatpush1.bf16.msra.mxu0 0
  %224 = vmatprep.mubr.bf16.mxu0 0
  %225 = vmatmul.mubr.bf16.gmra.mrb[0].mxu0 %v108
  %v226 = vpop.f32.mrb[0].mxu0
  %v227 = vadd.f32 %v45, %v226
  %v228 = vpop.f32.mrb[0].mxu0
  %v229 = vadd.f32 %v49, %v228
  %v230 = vpop.f32.mrb[0].mxu0
  %v231 = vpop.f32.mrb[0].mxu0
  %232 = vdwg.mxu0
  %233 = vmatprep.subr.bf16.mxu0 %v97
  %234 = vmatpush1.bf16.msra.mxu0 %v96
  %235 = vmatprep.subr.bf16.mxu0 0
  %236 = vmatpush1.bf16.msra.mxu0 0
  %237 = vmatprep.subr.bf16.mxu0 0
  %238 = vmatpush1.bf16.msra.mxu0 0
  %239 = vmatprep.subr.bf16.mxu0 0
  %240 = vmatpush1.bf16.msra.mxu0 0
  %241 = vmatprep.subr.bf16.mxu0 0
  %242 = vmatpush1.bf16.msra.mxu0 0
  %243 = vmatprep.subr.bf16.mxu0 0
  %244 = vmatpush1.bf16.msra.mxu0 0
  %245 = vmatprep.subr.bf16.mxu0 0
  %246 = vmatpush1.bf16.msra.mxu0 0
  %247 = vmatprep.subr.bf16.mxu0 0
  %248 = vmatpush1.bf16.msra.mxu0 0
  %249 = vmatprep.subr.bf16.mxu0 0
  %250 = vmatpush1.bf16.msra.mxu0 0
  %251 = vmatprep.subr.bf16.mxu0 0
  %252 = vmatpush1.bf16.msra.mxu0 0
  %253 = vmatprep.subr.bf16.mxu0 0
  %254 = vmatpush1.bf16.msra.mxu0 0
  %255 = vmatprep.subr.bf16.mxu0 0
  %256 = vmatpush1.bf16.msra.mxu0 0
  %257 = vmatprep.subr.bf16.mxu0 0
  %258 = vmatpush1.bf16.msra.mxu0 0
  %259 = vmatprep.subr.bf16.mxu0 0
  %260 = vmatpush1.bf16.msra.mxu0 0
  %261 = vmatprep.subr.bf16.mxu0 0
  %262 = vmatpush1.bf16.msra.mxu0 0
  %263 = vmatprep.subr.bf16.mxu0 0
  %264 = vmatpush1.bf16.msra.mxu0 0
  %265 = vmatprep.mubr.bf16.mxu0 0
  %266 = vmatmul.mubr.bf16.gmra.mrb[0].mxu0 %v108
  %v267 = vpop.f32.mrb[0].mxu0
  %v268 = vadd.f32 %v53, %v267
  %v269 = vpop.f32.mrb[0].mxu0
  %v270 = vadd.f32 %v57, %v269
  %v271 = vpop.f32.mrb[0].mxu0
  %v272 = vpop.f32.mrb[0].mxu0
  %273 = vdwg.mxu0
  %v282 = vcombine.low %v145, %v147
  %v283 = vcombine.low %v186, %v188
  %v285 = vunpack.c.l.s4 1983009808
  %v286 = vunpack.c.0.s8 %v285
  %v287 = vlaneseq
  %v288 = vshrl.u32 %v287, 7
  %v289 = vsub.s32 %v286, %v288
  %v290 = vrot.slane %v282, %v289
  %v292 = vunpack.c.l.s4 1983009808
  %v293 = vunpack.c.0.s8 %v292
  %v294 = vlaneseq
  %v295 = vshrl.u32 %v294, 7
  %v296 = vsub.s32 %v293, %v295
  %v297 = vrot.slane %v283, %v296
  %v298 = vcombine.low %v290, %v297
  %v299 = vcombine.low %v227, %v229
  %v300 = vcombine.low %v268, %v270
  %v302 = vunpack.c.l.s4 1983009808
  %v303 = vunpack.c.0.s8 %v302
  %v304 = vlaneseq
  %v305 = vshrl.u32 %v304, 7
  %v306 = vsub.s32 %v303, %v305
  %v307 = vrot.slane %v299, %v306
  %v309 = vunpack.c.l.s4 1983009808
  %v310 = vunpack.c.0.s8 %v309
  %v311 = vlaneseq
  %v312 = vshrl.u32 %v311, 7
  %v313 = vsub.s32 %v310, %v312
  %v314 = vrot.slane %v300, %v313
  %v315 = vcombine.low %v307, %v314
  %318 = vst [vmem:[%s3] sm:$0xff] %v298
  %319 = vst [vmem:[%s3 + $0x8] sm:$0xff] %v315
  // Predicated region
  $region14: #{generator_forward.11} parent=0 // pred_check
    _
  $region15: #{generator_forward.11} parent=0 // pred_check_branch
    %321 = sbr.rel (0) target = $region17
  $region16: #{generator_forward.11} parent=0 // pred_region
    _
  $region17: #{generator_forward.11} parent=0 // pred_fallthru
    _
  // Predicated region
  $region18: #{generator_forward.11} parent=0 // pred_check
    _
  $region19: #{generator_forward.11} parent=0 // pred_check_branch
    %323 = sbr.rel (0) target = $region21
  $region20: #{generator_forward.11} parent=0 // pred_region
    _
  $region21: #{generator_forward.11} parent=0 // pred_fallthru
    _

// kernel: generator_forward.12
$region0: #{generator_forward.12}
  #allocation0 [shape = 'u32[]', space=smem, size = 0x4, offset = 0x4, fixed_abs, tag = 'smem constant byte address 0x4 - core index']
  #allocation1 [shape = 'u32[144,128]{1,0:T(1,128)}', space=vmem, size = 0x12000, scoped, tag = 'internal scratch']
  %s0 = inlined_call_operand.vmem [shape: f32[2,1024], index: 0, kind: input, shape index: {}]
  %s1 = inlined_call_operand.vmem [shape: f32[1,1024], index: 1, kind: input, shape index: {}]
  %s2 = inlined_call_operand.vmem [shape: f32[1,1024], index: 2, kind: input, shape index: {}]
  %s3 = inlined_call_operand.vmem [shape: bf16[2,1024], index: 3, kind: output, shape index: {}]
  %s4 = sld [smem:[#allocation0]]
  $region22: #{generator_forward.12} parent=0
    _
  %s6 = ssub.s32 1, %s4
  %s7 = scalar_select 0, %s6, %s4
  // Predicated region
  $region2: #{generator_forward.12} parent=0 // pred_check
    _
  $region3: #{generator_forward.12} parent=0 // pred_check_branch
    %9 = sbr.rel (0) target = $region5
  $region4: #{generator_forward.12} parent=0 // pred_region
    _
  $region5: #{generator_forward.12} parent=0 // pred_fallthru
    _
  // Predicated region
  $region6: #{generator_forward.12} parent=0 // pred_check
    _
  $region7: #{generator_forward.12} parent=0 // pred_check_branch
    %11 = sbr.rel (0) target = $region9
  $region8: #{generator_forward.12} parent=0 // pred_region
    _
  $region9: #{generator_forward.12} parent=0 // pred_fallthru
    _
  // Predicated region
  $region10: #{generator_forward.12} parent=0 // pred_check
    _
  $region11: #{generator_forward.12} parent=0 // pred_check_branch
    %13 = sbr.rel (0) target = $region13
  $region12: #{generator_forward.12} parent=0 // pred_region
    _
  $region13: #{generator_forward.12} parent=0 // pred_fallthru
    _
  %v14 = vld [vmem:[%s0] sm:$0xff]
  %v15 = vld [vmem:[%s0 + $0x8] sm:$0xff]
  %v16 = vld [vmem:[%s1] sm:$0xff]
  %v18 = vlaneseq
  %v19 = vshrl.u32 %v18, 7
  %v20 = vsub.s32 0, %v19
  %v21 = vrot.slane %v16, %v20
  %v22 = vlaneseq
  %v23 = vshrl.u32 %v22, 7
  %v24 = vsub.s32 1, %v23
  %v25 = vrot.slane %v16, %v24
  %v26 = vlaneseq
  %v27 = vshrl.u32 %v26, 7
  %v28 = vsub.s32 2, %v27
  %v29 = vrot.slane %v16, %v28
  %v30 = vlaneseq
  %v31 = vshrl.u32 %v30, 7
  %v32 = vsub.s32 3, %v31
  %v33 = vrot.slane %v16, %v32
  %v34 = vlaneseq
  %v35 = vshrl.u32 %v34, 7
  %v36 = vsub.s32 4, %v35
  %v37 = vrot.slane %v16, %v36
  %v38 = vlaneseq
  %v39 = vshrl.u32 %v38, 7
  %v40 = vsub.s32 5, %v39
  %v41 = vrot.slane %v16, %v40
  %v42 = vlaneseq
  %v43 = vshrl.u32 %v42, 7
  %v44 = vsub.s32 6, %v43
  %v45 = vrot.slane %v16, %v44
  %v46 = vlaneseq
  %v47 = vshrl.u32 %v46, 7
  %v48 = vsub.s32 7, %v47
  %v49 = vrot.slane %v16, %v48
  %v50 = vcombine.low %v21, %v25
  %v51 = vcombine.low %v29, %v33
  %v53 = vunpack.c.l.s4 1983009808
  %v54 = vunpack.c.0.s8 %v53
  %v55 = vlaneseq
  %v56 = vshrl.u32 %v55, 7
  %v57 = vsub.s32 %v54, %v56
  %v58 = vrot.slane %v50, %v57
  %v60 = vunpack.c.l.s4 1983009808
  %v61 = vunpack.c.0.s8 %v60
  %v62 = vlaneseq
  %v63 = vshrl.u32 %v62, 7
  %v64 = vsub.s32 %v61, %v63
  %v65 = vrot.slane %v51, %v64
  %v66 = vcombine.low %v58, %v65
  %v67 = vcombine.low %v37, %v41
  %v68 = vcombine.low %v45, %v49
  %v70 = vunpack.c.l.s4 1983009808
  %v71 = vunpack.c.0.s8 %v70
  %v72 = vlaneseq
  %v73 = vshrl.u32 %v72, 7
  %v74 = vsub.s32 %v71, %v73
  %v75 = vrot.slane %v67, %v74
  %v77 = vunpack.c.l.s4 1983009808
  %v78 = vunpack.c.0.s8 %v77
  %v79 = vlaneseq
  %v80 = vshrl.u32 %v79, 7
  %v81 = vsub.s32 %v78, %v80
  %v82 = vrot.slane %v68, %v81
  %v83 = vcombine.low %v75, %v82
  %v86 = vmul.f32 %v14, %v66
  %v87 = vmul.f32 %v15, %v83
  %v88 = vld [vmem:[%s2] sm:$0xff]
  %v90 = vlaneseq
  %v91 = vshrl.u32 %v90, 7
  %v92 = vsub.s32 0, %v91
  %v93 = vrot.slane %v88, %v92
  %v94 = vlaneseq
  %v95 = vshrl.u32 %v94, 7
  %v96 = vsub.s32 1, %v95
  %v97 = vrot.slane %v88, %v96
  %v98 = vlaneseq
  %v99 = vshrl.u32 %v98, 7
  %v100 = vsub.s32 2, %v99
  %v101 = vrot.slane %v88, %v100
  %v102 = vlaneseq
  %v103 = vshrl.u32 %v102, 7
  %v104 = vsub.s32 3, %v103
  %v105 = vrot.slane %v88, %v104
  %v106 = vlaneseq
  %v107 = vshrl.u32 %v106, 7
  %v108 = vsub.s32 4, %v107
  %v109 = vrot.slane %v88, %v108
  %v110 = vlaneseq
  %v111 = vshrl.u32 %v110, 7
  %v112 = vsub.s32 5, %v111
  %v113 = vrot.slane %v88, %v112
  %v114 = vlaneseq
  %v115 = vshrl.u32 %v114, 7
  %v116 = vsub.s32 6, %v115
  %v117 = vrot.slane %v88, %v116
  %v118 = vlaneseq
  %v119 = vshrl.u32 %v118, 7
  %v120 = vsub.s32 7, %v119
  %v121 = vrot.slane %v88, %v120
  %v122 = vcombine.low %v93, %v97
  %v123 = vcombine.low %v101, %v105
  %v125 = vunpack.c.l.s4 1983009808
  %v126 = vunpack.c.0.s8 %v125
  %v127 = vlaneseq
  %v128 = vshrl.u32 %v127, 7
  %v129 = vsub.s32 %v126, %v128
  %v130 = vrot.slane %v122, %v129
  %v132 = vunpack.c.l.s4 1983009808
  %v133 = vunpack.c.0.s8 %v132
  %v134 = vlaneseq
  %v135 = vshrl.u32 %v134, 7
  %v136 = vsub.s32 %v133, %v135
  %v137 = vrot.slane %v123, %v136
  %v138 = vcombine.low %v130, %v137
  %v139 = vcombine.low %v109, %v113
  %v140 = vcombine.low %v117, %v121
  %v142 = vunpack.c.l.s4 1983009808
  %v143 = vunpack.c.0.s8 %v142
  %v144 = vlaneseq
  %v145 = vshrl.u32 %v144, 7
  %v146 = vsub.s32 %v143, %v145
  %v147 = vrot.slane %v139, %v146
  %v149 = vunpack.c.l.s4 1983009808
  %v150 = vunpack.c.0.s8 %v149
  %v151 = vlaneseq
  %v152 = vshrl.u32 %v151, 7
  %v153 = vsub.s32 %v150, %v152
  %v154 = vrot.slane %v140, %v153
  %v155 = vcombine.low %v147, %v154
  %v158 = vadd.f32 %v86, %v138
  %v159 = vadd.f32 %v87, %v155
  %vm160 = vcmp.ge.f32.partialorder %v158, 0.0
  %vm161 = vcmp.ge.f32.partialorder %v159, 0.0
  %v162 = vmul.f32 %v158, 0.2
  %v163 = vmul.f32 %v159, 0.2
  %v164 = vsel %vm160, %v158, %v162
  %v165 = vsel %vm161, %v159, %v163
  %v168 = vcombine.high %v164, %v164
  %v170 = vunpack.c.l.s4 1983009808
  %v171 = vunpack.c.0.s8 %v170
  %v172 = vlaneseq
  %v173 = vshrl.u32 %v172, 7
  %v174 = vsub.s32 %v171, %v173
  %v175 = vrot.slane %v164, %v174
  %v177 = vunpack.c.l.s4 1983009808
  %v178 = vunpack.c.0.s8 %v177
  %v179 = vlaneseq
  %v180 = vshrl.u32 %v179, 7
  %v181 = vsub.s32 %v178, %v180
  %v182 = vrot.slane %v168, %v181
  %v183 = vcombine.high %v175, %v175
  %v184 = vcombine.high %v182, %v182
  %v185 = vcombine.high %v165, %v165
  %v187 = vunpack.c.l.s4 1983009808
  %v188 = vunpack.c.0.s8 %v187
  %v189 = vlaneseq
  %v190 = vshrl.u32 %v189, 7
  %v191 = vsub.s32 %v188, %v190
  %v192 = vrot.slane %v165, %v191
  %v194 = vunpack.c.l.s4 1983009808
  %v195 = vunpack.c.0.s8 %v194
  %v196 = vlaneseq
  %v197 = vshrl.u32 %v196, 7
  %v198 = vsub.s32 %v195, %v197
  %v199 = vrot.slane %v185, %v198
  %v200 = vcombine.high %v192, %v192
  %v201 = vcombine.high %v199, %v199
  %v210 = vpack.c.bf16 %v175, %v175
  %v211 = vpack.c.bf16 %v183, %v183
  %v212 = vpack.c.bf16 %v182, %v182
  %v213 = vpack.c.bf16 %v184, %v184
  %v214 = vpack.c.bf16 %v192, %v192
  %v215 = vpack.c.bf16 %v200, %v200
  %v216 = vpack.c.bf16 %v199, %v199
  %v217 = vpack.c.bf16 %v201, %v201
  %v226 = vcombine.low %v210, %v211
  %v227 = vcombine.low %v212, %v213
  %v228 = vcombine.low %v214, %v215
  %v229 = vcombine.low %v216, %v217
  %v231 = vunpack.c.l.s4 1966171168
  %v232 = vunpack.c.0.s8 %v231
  %v233 = vlaneseq
  %v234 = vshrl.u32 %v233, 7
  %v235 = vsub.s32 %v232, %v234
  %v236 = vrot.slane %v226, %v235
  %v238 = vunpack.c.l.s4 1966171168
  %v239 = vunpack.c.0.s8 %v238
  %v240 = vlaneseq
  %v241 = vshrl.u32 %v240, 7
  %v242 = vsub.s32 %v239, %v241
  %v243 = vrot.slane %v227, %v242
  %v245 = vunpack.c.l.s4 1966171168
  %v246 = vunpack.c.0.s8 %v245
  %v247 = vlaneseq
  %v248 = vshrl.u32 %v247, 7
  %v249 = vsub.s32 %v246, %v248
  %v250 = vrot.slane %v228, %v249
  %v252 = vunpack.c.l.s4 1966171168
  %v253 = vunpack.c.0.s8 %v252
  %v254 = vlaneseq
  %v255 = vshrl.u32 %v254, 7
  %v256 = vsub.s32 %v253, %v255
  %v257 = vrot.slane %v229, %v256
  %v258 = vcombine.low %v236, %v243
  %v259 = vcombine.low %v250, %v257
  %v261 = vunpack.c.l.s4 1966171168
  %v262 = vunpack.c.0.s8 %v261
  %v263 = vlaneseq
  %v264 = vshrl.u32 %v263, 7
  %v265 = vsub.s32 %v262, %v264
  %v266 = vrot.slane %v258, %v265
  %v268 = vunpack.c.l.s4 1966171168
  %v269 = vunpack.c.0.s8 %v268
  %v270 = vlaneseq
  %v271 = vshrl.u32 %v270, 7
  %v272 = vsub.s32 %v269, %v271
  %v273 = vrot.slane %v259, %v272
  %v274 = vcombine.low %v266, %v273
  %276 = vst [vmem:[%s3] sm:$0xff] %v274
  // Predicated region
  $region14: #{generator_forward.12} parent=0 // pred_check
    _
  $region15: #{generator_forward.12} parent=0 // pred_check_branch
    %278 = sbr.rel (0) target = $region17
  $region16: #{generator_forward.12} parent=0 // pred_region
    _
  $region17: #{generator_forward.12} parent=0 // pred_fallthru
    _
  // Predicated region
  $region18: #{generator_forward.12} parent=0 // pred_check
    _
  $region19: #{generator_forward.12} parent=0 // pred_check_branch
    %280 = sbr.rel (0) target = $region21
  $region20: #{generator_forward.12} parent=0 // pred_region
    _
  $region21: #{generator_forward.12} parent=0 // pred_fallthru
    _

// kernel: tile.78
$region0: #{tile.78}
  #allocation0 [shape = 's32[1]{0}', space=sflag, size = 0x4, scoped, tag = 'scoped memory for tile.78']
  %s0 = inlined_call_operand.vmem [shape: f32[32], index: 0, kind: input, shape index: {}]
  %s1 = inlined_call_operand.vmem [shape: f32[4,32], index: 1, kind: output, shape index: {}]
  // Predicated region
  $region2: #{tile.78} parent=0 // pred_check
    _
  $region3: #{tile.78} parent=0 // pred_check_branch
    %3 = sbr.rel (0) target = $region5
  $region4: #{tile.78} parent=0 // pred_region
    _
  $region5: #{tile.78} parent=0 // pred_fallthru
    _
  %v4 = vld [vmem:[%s0] ss:$0 sm:$0xff]
  %5 = vst [vmem:[%s1] sm:$0xf] %v4

// kernel: generator_forward.14
$region0: #{generator_forward.14}
  #allocation0 [shape = 'u32[]', space=smem, size = 0x4, offset = 0x4, fixed_abs, tag = 'smem constant byte address 0x4 - core index']
  #allocation1 [shape = 'u32[144,128]{1,0:T(1,128)}', space=vmem, size = 0x12000, scoped, tag = 'internal scratch']
  %s0 = inlined_call_operand.vmem [shape: bf16[128,32], index: 0, kind: input, shape index: {}]
  %s1 = inlined_call_operand.vmem [shape: f32[128,1], index: 1, kind: input, shape index: {}]
  %s2 = inlined_call_operand.vmem [shape: f32[128,1], index: 2, kind: input, shape index: {}]
  %s3 = inlined_call_operand.vmem [shape: bf16[128,32], index: 3, kind: output, shape index: {}]
  %s4 = sld [smem:[#allocation0]]
  $region22: #{generator_forward.14} parent=0
    _
  %s6 = ssub.s32 1, %s4
  %s7 = scalar_select 0, %s6, %s4
  // Predicated region
  $region2: #{generator_forward.14} parent=0 // pred_check
    _
  $region3: #{generator_forward.14} parent=0 // pred_check_branch
    %9 = sbr.rel (0) target = $region5
  $region4: #{generator_forward.14} parent=0 // pred_region
    _
  $region5: #{generator_forward.14} parent=0 // pred_fallthru
    _
  // Predicated region
  $region6: #{generator_forward.14} parent=0 // pred_check
    _
  $region7: #{generator_forward.14} parent=0 // pred_check_branch
    %11 = sbr.rel (0) target = $region9
  $region8: #{generator_forward.14} parent=0 // pred_region
    _
  $region9: #{generator_forward.14} parent=0 // pred_fallthru
    _
  // Predicated region
  $region10: #{generator_forward.14} parent=0 // pred_check
    _
  $region11: #{generator_forward.14} parent=0 // pred_check_branch
    %13 = sbr.rel (0) target = $region13
  $region12: #{generator_forward.14} parent=0 // pred_region
    _
  $region13: #{generator_forward.14} parent=0 // pred_fallthru
    _
  %v14 = vld [vmem:[%s0] sm:$0xf]
  %v15 = vld [vmem:[%s0 + $0x4] sm:$0xf]
  %v16 = vld [vmem:[%s0 + $0x8] sm:$0xf]
  %v17 = vld [vmem:[%s0 + $0xc] sm:$0xf]
  %v18 = vld [vmem:[%s0 + $0x10] sm:$0xf]
  %v19 = vld [vmem:[%s0 + $0x14] sm:$0xf]
  %v20 = vld [vmem:[%s0 + $0x18] sm:$0xf]
  %v21 = vld [vmem:[%s0 + $0x1c] sm:$0xf]
  %v22 = vld [vmem:[%s0 + $0x20] sm:$0xf]
  %v23 = vld [vmem:[%s0 + $0x24] sm:$0xf]
  %v24 = vld [vmem:[%s0 + $0x28] sm:$0xf]
  %v25 = vld [vmem:[%s0 + $0x2c] sm:$0xf]
  %v26 = vld [vmem:[%s0 + $0x30] sm:$0xf]
  %v27 = vld [vmem:[%s0 + $0x34] sm:$0xf]
  %v28 = vld [vmem:[%s0 + $0x38] sm:$0xf]
  %v29 = vld [vmem:[%s0 + $0x3c] sm:$0xf]
  %v30 = vunpack.c.l.bf16 %v14
  %v31 = vunpack.c.l.bf16 %v15
  %v32 = vunpack.c.l.bf16 %v16
  %v33 = vunpack.c.l.bf16 %v17
  %v34 = vunpack.c.l.bf16 %v18
  %v35 = vunpack.c.l.bf16 %v19
  %v36 = vunpack.c.l.bf16 %v20
  %v37 = vunpack.c.l.bf16 %v21
  %v38 = vunpack.c.l.bf16 %v22
  %v39 = vunpack.c.l.bf16 %v23
  %v40 = vunpack.c.l.bf16 %v24
  %v41 = vunpack.c.l.bf16 %v25
  %v42 = vunpack.c.l.bf16 %v26
  %v43 = vunpack.c.l.bf16 %v27
  %v44 = vunpack.c.l.bf16 %v28
  %v45 = vunpack.c.l.bf16 %v29
  %v46 = vld [vmem:[%s1] sm:$0xff]
  %v47 = vld [vmem:[%s1 + $0x8] sm:$0xff]
  %v48 = vld [vmem:[%s1 + $0x10] sm:$0xff]
  %v49 = vld [vmem:[%s1 + $0x18] sm:$0xff]
  %v50 = vld [vmem:[%s1 + $0x20] sm:$0xff]
  %v51 = vld [vmem:[%s1 + $0x28] sm:$0xff]
  %v52 = vld [vmem:[%s1 + $0x30] sm:$0xff]
  %v53 = vld [vmem:[%s1 + $0x38] sm:$0xff]
  %v54 = vld [vmem:[%s1 + $0x40] sm:$0xff]
  %v55 = vld [vmem:[%s1 + $0x48] sm:$0xff]
  %v56 = vld [vmem:[%s1 + $0x50] sm:$0xff]
  %v57 = vld [vmem:[%s1 + $0x58] sm:$0xff]
  %v58 = vld [vmem:[%s1 + $0x60] sm:$0xff]
  %v59 = vld [vmem:[%s1 + $0x68] sm:$0xff]
  %v60 = vld [vmem:[%s1 + $0x70] sm:$0xff]
  %v61 = vld [vmem:[%s1 + $0x78] sm:$0xff]
  %63 = vset.pattern.permute.xlu0 0
  %64 = vperm.xlu0 %63, %v46
  %v65 = vpop.permute.xlu0 %64
  %68 = vset.pattern.permute.xlu0 0
  %69 = vperm.xlu0 %68, %v47
  %v70 = vpop.permute.xlu0 %69
  %73 = vset.pattern.permute.xlu0 0
  %74 = vperm.xlu0 %73, %v48
  %v75 = vpop.permute.xlu0 %74
  %78 = vset.pattern.permute.xlu0 0
  %79 = vperm.xlu0 %78, %v49
  %v80 = vpop.permute.xlu0 %79
  %83 = vset.pattern.permute.xlu0 0
  %84 = vperm.xlu0 %83, %v50
  %v85 = vpop.permute.xlu0 %84
  %88 = vset.pattern.permute.xlu0 0
  %89 = vperm.xlu0 %88, %v51
  %v90 = vpop.permute.xlu0 %89
  %93 = vset.pattern.permute.xlu0 0
  %94 = vperm.xlu0 %93, %v52
  %v95 = vpop.permute.xlu0 %94
  %98 = vset.pattern.permute.xlu0 0
  %99 = vperm.xlu0 %98, %v53
  %v100 = vpop.permute.xlu0 %99
  %103 = vset.pattern.permute.xlu0 0
  %104 = vperm.xlu0 %103, %v54
  %v105 = vpop.permute.xlu0 %104
  %108 = vset.pattern.permute.xlu0 0
  %109 = vperm.xlu0 %108, %v55
  %v110 = vpop.permute.xlu0 %109
  %113 = vset.pattern.permute.xlu0 0
  %114 = vperm.xlu0 %113, %v56
  %v115 = vpop.permute.xlu0 %114
  %118 = vset.pattern.permute.xlu0 0
  %119 = vperm.xlu0 %118, %v57
  %v120 = vpop.permute.xlu0 %119
  %123 = vset.pattern.permute.xlu0 0
  %124 = vperm.xlu0 %123, %v58
  %v125 = vpop.permute.xlu0 %124
  %128 = vset.pattern.permute.xlu0 0
  %129 = vperm.xlu0 %128, %v59
  %v130 = vpop.permute.xlu0 %129
  %133 = vset.pattern.permute.xlu0 0
  %134 = vperm.xlu0 %133, %v60
  %v135 = vpop.permute.xlu0 %134
  %138 = vset.pattern.permute.xlu0 0
  %139 = vperm.xlu0 %138, %v61
  %v140 = vpop.permute.xlu0 %139
  %v142 = vmul.f32 %v30, %v65
  %v143 = vmul.f32 %v31, %v70
  %v144 = vmul.f32 %v32, %v75
  %v145 = vmul.f32 %v33, %v80
  %v146 = vmul.f32 %v34, %v85
  %v147 = vmul.f32 %v35, %v90
  %v148 = vmul.f32 %v36, %v95
  %v149 = vmul.f32 %v37, %v100
  %v150 = vmul.f32 %v38, %v105
  %v151 = vmul.f32 %v39, %v110
  %v152 = vmul.f32 %v40, %v115
  %v153 = vmul.f32 %v41, %v120
  %v154 = vmul.f32 %v42, %v125
  %v155 = vmul.f32 %v43, %v130
  %v156 = vmul.f32 %v44, %v135
  %v157 = vmul.f32 %v45, %v140
  %v158 = vld [vmem:[%s2] sm:$0xff]
  %v159 = vld [vmem:[%s2 + $0x8] sm:$0xff]
  %v160 = vld [vmem:[%s2 + $0x10] sm:$0xff]
  %v161 = vld [vmem:[%s2 + $0x18] sm:$0xff]
  %v162 = vld [vmem:[%s2 + $0x20] sm:$0xff]
  %v163 = vld [vmem:[%s2 + $0x28] sm:$0xff]
  %v164 = vld [vmem:[%s2 + $0x30] sm:$0xff]
  %v165 = vld [vmem:[%s2 + $0x38] sm:$0xff]
  %v166 = vld [vmem:[%s2 + $0x40] sm:$0xff]
  %v167 = vld [vmem:[%s2 + $0x48] sm:$0xff]
  %v168 = vld [vmem:[%s2 + $0x50] sm:$0xff]
  %v169 = vld [vmem:[%s2 + $0x58] sm:$0xff]
  %v170 = vld [vmem:[%s2 + $0x60] sm:$0xff]
  %v171 = vld [vmem:[%s2 + $0x68] sm:$0xff]
  %v172 = vld [vmem:[%s2 + $0x70] sm:$0xff]
  %v173 = vld [vmem:[%s2 + $0x78] sm:$0xff]
  %175 = vset.pattern.permute.xlu0 0
  %176 = vperm.xlu0 %175, %v158
  %v177 = vpop.permute.xlu0 %176
  %180 = vset.pattern.permute.xlu0 0
  %181 = vperm.xlu0 %180, %v159
  %v182 = vpop.permute.xlu0 %181
  %185 = vset.pattern.permute.xlu0 0
  %186 = vperm.xlu0 %185, %v160
  %v187 = vpop.permute.xlu0 %186
  %190 = vset.pattern.permute.xlu0 0
  %191 = vperm.xlu0 %190, %v161
  %v192 = vpop.permute.xlu0 %191
  %195 = vset.pattern.permute.xlu0 0
  %196 = vperm.xlu0 %195, %v162
  %v197 = vpop.permute.xlu0 %196
  %200 = vset.pattern.permute.xlu0 0
  %201 = vperm.xlu0 %200, %v163
  %v202 = vpop.permute.xlu0 %201
  %205 = vset.pattern.permute.xlu0 0
  %206 = vperm.xlu0 %205, %v164
  %v207 = vpop.permute.xlu0 %206
  %210 = vset.pattern.permute.xlu0 0
  %211 = vperm.xlu0 %210, %v165
  %v212 = vpop.permute.xlu0 %211
  %215 = vset.pattern.permute.xlu0 0
  %216 = vperm.xlu0 %215, %v166
  %v217 = vpop.permute.xlu0 %216
  %220 = vset.pattern.permute.xlu0 0
  %221 = vperm.xlu0 %220, %v167
  %v222 = vpop.permute.xlu0 %221
  %225 = vset.pattern.permute.xlu0 0
  %226 = vperm.xlu0 %225, %v168
  %v227 = vpop.permute.xlu0 %226
  %230 = vset.pattern.permute.xlu0 0
  %231 = vperm.xlu0 %230, %v169
  %v232 = vpop.permute.xlu0 %231
  %235 = vset.pattern.permute.xlu0 0
  %236 = vperm.xlu0 %235, %v170
  %v237 = vpop.permute.xlu0 %236
  %240 = vset.pattern.permute.xlu0 0
  %241 = vperm.xlu0 %240, %v171
  %v242 = vpop.permute.xlu0 %241
  %245 = vset.pattern.permute.xlu0 0
  %246 = vperm.xlu0 %245, %v172
  %v247 = vpop.permute.xlu0 %246
  %250 = vset.pattern.permute.xlu0 0
  %251 = vperm.xlu0 %250, %v173
  %v252 = vpop.permute.xlu0 %251
  %v254 = vadd.f32 %v142, %v177
  %v255 = vadd.f32 %v143, %v182
  %v256 = vadd.f32 %v144, %v187
  %v257 = vadd.f32 %v145, %v192
  %v258 = vadd.f32 %v146, %v197
  %v259 = vadd.f32 %v147, %v202
  %v260 = vadd.f32 %v148, %v207
  %v261 = vadd.f32 %v149, %v212
  %v262 = vadd.f32 %v150, %v217
  %v263 = vadd.f32 %v151, %v222
  %v264 = vadd.f32 %v152, %v227
  %v265 = vadd.f32 %v153, %v232
  %v266 = vadd.f32 %v154, %v237
  %v267 = vadd.f32 %v155, %v242
  %v268 = vadd.f32 %v156, %v247
  %v269 = vadd.f32 %v157, %v252
  %vm270 = vcmp.ge.f32.partialorder %v254, 0.0
  %vm271 = vcmp.ge.f32.partialorder %v255, 0.0
  %vm272 = vcmp.ge.f32.partialorder %v256, 0.0
  %vm273 = vcmp.ge.f32.partialorder %v257, 0.0
  %vm274 = vcmp.ge.f32.partialorder %v258, 0.0
  %vm275 = vcmp.ge.f32.partialorder %v259, 0.0
  %vm276 = vcmp.ge.f32.partialorder %v260, 0.0
  %vm277 = vcmp.ge.f32.partialorder %v261, 0.0
  %vm278 = vcmp.ge.f32.partialorder %v262, 0.0
  %vm279 = vcmp.ge.f32.partialorder %v263, 0.0
  %vm280 = vcmp.ge.f32.partialorder %v264, 0.0
  %vm281 = vcmp.ge.f32.partialorder %v265, 0.0
  %vm282 = vcmp.ge.f32.partialorder %v266, 0.0
  %vm283 = vcmp.ge.f32.partialorder %v267, 0.0
  %vm284 = vcmp.ge.f32.partialorder %v268, 0.0
  %vm285 = vcmp.ge.f32.partialorder %v269, 0.0
  %v286 = vmul.f32 %v254, 0.2
  %v287 = vmul.f32 %v255, 0.2
  %v288 = vmul.f32 %v256, 0.2
  %v289 = vmul.f32 %v257, 0.2
  %v290 = vmul.f32 %v258, 0.2
  %v291 = vmul.f32 %v259, 0.2
  %v292 = vmul.f32 %v260, 0.2
  %v293 = vmul.f32 %v261, 0.2
  %v294 = vmul.f32 %v262, 0.2
  %v295 = vmul.f32 %v263, 0.2
  %v296 = vmul.f32 %v264, 0.2
  %v297 = vmul.f32 %v265, 0.2
  %v298 = vmul.f32 %v266, 0.2
  %v299 = vmul.f32 %v267, 0.2
  %v300 = vmul.f32 %v268, 0.2
  %v301 = vmul.f32 %v269, 0.2
  %v302 = vsel %vm270, %v254, %v286
  %v303 = vsel %vm271, %v255, %v287
  %v304 = vsel %vm272, %v256, %v288
  %v305 = vsel %vm273, %v257, %v289
  %v306 = vsel %vm274, %v258, %v290
  %v307 = vsel %vm275, %v259, %v291
  %v308 = vsel %vm276, %v260, %v292
  %v309 = vsel %vm277, %v261, %v293
  %v310 = vsel %vm278, %v262, %v294
  %v311 = vsel %vm279, %v263, %v295
  %v312 = vsel %vm280, %v264, %v296
  %v313 = vsel %vm281, %v265, %v297
  %v314 = vsel %vm282, %v266, %v298
  %v315 = vsel %vm283, %v267, %v299
  %v316 = vsel %vm284, %v268, %v300
  %v317 = vsel %vm285, %v269, %v301
  %v318 = vpack.c.bf16 %v303, %v302
  %v319 = vpack.c.bf16 %v305, %v304
  %v320 = vpack.c.bf16 %v307, %v306
  %v321 = vpack.c.bf16 %v309, %v308
  %v322 = vpack.c.bf16 %v311, %v310
  %v323 = vpack.c.bf16 %v313, %v312
  %v324 = vpack.c.bf16 %v315, %v314
  %v325 = vpack.c.bf16 %v317, %v316
  %v334 = vunpack.c.l.b16 %v318
  %v335 = vunpack.c.h.b16 %v318
  %v336 = vunpack.c.l.b16 %v319
  %v337 = vunpack.c.h.b16 %v319
  %v338 = vunpack.c.l.b16 %v320
  %v339 = vunpack.c.h.b16 %v320
  %v340 = vunpack.c.l.b16 %v321
  %v341 = vunpack.c.h.b16 %v321
  %v342 = vunpack.c.l.b16 %v322
  %v343 = vunpack.c.h.b16 %v322
  %v344 = vunpack.c.l.b16 %v323
  %v345 = vunpack.c.h.b16 %v323
  %v346 = vunpack.c.l.b16 %v324
  %v347 = vunpack.c.h.b16 %v324
  %v348 = vunpack.c.l.b16 %v325
  %v349 = vunpack.c.h.b16 %v325
  %v350 = vpack.c.b16 %v334, %v334
  %v351 = vpack.c.b16 %v335, %v335
  %v352 = vpack.c.b16 %v336, %v336
  %v353 = vpack.c.b16 %v337, %v337
  %v354 = vpack.c.b16 %v338, %v338
  %v355 = vpack.c.b16 %v339, %v339
  %v356 = vpack.c.b16 %v340, %v340
  %v357 = vpack.c.b16 %v341, %v341
  %v358 = vpack.c.b16 %v342, %v342
  %v359 = vpack.c.b16 %v343, %v343
  %v360 = vpack.c.b16 %v344, %v344
  %v361 = vpack.c.b16 %v345, %v345
  %v362 = vpack.c.b16 %v346, %v346
  %v363 = vpack.c.b16 %v347, %v347
  %v364 = vpack.c.b16 %v348, %v348
  %v365 = vpack.c.b16 %v349, %v349
  %vm382 = vcmask 257024
  %383 = vst.msk [vmem:[%s3] sm:$0xf] %vm382, %v350
  %384 = vst.msk [vmem:[%s3 + $0x4] sm:$0xf] %vm382, %v351
  %385 = vst.msk [vmem:[%s3 + $0x8] sm:$0xf] %vm382, %v352
  %386 = vst.msk [vmem:[%s3 + $0xc] sm:$0xf] %vm382, %v353
  %387 = vst.msk [vmem:[%s3 + $0x10] sm:$0xf] %vm382, %v354
  %388 = vst.msk [vmem:[%s3 + $0x14] sm:$0xf] %vm382, %v355
  %389 = vst.msk [vmem:[%s3 + $0x18] sm:$0xf] %vm382, %v356
  %390 = vst.msk [vmem:[%s3 + $0x1c] sm:$0xf] %vm382, %v357
  %391 = vst.msk [vmem:[%s3 + $0x20] sm:$0xf] %vm382, %v358
  %392 = vst.msk [vmem:[%s3 + $0x24] sm:$0xf] %vm382, %v359
  %393 = vst.msk [vmem:[%s3 + $0x28] sm:$0xf] %vm382, %v360
  %394 = vst.msk [vmem:[%s3 + $0x2c] sm:$0xf] %vm382, %v361
  %395 = vst.msk [vmem:[%s3 + $0x30] sm:$0xf] %vm382, %v362
  %396 = vst.msk [vmem:[%s3 + $0x34] sm:$0xf] %vm382, %v363
  %397 = vst.msk [vmem:[%s3 + $0x38] sm:$0xf] %vm382, %v364
  %398 = vst.msk [vmem:[%s3 + $0x3c] sm:$0xf] %vm382, %v365
  // Predicated region
  $region14: #{generator_forward.14} parent=0 // pred_check
    _
  $region15: #{generator_forward.14} parent=0 // pred_check_branch
    %400 = sbr.rel (0) target = $region17
  $region16: #{generator_forward.14} parent=0 // pred_region
    _
  $region17: #{generator_forward.14} parent=0 // pred_fallthru
    _
  // Predicated region
  $region18: #{generator_forward.14} parent=0 // pred_check
    _
  $region19: #{generator_forward.14} parent=0 // pred_check_branch
    %402 = sbr.rel (0) target = $region21
  $region20: #{generator_forward.14} parent=0 // pred_region
    _
  $region21: #{generator_forward.14} parent=0 // pred_fallthru
    _

// kernel: generator_forward.13
$region0: #{generator_forward.13}
  #allocation0 [shape = 'u32[]', space=smem, size = 0x4, offset = 0x4, fixed_abs, tag = 'smem constant byte address 0x4 - core index']
  #allocation1 [shape = 'u32[144,128]{1,0:T(1,128)}', space=vmem, size = 0x12000, scoped, tag = 'internal scratch']
  #allocation2 [shape = 'f32[128,32]{1,0:T(8,128)}', space=vmem, size = 0x10000, scoped, tag = 'scratch operand']
  %s0 = inlined_call_operand.vmem [shape: bf16[3,3,64,32], index: 0, kind: input, shape index: {}]
  %s1 = inlined_call_operand.vmem [shape: bf16[3,3,128,64], index: 1, kind: input, shape index: {}]
  %s2 = inlined_call_operand.vmem [shape: f32[128,1], index: 2, kind: input, shape index: {}]
  %s3 = inlined_call_operand.vmem [shape: bf16[128,32], index: 3, kind: output, shape index: {0}]
  %s4 = inlined_call_operand.vmem [shape: f32[1,128,1], index: 4, kind: output, shape index: {1}]
  %s5 = inlined_call_operand.vmem [shape: f32[1,128,1], index: 5, kind: output, shape index: {2}]
  %6 = xla_tuple %s3, %s4, %s5
  %s7 = sld [smem:[#allocation0]]
  $region69: #{generator_forward.13} parent=0
    _
  %s9 = ssub.s32 1, %s7
  %s10 = scalar_select 0, %s9, %s7
  loop: start=0, step=1, limit=11
  $region2: #{generator_forward.13} parent=0 // loop_pre_header
    _
  $region3: #{generator_forward.13} parent=0 // loop_header
    %s12 = sphi 0, %s16
    %p13 = scmp.ge.s32.totalorder %s12, 11
    %s19 = sphi 0, %s38
    %s20 = sphi 0, %s34
    %s21 = sphi 0, %s30
    %s22 = sphi 0, %s19
    %s23 = sphi 0, %s20
    %s24 = sphi 0, %s21
    %s25 = sphi 0, %s22
    %s26 = sphi 0, %s23
    %s27 = sphi 0, %s24
    %s45 = sphi 0, %s47
    %s48 = sphi 0, %s45
    %s49 = sphi 0, %s48
    %s65 = sphi 0, %s49
    %s73 = sphi 0, %s75
    %s76 = sphi 0, %s73
    %s77 = sphi 0, %s76
    %s93 = sphi 0, %s77
    %s97 = sphi 0, %s97
    %s99 = sphi 0, %s97
    %s100 = sphi 0, %s99
    %s114 = sphi 0, %s100
    %s120 = sphi 0, %s122
    %s123 = sphi 0, %s120
    %s124 = sphi 0, %s123
    %s140 = sphi 0, %s124
    %s146 = sphi 0, %s148
    %s149 = sphi 0, %s146
    %s150 = sphi 0, %s149
    %s166 = sphi 0, %s150
    %s172 = sphi 0, %s174
    %s175 = sphi 0, %s172
    %s176 = sphi 0, %s175
    %s192 = sphi 0, %s176
  $region4: #{generator_forward.13} parent=0 // loop_header_branch
    %15 = sbr.rel (%p13) target = $region8
  $region5: #{generator_forward.13} parent=0 // loop_body
    %s17 = ssub.s32 %s12, 1
    %s18 = ssub.s32 %s12, 2
    %s28 = sadd.s32 1, %s21
    %p29 = scmp.ge.s32.totalorder %s28, 3
    %s30 = scalar_select %p29, 0, %s28
    %s31 = sadd.s32 1, %s20
    %s32 = scalar_select %p29, %s31, %s20
    %p33 = scmp.ge.s32.totalorder %s32, 3
    %s34 = scalar_select %p33, 0, %s32
    %s35 = sadd.s32 1, %s19
    %s36 = scalar_select %p33, %s35, %s19
    %p37 = scmp.ge.s32.totalorder %s36, 1
    %s38 = scalar_select %p37, 0, %s36
    %s39 = ssub.s32 %s20, %s34
    %s40 = ssub.s32 %s21, %s30
    %s41 = sor.u32 %s39, %s40
    %s42 = ssub.s32 %s19, %s38
    %s43 = sor.u32 %s41, %s42
    %p44 = scmp.eq.s32.totalorder %s43, 0
    %s46 = sadd.s32 %s45, 1
    %s47 = scalar_select %p44, %s45, %s46
    %p50 = pneg %p44
    %p51 = scmp.eq.s32.totalorder %s12, 8
    %p52 = por %p50, %p51
    %p53 = scmp.ne.s32.totalorder %s45, %s48
    %p54 = scmp.eq.s32.totalorder %s12, 0
    %p55 = por %p53, %p54
    %p56 = scmp.ne.s32.totalorder %s45, %s48
    %p57 = scmp.eq.s32.totalorder %s17, 8
    %p58 = por %p56, %p57
    %p59 = scmp.ne.s32.totalorder %s48, %s49
    %p60 = scmp.eq.s32.totalorder %s17, 0
    %p61 = por %p59, %p60
    %p62 = scmp.ne.s32.totalorder %s48, %s49
    %p63 = scmp.eq.s32.totalorder %s18, 8
    %p64 = por %p62, %p63
    %p66 = scmp.ne.s32.totalorder %s49, %s65
    %p67 = scmp.eq.s32.totalorder %s18, 0
    %p68 = por %p66, %p67
    %s69 = ssub.s32 %s20, %s34
    %s70 = ssub.s32 %s21, %s30
    %s71 = sor.u32 %s69, %s70
    %p72 = scmp.eq.s32.totalorder %s71, 0
    %s74 = sadd.s32 %s73, 1
    %s75 = scalar_select %p72, %s73, %s74
    %p78 = pneg %p72
    %p79 = scmp.eq.s32.totalorder %s12, 8
    %p80 = por %p78, %p79
    %p81 = scmp.ne.s32.totalorder %s73, %s76
    %p82 = scmp.eq.s32.totalorder %s12, 0
    %p83 = por %p81, %p82
    %p84 = scmp.ne.s32.totalorder %s73, %s76
    %p85 = scmp.eq.s32.totalorder %s17, 8
    %p86 = por %p84, %p85
    %p87 = scmp.ne.s32.totalorder %s76, %s77
    %p88 = scmp.eq.s32.totalorder %s17, 0
    %p89 = por %p87, %p88
    %p90 = scmp.ne.s32.totalorder %s76, %s77
    %p91 = scmp.eq.s32.totalorder %s18, 8
    %p92 = por %p90, %p91
    %p94 = scmp.ne.s32.totalorder %s77, %s93
    %p95 = scmp.eq.s32.totalorder %s18, 0
    %p96 = por %p94, %p95
    %s98 = sadd.s32 %s97, 1
    %p101 = scmp.eq.s32.totalorder %s12, 8
    %p102 = scmp.ne.s32.totalorder %s97, %s99
    %p103 = scmp.eq.s32.totalorder %s12, 0
    %p104 = por %p102, %p103
    %p105 = scmp.ne.s32.totalorder %s97, %s99
    %p106 = scmp.eq.s32.totalorder %s17, 8
    %p107 = por %p105, %p106
    %p108 = scmp.ne.s32.totalorder %s99, %s100
    %p109 = scmp.eq.s32.totalorder %s17, 0
    %p110 = por %p108, %p109
    %p111 = scmp.ne.s32.totalorder %s99, %s100
    %p112 = scmp.eq.s32.totalorder %s18, 8
    %p113 = por %p111, %p112
    %p115 = scmp.ne.s32.totalorder %s100, %s114
    %p116 = scmp.eq.s32.totalorder %s18, 0
    %p117 = por %p115, %p116
    %s118 = ssub.s32 %s19, %s38
    %p119 = scmp.eq.s32.totalorder %s118, 0
    %s121 = sadd.s32 %s120, 1
    %s122 = scalar_select %p119, %s120, %s121
    %p125 = pneg %p119
    %p126 = scmp.eq.s32.totalorder %s12, 8
    %p127 = por %p125, %p126
    %p128 = scmp.ne.s32.totalorder %s120, %s123
    %p129 = scmp.eq.s32.totalorder %s12, 0
    %p130 = por %p128, %p129
    %p131 = scmp.ne.s32.totalorder %s120, %s123
    %p132 = scmp.eq.s32.totalorder %s17, 8
    %p133 = por %p131, %p132
    %p134 = scmp.ne.s32.totalorder %s123, %s124
    %p135 = scmp.eq.s32.totalorder %s17, 0
    %p136 = por %p134, %p135
    %p137 = scmp.ne.s32.totalorder %s123, %s124
    %p138 = scmp.eq.s32.totalorder %s18, 8
    %p139 = por %p137, %p138
    %p141 = scmp.ne.s32.totalorder %s124, %s140
    %p142 = scmp.eq.s32.totalorder %s18, 0
    %p143 = por %p141, %p142
    %s144 = ssub.s32 %s19, %s38
    %p145 = scmp.eq.s32.totalorder %s144, 0
    %s147 = sadd.s32 %s146, 1
    %s148 = scalar_select %p145, %s146, %s147
    %p151 = pneg %p145
    %p152 = scmp.eq.s32.totalorder %s12, 8
    %p153 = por %p151, %p152
    %p154 = scmp.ne.s32.totalorder %s146, %s149
    %p155 = scmp.eq.s32.totalorder %s12, 0
    %p156 = por %p154, %p155
    %p157 = scmp.ne.s32.totalorder %s146, %s149
    %p158 = scmp.eq.s32.totalorder %s17, 8
    %p159 = por %p157, %p158
    %p160 = scmp.ne.s32.totalorder %s149, %s150
    %p161 = scmp.eq.s32.totalorder %s17, 0
    %p162 = por %p160, %p161
    %p163 = scmp.ne.s32.totalorder %s149, %s150
    %p164 = scmp.eq.s32.totalorder %s18, 8
    %p165 = por %p163, %p164
    %p167 = scmp.ne.s32.totalorder %s150, %s166
    %p168 = scmp.eq.s32.totalorder %s18, 0
    %p169 = por %p167, %p168
    %s170 = ssub.s32 %s19, %s38
    %p171 = scmp.eq.s32.totalorder %s170, 0
    %s173 = sadd.s32 %s172, 1
    %s174 = scalar_select %p171, %s172, %s173
    %p177 = pneg %p171
    %p178 = scmp.eq.s32.totalorder %s12, 8
    %p179 = por %p177, %p178
    %p180 = scmp.ne.s32.totalorder %s172, %s175
    %p181 = scmp.eq.s32.totalorder %s12, 0
    %p182 = por %p180, %p181
    %p183 = scmp.ne.s32.totalorder %s172, %s175
    %p184 = scmp.eq.s32.totalorder %s17, 8
    %p185 = por %p183, %p184
    %p186 = scmp.ne.s32.totalorder %s175, %s176
    %p187 = scmp.eq.s32.totalorder %s17, 0
    %p188 = por %p186, %p187
    %p189 = scmp.ne.s32.totalorder %s175, %s176
    %p190 = scmp.eq.s32.totalorder %s18, 8
    %p191 = por %p189, %p190
    %p193 = scmp.ne.s32.totalorder %s176, %s192
    %p194 = scmp.eq.s32.totalorder %s18, 0
    %p195 = por %p193, %p194
    %p196 = scmp.le.s32.totalorder 1, %s12
    %p197 = scmp.lt.s32.totalorder %s12, 10
    %p198 = pnand %p196, %p197
    %p199 = pneg %p198
    // Predicated region
    $region9: #{generator_forward.13} parent=5 // pred_check
      _
    $region10: #{generator_forward.13} parent=5 // pred_check_branch
      %201 = sbr.rel (%p198) target = $region12
    $region11: #{generator_forward.13} parent=5 // pred_region
      %s202 = ssub.s32 %s12, 1
      // Predicated region
      $region13: #{generator_forward.13} parent=11 // pred_check
        %p203 = pneg %p110
      $region14: #{generator_forward.13} parent=11 // pred_check_branch
        %205 = sbr.rel (%p203) target = $region16
      $region15: #{generator_forward.13} parent=11 // pred_region
        _
      $region16: #{generator_forward.13} parent=11 // pred_fallthru
        _
    $region12: #{generator_forward.13} parent=5 // pred_fallthru
      _
    %p206 = scmp.lt.s32.totalorder %s12, 9
    // Predicated region
    $region17: #{generator_forward.13} parent=5 // pred_check
      %p207 = pneg %p206
    $region18: #{generator_forward.13} parent=5 // pred_check_branch
      %209 = sbr.rel (%p207) target = $region20
    $region19: #{generator_forward.13} parent=5 // pred_region
      // Predicated region
      $region21: #{generator_forward.13} parent=19 // pred_check
        %p210 = pneg %p55
      $region22: #{generator_forward.13} parent=19 // pred_check_branch
        %212 = sbr.rel (%p210) target = $region24
      $region23: #{generator_forward.13} parent=19 // pred_region
        %p213 = scmp.lt.s32.totalorder %s20, 2
        %s214 = scalar_select %p213, %s20, 2
        %p215 = scmp.lt.s32.totalorder %s21, 2
        %s216 = scalar_select %p215, %s21, 2
        %p217 = scmp.lt.s32.totalorder %s19, 0
        %s218 = scalar_select %p217, %s19, 0
        %s219 = smul.addr %s216, 8
        %s220 = sadd.s32 %s218, %s219
        %s221 = smul.addr %s214, 24
        %s222 = sadd.s32 %s220, %s221
        %s223 = smul.addr %s222, 4
        %s224 = scalar_lea.vmem %s0, %s223
      $region24: #{generator_forward.13} parent=19 // pred_fallthru
        _
      // Predicated region
      $region25: #{generator_forward.13} parent=19 // pred_check
        %p225 = pneg %p83
      $region26: #{generator_forward.13} parent=19 // pred_check_branch
        %227 = sbr.rel (%p225) target = $region28
      $region27: #{generator_forward.13} parent=19 // pred_region
        %p228 = scmp.lt.s32.totalorder %s20, 2
        %s229 = scalar_select %p228, %s20, 2
        %p230 = scmp.lt.s32.totalorder %s21, 2
        %s231 = scalar_select %p230, %s21, 2
        %s232 = smul.addr %s231, 16
        %s233 = smul.addr %s229, 48
        %s234 = sadd.s32 %s232, %s233
        %s235 = smul.addr %s234, 4
        %s236 = scalar_lea.vmem %s1, %s235
      $region28: #{generator_forward.13} parent=19 // pred_fallthru
        _
    $region20: #{generator_forward.13} parent=5 // pred_fallthru
      _
    %p237 = scmp.le.s32.totalorder 1, %s12
    %p238 = scmp.lt.s32.totalorder %s12, 10
    %p239 = pnand %p237, %p238
    %p240 = pneg %p239
    // Predicated region
    $region29: #{generator_forward.13} parent=5 // pred_check
      _
    $region30: #{generator_forward.13} parent=5 // pred_check_branch
      %242 = sbr.rel (%p239) target = $region32
    $region31: #{generator_forward.13} parent=5 // pred_region
      %s243 = ssub.s32 %s12, 1
      %p244 = scmp.lt.s32.totalorder %s23, 2
      %s245 = scalar_select %p244, %s23, 2
      %p246 = scmp.lt.s32.totalorder %s24, 2
      %s247 = scalar_select %p246, %s24, 2
      %p248 = scmp.lt.s32.totalorder %s22, 0
      %s249 = scalar_select %p248, %s22, 0
      %s250 = smul.addr %s247, 8
      %s251 = sadd.s32 %s249, %s250
      %s252 = smul.addr %s245, 24
      %s253 = sadd.s32 %s251, %s252
      %s254 = smul.addr %s253, 4
      %s255 = scalar_lea.vmem %s0, %s254
      %p256 = pneg %p61
      %p257 = pneg %p58
      %p258 = scmp.lt.s32.totalorder %s23, 2
      %s259 = scalar_select %p258, %s23, 2
      %p260 = scmp.lt.s32.totalorder %s24, 2
      %s261 = scalar_select %p260, %s24, 2
      %s262 = smul.addr %s261, 16
      %s263 = smul.addr %s259, 48
      %s264 = sadd.s32 %s262, %s263
      %s265 = smul.addr %s264, 4
      %s266 = scalar_lea.vmem %s1, %s265
      %p267 = pneg %p89
      %p268 = pneg %p86
      %p269 = pneg %p110
      %p270 = pneg %p107
      %p271 = pneg %p136
      %p272 = pneg %p133
      %p273 = scmp.lt.s32.totalorder %s22, 0
      %s274 = scalar_select %p273, %s22, 0
      %s275 = smul.addr %s274, 4
      %s276 = scalar_lea.vmem %s3, %s275
      %p277 = pneg %p162
      %p278 = pneg %p159
      %p279 = scmp.lt.s32.totalorder %s22, 0
      %s280 = scalar_select %p279, %s22, 0
      %s281 = smul.addr %s280, 16
      %s282 = smul.addr %s281, 8
      %s283 = scalar_lea.vmem %s4, %s282
      %p284 = pneg %p188
      %p285 = pneg %p185
      %p286 = scmp.lt.s32.totalorder %s22, 0
      %s287 = scalar_select %p286, %s22, 0
      %s288 = smul.addr %s287, 16
      %s289 = smul.addr %s288, 8
      %s290 = scalar_lea.vmem %s5, %s289
      %p291 = scmp.lt.s32.totalorder %s23, 2
      %s292 = scalar_select %p291, %s23, 2
      %p293 = scmp.lt.s32.totalorder %s24, 2
      %s294 = scalar_select %p293, %s24, 2
      %p295 = scmp.lt.s32.totalorder %s22, 0
      %s296 = scalar_select %p295, %s22, 0
      %s297 = smul.addr %s294, 8
      %s298 = sadd.s32 %s296, %s297
      %s299 = smul.addr %s292, 24
      %s300 = sadd.s32 %s298, %s299
      %s301 = smul.addr %s300, 4
      %s302 = scalar_lea.vmem %s0, %s301
      %p303 = scmp.lt.s32.totalorder %s23, 2
      %s304 = scalar_select %p303, %s23, 2
      %p305 = scmp.lt.s32.totalorder %s24, 2
      %s306 = scalar_select %p305, %s24, 2
      %s307 = smul.addr %s306, 16
      %s308 = smul.addr %s304, 48
      %s309 = sadd.s32 %s307, %s308
      %s310 = smul.addr %s309, 4
      %s311 = scalar_lea.vmem %s1, %s310
      %p312 = scmp.lt.s32.totalorder %s22, 0
      %s313 = scalar_select %p312, %s22, 0
      %s314 = smul.addr %s313, 4
      %s315 = scalar_lea.vmem %s3, %s314
      %p316 = scmp.lt.s32.totalorder %s22, 0
      %s317 = scalar_select %p316, %s22, 0
      %s318 = smul.addr %s317, 16
      %s319 = smul.addr %s318, 8
      %s320 = scalar_lea.vmem %s4, %s319
      %p321 = scmp.lt.s32.totalorder %s22, 0
      %s322 = scalar_select %p321, %s22, 0
      %s323 = smul.addr %s322, 16
      %s324 = smul.addr %s323, 8
      %s325 = scalar_lea.vmem %s5, %s324
      %p327 = scmp.eq.s32.totalorder %s23, 0
      %p328 = scmp.eq.s32.totalorder %s24, 0
      %p329 = pnand %p327, %p328
      %p330 = pneg %p329
      // Predicated region
      $region33: #{generator_forward.13} parent=31 // pred_check
        _
      $region34: #{generator_forward.13} parent=31 // pred_check_branch
        %332 = sbr.rel (%p329) target = $region36
      $region35: #{generator_forward.13} parent=31 // pred_region
        %vm333 = vcmask 261120
        %334 = vst.msk [vmem:[#allocation2] sm:$0xff] %vm333, 0.0
        %335 = vst.msk [vmem:[#allocation2 + $0x8] sm:$0xff] %vm333, 0.0
        %336 = vst.msk [vmem:[#allocation2 + $0x10] sm:$0xff] %vm333, 0.0
        %337 = vst.msk [vmem:[#allocation2 + $0x18] sm:$0xff] %vm333, 0.0
        %338 = vst.msk [vmem:[#allocation2 + $0x20] sm:$0xff] %vm333, 0.0
        %339 = vst.msk [vmem:[#allocation2 + $0x28] sm:$0xff] %vm333, 0.0
        %340 = vst.msk [vmem:[#allocation2 + $0x30] sm:$0xff] %vm333, 0.0
        %341 = vst.msk [vmem:[#allocation2 + $0x38] sm:$0xff] %vm333, 0.0
        %342 = vst.msk [vmem:[#allocation2 + $0x40] sm:$0xff] %vm333, 0.0
        %343 = vst.msk [vmem:[#allocation2 + $0x48] sm:$0xff] %vm333, 0.0
        %344 = vst.msk [vmem:[#allocation2 + $0x50] sm:$0xff] %vm333, 0.0
        %345 = vst.msk [vmem:[#allocation2 + $0x58] sm:$0xff] %vm333, 0.0
        %346 = vst.msk [vmem:[#allocation2 + $0x60] sm:$0xff] %vm333, 0.0
        %347 = vst.msk [vmem:[#allocation2 + $0x68] sm:$0xff] %vm333, 0.0
        %348 = vst.msk [vmem:[#allocation2 + $0x70] sm:$0xff] %vm333, 0.0
        %349 = vst.msk [vmem:[#allocation2 + $0x78] sm:$0xff] %vm333, 0.0
      $region36: #{generator_forward.13} parent=31 // pred_fallthru
        _
      %v350 = vld [vmem:[#allocation2] sm:$0xff]
      %v351 = vld [vmem:[#allocation2 + $0x8] sm:$0xff]
      %v352 = vld [vmem:[#allocation2 + $0x10] sm:$0xff]
      %v353 = vld [vmem:[#allocation2 + $0x18] sm:$0xff]
      %v354 = vld [vmem:[#allocation2 + $0x20] sm:$0xff]
      %v355 = vld [vmem:[#allocation2 + $0x28] sm:$0xff]
      %v356 = vld [vmem:[#allocation2 + $0x30] sm:$0xff]
      %v357 = vld [vmem:[#allocation2 + $0x38] sm:$0xff]
      %v358 = vld [vmem:[#allocation2 + $0x40] sm:$0xff]
      %v359 = vld [vmem:[#allocation2 + $0x48] sm:$0xff]
      %v360 = vld [vmem:[#allocation2 + $0x50] sm:$0xff]
      %v361 = vld [vmem:[#allocation2 + $0x58] sm:$0xff]
      %v362 = vld [vmem:[#allocation2 + $0x60] sm:$0xff]
      %v363 = vld [vmem:[#allocation2 + $0x68] sm:$0xff]
      %v364 = vld [vmem:[#allocation2 + $0x70] sm:$0xff]
      %v365 = vld [vmem:[#allocation2 + $0x78] sm:$0xff]
      %v366 = vld [vmem:[%s311] sm:$0xf]
      %v367 = vld [vmem:[%s311 + $0x4] sm:$0xf]
      %v368 = vld [vmem:[%s311 + $0x8] sm:$0xf]
      %v369 = vld [vmem:[%s311 + $0xc] sm:$0xf]
      %v370 = vld [vmem:[%s311 + $0x10] sm:$0xf]
      %v371 = vld [vmem:[%s311 + $0x14] sm:$0xf]
      %v372 = vld [vmem:[%s311 + $0x18] sm:$0xf]
      %v373 = vld [vmem:[%s311 + $0x1c] sm:$0xf]
      %v374 = vld [vmem:[%s311 + $0x20] sm:$0xf]
      %v375 = vld [vmem:[%s311 + $0x24] sm:$0xf]
      %v376 = vld [vmem:[%s311 + $0x28] sm:$0xf]
      %v377 = vld [vmem:[%s311 + $0x2c] sm:$0xf]
      %v378 = vld [vmem:[%s311 + $0x30] sm:$0xf]
      %v379 = vld [vmem:[%s311 + $0x34] sm:$0xf]
      %v380 = vld [vmem:[%s311 + $0x38] sm:$0xf]
      %v381 = vld [vmem:[%s311 + $0x3c] sm:$0xf]
      %v382 = vld [vmem:[%s302] sm:$0xf]
      %v383 = vld [vmem:[%s302 + $0x4] sm:$0xf]
      %v384 = vld [vmem:[%s302 + $0x8] sm:$0xf]
      %v385 = vld [vmem:[%s302 + $0xc] sm:$0xf]
      %v386 = vld [vmem:[%s302 + $0x10] sm:$0xf]
      %v387 = vld [vmem:[%s302 + $0x14] sm:$0xf]
      %v388 = vld [vmem:[%s302 + $0x18] sm:$0xf]
      %v389 = vld [vmem:[%s302 + $0x1c] sm:$0xf]
      %v406 = vunpack.c.l.b16 %v366
      %v407 = vunpack.c.l.b16 %v367
      %v408 = vunpack.c.l.b16 %v368
      %v409 = vunpack.c.l.b16 %v369
      %v410 = vunpack.c.l.b16 %v370
      %v411 = vunpack.c.l.b16 %v371
      %v412 = vunpack.c.l.b16 %v372
      %v413 = vunpack.c.l.b16 %v373
      %v414 = vunpack.c.l.b16 %v374
      %v415 = vunpack.c.l.b16 %v375
      %v416 = vunpack.c.l.b16 %v376
      %v417 = vunpack.c.l.b16 %v377
      %v418 = vunpack.c.l.b16 %v378
      %v419 = vunpack.c.l.b16 %v379
      %v420 = vunpack.c.l.b16 %v380
      %v421 = vunpack.c.l.b16 %v381
      %v422 = vpack.c.b16 %v407, %v406
      %v423 = vpack.c.b16 %v409, %v408
      %v424 = vpack.c.b16 %v411, %v410
      %v425 = vpack.c.b16 %v413, %v412
      %v426 = vpack.c.b16 %v415, %v414
      %v427 = vpack.c.b16 %v417, %v416
      %v428 = vpack.c.b16 %v419, %v418
      %v429 = vpack.c.b16 %v421, %v420
      %v438 = vunpack.c.l.b16 %v382
      %v439 = vunpack.c.l.b16 %v383
      %v440 = vunpack.c.l.b16 %v384
      %v441 = vunpack.c.l.b16 %v385
      %v442 = vunpack.c.l.b16 %v386
      %v443 = vunpack.c.l.b16 %v387
      %v444 = vunpack.c.l.b16 %v388
      %v445 = vunpack.c.l.b16 %v389
      %v446 = vpack.c.b16 %v439, %v438
      %v447 = vpack.c.b16 %v441, %v440
      %v448 = vpack.c.b16 %v443, %v442
      %v449 = vpack.c.b16 %v445, %v444
      %vm454 = vcmask 523264
      %v456 = vsel %vm454, %v422, 0
      %v459 = vsel %vm454, %v423, 0
      %v462 = vsel %vm454, %v424, 0
      %v465 = vsel %vm454, %v425, 0
      %v468 = vsel %vm454, %v426, 0
      %v471 = vsel %vm454, %v427, 0
      %v474 = vsel %vm454, %v428, 0
      %v477 = vsel %vm454, %v429, 0
      %479 = vmatprep.subr.bf16.mxu0 0
      %480 = vmatpush1.bf16.msra.mxu0 %v446
      %481 = vmatprep.subr.bf16.mxu0 0
      %482 = vmatpush1.bf16.msra.mxu0 %v447
      %483 = vmatprep.subr.bf16.mxu0 0
      %484 = vmatpush1.bf16.msra.mxu0 %v448
      %485 = vmatprep.subr.bf16.mxu0 0
      %486 = vmatpush1.bf16.msra.mxu0 %v449
      %487 = vmatprep.subr.bf16.mxu0 0
      %488 = vmatpush1.bf16.msra.mxu0 0
      %489 = vmatprep.subr.bf16.mxu0 0
      %490 = vmatpush1.bf16.msra.mxu0 0
      %491 = vmatprep.subr.bf16.mxu0 0
      %492 = vmatpush1.bf16.msra.mxu0 0
      %493 = vmatprep.subr.bf16.mxu0 0
      %494 = vmatpush1.bf16.msra.mxu0 0
      %495 = vmatprep.subr.bf16.mxu0 0
      %496 = vmatpush1.bf16.msra.mxu0 0
      %497 = vmatprep.subr.bf16.mxu0 0
      %498 = vmatpush1.bf16.msra.mxu0 0
      %499 = vmatprep.subr.bf16.mxu0 0
      %500 = vmatpush1.bf16.msra.mxu0 0
      %501 = vmatprep.subr.bf16.mxu0 0
      %502 = vmatpush1.bf16.msra.mxu0 0
      %503 = vmatprep.subr.bf16.mxu0 0
      %504 = vmatpush1.bf16.msra.mxu0 0
      %505 = vmatprep.subr.bf16.mxu0 0
      %506 = vmatpush1.bf16.msra.mxu0 0
      %507 = vmatprep.subr.bf16.mxu0 0
      %508 = vmatpush1.bf16.msra.mxu0 0
      %509 = vmatprep.subr.bf16.mxu0 0
      %510 = vmatpush1.bf16.msra.mxu0 0
      %511 = vmatprep.mubr.bf16.mxu0 0
      %512 = vmatmul.mubr.bf16.gmra.mrb[0].mxu0 %v456
      %v513 = vpop.f32.mrb[0].mxu0
      %v514 = vadd.f32 0.0, %v513
      %v515 = vpop.f32.mrb[0].mxu0
      %v516 = vpop.f32.mrb[0].mxu0
      %v517 = vadd.f32 0.0, %v516
      %v518 = vpop.f32.mrb[0].mxu0
      %519 = vmatprep.mubr.bf16.mxu0 0
      %520 = vmatmul.mubr.bf16.gmra.mrb[0].mxu0 %v459
      %v521 = vpop.f32.mrb[0].mxu0
      %v522 = vadd.f32 0.0, %v521
      %v523 = vpop.f32.mrb[0].mxu0
      %v524 = vpop.f32.mrb[0].mxu0
      %v525 = vadd.f32 0.0, %v524
      %v526 = vpop.f32.mrb[0].mxu0
      %527 = vmatprep.mubr.bf16.mxu0 0
      %528 = vmatmul.mubr.bf16.gmra.mrb[0].mxu0 %v462
      %v529 = vpop.f32.mrb[0].mxu0
      %v530 = vadd.f32 0.0, %v529
      %v531 = vpop.f32.mrb[0].mxu0
      %v532 = vpop.f32.mrb[0].mxu0
      %v533 = vadd.f32 0.0, %v532
      %v534 = vpop.f32.mrb[0].mxu0
      %535 = vmatprep.mubr.bf16.mxu0 0
      %536 = vmatmul.mubr.bf16.gmra.mrb[0].mxu0 %v465
      %v537 = vpop.f32.mrb[0].mxu0
      %v538 = vadd.f32 0.0, %v537
      %v539 = vpop.f32.mrb[0].mxu0
      %v540 = vpop.f32.mrb[0].mxu0
      %v541 = vadd.f32 0.0, %v540
      %v542 = vpop.f32.mrb[0].mxu0
      %543 = vmatprep.mubr.bf16.mxu0 0
      %544 = vmatmul.mubr.bf16.gmra.mrb[0].mxu0 %v468
      %v545 = vpop.f32.mrb[0].mxu0
      %v546 = vadd.f32 0.0, %v545
      %v547 = vpop.f32.mrb[0].mxu0
      %v548 = vpop.f32.mrb[0].mxu0
      %v549 = vadd.f32 0.0, %v548
      %v550 = vpop.f32.mrb[0].mxu0
      %551 = vmatprep.mubr.bf16.mxu0 0
      %552 = vmatmul.mubr.bf16.gmra.mrb[0].mxu0 %v471
      %v553 = vpop.f32.mrb[0].mxu0
      %v554 = vadd.f32 0.0, %v553
      %v555 = vpop.f32.mrb[0].mxu0
      %v556 = vpop.f32.mrb[0].mxu0
      %v557 = vadd.f32 0.0, %v556
      %v558 = vpop.f32.mrb[0].mxu0
      %559 = vmatprep.mubr.bf16.mxu0 0
      %560 = vmatmul.mubr.bf16.gmra.mrb[0].mxu0 %v474
      %v561 = vpop.f32.mrb[0].mxu0
      %v562 = vadd.f32 0.0, %v561
      %v563 = vpop.f32.mrb[0].mxu0
      %v564 = vpop.f32.mrb[0].mxu0
      %v565 = vadd.f32 0.0, %v564
      %v566 = vpop.f32.mrb[0].mxu0
      %567 = vmatprep.mubr.bf16.mxu0 0
      %568 = vmatmul.mubr.bf16.gmra.mrb[0].mxu0 %v477
      %v569 = vpop.f32.mrb[0].mxu0
      %v570 = vadd.f32 0.0, %v569
      %v571 = vpop.f32.mrb[0].mxu0
      %v572 = vpop.f32.mrb[0].mxu0
      %v573 = vadd.f32 0.0, %v572
      %v574 = vpop.f32.mrb[0].mxu0
      %575 = vdwg.mxu0
      %v576 = vadd.f32 %v350, %v514
      %v577 = vadd.f32 %v351, %v517
      %v578 = vadd.f32 %v352, %v522
      %v579 = vadd.f32 %v353, %v525
      %v580 = vadd.f32 %v354, %v530
      %v581 = vadd.f32 %v355, %v533
      %v582 = vadd.f32 %v356, %v538
      %v583 = vadd.f32 %v357, %v541
      %v584 = vadd.f32 %v358, %v546
      %v585 = vadd.f32 %v359, %v549
      %v586 = vadd.f32 %v360, %v554
      %v587 = vadd.f32 %v361, %v557
      %v588 = vadd.f32 %v362, %v562
      %v589 = vadd.f32 %v363, %v565
      %v590 = vadd.f32 %v364, %v570
      %v591 = vadd.f32 %v365, %v573
      %vm592 = vcmask 261120
      %593 = vst.msk [vmem:[#allocation2] sm:$0xff] %vm592, %v576
      %594 = vst.msk [vmem:[#allocation2 + $0x8] sm:$0xff] %vm592, %v577
      %595 = vst.msk [vmem:[#allocation2 + $0x10] sm:$0xff] %vm592, %v578
      %596 = vst.msk [vmem:[#allocation2 + $0x18] sm:$0xff] %vm592, %v579
      %597 = vst.msk [vmem:[#allocation2 + $0x20] sm:$0xff] %vm592, %v580
      %598 = vst.msk [vmem:[#allocation2 + $0x28] sm:$0xff] %vm592, %v581
      %599 = vst.msk [vmem:[#allocation2 + $0x30] sm:$0xff] %vm592, %v582
      %600 = vst.msk [vmem:[#allocation2 + $0x38] sm:$0xff] %vm592, %v583
      %601 = vst.msk [vmem:[#allocation2 + $0x40] sm:$0xff] %vm592, %v584
      %602 = vst.msk [vmem:[#allocation2 + $0x48] sm:$0xff] %vm592, %v585
      %603 = vst.msk [vmem:[#allocation2 + $0x50] sm:$0xff] %vm592, %v586
      %604 = vst.msk [vmem:[#allocation2 + $0x58] sm:$0xff] %vm592, %v587
      %605 = vst.msk [vmem:[#allocation2 + $0x60] sm:$0xff] %vm592, %v588
      %606 = vst.msk [vmem:[#allocation2 + $0x68] sm:$0xff] %vm592, %v589
      %607 = vst.msk [vmem:[#allocation2 + $0x70] sm:$0xff] %vm592, %v590
      %608 = vst.msk [vmem:[#allocation2 + $0x78] sm:$0xff] %vm592, %v591
      %p609 = scmp.eq.s32.totalorder %s23, 2
      %p610 = scmp.eq.s32.totalorder %s24, 2
      %p611 = pnand %p609, %p610
      %p612 = pneg %p611
      // Predicated region
      $region37: #{generator_forward.13} parent=31 // pred_check
        _
      $region38: #{generator_forward.13} parent=31 // pred_check_branch
        %614 = sbr.rel (%p611) target = $region40
      $region39: #{generator_forward.13} parent=31 // pred_region
        %v615 = vld [vmem:[#allocation2] sm:$0xff]
        %v616 = vld [vmem:[#allocation2 + $0x8] sm:$0xff]
        %v617 = vld [vmem:[#allocation2 + $0x10] sm:$0xff]
        %v618 = vld [vmem:[#allocation2 + $0x18] sm:$0xff]
        %v619 = vld [vmem:[#allocation2 + $0x20] sm:$0xff]
        %v620 = vld [vmem:[#allocation2 + $0x28] sm:$0xff]
        %v621 = vld [vmem:[#allocation2 + $0x30] sm:$0xff]
        %v622 = vld [vmem:[#allocation2 + $0x38] sm:$0xff]
        %v623 = vld [vmem:[#allocation2 + $0x40] sm:$0xff]
        %v624 = vld [vmem:[#allocation2 + $0x48] sm:$0xff]
        %v625 = vld [vmem:[#allocation2 + $0x50] sm:$0xff]
        %v626 = vld [vmem:[#allocation2 + $0x58] sm:$0xff]
        %v627 = vld [vmem:[#allocation2 + $0x60] sm:$0xff]
        %v628 = vld [vmem:[#allocation2 + $0x68] sm:$0xff]
        %v629 = vld [vmem:[#allocation2 + $0x70] sm:$0xff]
        %v630 = vld [vmem:[#allocation2 + $0x78] sm:$0xff]
        %v631 = vld [vmem:[%s2] sm:$0xff]
        %v632 = vld [vmem:[%s2 + $0x8] sm:$0xff]
        %v633 = vld [vmem:[%s2 + $0x10] sm:$0xff]
        %v634 = vld [vmem:[%s2 + $0x18] sm:$0xff]
        %v635 = vld [vmem:[%s2 + $0x20] sm:$0xff]
        %v636 = vld [vmem:[%s2 + $0x28] sm:$0xff]
        %v637 = vld [vmem:[%s2 + $0x30] sm:$0xff]
        %v638 = vld [vmem:[%s2 + $0x38] sm:$0xff]
        %v639 = vld [vmem:[%s2 + $0x40] sm:$0xff]
        %v640 = vld [vmem:[%s2 + $0x48] sm:$0xff]
        %v641 = vld [vmem:[%s2 + $0x50] sm:$0xff]
        %v642 = vld [vmem:[%s2 + $0x58] sm:$0xff]
        %v643 = vld [vmem:[%s2 + $0x60] sm:$0xff]
        %v644 = vld [vmem:[%s2 + $0x68] sm:$0xff]
        %v645 = vld [vmem:[%s2 + $0x70] sm:$0xff]
        %v646 = vld [vmem:[%s2 + $0x78] sm:$0xff]
        %648 = vset.pattern.permute.xlu0 0
        %649 = vperm.xlu0 %648, %v631
        %v650 = vpop.permute.xlu0 %649
        %653 = vset.pattern.permute.xlu0 0
        %654 = vperm.xlu0 %653, %v632
        %v655 = vpop.permute.xlu0 %654
        %658 = vset.pattern.permute.xlu0 0
        %659 = vperm.xlu0 %658, %v633
        %v660 = vpop.permute.xlu0 %659
        %663 = vset.pattern.permute.xlu0 0
        %664 = vperm.xlu0 %663, %v634
        %v665 = vpop.permute.xlu0 %664
        %668 = vset.pattern.permute.xlu0 0
        %669 = vperm.xlu0 %668, %v635
        %v670 = vpop.permute.xlu0 %669
        %673 = vset.pattern.permute.xlu0 0
        %674 = vperm.xlu0 %673, %v636
        %v675 = vpop.permute.xlu0 %674
        %678 = vset.pattern.permute.xlu0 0
        %679 = vperm.xlu0 %678, %v637
        %v680 = vpop.permute.xlu0 %679
        %683 = vset.pattern.permute.xlu0 0
        %684 = vperm.xlu0 %683, %v638
        %v685 = vpop.permute.xlu0 %684
        %688 = vset.pattern.permute.xlu0 0
        %689 = vperm.xlu0 %688, %v639
        %v690 = vpop.permute.xlu0 %689
        %693 = vset.pattern.permute.xlu0 0
        %694 = vperm.xlu0 %693, %v640
        %v695 = vpop.permute.xlu0 %694
        %698 = vset.pattern.permute.xlu0 0
        %699 = vperm.xlu0 %698, %v641
        %v700 = vpop.permute.xlu0 %699
        %703 = vset.pattern.permute.xlu0 0
        %704 = vperm.xlu0 %703, %v642
        %v705 = vpop.permute.xlu0 %704
        %708 = vset.pattern.permute.xlu0 0
        %709 = vperm.xlu0 %708, %v643
        %v710 = vpop.permute.xlu0 %709
        %713 = vset.pattern.permute.xlu0 0
        %714 = vperm.xlu0 %713, %v644
        %v715 = vpop.permute.xlu0 %714
        %718 = vset.pattern.permute.xlu0 0
        %719 = vperm.xlu0 %718, %v645
        %v720 = vpop.permute.xlu0 %719
        %723 = vset.pattern.permute.xlu0 0
        %724 = vperm.xlu0 %723, %v646
        %v725 = vpop.permute.xlu0 %724
        %v727 = vadd.f32 %v615, %v650
        %v728 = vadd.f32 %v616, %v655
        %v729 = vadd.f32 %v617, %v660
        %v730 = vadd.f32 %v618, %v665
        %v731 = vadd.f32 %v619, %v670
        %v732 = vadd.f32 %v620, %v675
        %v733 = vadd.f32 %v621, %v680
        %v734 = vadd.f32 %v622, %v685
        %v735 = vadd.f32 %v623, %v690
        %v736 = vadd.f32 %v624, %v695
        %v737 = vadd.f32 %v625, %v700
        %v738 = vadd.f32 %v626, %v705
        %v739 = vadd.f32 %v627, %v710
        %v740 = vadd.f32 %v628, %v715
        %v741 = vadd.f32 %v629, %v720
        %v742 = vadd.f32 %v630, %v725
        %v743 = vsel %vm592, %v727, 0.0
        %744 = vadd.xlane.f32.xlu0 %v743
        %v745 = vpop.xlane.xlu0 %744
        %v746 = vsel %vm592, %v728, 0.0
        %747 = vadd.xlane.f32.xlu0 %v746
        %v748 = vpop.xlane.xlu0 %747
        %v749 = vsel %vm592, %v729, 0.0
        %750 = vadd.xlane.f32.xlu0 %v749
        %v751 = vpop.xlane.xlu0 %750
        %v752 = vsel %vm592, %v730, 0.0
        %753 = vadd.xlane.f32.xlu0 %v752
        %v754 = vpop.xlane.xlu0 %753
        %v755 = vsel %vm592, %v731, 0.0
        %756 = vadd.xlane.f32.xlu0 %v755
        %v757 = vpop.xlane.xlu0 %756
        %v758 = vsel %vm592, %v732, 0.0
        %759 = vadd.xlane.f32.xlu0 %v758
        %v760 = vpop.xlane.xlu0 %759
        %v761 = vsel %vm592, %v733, 0.0
        %762 = vadd.xlane.f32.xlu0 %v761
        %v763 = vpop.xlane.xlu0 %762
        %v764 = vsel %vm592, %v734, 0.0
        %765 = vadd.xlane.f32.xlu0 %v764
        %v766 = vpop.xlane.xlu0 %765
        %v767 = vsel %vm592, %v735, 0.0
        %768 = vadd.xlane.f32.xlu0 %v767
        %v769 = vpop.xlane.xlu0 %768
        %v770 = vsel %vm592, %v736, 0.0
        %771 = vadd.xlane.f32.xlu0 %v770
        %v772 = vpop.xlane.xlu0 %771
        %v773 = vsel %vm592, %v737, 0.0
        %774 = vadd.xlane.f32.xlu0 %v773
        %v775 = vpop.xlane.xlu0 %774
        %v776 = vsel %vm592, %v738, 0.0
        %777 = vadd.xlane.f32.xlu0 %v776
        %v778 = vpop.xlane.xlu0 %777
        %v779 = vsel %vm592, %v739, 0.0
        %780 = vadd.xlane.f32.xlu0 %v779
        %v781 = vpop.xlane.xlu0 %780
        %v782 = vsel %vm592, %v740, 0.0
        %783 = vadd.xlane.f32.xlu0 %v782
        %v784 = vpop.xlane.xlu0 %783
        %v785 = vsel %vm592, %v741, 0.0
        %786 = vadd.xlane.f32.xlu0 %v785
        %v787 = vpop.xlane.xlu0 %786
        %v788 = vsel %vm592, %v742, 0.0
        %789 = vadd.xlane.f32.xlu0 %v788
        %v790 = vpop.xlane.xlu0 %789
        %vm791 = vcmask 7168
        %792 = vst.msk [vmem:[%s320] sm:$0xff] %vm791, %v745
        %793 = vst.msk [vmem:[%s320 + $0x8] sm:$0xff] %vm791, %v748
        %794 = vst.msk [vmem:[%s320 + $0x10] sm:$0xff] %vm791, %v751
        %795 = vst.msk [vmem:[%s320 + $0x18] sm:$0xff] %vm791, %v754
        %796 = vst.msk [vmem:[%s320 + $0x20] sm:$0xff] %vm791, %v757
        %797 = vst.msk [vmem:[%s320 + $0x28] sm:$0xff] %vm791, %v760
        %798 = vst.msk [vmem:[%s320 + $0x30] sm:$0xff] %vm791, %v763
        %799 = vst.msk [vmem:[%s320 + $0x38] sm:$0xff] %vm791, %v766
        %800 = vst.msk [vmem:[%s320 + $0x40] sm:$0xff] %vm791, %v769
        %801 = vst.msk [vmem:[%s320 + $0x48] sm:$0xff] %vm791, %v772
        %802 = vst.msk [vmem:[%s320 + $0x50] sm:$0xff] %vm791, %v775
        %803 = vst.msk [vmem:[%s320 + $0x58] sm:$0xff] %vm791, %v778
        %804 = vst.msk [vmem:[%s320 + $0x60] sm:$0xff] %vm791, %v781
        %805 = vst.msk [vmem:[%s320 + $0x68] sm:$0xff] %vm791, %v784
        %806 = vst.msk [vmem:[%s320 + $0x70] sm:$0xff] %vm791, %v787
        %807 = vst.msk [vmem:[%s320 + $0x78] sm:$0xff] %vm791, %v790
        %v808 = vmul.f32 %v727, %v727
        %v809 = vmul.f32 %v728, %v728
        %v810 = vmul.f32 %v729, %v729
        %v811 = vmul.f32 %v730, %v730
        %v812 = vmul.f32 %v731, %v731
        %v813 = vmul.f32 %v732, %v732
        %v814 = vmul.f32 %v733, %v733
        %v815 = vmul.f32 %v734, %v734
        %v816 = vmul.f32 %v735, %v735
        %v817 = vmul.f32 %v736, %v736
        %v818 = vmul.f32 %v737, %v737
        %v819 = vmul.f32 %v738, %v738
        %v820 = vmul.f32 %v739, %v739
        %v821 = vmul.f32 %v740, %v740
        %v822 = vmul.f32 %v741, %v741
        %v823 = vmul.f32 %v742, %v742
        %v824 = vsel %vm592, %v808, 0.0
        %825 = vadd.xlane.f32.xlu0 %v824
        %v826 = vpop.xlane.xlu0 %825
        %v827 = vsel %vm592, %v809, 0.0
        %828 = vadd.xlane.f32.xlu0 %v827
        %v829 = vpop.xlane.xlu0 %828
        %v830 = vsel %vm592, %v810, 0.0
        %831 = vadd.xlane.f32.xlu0 %v830
        %v832 = vpop.xlane.xlu0 %831
        %v833 = vsel %vm592, %v811, 0.0
        %834 = vadd.xlane.f32.xlu0 %v833
        %v835 = vpop.xlane.xlu0 %834
        %v836 = vsel %vm592, %v812, 0.0
        %837 = vadd.xlane.f32.xlu0 %v836
        %v838 = vpop.xlane.xlu0 %837
        %v839 = vsel %vm592, %v813, 0.0
        %840 = vadd.xlane.f32.xlu0 %v839
        %v841 = vpop.xlane.xlu0 %840
        %v842 = vsel %vm592, %v814, 0.0
        %843 = vadd.xlane.f32.xlu0 %v842
        %v844 = vpop.xlane.xlu0 %843
        %v845 = vsel %vm592, %v815, 0.0
        %846 = vadd.xlane.f32.xlu0 %v845
        %v847 = vpop.xlane.xlu0 %846
        %v848 = vsel %vm592, %v816, 0.0
        %849 = vadd.xlane.f32.xlu0 %v848
        %v850 = vpop.xlane.xlu0 %849
        %v851 = vsel %vm592, %v817, 0.0
        %852 = vadd.xlane.f32.xlu0 %v851
        %v853 = vpop.xlane.xlu0 %852
        %v854 = vsel %vm592, %v818, 0.0
        %855 = vadd.xlane.f32.xlu0 %v854
        %v856 = vpop.xlane.xlu0 %855
        %v857 = vsel %vm592, %v819, 0.0
        %858 = vadd.xlane.f32.xlu0 %v857
        %v859 = vpop.xlane.xlu0 %858
        %v860 = vsel %vm592, %v820, 0.0
        %861 = vadd.xlane.f32.xlu0 %v860
        %v862 = vpop.xlane.xlu0 %861
        %v863 = vsel %vm592, %v821, 0.0
        %864 = vadd.xlane.f32.xlu0 %v863
        %v865 = vpop.xlane.xlu0 %864
        %v866 = vsel %vm592, %v822, 0.0
        %867 = vadd.xlane.f32.xlu0 %v866
        %v868 = vpop.xlane.xlu0 %867
        %v869 = vsel %vm592, %v823, 0.0
        %870 = vadd.xlane.f32.xlu0 %v869
        %v871 = vpop.xlane.xlu0 %870
        %872 = vst.msk [vmem:[%s325] sm:$0xff] %vm791, %v826
        %873 = vst.msk [vmem:[%s325 + $0x8] sm:$0xff] %vm791, %v829
        %874 = vst.msk [vmem:[%s325 + $0x10] sm:$0xff] %vm791, %v832
        %875 = vst.msk [vmem:[%s325 + $0x18] sm:$0xff] %vm791, %v835
        %876 = vst.msk [vmem:[%s325 + $0x20] sm:$0xff] %vm791, %v838
        %877 = vst.msk [vmem:[%s325 + $0x28] sm:$0xff] %vm791, %v841
        %878 = vst.msk [vmem:[%s325 + $0x30] sm:$0xff] %vm791, %v844
        %879 = vst.msk [vmem:[%s325 + $0x38] sm:$0xff] %vm791, %v847
        %880 = vst.msk [vmem:[%s325 + $0x40] sm:$0xff] %vm791, %v850
        %881 = vst.msk [vmem:[%s325 + $0x48] sm:$0xff] %vm791, %v853
        %882 = vst.msk [vmem:[%s325 + $0x50] sm:$0xff] %vm791, %v856
        %883 = vst.msk [vmem:[%s325 + $0x58] sm:$0xff] %vm791, %v859
        %884 = vst.msk [vmem:[%s325 + $0x60] sm:$0xff] %vm791, %v862
        %885 = vst.msk [vmem:[%s325 + $0x68] sm:$0xff] %vm791, %v865
        %886 = vst.msk [vmem:[%s325 + $0x70] sm:$0xff] %vm791, %v868
        %887 = vst.msk [vmem:[%s325 + $0x78] sm:$0xff] %vm791, %v871
        %v888 = vpack.c.bf16 %v728, %v727
        %v889 = vpack.c.bf16 %v730, %v729
        %v890 = vpack.c.bf16 %v732, %v731
        %v891 = vpack.c.bf16 %v734, %v733
        %v892 = vpack.c.bf16 %v736, %v735
        %v893 = vpack.c.bf16 %v738, %v737
        %v894 = vpack.c.bf16 %v740, %v739
        %v895 = vpack.c.bf16 %v742, %v741
        %v904 = vunpack.c.l.b16 %v888
        %v905 = vunpack.c.h.b16 %v888
        %v906 = vunpack.c.l.b16 %v889
        %v907 = vunpack.c.h.b16 %v889
        %v908 = vunpack.c.l.b16 %v890
        %v909 = vunpack.c.h.b16 %v890
        %v910 = vunpack.c.l.b16 %v891
        %v911 = vunpack.c.h.b16 %v891
        %v912 = vunpack.c.l.b16 %v892
        %v913 = vunpack.c.h.b16 %v892
        %v914 = vunpack.c.l.b16 %v893
        %v915 = vunpack.c.h.b16 %v893
        %v916 = vunpack.c.l.b16 %v894
        %v917 = vunpack.c.h.b16 %v894
        %v918 = vunpack.c.l.b16 %v895
        %v919 = vunpack.c.h.b16 %v895
        %v920 = vpack.c.b16 %v904, %v904
        %v921 = vpack.c.b16 %v905, %v905
        %v922 = vpack.c.b16 %v906, %v906
        %v923 = vpack.c.b16 %v907, %v907
        %v924 = vpack.c.b16 %v908, %v908
        %v925 = vpack.c.b16 %v909, %v909
        %v926 = vpack.c.b16 %v910, %v910
        %v927 = vpack.c.b16 %v911, %v911
        %v928 = vpack.c.b16 %v912, %v912
        %v929 = vpack.c.b16 %v913, %v913
        %v930 = vpack.c.b16 %v914, %v914
        %v931 = vpack.c.b16 %v915, %v915
        %v932 = vpack.c.b16 %v916, %v916
        %v933 = vpack.c.b16 %v917, %v917
        %v934 = vpack.c.b16 %v918, %v918
        %v935 = vpack.c.b16 %v919, %v919
        %vm952 = vcmask 257024
        %953 = vst.msk [vmem:[%s315] sm:$0xf] %vm952, %v920
        %954 = vst.msk [vmem:[%s315 + $0x4] sm:$0xf] %vm952, %v921
        %955 = vst.msk [vmem:[%s315 + $0x8] sm:$0xf] %vm952, %v922
        %956 = vst.msk [vmem:[%s315 + $0xc] sm:$0xf] %vm952, %v923
        %957 = vst.msk [vmem:[%s315 + $0x10] sm:$0xf] %vm952, %v924
        %958 = vst.msk [vmem:[%s315 + $0x14] sm:$0xf] %vm952, %v925
        %959 = vst.msk [vmem:[%s315 + $0x18] sm:$0xf] %vm952, %v926
        %960 = vst.msk [vmem:[%s315 + $0x1c] sm:$0xf] %vm952, %v927
        %961 = vst.msk [vmem:[%s315 + $0x20] sm:$0xf] %vm952, %v928
        %962 = vst.msk [vmem:[%s315 + $0x24] sm:$0xf] %vm952, %v929
        %963 = vst.msk [vmem:[%s315 + $0x28] sm:$0xf] %vm952, %v930
        %964 = vst.msk [vmem:[%s315 + $0x2c] sm:$0xf] %vm952, %v931
        %965 = vst.msk [vmem:[%s315 + $0x30] sm:$0xf] %vm952, %v932
        %966 = vst.msk [vmem:[%s315 + $0x34] sm:$0xf] %vm952, %v933
        %967 = vst.msk [vmem:[%s315 + $0x38] sm:$0xf] %vm952, %v934
        %968 = vst.msk [vmem:[%s315 + $0x3c] sm:$0xf] %vm952, %v935
      $region40: #{generator_forward.13} parent=31 // pred_fallthru
        _
      %p969 = scmp.lt.s32.totalorder %s22, 0
      %s970 = scalar_select %p969, %s22, 0
      %s971 = smul.addr %s970, 4
      %s972 = scalar_lea.vmem %s3, %s971
      %p973 = scmp.lt.s32.totalorder %s22, 0
      %s974 = scalar_select %p973, %s22, 0
      %s975 = smul.addr %s974, 16
      %s976 = smul.addr %s975, 8
      %s977 = scalar_lea.vmem %s4, %s976
      %p978 = scmp.lt.s32.totalorder %s22, 0
      %s979 = scalar_select %p978, %s22, 0
      %s980 = smul.addr %s979, 16
      %s981 = smul.addr %s980, 8
      %s982 = scalar_lea.vmem %s5, %s981
      // Predicated region
      $region41: #{generator_forward.13} parent=31 // pred_check
        %p983 = pneg %p133
      $region42: #{generator_forward.13} parent=31 // pred_check_branch
        %985 = sbr.rel (%p983) target = $region44
      $region43: #{generator_forward.13} parent=31 // pred_region
        _
      $region44: #{generator_forward.13} parent=31 // pred_fallthru
        _
      // Predicated region
      $region45: #{generator_forward.13} parent=31 // pred_check
        %p986 = pneg %p159
      $region46: #{generator_forward.13} parent=31 // pred_check_branch
        %988 = sbr.rel (%p986) target = $region48
      $region47: #{generator_forward.13} parent=31 // pred_region
        _
      $region48: #{generator_forward.13} parent=31 // pred_fallthru
        _
      // Predicated region
      $region49: #{generator_forward.13} parent=31 // pred_check
        %p989 = pneg %p185
      $region50: #{generator_forward.13} parent=31 // pred_check_branch
        %991 = sbr.rel (%p989) target = $region52
      $region51: #{generator_forward.13} parent=31 // pred_region
        _
      $region52: #{generator_forward.13} parent=31 // pred_fallthru
        _
      // Predicated region
      $region53: #{generator_forward.13} parent=31 // pred_check
        %p992 = pneg %p133
      $region54: #{generator_forward.13} parent=31 // pred_check_branch
        %994 = sbr.rel (%p992) target = $region56
      $region55: #{generator_forward.13} parent=31 // pred_region
        %p995 = scmp.lt.s32.totalorder %s22, 0
        %s996 = scalar_select %p995, %s22, 0
        %s997 = smul.addr %s996, 4
        %s998 = scalar_lea.vmem %s3, %s997
      $region56: #{generator_forward.13} parent=31 // pred_fallthru
        _
      // Predicated region
      $region57: #{generator_forward.13} parent=31 // pred_check
        %p999 = pneg %p159
      $region58: #{generator_forward.13} parent=31 // pred_check_branch
        %1001 = sbr.rel (%p999) target = $region60
      $region59: #{generator_forward.13} parent=31 // pred_region
        %p1002 = scmp.lt.s32.totalorder %s22, 0
        %s1003 = scalar_select %p1002, %s22, 0
        %s1004 = smul.addr %s1003, 16
        %s1005 = smul.addr %s1004, 8
        %s1006 = scalar_lea.vmem %s4, %s1005
      $region60: #{generator_forward.13} parent=31 // pred_fallthru
        _
      // Predicated region
      $region61: #{generator_forward.13} parent=31 // pred_check
        %p1007 = pneg %p185
      $region62: #{generator_forward.13} parent=31 // pred_check_branch
        %1009 = sbr.rel (%p1007) target = $region64
      $region63: #{generator_forward.13} parent=31 // pred_region
        %p1010 = scmp.lt.s32.totalorder %s22, 0
        %s1011 = scalar_select %p1010, %s22, 0
        %s1012 = smul.addr %s1011, 16
        %s1013 = smul.addr %s1012, 8
        %s1014 = scalar_lea.vmem %s5, %s1013
      $region64: #{generator_forward.13} parent=31 // pred_fallthru
        _
    $region32: #{generator_forward.13} parent=5 // pred_fallthru
      _
    %p1015 = scmp.le.s32.totalorder 2, %s12
    // Predicated region
    $region65: #{generator_forward.13} parent=5 // pred_check
      %p1016 = pneg %p1015
    $region66: #{generator_forward.13} parent=5 // pred_check_branch
      %1018 = sbr.rel (%p1016) target = $region68
    $region67: #{generator_forward.13} parent=5 // pred_region
      %s1019 = ssub.s32 %s12, 2
    $region68: #{generator_forward.13} parent=5 // pred_fallthru
      _
  $region6: #{generator_forward.13} parent=0 // loop_footer
    %s16 = sadd.s32 1, %s12
  $region7: #{generator_forward.13} parent=0 // loop_footer_branch
    %11 = sbr.rel target = $region3
  $region8: #{generator_forward.13} parent=0 // loop_exit
    _

// kernel: tile.93
$region0: #{tile.93}
  #allocation0 [shape = 's32[1]{0}', space=sflag, size = 0x4, scoped, tag = 'scoped memory for tile.93']
  %s0 = inlined_call_operand.vmem [shape: f32[16], index: 0, kind: input, shape index: {}]
  %s1 = inlined_call_operand.vmem [shape: f32[4,16], index: 1, kind: output, shape index: {}]
  // Predicated region
  $region2: #{tile.93} parent=0 // pred_check
    _
  $region3: #{tile.93} parent=0 // pred_check_branch
    %3 = sbr.rel (0) target = $region5
  $region4: #{tile.93} parent=0 // pred_region
    _
  $region5: #{tile.93} parent=0 // pred_fallthru
    _
  %v4 = vld [vmem:[%s0] ss:$0 sm:$0xff]
  %5 = vst [vmem:[%s1] sm:$0xf] %v4

// kernel: generator_forward.16
$region0: #{generator_forward.16}
  #allocation0 [shape = 'u32[]', space=smem, size = 0x4, offset = 0x4, fixed_abs, tag = 'smem constant byte address 0x4 - core index']
  #allocation1 [shape = 'u32[144,128]{1,0:T(1,128)}', space=vmem, size = 0x12000, scoped, tag = 'internal scratch']
  %s0 = inlined_call_operand.vmem [shape: bf16[64,128], index: 0, kind: input, shape index: {}]
  %s1 = inlined_call_operand.vmem [shape: f32[64,1], index: 1, kind: input, shape index: {}]
  %s2 = inlined_call_operand.vmem [shape: f32[64,1], index: 2, kind: input, shape index: {}]
  %s3 = inlined_call_operand.vmem [shape: bf16[64,128], index: 3, kind: output, shape index: {}]
  %s4 = sld [smem:[#allocation0]]
  $region22: #{generator_forward.16} parent=0
    _
  %s6 = ssub.s32 1, %s4
  %s7 = scalar_select 0, %s6, %s4
  // Predicated region
  $region2: #{generator_forward.16} parent=0 // pred_check
    _
  $region3: #{generator_forward.16} parent=0 // pred_check_branch
    %9 = sbr.rel (0) target = $region5
  $region4: #{generator_forward.16} parent=0 // pred_region
    _
  $region5: #{generator_forward.16} parent=0 // pred_fallthru
    _
  // Predicated region
  $region6: #{generator_forward.16} parent=0 // pred_check
    _
  $region7: #{generator_forward.16} parent=0 // pred_check_branch
    %11 = sbr.rel (0) target = $region9
  $region8: #{generator_forward.16} parent=0 // pred_region
    _
  $region9: #{generator_forward.16} parent=0 // pred_fallthru
    _
  // Predicated region
  $region10: #{generator_forward.16} parent=0 // pred_check
    _
  $region11: #{generator_forward.16} parent=0 // pred_check_branch
    %13 = sbr.rel (0) target = $region13
  $region12: #{generator_forward.16} parent=0 // pred_region
    _
  $region13: #{generator_forward.16} parent=0 // pred_fallthru
    _
  %v14 = vld [vmem:[%s0] sm:$0xf]
  %v15 = vld [vmem:[%s0 + $0x4] sm:$0xf]
  %v16 = vld [vmem:[%s0 + $0x8] sm:$0xf]
  %v17 = vld [vmem:[%s0 + $0xc] sm:$0xf]
  %v18 = vld [vmem:[%s0 + $0x10] sm:$0xf]
  %v19 = vld [vmem:[%s0 + $0x14] sm:$0xf]
  %v20 = vld [vmem:[%s0 + $0x18] sm:$0xf]
  %v21 = vld [vmem:[%s0 + $0x1c] sm:$0xf]
  %v22 = vunpack.c.l.bf16 %v14
  %v23 = vunpack.c.l.bf16 %v15
  %v24 = vunpack.c.l.bf16 %v16
  %v25 = vunpack.c.l.bf16 %v17
  %v26 = vunpack.c.l.bf16 %v18
  %v27 = vunpack.c.l.bf16 %v19
  %v28 = vunpack.c.l.bf16 %v20
  %v29 = vunpack.c.l.bf16 %v21
  %v30 = vld [vmem:[%s1] sm:$0xff]
  %v31 = vld [vmem:[%s1 + $0x8] sm:$0xff]
  %v32 = vld [vmem:[%s1 + $0x10] sm:$0xff]
  %v33 = vld [vmem:[%s1 + $0x18] sm:$0xff]
  %v34 = vld [vmem:[%s1 + $0x20] sm:$0xff]
  %v35 = vld [vmem:[%s1 + $0x28] sm:$0xff]
  %v36 = vld [vmem:[%s1 + $0x30] sm:$0xff]
  %v37 = vld [vmem:[%s1 + $0x38] sm:$0xff]
  %39 = vset.pattern.permute.xlu0 0
  %40 = vperm.xlu0 %39, %v30
  %v41 = vpop.permute.xlu0 %40
  %44 = vset.pattern.permute.xlu0 0
  %45 = vperm.xlu0 %44, %v31
  %v46 = vpop.permute.xlu0 %45
  %49 = vset.pattern.permute.xlu0 0
  %50 = vperm.xlu0 %49, %v32
  %v51 = vpop.permute.xlu0 %50
  %54 = vset.pattern.permute.xlu0 0
  %55 = vperm.xlu0 %54, %v33
  %v56 = vpop.permute.xlu0 %55
  %59 = vset.pattern.permute.xlu0 0
  %60 = vperm.xlu0 %59, %v34
  %v61 = vpop.permute.xlu0 %60
  %64 = vset.pattern.permute.xlu0 0
  %65 = vperm.xlu0 %64, %v35
  %v66 = vpop.permute.xlu0 %65
  %69 = vset.pattern.permute.xlu0 0
  %70 = vperm.xlu0 %69, %v36
  %v71 = vpop.permute.xlu0 %70
  %74 = vset.pattern.permute.xlu0 0
  %75 = vperm.xlu0 %74, %v37
  %v76 = vpop.permute.xlu0 %75
  %v78 = vmul.f32 %v22, %v41
  %v79 = vmul.f32 %v23, %v46
  %v80 = vmul.f32 %v24, %v51
  %v81 = vmul.f32 %v25, %v56
  %v82 = vmul.f32 %v26, %v61
  %v83 = vmul.f32 %v27, %v66
  %v84 = vmul.f32 %v28, %v71
  %v85 = vmul.f32 %v29, %v76
  %v86 = vld [vmem:[%s2] sm:$0xff]
  %v87 = vld [vmem:[%s2 + $0x8] sm:$0xff]
  %v88 = vld [vmem:[%s2 + $0x10] sm:$0xff]
  %v89 = vld [vmem:[%s2 + $0x18] sm:$0xff]
  %v90 = vld [vmem:[%s2 + $0x20] sm:$0xff]
  %v91 = vld [vmem:[%s2 + $0x28] sm:$0xff]
  %v92 = vld [vmem:[%s2 + $0x30] sm:$0xff]
  %v93 = vld [vmem:[%s2 + $0x38] sm:$0xff]
  %95 = vset.pattern.permute.xlu0 0
  %96 = vperm.xlu0 %95, %v86
  %v97 = vpop.permute.xlu0 %96
  %100 = vset.pattern.permute.xlu0 0
  %101 = vperm.xlu0 %100, %v87
  %v102 = vpop.permute.xlu0 %101
  %105 = vset.pattern.permute.xlu0 0
  %106 = vperm.xlu0 %105, %v88
  %v107 = vpop.permute.xlu0 %106
  %110 = vset.pattern.permute.xlu0 0
  %111 = vperm.xlu0 %110, %v89
  %v112 = vpop.permute.xlu0 %111
  %115 = vset.pattern.permute.xlu0 0
  %116 = vperm.xlu0 %115, %v90
  %v117 = vpop.permute.xlu0 %116
  %120 = vset.pattern.permute.xlu0 0
  %121 = vperm.xlu0 %120, %v91
  %v122 = vpop.permute.xlu0 %121
  %125 = vset.pattern.permute.xlu0 0
  %126 = vperm.xlu0 %125, %v92
  %v127 = vpop.permute.xlu0 %126
  %130 = vset.pattern.permute.xlu0 0
  %131 = vperm.xlu0 %130, %v93
  %v132 = vpop.permute.xlu0 %131
  %v134 = vadd.f32 %v78, %v97
  %v135 = vadd.f32 %v79, %v102
  %v136 = vadd.f32 %v80, %v107
  %v137 = vadd.f32 %v81, %v112
  %v138 = vadd.f32 %v82, %v117
  %v139 = vadd.f32 %v83, %v122
  %v140 = vadd.f32 %v84, %v127
  %v141 = vadd.f32 %v85, %v132
  %vm142 = vcmp.ge.f32.partialorder %v134, 0.0
  %vm143 = vcmp.ge.f32.partialorder %v135, 0.0
  %vm144 = vcmp.ge.f32.partialorder %v136, 0.0
  %vm145 = vcmp.ge.f32.partialorder %v137, 0.0
  %vm146 = vcmp.ge.f32.partialorder %v138, 0.0
  %vm147 = vcmp.ge.f32.partialorder %v139, 0.0
  %vm148 = vcmp.ge.f32.partialorder %v140, 0.0
  %vm149 = vcmp.ge.f32.partialorder %v141, 0.0
  %v150 = vmul.f32 %v134, 0.2
  %v151 = vmul.f32 %v135, 0.2
  %v152 = vmul.f32 %v136, 0.2
  %v153 = vmul.f32 %v137, 0.2
  %v154 = vmul.f32 %v138, 0.2
  %v155 = vmul.f32 %v139, 0.2
  %v156 = vmul.f32 %v140, 0.2
  %v157 = vmul.f32 %v141, 0.2
  %v158 = vsel %vm142, %v134, %v150
  %v159 = vsel %vm143, %v135, %v151
  %v160 = vsel %vm144, %v136, %v152
  %v161 = vsel %vm145, %v137, %v153
  %v162 = vsel %vm146, %v138, %v154
  %v163 = vsel %vm147, %v139, %v155
  %v164 = vsel %vm148, %v140, %v156
  %v165 = vsel %vm149, %v141, %v157
  %v166 = vpack.c.bf16 %v159, %v158
  %v167 = vpack.c.bf16 %v161, %v160
  %v168 = vpack.c.bf16 %v163, %v162
  %v169 = vpack.c.bf16 %v165, %v164
  %v174 = vunpack.c.l.b16 %v166
  %v175 = vunpack.c.h.b16 %v166
  %v176 = vunpack.c.l.b16 %v167
  %v177 = vunpack.c.h.b16 %v167
  %v178 = vunpack.c.l.b16 %v168
  %v179 = vunpack.c.h.b16 %v168
  %v180 = vunpack.c.l.b16 %v169
  %v181 = vunpack.c.h.b16 %v169
  %v182 = vpack.c.b16 %v174, %v174
  %v183 = vpack.c.b16 %v175, %v175
  %v184 = vpack.c.b16 %v176, %v176
  %v185 = vpack.c.b16 %v177, %v177
  %v186 = vpack.c.b16 %v178, %v178
  %v187 = vpack.c.b16 %v179, %v179
  %v188 = vpack.c.b16 %v180, %v180
  %v189 = vpack.c.b16 %v181, %v181
  %198 = vst [vmem:[%s3] sm:$0xf] %v182
  %199 = vst [vmem:[%s3 + $0x4] sm:$0xf] %v183
  %200 = vst [vmem:[%s3 + $0x8] sm:$0xf] %v184
  %201 = vst [vmem:[%s3 + $0xc] sm:$0xf] %v185
  %202 = vst [vmem:[%s3 + $0x10] sm:$0xf] %v186
  %203 = vst [vmem:[%s3 + $0x14] sm:$0xf] %v187
  %204 = vst [vmem:[%s3 + $0x18] sm:$0xf] %v188
  %205 = vst [vmem:[%s3 + $0x1c] sm:$0xf] %v189
  // Predicated region
  $region14: #{generator_forward.16} parent=0 // pred_check
    _
  $region15: #{generator_forward.16} parent=0 // pred_check_branch
    %207 = sbr.rel (0) target = $region17
  $region16: #{generator_forward.16} parent=0 // pred_region
    _
  $region17: #{generator_forward.16} parent=0 // pred_fallthru
    _
  // Predicated region
  $region18: #{generator_forward.16} parent=0 // pred_check
    _
  $region19: #{generator_forward.16} parent=0 // pred_check_branch
    %209 = sbr.rel (0) target = $region21
  $region20: #{generator_forward.16} parent=0 // pred_region
    _
  $region21: #{generator_forward.16} parent=0 // pred_fallthru
    _

// kernel: generator_forward.15
$region0: #{generator_forward.15}
  #allocation0 [shape = 'u32[]', space=smem, size = 0x4, offset = 0x4, fixed_abs, tag = 'smem constant byte address 0x4 - core index']
  #allocation1 [shape = 'u32[144,128]{1,0:T(1,128)}', space=vmem, size = 0x12000, scoped, tag = 'internal scratch']
  #allocation2 [shape = 'f32[64,128]{1,0:T(8,128)}', space=vmem, size = 0x8000, scoped, tag = 'scratch operand']
  %s0 = inlined_call_operand.vmem [shape: bf16[3,3,32,128], index: 0, kind: input, shape index: {}]
  %s1 = inlined_call_operand.vmem [shape: bf16[3,3,64,32], index: 1, kind: input, shape index: {}]
  %s2 = inlined_call_operand.vmem [shape: f32[64,1], index: 2, kind: input, shape index: {}]
  %s3 = inlined_call_operand.vmem [shape: bf16[64,128], index: 3, kind: output, shape index: {0}]
  %s4 = inlined_call_operand.vmem [shape: f32[1,64,1], index: 4, kind: output, shape index: {1}]
  %s5 = inlined_call_operand.vmem [shape: f32[1,64,1], index: 5, kind: output, shape index: {2}]
  %6 = xla_tuple %s3, %s4, %s5
  %s7 = sld [smem:[#allocation0]]
  $region69: #{generator_forward.15} parent=0
    _
  %s9 = ssub.s32 1, %s7
  %s10 = scalar_select 0, %s9, %s7
  loop: start=0, step=1, limit=11
  $region2: #{generator_forward.15} parent=0 // loop_pre_header
    _
  $region3: #{generator_forward.15} parent=0 // loop_header
    %s12 = sphi 0, %s16
    %p13 = scmp.ge.s32.totalorder %s12, 11
    %s19 = sphi 0, %s38
    %s20 = sphi 0, %s34
    %s21 = sphi 0, %s30
    %s22 = sphi 0, %s19
    %s23 = sphi 0, %s20
    %s24 = sphi 0, %s21
    %s25 = sphi 0, %s22
    %s26 = sphi 0, %s23
    %s27 = sphi 0, %s24
    %s45 = sphi 0, %s47
    %s48 = sphi 0, %s45
    %s49 = sphi 0, %s48
    %s65 = sphi 0, %s49
    %s73 = sphi 0, %s75
    %s76 = sphi 0, %s73
    %s77 = sphi 0, %s76
    %s93 = sphi 0, %s77
    %s97 = sphi 0, %s97
    %s99 = sphi 0, %s97
    %s100 = sphi 0, %s99
    %s114 = sphi 0, %s100
    %s120 = sphi 0, %s122
    %s123 = sphi 0, %s120
    %s124 = sphi 0, %s123
    %s140 = sphi 0, %s124
    %s146 = sphi 0, %s148
    %s149 = sphi 0, %s146
    %s150 = sphi 0, %s149
    %s166 = sphi 0, %s150
    %s172 = sphi 0, %s174
    %s175 = sphi 0, %s172
    %s176 = sphi 0, %s175
    %s192 = sphi 0, %s176
  $region4: #{generator_forward.15} parent=0 // loop_header_branch
    %15 = sbr.rel (%p13) target = $region8
  $region5: #{generator_forward.15} parent=0 // loop_body
    %s17 = ssub.s32 %s12, 1
    %s18 = ssub.s32 %s12, 2
    %s28 = sadd.s32 1, %s21
    %p29 = scmp.ge.s32.totalorder %s28, 3
    %s30 = scalar_select %p29, 0, %s28
    %s31 = sadd.s32 1, %s20
    %s32 = scalar_select %p29, %s31, %s20
    %p33 = scmp.ge.s32.totalorder %s32, 3
    %s34 = scalar_select %p33, 0, %s32
    %s35 = sadd.s32 1, %s19
    %s36 = scalar_select %p33, %s35, %s19
    %p37 = scmp.ge.s32.totalorder %s36, 1
    %s38 = scalar_select %p37, 0, %s36
    %s39 = ssub.s32 %s20, %s34
    %s40 = ssub.s32 %s21, %s30
    %s41 = sor.u32 %s39, %s40
    %s42 = ssub.s32 %s19, %s38
    %s43 = sor.u32 %s41, %s42
    %p44 = scmp.eq.s32.totalorder %s43, 0
    %s46 = sadd.s32 %s45, 1
    %s47 = scalar_select %p44, %s45, %s46
    %p50 = pneg %p44
    %p51 = scmp.eq.s32.totalorder %s12, 8
    %p52 = por %p50, %p51
    %p53 = scmp.ne.s32.totalorder %s45, %s48
    %p54 = scmp.eq.s32.totalorder %s12, 0
    %p55 = por %p53, %p54
    %p56 = scmp.ne.s32.totalorder %s45, %s48
    %p57 = scmp.eq.s32.totalorder %s17, 8
    %p58 = por %p56, %p57
    %p59 = scmp.ne.s32.totalorder %s48, %s49
    %p60 = scmp.eq.s32.totalorder %s17, 0
    %p61 = por %p59, %p60
    %p62 = scmp.ne.s32.totalorder %s48, %s49
    %p63 = scmp.eq.s32.totalorder %s18, 8
    %p64 = por %p62, %p63
    %p66 = scmp.ne.s32.totalorder %s49, %s65
    %p67 = scmp.eq.s32.totalorder %s18, 0
    %p68 = por %p66, %p67
    %s69 = ssub.s32 %s20, %s34
    %s70 = ssub.s32 %s21, %s30
    %s71 = sor.u32 %s69, %s70
    %p72 = scmp.eq.s32.totalorder %s71, 0
    %s74 = sadd.s32 %s73, 1
    %s75 = scalar_select %p72, %s73, %s74
    %p78 = pneg %p72
    %p79 = scmp.eq.s32.totalorder %s12, 8
    %p80 = por %p78, %p79
    %p81 = scmp.ne.s32.totalorder %s73, %s76
    %p82 = scmp.eq.s32.totalorder %s12, 0
    %p83 = por %p81, %p82
    %p84 = scmp.ne.s32.totalorder %s73, %s76
    %p85 = scmp.eq.s32.totalorder %s17, 8
    %p86 = por %p84, %p85
    %p87 = scmp.ne.s32.totalorder %s76, %s77
    %p88 = scmp.eq.s32.totalorder %s17, 0
    %p89 = por %p87, %p88
    %p90 = scmp.ne.s32.totalorder %s76, %s77
    %p91 = scmp.eq.s32.totalorder %s18, 8
    %p92 = por %p90, %p91
    %p94 = scmp.ne.s32.totalorder %s77, %s93
    %p95 = scmp.eq.s32.totalorder %s18, 0
    %p96 = por %p94, %p95
    %s98 = sadd.s32 %s97, 1
    %p101 = scmp.eq.s32.totalorder %s12, 8
    %p102 = scmp.ne.s32.totalorder %s97, %s99
    %p103 = scmp.eq.s32.totalorder %s12, 0
    %p104 = por %p102, %p103
    %p105 = scmp.ne.s32.totalorder %s97, %s99
    %p106 = scmp.eq.s32.totalorder %s17, 8
    %p107 = por %p105, %p106
    %p108 = scmp.ne.s32.totalorder %s99, %s100
    %p109 = scmp.eq.s32.totalorder %s17, 0
    %p110 = por %p108, %p109
    %p111 = scmp.ne.s32.totalorder %s99, %s100
    %p112 = scmp.eq.s32.totalorder %s18, 8
    %p113 = por %p111, %p112
    %p115 = scmp.ne.s32.totalorder %s100, %s114
    %p116 = scmp.eq.s32.totalorder %s18, 0
    %p117 = por %p115, %p116
    %s118 = ssub.s32 %s19, %s38
    %p119 = scmp.eq.s32.totalorder %s118, 0
    %s121 = sadd.s32 %s120, 1
    %s122 = scalar_select %p119, %s120, %s121
    %p125 = pneg %p119
    %p126 = scmp.eq.s32.totalorder %s12, 8
    %p127 = por %p125, %p126
    %p128 = scmp.ne.s32.totalorder %s120, %s123
    %p129 = scmp.eq.s32.totalorder %s12, 0
    %p130 = por %p128, %p129
    %p131 = scmp.ne.s32.totalorder %s120, %s123
    %p132 = scmp.eq.s32.totalorder %s17, 8
    %p133 = por %p131, %p132
    %p134 = scmp.ne.s32.totalorder %s123, %s124
    %p135 = scmp.eq.s32.totalorder %s17, 0
    %p136 = por %p134, %p135
    %p137 = scmp.ne.s32.totalorder %s123, %s124
    %p138 = scmp.eq.s32.totalorder %s18, 8
    %p139 = por %p137, %p138
    %p141 = scmp.ne.s32.totalorder %s124, %s140
    %p142 = scmp.eq.s32.totalorder %s18, 0
    %p143 = por %p141, %p142
    %s144 = ssub.s32 %s19, %s38
    %p145 = scmp.eq.s32.totalorder %s144, 0
    %s147 = sadd.s32 %s146, 1
    %s148 = scalar_select %p145, %s146, %s147
    %p151 = pneg %p145
    %p152 = scmp.eq.s32.totalorder %s12, 8
    %p153 = por %p151, %p152
    %p154 = scmp.ne.s32.totalorder %s146, %s149
    %p155 = scmp.eq.s32.totalorder %s12, 0
    %p156 = por %p154, %p155
    %p157 = scmp.ne.s32.totalorder %s146, %s149
    %p158 = scmp.eq.s32.totalorder %s17, 8
    %p159 = por %p157, %p158
    %p160 = scmp.ne.s32.totalorder %s149, %s150
    %p161 = scmp.eq.s32.totalorder %s17, 0
    %p162 = por %p160, %p161
    %p163 = scmp.ne.s32.totalorder %s149, %s150
    %p164 = scmp.eq.s32.totalorder %s18, 8
    %p165 = por %p163, %p164
    %p167 = scmp.ne.s32.totalorder %s150, %s166
    %p168 = scmp.eq.s32.totalorder %s18, 0
    %p169 = por %p167, %p168
    %s170 = ssub.s32 %s19, %s38
    %p171 = scmp.eq.s32.totalorder %s170, 0
    %s173 = sadd.s32 %s172, 1
    %s174 = scalar_select %p171, %s172, %s173
    %p177 = pneg %p171
    %p178 = scmp.eq.s32.totalorder %s12, 8
    %p179 = por %p177, %p178
    %p180 = scmp.ne.s32.totalorder %s172, %s175
    %p181 = scmp.eq.s32.totalorder %s12, 0
    %p182 = por %p180, %p181
    %p183 = scmp.ne.s32.totalorder %s172, %s175
    %p184 = scmp.eq.s32.totalorder %s17, 8
    %p185 = por %p183, %p184
    %p186 = scmp.ne.s32.totalorder %s175, %s176
    %p187 = scmp.eq.s32.totalorder %s17, 0
    %p188 = por %p186, %p187
    %p189 = scmp.ne.s32.totalorder %s175, %s176
    %p190 = scmp.eq.s32.totalorder %s18, 8
    %p191 = por %p189, %p190
    %p193 = scmp.ne.s32.totalorder %s176, %s192
    %p194 = scmp.eq.s32.totalorder %s18, 0
    %p195 = por %p193, %p194
    %p196 = scmp.le.s32.totalorder 1, %s12
    %p197 = scmp.lt.s32.totalorder %s12, 10
    %p198 = pnand %p196, %p197
    %p199 = pneg %p198
    // Predicated region
    $region9: #{generator_forward.15} parent=5 // pred_check
      _
    $region10: #{generator_forward.15} parent=5 // pred_check_branch
      %201 = sbr.rel (%p198) target = $region12
    $region11: #{generator_forward.15} parent=5 // pred_region
      %s202 = ssub.s32 %s12, 1
      // Predicated region
      $region13: #{generator_forward.15} parent=11 // pred_check
        %p203 = pneg %p110
      $region14: #{generator_forward.15} parent=11 // pred_check_branch
        %205 = sbr.rel (%p203) target = $region16
      $region15: #{generator_forward.15} parent=11 // pred_region
        _
      $region16: #{generator_forward.15} parent=11 // pred_fallthru
        _
    $region12: #{generator_forward.15} parent=5 // pred_fallthru
      _
    %p206 = scmp.lt.s32.totalorder %s12, 9
    // Predicated region
    $region17: #{generator_forward.15} parent=5 // pred_check
      %p207 = pneg %p206
    $region18: #{generator_forward.15} parent=5 // pred_check_branch
      %209 = sbr.rel (%p207) target = $region20
    $region19: #{generator_forward.15} parent=5 // pred_region
      // Predicated region
      $region21: #{generator_forward.15} parent=19 // pred_check
        %p210 = pneg %p55
      $region22: #{generator_forward.15} parent=19 // pred_check_branch
        %212 = sbr.rel (%p210) target = $region24
      $region23: #{generator_forward.15} parent=19 // pred_region
        %p213 = scmp.lt.s32.totalorder %s20, 2
        %s214 = scalar_select %p213, %s20, 2
        %p215 = scmp.lt.s32.totalorder %s21, 2
        %s216 = scalar_select %p215, %s21, 2
        %p217 = scmp.lt.s32.totalorder %s19, 0
        %s218 = scalar_select %p217, %s19, 0
        %s219 = smul.addr %s216, 4
        %s220 = sadd.s32 %s218, %s219
        %s221 = smul.addr %s214, 12
        %s222 = sadd.s32 %s220, %s221
        %s223 = smul.addr %s222, 4
        %s224 = scalar_lea.vmem %s0, %s223
      $region24: #{generator_forward.15} parent=19 // pred_fallthru
        _
      // Predicated region
      $region25: #{generator_forward.15} parent=19 // pred_check
        %p225 = pneg %p83
      $region26: #{generator_forward.15} parent=19 // pred_check_branch
        %227 = sbr.rel (%p225) target = $region28
      $region27: #{generator_forward.15} parent=19 // pred_region
        %p228 = scmp.lt.s32.totalorder %s20, 2
        %s229 = scalar_select %p228, %s20, 2
        %p230 = scmp.lt.s32.totalorder %s21, 2
        %s231 = scalar_select %p230, %s21, 2
        %s232 = smul.addr %s231, 8
        %s233 = smul.addr %s229, 24
        %s234 = sadd.s32 %s232, %s233
        %s235 = smul.addr %s234, 4
        %s236 = scalar_lea.vmem %s1, %s235
      $region28: #{generator_forward.15} parent=19 // pred_fallthru
        _
    $region20: #{generator_forward.15} parent=5 // pred_fallthru
      _
    %p237 = scmp.le.s32.totalorder 1, %s12
    %p238 = scmp.lt.s32.totalorder %s12, 10
    %p239 = pnand %p237, %p238
    %p240 = pneg %p239
    // Predicated region
    $region29: #{generator_forward.15} parent=5 // pred_check
      _
    $region30: #{generator_forward.15} parent=5 // pred_check_branch
      %242 = sbr.rel (%p239) target = $region32
    $region31: #{generator_forward.15} parent=5 // pred_region
      %s243 = ssub.s32 %s12, 1
      %p244 = scmp.lt.s32.totalorder %s23, 2
      %s245 = scalar_select %p244, %s23, 2
      %p246 = scmp.lt.s32.totalorder %s24, 2
      %s247 = scalar_select %p246, %s24, 2
      %p248 = scmp.lt.s32.totalorder %s22, 0
      %s249 = scalar_select %p248, %s22, 0
      %s250 = smul.addr %s247, 4
      %s251 = sadd.s32 %s249, %s250
      %s252 = smul.addr %s245, 12
      %s253 = sadd.s32 %s251, %s252
      %s254 = smul.addr %s253, 4
      %s255 = scalar_lea.vmem %s0, %s254
      %p256 = pneg %p61
      %p257 = pneg %p58
      %p258 = scmp.lt.s32.totalorder %s23, 2
      %s259 = scalar_select %p258, %s23, 2
      %p260 = scmp.lt.s32.totalorder %s24, 2
      %s261 = scalar_select %p260, %s24, 2
      %s262 = smul.addr %s261, 8
      %s263 = smul.addr %s259, 24
      %s264 = sadd.s32 %s262, %s263
      %s265 = smul.addr %s264, 4
      %s266 = scalar_lea.vmem %s1, %s265
      %p267 = pneg %p89
      %p268 = pneg %p86
      %p269 = pneg %p110
      %p270 = pneg %p107
      %p271 = pneg %p136
      %p272 = pneg %p133
      %p273 = scmp.lt.s32.totalorder %s22, 0
      %s274 = scalar_select %p273, %s22, 0
      %s275 = smul.addr %s274, 4
      %s276 = scalar_lea.vmem %s3, %s275
      %p277 = pneg %p162
      %p278 = pneg %p159
      %p279 = scmp.lt.s32.totalorder %s22, 0
      %s280 = scalar_select %p279, %s22, 0
      %s281 = smul.addr %s280, 8
      %s282 = smul.addr %s281, 8
      %s283 = scalar_lea.vmem %s4, %s282
      %p284 = pneg %p188
      %p285 = pneg %p185
      %p286 = scmp.lt.s32.totalorder %s22, 0
      %s287 = scalar_select %p286, %s22, 0
      %s288 = smul.addr %s287, 8
      %s289 = smul.addr %s288, 8
      %s290 = scalar_lea.vmem %s5, %s289
      %p291 = scmp.lt.s32.totalorder %s23, 2
      %s292 = scalar_select %p291, %s23, 2
      %p293 = scmp.lt.s32.totalorder %s24, 2
      %s294 = scalar_select %p293, %s24, 2
      %p295 = scmp.lt.s32.totalorder %s22, 0
      %s296 = scalar_select %p295, %s22, 0
      %s297 = smul.addr %s294, 4
      %s298 = sadd.s32 %s296, %s297
      %s299 = smul.addr %s292, 12
      %s300 = sadd.s32 %s298, %s299
      %s301 = smul.addr %s300, 4
      %s302 = scalar_lea.vmem %s0, %s301
      %p303 = scmp.lt.s32.totalorder %s23, 2
      %s304 = scalar_select %p303, %s23, 2
      %p305 = scmp.lt.s32.totalorder %s24, 2
      %s306 = scalar_select %p305, %s24, 2
      %s307 = smul.addr %s306, 8
      %s308 = smul.addr %s304, 24
      %s309 = sadd.s32 %s307, %s308
      %s310 = smul.addr %s309, 4
      %s311 = scalar_lea.vmem %s1, %s310
      %p312 = scmp.lt.s32.totalorder %s22, 0
      %s313 = scalar_select %p312, %s22, 0
      %s314 = smul.addr %s313, 4
      %s315 = scalar_lea.vmem %s3, %s314
      %p316 = scmp.lt.s32.totalorder %s22, 0
      %s317 = scalar_select %p316, %s22, 0
      %s318 = smul.addr %s317, 8
      %s319 = smul.addr %s318, 8
      %s320 = scalar_lea.vmem %s4, %s319
      %p321 = scmp.lt.s32.totalorder %s22, 0
      %s322 = scalar_select %p321, %s22, 0
      %s323 = smul.addr %s322, 8
      %s324 = smul.addr %s323, 8
      %s325 = scalar_lea.vmem %s5, %s324
      %p327 = scmp.eq.s32.totalorder %s23, 0
      %p328 = scmp.eq.s32.totalorder %s24, 0
      %p329 = pnand %p327, %p328
      %p330 = pneg %p329
      // Predicated region
      $region33: #{generator_forward.15} parent=31 // pred_check
        _
      $region34: #{generator_forward.15} parent=31 // pred_check_branch
        %332 = sbr.rel (%p329) target = $region36
      $region35: #{generator_forward.15} parent=31 // pred_region
        %333 = vst [vmem:[#allocation2] sm:$0xff] 0.0
        %334 = vst [vmem:[#allocation2 + $0x8] sm:$0xff] 0.0
        %335 = vst [vmem:[#allocation2 + $0x10] sm:$0xff] 0.0
        %336 = vst [vmem:[#allocation2 + $0x18] sm:$0xff] 0.0
        %337 = vst [vmem:[#allocation2 + $0x20] sm:$0xff] 0.0
        %338 = vst [vmem:[#allocation2 + $0x28] sm:$0xff] 0.0
        %339 = vst [vmem:[#allocation2 + $0x30] sm:$0xff] 0.0
        %340 = vst [vmem:[#allocation2 + $0x38] sm:$0xff] 0.0
      $region36: #{generator_forward.15} parent=31 // pred_fallthru
        _
      %v341 = vld [vmem:[#allocation2] sm:$0xff]
      %v342 = vld [vmem:[#allocation2 + $0x8] sm:$0xff]
      %v343 = vld [vmem:[#allocation2 + $0x10] sm:$0xff]
      %v344 = vld [vmem:[#allocation2 + $0x18] sm:$0xff]
      %v345 = vld [vmem:[#allocation2 + $0x20] sm:$0xff]
      %v346 = vld [vmem:[#allocation2 + $0x28] sm:$0xff]
      %v347 = vld [vmem:[#allocation2 + $0x30] sm:$0xff]
      %v348 = vld [vmem:[#allocation2 + $0x38] sm:$0xff]
      %v349 = vld [vmem:[%s311] sm:$0xf]
      %v350 = vld [vmem:[%s311 + $0x4] sm:$0xf]
      %v351 = vld [vmem:[%s311 + $0x8] sm:$0xf]
      %v352 = vld [vmem:[%s311 + $0xc] sm:$0xf]
      %v353 = vld [vmem:[%s311 + $0x10] sm:$0xf]
      %v354 = vld [vmem:[%s311 + $0x14] sm:$0xf]
      %v355 = vld [vmem:[%s311 + $0x18] sm:$0xf]
      %v356 = vld [vmem:[%s311 + $0x1c] sm:$0xf]
      %v357 = vld [vmem:[%s302] sm:$0xf]
      %v358 = vld [vmem:[%s302 + $0x4] sm:$0xf]
      %v359 = vld [vmem:[%s302 + $0x8] sm:$0xf]
      %v360 = vld [vmem:[%s302 + $0xc] sm:$0xf]
      %v369 = vunpack.c.l.b16 %v349
      %v370 = vunpack.c.l.b16 %v350
      %v371 = vunpack.c.l.b16 %v351
      %v372 = vunpack.c.l.b16 %v352
      %v373 = vunpack.c.l.b16 %v353
      %v374 = vunpack.c.l.b16 %v354
      %v375 = vunpack.c.l.b16 %v355
      %v376 = vunpack.c.l.b16 %v356
      %v377 = vpack.c.b16 %v370, %v369
      %v378 = vpack.c.b16 %v372, %v371
      %v379 = vpack.c.b16 %v374, %v373
      %v380 = vpack.c.b16 %v376, %v375
      %v385 = vunpack.c.l.b16 %v357
      %v386 = vunpack.c.l.b16 %v358
      %v387 = vunpack.c.l.b16 %v359
      %v388 = vunpack.c.l.b16 %v360
      %v389 = vpack.c.b16 %v386, %v385
      %v390 = vpack.c.b16 %v388, %v387
      %vm393 = vcmask 261120
      %v395 = vsel %vm393, %v377, 0
      %v398 = vsel %vm393, %v378, 0
      %v401 = vsel %vm393, %v379, 0
      %v404 = vsel %vm393, %v380, 0
      %406 = vmatprep.subr.bf16.mxu0 0
      %407 = vmatpush1.bf16.msra.mxu0 %v389
      %408 = vmatprep.subr.bf16.mxu0 0
      %409 = vmatpush1.bf16.msra.mxu0 %v390
      %410 = vmatprep.subr.bf16.mxu0 0
      %411 = vmatpush1.bf16.msra.mxu0 0
      %412 = vmatprep.subr.bf16.mxu0 0
      %413 = vmatpush1.bf16.msra.mxu0 0
      %414 = vmatprep.subr.bf16.mxu0 0
      %415 = vmatpush1.bf16.msra.mxu0 0
      %416 = vmatprep.subr.bf16.mxu0 0
      %417 = vmatpush1.bf16.msra.mxu0 0
      %418 = vmatprep.subr.bf16.mxu0 0
      %419 = vmatpush1.bf16.msra.mxu0 0
      %420 = vmatprep.subr.bf16.mxu0 0
      %421 = vmatpush1.bf16.msra.mxu0 0
      %422 = vmatprep.subr.bf16.mxu0 0
      %423 = vmatpush1.bf16.msra.mxu0 0
      %424 = vmatprep.subr.bf16.mxu0 0
      %425 = vmatpush1.bf16.msra.mxu0 0
      %426 = vmatprep.subr.bf16.mxu0 0
      %427 = vmatpush1.bf16.msra.mxu0 0
      %428 = vmatprep.subr.bf16.mxu0 0
      %429 = vmatpush1.bf16.msra.mxu0 0
      %430 = vmatprep.subr.bf16.mxu0 0
      %431 = vmatpush1.bf16.msra.mxu0 0
      %432 = vmatprep.subr.bf16.mxu0 0
      %433 = vmatpush1.bf16.msra.mxu0 0
      %434 = vmatprep.subr.bf16.mxu0 0
      %435 = vmatpush1.bf16.msra.mxu0 0
      %436 = vmatprep.subr.bf16.mxu0 0
      %437 = vmatpush1.bf16.msra.mxu0 0
      %438 = vmatprep.mubr.bf16.mxu0 0
      %439 = vmatmul.mubr.bf16.gmra.mrb[0].mxu0 %v395
      %v440 = vpop.f32.mrb[0].mxu0
      %v441 = vadd.f32 0.0, %v440
      %v442 = vpop.f32.mrb[0].mxu0
      %v443 = vpop.f32.mrb[0].mxu0
      %v444 = vadd.f32 0.0, %v443
      %v445 = vpop.f32.mrb[0].mxu0
      %446 = vmatprep.mubr.bf16.mxu0 0
      %447 = vmatmul.mubr.bf16.gmra.mrb[0].mxu0 %v398
      %v448 = vpop.f32.mrb[0].mxu0
      %v449 = vadd.f32 0.0, %v448
      %v450 = vpop.f32.mrb[0].mxu0
      %v451 = vpop.f32.mrb[0].mxu0
      %v452 = vadd.f32 0.0, %v451
      %v453 = vpop.f32.mrb[0].mxu0
      %454 = vmatprep.mubr.bf16.mxu0 0
      %455 = vmatmul.mubr.bf16.gmra.mrb[0].mxu0 %v401
      %v456 = vpop.f32.mrb[0].mxu0
      %v457 = vadd.f32 0.0, %v456
      %v458 = vpop.f32.mrb[0].mxu0
      %v459 = vpop.f32.mrb[0].mxu0
      %v460 = vadd.f32 0.0, %v459
      %v461 = vpop.f32.mrb[0].mxu0
      %462 = vmatprep.mubr.bf16.mxu0 0
      %463 = vmatmul.mubr.bf16.gmra.mrb[0].mxu0 %v404
      %v464 = vpop.f32.mrb[0].mxu0
      %v465 = vadd.f32 0.0, %v464
      %v466 = vpop.f32.mrb[0].mxu0
      %v467 = vpop.f32.mrb[0].mxu0
      %v468 = vadd.f32 0.0, %v467
      %v469 = vpop.f32.mrb[0].mxu0
      %470 = vdwg.mxu0
      %v471 = vadd.f32 %v341, %v441
      %v472 = vadd.f32 %v342, %v444
      %v473 = vadd.f32 %v343, %v449
      %v474 = vadd.f32 %v344, %v452
      %v475 = vadd.f32 %v345, %v457
      %v476 = vadd.f32 %v346, %v460
      %v477 = vadd.f32 %v347, %v465
      %v478 = vadd.f32 %v348, %v468
      %479 = vst [vmem:[#allocation2] sm:$0xff] %v471
      %480 = vst [vmem:[#allocation2 + $0x8] sm:$0xff] %v472
      %481 = vst [vmem:[#allocation2 + $0x10] sm:$0xff] %v473
      %482 = vst [vmem:[#allocation2 + $0x18] sm:$0xff] %v474
      %483 = vst [vmem:[#allocation2 + $0x20] sm:$0xff] %v475
      %484 = vst [vmem:[#allocation2 + $0x28] sm:$0xff] %v476
      %485 = vst [vmem:[#allocation2 + $0x30] sm:$0xff] %v477
      %486 = vst [vmem:[#allocation2 + $0x38] sm:$0xff] %v478
      %p487 = scmp.eq.s32.totalorder %s23, 2
      %p488 = scmp.eq.s32.totalorder %s24, 2
      %p489 = pnand %p487, %p488
      %p490 = pneg %p489
      // Predicated region
      $region37: #{generator_forward.15} parent=31 // pred_check
        _
      $region38: #{generator_forward.15} parent=31 // pred_check_branch
        %492 = sbr.rel (%p489) target = $region40
      $region39: #{generator_forward.15} parent=31 // pred_region
        %v493 = vld [vmem:[#allocation2] sm:$0xff]
        %v494 = vld [vmem:[#allocation2 + $0x8] sm:$0xff]
        %v495 = vld [vmem:[#allocation2 + $0x10] sm:$0xff]
        %v496 = vld [vmem:[#allocation2 + $0x18] sm:$0xff]
        %v497 = vld [vmem:[#allocation2 + $0x20] sm:$0xff]
        %v498 = vld [vmem:[#allocation2 + $0x28] sm:$0xff]
        %v499 = vld [vmem:[#allocation2 + $0x30] sm:$0xff]
        %v500 = vld [vmem:[#allocation2 + $0x38] sm:$0xff]
        %v501 = vld [vmem:[%s2] sm:$0xff]
        %v502 = vld [vmem:[%s2 + $0x8] sm:$0xff]
        %v503 = vld [vmem:[%s2 + $0x10] sm:$0xff]
        %v504 = vld [vmem:[%s2 + $0x18] sm:$0xff]
        %v505 = vld [vmem:[%s2 + $0x20] sm:$0xff]
        %v506 = vld [vmem:[%s2 + $0x28] sm:$0xff]
        %v507 = vld [vmem:[%s2 + $0x30] sm:$0xff]
        %v508 = vld [vmem:[%s2 + $0x38] sm:$0xff]
        %510 = vset.pattern.permute.xlu0 0
        %511 = vperm.xlu0 %510, %v501
        %v512 = vpop.permute.xlu0 %511
        %515 = vset.pattern.permute.xlu0 0
        %516 = vperm.xlu0 %515, %v502
        %v517 = vpop.permute.xlu0 %516
        %520 = vset.pattern.permute.xlu0 0
        %521 = vperm.xlu0 %520, %v503
        %v522 = vpop.permute.xlu0 %521
        %525 = vset.pattern.permute.xlu0 0
        %526 = vperm.xlu0 %525, %v504
        %v527 = vpop.permute.xlu0 %526
        %530 = vset.pattern.permute.xlu0 0
        %531 = vperm.xlu0 %530, %v505
        %v532 = vpop.permute.xlu0 %531
        %535 = vset.pattern.permute.xlu0 0
        %536 = vperm.xlu0 %535, %v506
        %v537 = vpop.permute.xlu0 %536
        %540 = vset.pattern.permute.xlu0 0
        %541 = vperm.xlu0 %540, %v507
        %v542 = vpop.permute.xlu0 %541
        %545 = vset.pattern.permute.xlu0 0
        %546 = vperm.xlu0 %545, %v508
        %v547 = vpop.permute.xlu0 %546
        %v549 = vadd.f32 %v493, %v512
        %v550 = vadd.f32 %v494, %v517
        %v551 = vadd.f32 %v495, %v522
        %v552 = vadd.f32 %v496, %v527
        %v553 = vadd.f32 %v497, %v532
        %v554 = vadd.f32 %v498, %v537
        %v555 = vadd.f32 %v499, %v542
        %v556 = vadd.f32 %v500, %v547
        %557 = vadd.xlane.f32.xlu0 %v549
        %v558 = vpop.xlane.xlu0 %557
        %559 = vadd.xlane.f32.xlu0 %v550
        %v560 = vpop.xlane.xlu0 %559
        %561 = vadd.xlane.f32.xlu0 %v551
        %v562 = vpop.xlane.xlu0 %561
        %563 = vadd.xlane.f32.xlu0 %v552
        %v564 = vpop.xlane.xlu0 %563
        %565 = vadd.xlane.f32.xlu0 %v553
        %v566 = vpop.xlane.xlu0 %565
        %567 = vadd.xlane.f32.xlu0 %v554
        %v568 = vpop.xlane.xlu0 %567
        %569 = vadd.xlane.f32.xlu0 %v555
        %v570 = vpop.xlane.xlu0 %569
        %571 = vadd.xlane.f32.xlu0 %v556
        %v572 = vpop.xlane.xlu0 %571
        %vm573 = vcmask 7168
        %574 = vst.msk [vmem:[%s320] sm:$0xff] %vm573, %v558
        %575 = vst.msk [vmem:[%s320 + $0x8] sm:$0xff] %vm573, %v560
        %576 = vst.msk [vmem:[%s320 + $0x10] sm:$0xff] %vm573, %v562
        %577 = vst.msk [vmem:[%s320 + $0x18] sm:$0xff] %vm573, %v564
        %578 = vst.msk [vmem:[%s320 + $0x20] sm:$0xff] %vm573, %v566
        %579 = vst.msk [vmem:[%s320 + $0x28] sm:$0xff] %vm573, %v568
        %580 = vst.msk [vmem:[%s320 + $0x30] sm:$0xff] %vm573, %v570
        %581 = vst.msk [vmem:[%s320 + $0x38] sm:$0xff] %vm573, %v572
        %v582 = vmul.f32 %v549, %v549
        %v583 = vmul.f32 %v550, %v550
        %v584 = vmul.f32 %v551, %v551
        %v585 = vmul.f32 %v552, %v552
        %v586 = vmul.f32 %v553, %v553
        %v587 = vmul.f32 %v554, %v554
        %v588 = vmul.f32 %v555, %v555
        %v589 = vmul.f32 %v556, %v556
        %590 = vadd.xlane.f32.xlu0 %v582
        %v591 = vpop.xlane.xlu0 %590
        %592 = vadd.xlane.f32.xlu0 %v583
        %v593 = vpop.xlane.xlu0 %592
        %594 = vadd.xlane.f32.xlu0 %v584
        %v595 = vpop.xlane.xlu0 %594
        %596 = vadd.xlane.f32.xlu0 %v585
        %v597 = vpop.xlane.xlu0 %596
        %598 = vadd.xlane.f32.xlu0 %v586
        %v599 = vpop.xlane.xlu0 %598
        %600 = vadd.xlane.f32.xlu0 %v587
        %v601 = vpop.xlane.xlu0 %600
        %602 = vadd.xlane.f32.xlu0 %v588
        %v603 = vpop.xlane.xlu0 %602
        %604 = vadd.xlane.f32.xlu0 %v589
        %v605 = vpop.xlane.xlu0 %604
        %606 = vst.msk [vmem:[%s325] sm:$0xff] %vm573, %v591
        %607 = vst.msk [vmem:[%s325 + $0x8] sm:$0xff] %vm573, %v593
        %608 = vst.msk [vmem:[%s325 + $0x10] sm:$0xff] %vm573, %v595
        %609 = vst.msk [vmem:[%s325 + $0x18] sm:$0xff] %vm573, %v597
        %610 = vst.msk [vmem:[%s325 + $0x20] sm:$0xff] %vm573, %v599
        %611 = vst.msk [vmem:[%s325 + $0x28] sm:$0xff] %vm573, %v601
        %612 = vst.msk [vmem:[%s325 + $0x30] sm:$0xff] %vm573, %v603
        %613 = vst.msk [vmem:[%s325 + $0x38] sm:$0xff] %vm573, %v605
        %v614 = vpack.c.bf16 %v550, %v549
        %v615 = vpack.c.bf16 %v552, %v551
        %v616 = vpack.c.bf16 %v554, %v553
        %v617 = vpack.c.bf16 %v556, %v555
        %v622 = vunpack.c.l.b16 %v614
        %v623 = vunpack.c.h.b16 %v614
        %v624 = vunpack.c.l.b16 %v615
        %v625 = vunpack.c.h.b16 %v615
        %v626 = vunpack.c.l.b16 %v616
        %v627 = vunpack.c.h.b16 %v616
        %v628 = vunpack.c.l.b16 %v617
        %v629 = vunpack.c.h.b16 %v617
        %v630 = vpack.c.b16 %v622, %v622
        %v631 = vpack.c.b16 %v623, %v623
        %v632 = vpack.c.b16 %v624, %v624
        %v633 = vpack.c.b16 %v625, %v625
        %v634 = vpack.c.b16 %v626, %v626
        %v635 = vpack.c.b16 %v627, %v627
        %v636 = vpack.c.b16 %v628, %v628
        %v637 = vpack.c.b16 %v629, %v629
        %646 = vst [vmem:[%s315] sm:$0xf] %v630
        %647 = vst [vmem:[%s315 + $0x4] sm:$0xf] %v631
        %648 = vst [vmem:[%s315 + $0x8] sm:$0xf] %v632
        %649 = vst [vmem:[%s315 + $0xc] sm:$0xf] %v633
        %650 = vst [vmem:[%s315 + $0x10] sm:$0xf] %v634
        %651 = vst [vmem:[%s315 + $0x14] sm:$0xf] %v635
        %652 = vst [vmem:[%s315 + $0x18] sm:$0xf] %v636
        %653 = vst [vmem:[%s315 + $0x1c] sm:$0xf] %v637
      $region40: #{generator_forward.15} parent=31 // pred_fallthru
        _
      %p654 = scmp.lt.s32.totalorder %s22, 0
      %s655 = scalar_select %p654, %s22, 0
      %s656 = smul.addr %s655, 4
      %s657 = scalar_lea.vmem %s3, %s656
      %p658 = scmp.lt.s32.totalorder %s22, 0
      %s659 = scalar_select %p658, %s22, 0
      %s660 = smul.addr %s659, 8
      %s661 = smul.addr %s660, 8
      %s662 = scalar_lea.vmem %s4, %s661
      %p663 = scmp.lt.s32.totalorder %s22, 0
      %s664 = scalar_select %p663, %s22, 0
      %s665 = smul.addr %s664, 8
      %s666 = smul.addr %s665, 8
      %s667 = scalar_lea.vmem %s5, %s666
      // Predicated region
      $region41: #{generator_forward.15} parent=31 // pred_check
        %p668 = pneg %p133
      $region42: #{generator_forward.15} parent=31 // pred_check_branch
        %670 = sbr.rel (%p668) target = $region44
      $region43: #{generator_forward.15} parent=31 // pred_region
        _
      $region44: #{generator_forward.15} parent=31 // pred_fallthru
        _
      // Predicated region
      $region45: #{generator_forward.15} parent=31 // pred_check
        %p671 = pneg %p159
      $region46: #{generator_forward.15} parent=31 // pred_check_branch
        %673 = sbr.rel (%p671) target = $region48
      $region47: #{generator_forward.15} parent=31 // pred_region
        _
      $region48: #{generator_forward.15} parent=31 // pred_fallthru
        _
      // Predicated region
      $region49: #{generator_forward.15} parent=31 // pred_check
        %p674 = pneg %p185
      $region50: #{generator_forward.15} parent=31 // pred_check_branch
        %676 = sbr.rel (%p674) target = $region52
      $region51: #{generator_forward.15} parent=31 // pred_region
        _
      $region52: #{generator_forward.15} parent=31 // pred_fallthru
        _
      // Predicated region
      $region53: #{generator_forward.15} parent=31 // pred_check
        %p677 = pneg %p133
      $region54: #{generator_forward.15} parent=31 // pred_check_branch
        %679 = sbr.rel (%p677) target = $region56
      $region55: #{generator_forward.15} parent=31 // pred_region
        %p680 = scmp.lt.s32.totalorder %s22, 0
        %s681 = scalar_select %p680, %s22, 0
        %s682 = smul.addr %s681, 4
        %s683 = scalar_lea.vmem %s3, %s682
      $region56: #{generator_forward.15} parent=31 // pred_fallthru
        _
      // Predicated region
      $region57: #{generator_forward.15} parent=31 // pred_check
        %p684 = pneg %p159
      $region58: #{generator_forward.15} parent=31 // pred_check_branch
        %686 = sbr.rel (%p684) target = $region60
      $region59: #{generator_forward.15} parent=31 // pred_region
        %p687 = scmp.lt.s32.totalorder %s22, 0
        %s688 = scalar_select %p687, %s22, 0
        %s689 = smul.addr %s688, 8
        %s690 = smul.addr %s689, 8
        %s691 = scalar_lea.vmem %s4, %s690
      $region60: #{generator_forward.15} parent=31 // pred_fallthru
        _
      // Predicated region
      $region61: #{generator_forward.15} parent=31 // pred_check
        %p692 = pneg %p185
      $region62: #{generator_forward.15} parent=31 // pred_check_branch
        %694 = sbr.rel (%p692) target = $region64
      $region63: #{generator_forward.15} parent=31 // pred_region
        %p695 = scmp.lt.s32.totalorder %s22, 0
        %s696 = scalar_select %p695, %s22, 0
        %s697 = smul.addr %s696, 8
        %s698 = smul.addr %s697, 8
        %s699 = scalar_lea.vmem %s5, %s698
      $region64: #{generator_forward.15} parent=31 // pred_fallthru
        _
    $region32: #{generator_forward.15} parent=5 // pred_fallthru
      _
    %p700 = scmp.le.s32.totalorder 2, %s12
    // Predicated region
    $region65: #{generator_forward.15} parent=5 // pred_check
      %p701 = pneg %p700
    $region66: #{generator_forward.15} parent=5 // pred_check_branch
      %703 = sbr.rel (%p701) target = $region68
    $region67: #{generator_forward.15} parent=5 // pred_region
      %s704 = ssub.s32 %s12, 2
    $region68: #{generator_forward.15} parent=5 // pred_fallthru
      _
  $region6: #{generator_forward.15} parent=0 // loop_footer
    %s16 = sadd.s32 1, %s12
  $region7: #{generator_forward.15} parent=0 // loop_footer_branch
    %11 = sbr.rel target = $region3
  $region8: #{generator_forward.15} parent=0 // loop_exit
    _

// kernel: tile.108
$region0: #{tile.108}
  #allocation0 [shape = 's32[1]{0}', space=sflag, size = 0x4, scoped, tag = 'scoped memory for tile.108']
  %s0 = inlined_call_operand.vmem [shape: f32[8], index: 0, kind: input, shape index: {}]
  %s1 = inlined_call_operand.vmem [shape: f32[4,8], index: 1, kind: output, shape index: {}]
  // Predicated region
  $region2: #{tile.108} parent=0 // pred_check
    _
  $region3: #{tile.108} parent=0 // pred_check_branch
    %3 = sbr.rel (0) target = $region5
  $region4: #{tile.108} parent=0 // pred_region
    _
  $region5: #{tile.108} parent=0 // pred_fallthru
    _
  %v4 = vld [vmem:[%s0] ss:$0 sm:$0xff]
  %5 = vst [vmem:[%s1] sm:$0xf] %v4

// kernel: generator_forward.17
$region0: #{generator_forward.17}
  #allocation0 [shape = 'u32[]', space=smem, size = 0x4, offset = 0x4, fixed_abs, tag = 'smem constant byte address 0x4 - core index']
  #allocation1 [shape = 'u32[144,128]{1,0:T(1,128)}', space=vmem, size = 0x12000, scoped, tag = 'internal scratch']
  #allocation2 [shape = 'f32[32,512]{1,0:T(8,128)}', space=vmem, size = 0x10000, scoped, tag = 'scratch operand']
  %s0 = inlined_call_operand.vmem [shape: bf16[3,3,16,512], index: 0, kind: input, shape index: {}]
  %s1 = inlined_call_operand.vmem [shape: bf16[3,3,32,16], index: 1, kind: input, shape index: {}]
  %s2 = inlined_call_operand.vmem [shape: f32[32,1], index: 2, kind: input, shape index: {}]
  %s3 = inlined_call_operand.vmem [shape: bf16[32,512], index: 3, kind: output, shape index: {0}]
  %s4 = inlined_call_operand.vmem [shape: f32[1,32,1], index: 4, kind: output, shape index: {1}]
  %s5 = inlined_call_operand.vmem [shape: f32[1,32,1], index: 5, kind: output, shape index: {2}]
  %6 = xla_tuple %s3, %s4, %s5
  %s7 = sld [smem:[#allocation0]]
  $region69: #{generator_forward.17} parent=0
    _
  %s9 = ssub.s32 1, %s7
  %s10 = scalar_select 0, %s9, %s7
  loop: start=0, step=1, limit=11
  $region2: #{generator_forward.17} parent=0 // loop_pre_header
    _
  $region3: #{generator_forward.17} parent=0 // loop_header
    %s12 = sphi 0, %s16
    %p13 = scmp.ge.s32.totalorder %s12, 11
    %s19 = sphi 0, %s38
    %s20 = sphi 0, %s34
    %s21 = sphi 0, %s30
    %s22 = sphi 0, %s19
    %s23 = sphi 0, %s20
    %s24 = sphi 0, %s21
    %s25 = sphi 0, %s22
    %s26 = sphi 0, %s23
    %s27 = sphi 0, %s24
    %s45 = sphi 0, %s47
    %s48 = sphi 0, %s45
    %s49 = sphi 0, %s48
    %s65 = sphi 0, %s49
    %s73 = sphi 0, %s75
    %s76 = sphi 0, %s73
    %s77 = sphi 0, %s76
    %s93 = sphi 0, %s77
    %s97 = sphi 0, %s97
    %s99 = sphi 0, %s97
    %s100 = sphi 0, %s99
    %s114 = sphi 0, %s100
    %s120 = sphi 0, %s122
    %s123 = sphi 0, %s120
    %s124 = sphi 0, %s123
    %s140 = sphi 0, %s124
    %s146 = sphi 0, %s148
    %s149 = sphi 0, %s146
    %s150 = sphi 0, %s149
    %s166 = sphi 0, %s150
    %s172 = sphi 0, %s174
    %s175 = sphi 0, %s172
    %s176 = sphi 0, %s175
    %s192 = sphi 0, %s176
  $region4: #{generator_forward.17} parent=0 // loop_header_branch
    %15 = sbr.rel (%p13) target = $region8
  $region5: #{generator_forward.17} parent=0 // loop_body
    %s17 = ssub.s32 %s12, 1
    %s18 = ssub.s32 %s12, 2
    %s28 = sadd.s32 1, %s21
    %p29 = scmp.ge.s32.totalorder %s28, 3
    %s30 = scalar_select %p29, 0, %s28
    %s31 = sadd.s32 1, %s20
    %s32 = scalar_select %p29, %s31, %s20
    %p33 = scmp.ge.s32.totalorder %s32, 3
    %s34 = scalar_select %p33, 0, %s32
    %s35 = sadd.s32 1, %s19
    %s36 = scalar_select %p33, %s35, %s19
    %p37 = scmp.ge.s32.totalorder %s36, 1
    %s38 = scalar_select %p37, 0, %s36
    %s39 = ssub.s32 %s20, %s34
    %s40 = ssub.s32 %s21, %s30
    %s41 = sor.u32 %s39, %s40
    %s42 = ssub.s32 %s19, %s38
    %s43 = sor.u32 %s41, %s42
    %p44 = scmp.eq.s32.totalorder %s43, 0
    %s46 = sadd.s32 %s45, 1
    %s47 = scalar_select %p44, %s45, %s46
    %p50 = pneg %p44
    %p51 = scmp.eq.s32.totalorder %s12, 8
    %p52 = por %p50, %p51
    %p53 = scmp.ne.s32.totalorder %s45, %s48
    %p54 = scmp.eq.s32.totalorder %s12, 0
    %p55 = por %p53, %p54
    %p56 = scmp.ne.s32.totalorder %s45, %s48
    %p57 = scmp.eq.s32.totalorder %s17, 8
    %p58 = por %p56, %p57
    %p59 = scmp.ne.s32.totalorder %s48, %s49
    %p60 = scmp.eq.s32.totalorder %s17, 0
    %p61 = por %p59, %p60
    %p62 = scmp.ne.s32.totalorder %s48, %s49
    %p63 = scmp.eq.s32.totalorder %s18, 8
    %p64 = por %p62, %p63
    %p66 = scmp.ne.s32.totalorder %s49, %s65
    %p67 = scmp.eq.s32.totalorder %s18, 0
    %p68 = por %p66, %p67
    %s69 = ssub.s32 %s20, %s34
    %s70 = ssub.s32 %s21, %s30
    %s71 = sor.u32 %s69, %s70
    %p72 = scmp.eq.s32.totalorder %s71, 0
    %s74 = sadd.s32 %s73, 1
    %s75 = scalar_select %p72, %s73, %s74
    %p78 = pneg %p72
    %p79 = scmp.eq.s32.totalorder %s12, 8
    %p80 = por %p78, %p79
    %p81 = scmp.ne.s32.totalorder %s73, %s76
    %p82 = scmp.eq.s32.totalorder %s12, 0
    %p83 = por %p81, %p82
    %p84 = scmp.ne.s32.totalorder %s73, %s76
    %p85 = scmp.eq.s32.totalorder %s17, 8
    %p86 = por %p84, %p85
    %p87 = scmp.ne.s32.totalorder %s76, %s77
    %p88 = scmp.eq.s32.totalorder %s17, 0
    %p89 = por %p87, %p88
    %p90 = scmp.ne.s32.totalorder %s76, %s77
    %p91 = scmp.eq.s32.totalorder %s18, 8
    %p92 = por %p90, %p91
    %p94 = scmp.ne.s32.totalorder %s77, %s93
    %p95 = scmp.eq.s32.totalorder %s18, 0
    %p96 = por %p94, %p95
    %s98 = sadd.s32 %s97, 1
    %p101 = scmp.eq.s32.totalorder %s12, 8
    %p102 = scmp.ne.s32.totalorder %s97, %s99
    %p103 = scmp.eq.s32.totalorder %s12, 0
    %p104 = por %p102, %p103
    %p105 = scmp.ne.s32.totalorder %s97, %s99
    %p106 = scmp.eq.s32.totalorder %s17, 8
    %p107 = por %p105, %p106
    %p108 = scmp.ne.s32.totalorder %s99, %s100
    %p109 = scmp.eq.s32.totalorder %s17, 0
    %p110 = por %p108, %p109
    %p111 = scmp.ne.s32.totalorder %s99, %s100
    %p112 = scmp.eq.s32.totalorder %s18, 8
    %p113 = por %p111, %p112
    %p115 = scmp.ne.s32.totalorder %s100, %s114
    %p116 = scmp.eq.s32.totalorder %s18, 0
    %p117 = por %p115, %p116
    %s118 = ssub.s32 %s19, %s38
    %p119 = scmp.eq.s32.totalorder %s118, 0
    %s121 = sadd.s32 %s120, 1
    %s122 = scalar_select %p119, %s120, %s121
    %p125 = pneg %p119
    %p126 = scmp.eq.s32.totalorder %s12, 8
    %p127 = por %p125, %p126
    %p128 = scmp.ne.s32.totalorder %s120, %s123
    %p129 = scmp.eq.s32.totalorder %s12, 0
    %p130 = por %p128, %p129
    %p131 = scmp.ne.s32.totalorder %s120, %s123
    %p132 = scmp.eq.s32.totalorder %s17, 8
    %p133 = por %p131, %p132
    %p134 = scmp.ne.s32.totalorder %s123, %s124
    %p135 = scmp.eq.s32.totalorder %s17, 0
    %p136 = por %p134, %p135
    %p137 = scmp.ne.s32.totalorder %s123, %s124
    %p138 = scmp.eq.s32.totalorder %s18, 8
    %p139 = por %p137, %p138
    %p141 = scmp.ne.s32.totalorder %s124, %s140
    %p142 = scmp.eq.s32.totalorder %s18, 0
    %p143 = por %p141, %p142
    %s144 = ssub.s32 %s19, %s38
    %p145 = scmp.eq.s32.totalorder %s144, 0
    %s147 = sadd.s32 %s146, 1
    %s148 = scalar_select %p145, %s146, %s147
    %p151 = pneg %p145
    %p152 = scmp.eq.s32.totalorder %s12, 8
    %p153 = por %p151, %p152
    %p154 = scmp.ne.s32.totalorder %s146, %s149
    %p155 = scmp.eq.s32.totalorder %s12, 0
    %p156 = por %p154, %p155
    %p157 = scmp.ne.s32.totalorder %s146, %s149
    %p158 = scmp.eq.s32.totalorder %s17, 8
    %p159 = por %p157, %p158
    %p160 = scmp.ne.s32.totalorder %s149, %s150
    %p161 = scmp.eq.s32.totalorder %s17, 0
    %p162 = por %p160, %p161
    %p163 = scmp.ne.s32.totalorder %s149, %s150
    %p164 = scmp.eq.s32.totalorder %s18, 8
    %p165 = por %p163, %p164
    %p167 = scmp.ne.s32.totalorder %s150, %s166
    %p168 = scmp.eq.s32.totalorder %s18, 0
    %p169 = por %p167, %p168
    %s170 = ssub.s32 %s19, %s38
    %p171 = scmp.eq.s32.totalorder %s170, 0
    %s173 = sadd.s32 %s172, 1
    %s174 = scalar_select %p171, %s172, %s173
    %p177 = pneg %p171
    %p178 = scmp.eq.s32.totalorder %s12, 8
    %p179 = por %p177, %p178
    %p180 = scmp.ne.s32.totalorder %s172, %s175
    %p181 = scmp.eq.s32.totalorder %s12, 0
    %p182 = por %p180, %p181
    %p183 = scmp.ne.s32.totalorder %s172, %s175
    %p184 = scmp.eq.s32.totalorder %s17, 8
    %p185 = por %p183, %p184
    %p186 = scmp.ne.s32.totalorder %s175, %s176
    %p187 = scmp.eq.s32.totalorder %s17, 0
    %p188 = por %p186, %p187
    %p189 = scmp.ne.s32.totalorder %s175, %s176
    %p190 = scmp.eq.s32.totalorder %s18, 8
    %p191 = por %p189, %p190
    %p193 = scmp.ne.s32.totalorder %s176, %s192
    %p194 = scmp.eq.s32.totalorder %s18, 0
    %p195 = por %p193, %p194
    %p196 = scmp.le.s32.totalorder 1, %s12
    %p197 = scmp.lt.s32.totalorder %s12, 10
    %p198 = pnand %p196, %p197
    %p199 = pneg %p198
    // Predicated region
    $region9: #{generator_forward.17} parent=5 // pred_check
      _
    $region10: #{generator_forward.17} parent=5 // pred_check_branch
      %201 = sbr.rel (%p198) target = $region12
    $region11: #{generator_forward.17} parent=5 // pred_region
      %s202 = ssub.s32 %s12, 1
      // Predicated region
      $region13: #{generator_forward.17} parent=11 // pred_check
        %p203 = pneg %p110
      $region14: #{generator_forward.17} parent=11 // pred_check_branch
        %205 = sbr.rel (%p203) target = $region16
      $region15: #{generator_forward.17} parent=11 // pred_region
        _
      $region16: #{generator_forward.17} parent=11 // pred_fallthru
        _
    $region12: #{generator_forward.17} parent=5 // pred_fallthru
      _
    %p206 = scmp.lt.s32.totalorder %s12, 9
    // Predicated region
    $region17: #{generator_forward.17} parent=5 // pred_check
      %p207 = pneg %p206
    $region18: #{generator_forward.17} parent=5 // pred_check_branch
      %209 = sbr.rel (%p207) target = $region20
    $region19: #{generator_forward.17} parent=5 // pred_region
      // Predicated region
      $region21: #{generator_forward.17} parent=19 // pred_check
        %p210 = pneg %p55
      $region22: #{generator_forward.17} parent=19 // pred_check_branch
        %212 = sbr.rel (%p210) target = $region24
      $region23: #{generator_forward.17} parent=19 // pred_region
        %s213 = smul.u32 4, %s19
        %p214 = scmp.lt.s32.totalorder %s20, 2
        %s215 = scalar_select %p214, %s20, 2
        %p216 = scmp.lt.s32.totalorder %s21, 2
        %s217 = scalar_select %p216, %s21, 2
        %p218 = scmp.lt.s32.totalorder %s213, 3
        %s219 = scalar_select %p218, %s213, 3
        %s220 = smul.addr %s217, 8
        %s221 = sadd.s32 %s219, %s220
        %s222 = smul.addr %s215, 24
        %s223 = sadd.s32 %s221, %s222
        %s224 = smul.addr %s223, 4
        %s225 = scalar_lea.vmem %s0, %s224
        %s226 = smul.u32 4, %s19
      $region24: #{generator_forward.17} parent=19 // pred_fallthru
        _
      // Predicated region
      $region25: #{generator_forward.17} parent=19 // pred_check
        %p227 = pneg %p83
      $region26: #{generator_forward.17} parent=19 // pred_check_branch
        %229 = sbr.rel (%p227) target = $region28
      $region27: #{generator_forward.17} parent=19 // pred_region
        %p230 = scmp.lt.s32.totalorder %s20, 2
        %s231 = scalar_select %p230, %s20, 2
        %p232 = scmp.lt.s32.totalorder %s21, 2
        %s233 = scalar_select %p232, %s21, 2
        %s234 = smul.addr %s233, 4
        %s235 = smul.addr %s231, 12
        %s236 = sadd.s32 %s234, %s235
        %s237 = smul.addr %s236, 4
        %s238 = scalar_lea.vmem %s1, %s237
      $region28: #{generator_forward.17} parent=19 // pred_fallthru
        _
    $region20: #{generator_forward.17} parent=5 // pred_fallthru
      _
    %p239 = scmp.le.s32.totalorder 1, %s12
    %p240 = scmp.lt.s32.totalorder %s12, 10
    %p241 = pnand %p239, %p240
    %p242 = pneg %p241
    // Predicated region
    $region29: #{generator_forward.17} parent=5 // pred_check
      _
    $region30: #{generator_forward.17} parent=5 // pred_check_branch
      %244 = sbr.rel (%p241) target = $region32
    $region31: #{generator_forward.17} parent=5 // pred_region
      %s245 = ssub.s32 %s12, 1
      %s246 = smul.u32 4, %s22
      %p247 = scmp.lt.s32.totalorder %s23, 2
      %s248 = scalar_select %p247, %s23, 2
      %p249 = scmp.lt.s32.totalorder %s24, 2
      %s250 = scalar_select %p249, %s24, 2
      %p251 = scmp.lt.s32.totalorder %s246, 3
      %s252 = scalar_select %p251, %s246, 3
      %s253 = smul.addr %s250, 8
      %s254 = sadd.s32 %s252, %s253
      %s255 = smul.addr %s248, 24
      %s256 = sadd.s32 %s254, %s255
      %s257 = smul.addr %s256, 4
      %s258 = scalar_lea.vmem %s0, %s257
      %p259 = pneg %p61
      %p260 = pneg %p58
      %p261 = scmp.lt.s32.totalorder %s23, 2
      %s262 = scalar_select %p261, %s23, 2
      %p263 = scmp.lt.s32.totalorder %s24, 2
      %s264 = scalar_select %p263, %s24, 2
      %s265 = smul.addr %s264, 4
      %s266 = smul.addr %s262, 12
      %s267 = sadd.s32 %s265, %s266
      %s268 = smul.addr %s267, 4
      %s269 = scalar_lea.vmem %s1, %s268
      %p270 = pneg %p89
      %p271 = pneg %p86
      %p272 = pneg %p110
      %p273 = pneg %p107
      %p274 = pneg %p136
      %p275 = pneg %p133
      %s276 = smul.u32 4, %s22
      %p277 = scmp.lt.s32.totalorder %s276, 3
      %s278 = scalar_select %p277, %s276, 3
      %s279 = smul.addr %s278, 4
      %s280 = scalar_lea.vmem %s3, %s279
      %p281 = pneg %p162
      %p282 = pneg %p159
      %p283 = scmp.lt.s32.totalorder %s22, 0
      %s284 = scalar_select %p283, %s22, 0
      %s285 = smul.addr %s284, 4
      %s286 = smul.addr %s285, 8
      %s287 = scalar_lea.vmem %s4, %s286
      %p288 = pneg %p188
      %p289 = pneg %p185
      %p290 = scmp.lt.s32.totalorder %s22, 0
      %s291 = scalar_select %p290, %s22, 0
      %s292 = smul.addr %s291, 4
      %s293 = smul.addr %s292, 8
      %s294 = scalar_lea.vmem %s5, %s293
      %s295 = smul.u32 4, %s22
      %p296 = scmp.lt.s32.totalorder %s23, 2
      %s297 = scalar_select %p296, %s23, 2
      %p298 = scmp.lt.s32.totalorder %s24, 2
      %s299 = scalar_select %p298, %s24, 2
      %p300 = scmp.lt.s32.totalorder %s295, 3
      %s301 = scalar_select %p300, %s295, 3
      %s302 = smul.addr %s299, 8
      %s303 = sadd.s32 %s301, %s302
      %s304 = smul.addr %s297, 24
      %s305 = sadd.s32 %s303, %s304
      %s306 = smul.addr %s305, 4
      %s307 = scalar_lea.vmem %s0, %s306
      %s308 = smul.u32 4, %s22
      %p309 = scmp.lt.s32.totalorder %s23, 2
      %s310 = scalar_select %p309, %s23, 2
      %p311 = scmp.lt.s32.totalorder %s24, 2
      %s312 = scalar_select %p311, %s24, 2
      %s313 = smul.addr %s312, 4
      %s314 = smul.addr %s310, 12
      %s315 = sadd.s32 %s313, %s314
      %s316 = smul.addr %s315, 4
      %s317 = scalar_lea.vmem %s1, %s316
      %s318 = smul.u32 4, %s22
      %p319 = scmp.lt.s32.totalorder %s318, 3
      %s320 = scalar_select %p319, %s318, 3
      %s321 = smul.addr %s320, 4
      %s322 = scalar_lea.vmem %s3, %s321
      %s323 = smul.u32 4, %s22
      %p324 = scmp.lt.s32.totalorder %s22, 0
      %s325 = scalar_select %p324, %s22, 0
      %s326 = smul.addr %s325, 4
      %s327 = smul.addr %s326, 8
      %s328 = scalar_lea.vmem %s4, %s327
      %p329 = scmp.lt.s32.totalorder %s22, 0
      %s330 = scalar_select %p329, %s22, 0
      %s331 = smul.addr %s330, 4
      %s332 = smul.addr %s331, 8
      %s333 = scalar_lea.vmem %s5, %s332
      %p335 = scmp.eq.s32.totalorder %s23, 0
      %p336 = scmp.eq.s32.totalorder %s24, 0
      %p337 = pnand %p335, %p336
      %p338 = pneg %p337
      // Predicated region
      $region33: #{generator_forward.17} parent=31 // pred_check
        _
      $region34: #{generator_forward.17} parent=31 // pred_check_branch
        %340 = sbr.rel (%p337) target = $region36
      $region35: #{generator_forward.17} parent=31 // pred_region
        %341 = vst [vmem:[#allocation2] sm:$0xff] 0.0
        %342 = vst [vmem:[#allocation2 + $0x8] sm:$0xff] 0.0
        %343 = vst [vmem:[#allocation2 + $0x10] sm:$0xff] 0.0
        %344 = vst [vmem:[#allocation2 + $0x18] sm:$0xff] 0.0
        %345 = vst [vmem:[#allocation2 + $0x20] sm:$0xff] 0.0
        %346 = vst [vmem:[#allocation2 + $0x28] sm:$0xff] 0.0
        %347 = vst [vmem:[#allocation2 + $0x30] sm:$0xff] 0.0
        %348 = vst [vmem:[#allocation2 + $0x38] sm:$0xff] 0.0
        %349 = vst [vmem:[#allocation2 + $0x40] sm:$0xff] 0.0
        %350 = vst [vmem:[#allocation2 + $0x48] sm:$0xff] 0.0
        %351 = vst [vmem:[#allocation2 + $0x50] sm:$0xff] 0.0
        %352 = vst [vmem:[#allocation2 + $0x58] sm:$0xff] 0.0
        %353 = vst [vmem:[#allocation2 + $0x60] sm:$0xff] 0.0
        %354 = vst [vmem:[#allocation2 + $0x68] sm:$0xff] 0.0
        %355 = vst [vmem:[#allocation2 + $0x70] sm:$0xff] 0.0
        %356 = vst [vmem:[#allocation2 + $0x78] sm:$0xff] 0.0
      $region36: #{generator_forward.17} parent=31 // pred_fallthru
        _
      %v357 = vld [vmem:[#allocation2] sm:$0xff]
      %v358 = vld [vmem:[#allocation2 + $0x8] sm:$0xff]
      %v359 = vld [vmem:[#allocation2 + $0x10] sm:$0xff]
      %v360 = vld [vmem:[#allocation2 + $0x18] sm:$0xff]
      %v361 = vld [vmem:[#allocation2 + $0x20] sm:$0xff]
      %v362 = vld [vmem:[#allocation2 + $0x28] sm:$0xff]
      %v363 = vld [vmem:[#allocation2 + $0x30] sm:$0xff]
      %v364 = vld [vmem:[#allocation2 + $0x38] sm:$0xff]
      %v365 = vld [vmem:[#allocation2 + $0x40] sm:$0xff]
      %v366 = vld [vmem:[#allocation2 + $0x48] sm:$0xff]
      %v367 = vld [vmem:[#allocation2 + $0x50] sm:$0xff]
      %v368 = vld [vmem:[#allocation2 + $0x58] sm:$0xff]
      %v369 = vld [vmem:[#allocation2 + $0x60] sm:$0xff]
      %v370 = vld [vmem:[#allocation2 + $0x68] sm:$0xff]
      %v371 = vld [vmem:[#allocation2 + $0x70] sm:$0xff]
      %v372 = vld [vmem:[#allocation2 + $0x78] sm:$0xff]
      %v373 = vld [vmem:[%s317] sm:$0xf]
      %v374 = vld [vmem:[%s317 + $0x4] sm:$0xf]
      %v375 = vld [vmem:[%s317 + $0x8] sm:$0xf]
      %v376 = vld [vmem:[%s317 + $0xc] sm:$0xf]
      %v377 = vld [vmem:[%s307] sm:$0xff]
      %v378 = vld [vmem:[%s307 + $0x8] sm:$0xff]
      %v379 = vld [vmem:[%s307 + $0x10] sm:$0xff]
      %v380 = vld [vmem:[%s307 + $0x18] sm:$0xff]
      %v385 = vunpack.c.l.b16 %v373
      %v386 = vunpack.c.l.b16 %v374
      %v387 = vunpack.c.l.b16 %v375
      %v388 = vunpack.c.l.b16 %v376
      %v389 = vpack.c.b16 %v386, %v385
      %v390 = vpack.c.b16 %v388, %v387
      %v395 = vunpack.c.l.b16 %v377
      %v396 = vunpack.c.h.b16 %v377
      %v397 = vunpack.c.l.b16 %v378
      %v398 = vunpack.c.h.b16 %v378
      %v399 = vunpack.c.l.b16 %v379
      %v400 = vunpack.c.h.b16 %v379
      %v401 = vunpack.c.l.b16 %v380
      %v402 = vunpack.c.h.b16 %v380
      %v403 = vpack.c.b16 %v399, %v395
      %v404 = vpack.c.b16 %v400, %v396
      %v405 = vpack.c.b16 %v401, %v397
      %v406 = vpack.c.b16 %v402, %v398
      %vm411 = vcmask 130048
      %v413 = vsel %vm411, %v389, 0
      %v416 = vsel %vm411, %v390, 0
      %418 = vmatprep.subr.bf16.mxu0 %v404
      %419 = vmatpush1.bf16.msra.mxu0 %v403
      %420 = vmatprep.subr.bf16.mxu0 0
      %421 = vmatpush1.bf16.msra.mxu0 0
      %422 = vmatprep.subr.bf16.mxu0 0
      %423 = vmatpush1.bf16.msra.mxu0 0
      %424 = vmatprep.subr.bf16.mxu0 0
      %425 = vmatpush1.bf16.msra.mxu0 0
      %426 = vmatprep.subr.bf16.mxu0 0
      %427 = vmatpush1.bf16.msra.mxu0 0
      %428 = vmatprep.subr.bf16.mxu0 0
      %429 = vmatpush1.bf16.msra.mxu0 0
      %430 = vmatprep.subr.bf16.mxu0 0
      %431 = vmatpush1.bf16.msra.mxu0 0
      %432 = vmatprep.subr.bf16.mxu0 0
      %433 = vmatpush1.bf16.msra.mxu0 0
      %434 = vmatprep.subr.bf16.mxu0 0
      %435 = vmatpush1.bf16.msra.mxu0 0
      %436 = vmatprep.subr.bf16.mxu0 0
      %437 = vmatpush1.bf16.msra.mxu0 0
      %438 = vmatprep.subr.bf16.mxu0 0
      %439 = vmatpush1.bf16.msra.mxu0 0
      %440 = vmatprep.subr.bf16.mxu0 0
      %441 = vmatpush1.bf16.msra.mxu0 0
      %442 = vmatprep.subr.bf16.mxu0 0
      %443 = vmatpush1.bf16.msra.mxu0 0
      %444 = vmatprep.subr.bf16.mxu0 0
      %445 = vmatpush1.bf16.msra.mxu0 0
      %446 = vmatprep.subr.bf16.mxu0 0
      %447 = vmatpush1.bf16.msra.mxu0 0
      %448 = vmatprep.subr.bf16.mxu0 0
      %449 = vmatpush1.bf16.msra.mxu0 0
      %450 = vmatprep.mubr.bf16.mxu0 0
      %451 = vmatmul.mubr.bf16.gmra.mrb[0].mxu0 %v413
      %v452 = vpop.f32.mrb[0].mxu0
      %v453 = vadd.f32 0.0, %v452
      %v454 = vpop.f32.mrb[0].mxu0
      %v455 = vadd.f32 0.0, %v454
      %v456 = vpop.f32.mrb[0].mxu0
      %v457 = vadd.f32 0.0, %v456
      %v458 = vpop.f32.mrb[0].mxu0
      %v459 = vadd.f32 0.0, %v458
      %460 = vmatprep.mubr.bf16.mxu0 0
      %461 = vmatmul.mubr.bf16.gmra.mrb[0].mxu0 %v416
      %v462 = vpop.f32.mrb[0].mxu0
      %v463 = vadd.f32 0.0, %v462
      %v464 = vpop.f32.mrb[0].mxu0
      %v465 = vadd.f32 0.0, %v464
      %v466 = vpop.f32.mrb[0].mxu0
      %v467 = vadd.f32 0.0, %v466
      %v468 = vpop.f32.mrb[0].mxu0
      %v469 = vadd.f32 0.0, %v468
      %470 = vdwg.mxu0
      %471 = vmatprep.subr.bf16.mxu0 %v406
      %472 = vmatpush1.bf16.msra.mxu0 %v405
      %473 = vmatprep.subr.bf16.mxu0 0
      %474 = vmatpush1.bf16.msra.mxu0 0
      %475 = vmatprep.subr.bf16.mxu0 0
      %476 = vmatpush1.bf16.msra.mxu0 0
      %477 = vmatprep.subr.bf16.mxu0 0
      %478 = vmatpush1.bf16.msra.mxu0 0
      %479 = vmatprep.subr.bf16.mxu0 0
      %480 = vmatpush1.bf16.msra.mxu0 0
      %481 = vmatprep.subr.bf16.mxu0 0
      %482 = vmatpush1.bf16.msra.mxu0 0
      %483 = vmatprep.subr.bf16.mxu0 0
      %484 = vmatpush1.bf16.msra.mxu0 0
      %485 = vmatprep.subr.bf16.mxu0 0
      %486 = vmatpush1.bf16.msra.mxu0 0
      %487 = vmatprep.subr.bf16.mxu0 0
      %488 = vmatpush1.bf16.msra.mxu0 0
      %489 = vmatprep.subr.bf16.mxu0 0
      %490 = vmatpush1.bf16.msra.mxu0 0
      %491 = vmatprep.subr.bf16.mxu0 0
      %492 = vmatpush1.bf16.msra.mxu0 0
      %493 = vmatprep.subr.bf16.mxu0 0
      %494 = vmatpush1.bf16.msra.mxu0 0
      %495 = vmatprep.subr.bf16.mxu0 0
      %496 = vmatpush1.bf16.msra.mxu0 0
      %497 = vmatprep.subr.bf16.mxu0 0
      %498 = vmatpush1.bf16.msra.mxu0 0
      %499 = vmatprep.subr.bf16.mxu0 0
      %500 = vmatpush1.bf16.msra.mxu0 0
      %501 = vmatprep.subr.bf16.mxu0 0
      %502 = vmatpush1.bf16.msra.mxu0 0
      %503 = vmatprep.mubr.bf16.mxu0 0
      %504 = vmatmul.mubr.bf16.gmra.mrb[0].mxu0 %v413
      %v505 = vpop.f32.mrb[0].mxu0
      %v506 = vadd.f32 0.0, %v505
      %v507 = vpop.f32.mrb[0].mxu0
      %v508 = vadd.f32 0.0, %v507
      %v509 = vpop.f32.mrb[0].mxu0
      %v510 = vadd.f32 0.0, %v509
      %v511 = vpop.f32.mrb[0].mxu0
      %v512 = vadd.f32 0.0, %v511
      %513 = vmatprep.mubr.bf16.mxu0 0
      %514 = vmatmul.mubr.bf16.gmra.mrb[0].mxu0 %v416
      %v515 = vpop.f32.mrb[0].mxu0
      %v516 = vadd.f32 0.0, %v515
      %v517 = vpop.f32.mrb[0].mxu0
      %v518 = vadd.f32 0.0, %v517
      %v519 = vpop.f32.mrb[0].mxu0
      %v520 = vadd.f32 0.0, %v519
      %v521 = vpop.f32.mrb[0].mxu0
      %v522 = vadd.f32 0.0, %v521
      %523 = vdwg.mxu0
      %v524 = vadd.f32 %v357, %v453
      %v525 = vadd.f32 %v358, %v455
      %v526 = vadd.f32 %v359, %v506
      %v527 = vadd.f32 %v360, %v508
      %v528 = vadd.f32 %v361, %v457
      %v529 = vadd.f32 %v362, %v459
      %v530 = vadd.f32 %v363, %v510
      %v531 = vadd.f32 %v364, %v512
      %v532 = vadd.f32 %v365, %v463
      %v533 = vadd.f32 %v366, %v465
      %v534 = vadd.f32 %v367, %v516
      %v535 = vadd.f32 %v368, %v518
      %v536 = vadd.f32 %v369, %v467
      %v537 = vadd.f32 %v370, %v469
      %v538 = vadd.f32 %v371, %v520
      %v539 = vadd.f32 %v372, %v522
      %540 = vst [vmem:[#allocation2] sm:$0xff] %v524
      %541 = vst [vmem:[#allocation2 + $0x8] sm:$0xff] %v525
      %542 = vst [vmem:[#allocation2 + $0x10] sm:$0xff] %v526
      %543 = vst [vmem:[#allocation2 + $0x18] sm:$0xff] %v527
      %544 = vst [vmem:[#allocation2 + $0x20] sm:$0xff] %v528
      %545 = vst [vmem:[#allocation2 + $0x28] sm:$0xff] %v529
      %546 = vst [vmem:[#allocation2 + $0x30] sm:$0xff] %v530
      %547 = vst [vmem:[#allocation2 + $0x38] sm:$0xff] %v531
      %548 = vst [vmem:[#allocation2 + $0x40] sm:$0xff] %v532
      %549 = vst [vmem:[#allocation2 + $0x48] sm:$0xff] %v533
      %550 = vst [vmem:[#allocation2 + $0x50] sm:$0xff] %v534
      %551 = vst [vmem:[#allocation2 + $0x58] sm:$0xff] %v535
      %552 = vst [vmem:[#allocation2 + $0x60] sm:$0xff] %v536
      %553 = vst [vmem:[#allocation2 + $0x68] sm:$0xff] %v537
      %554 = vst [vmem:[#allocation2 + $0x70] sm:$0xff] %v538
      %555 = vst [vmem:[#allocation2 + $0x78] sm:$0xff] %v539
      %p556 = scmp.eq.s32.totalorder %s23, 2
      %p557 = scmp.eq.s32.totalorder %s24, 2
      %p558 = pnand %p556, %p557
      %p559 = pneg %p558
      // Predicated region
      $region37: #{generator_forward.17} parent=31 // pred_check
        _
      $region38: #{generator_forward.17} parent=31 // pred_check_branch
        %561 = sbr.rel (%p558) target = $region40
      $region39: #{generator_forward.17} parent=31 // pred_region
        %v562 = vld [vmem:[#allocation2] sm:$0xff]
        %v563 = vld [vmem:[#allocation2 + $0x8] sm:$0xff]
        %v564 = vld [vmem:[#allocation2 + $0x10] sm:$0xff]
        %v565 = vld [vmem:[#allocation2 + $0x18] sm:$0xff]
        %v566 = vld [vmem:[#allocation2 + $0x20] sm:$0xff]
        %v567 = vld [vmem:[#allocation2 + $0x28] sm:$0xff]
        %v568 = vld [vmem:[#allocation2 + $0x30] sm:$0xff]
        %v569 = vld [vmem:[#allocation2 + $0x38] sm:$0xff]
        %v570 = vld [vmem:[#allocation2 + $0x40] sm:$0xff]
        %v571 = vld [vmem:[#allocation2 + $0x48] sm:$0xff]
        %v572 = vld [vmem:[#allocation2 + $0x50] sm:$0xff]
        %v573 = vld [vmem:[#allocation2 + $0x58] sm:$0xff]
        %v574 = vld [vmem:[#allocation2 + $0x60] sm:$0xff]
        %v575 = vld [vmem:[#allocation2 + $0x68] sm:$0xff]
        %v576 = vld [vmem:[#allocation2 + $0x70] sm:$0xff]
        %v577 = vld [vmem:[#allocation2 + $0x78] sm:$0xff]
        %v578 = vld [vmem:[%s2] sm:$0xff]
        %v579 = vld [vmem:[%s2 + $0x8] sm:$0xff]
        %v580 = vld [vmem:[%s2 + $0x10] sm:$0xff]
        %v581 = vld [vmem:[%s2 + $0x18] sm:$0xff]
        %583 = vset.pattern.permute.xlu0 0
        %584 = vperm.xlu0 %583, %v578
        %v585 = vpop.permute.xlu0 %584
        %588 = vset.pattern.permute.xlu0 0
        %589 = vperm.xlu0 %588, %v579
        %v590 = vpop.permute.xlu0 %589
        %593 = vset.pattern.permute.xlu0 0
        %594 = vperm.xlu0 %593, %v580
        %v595 = vpop.permute.xlu0 %594
        %598 = vset.pattern.permute.xlu0 0
        %599 = vperm.xlu0 %598, %v581
        %v600 = vpop.permute.xlu0 %599
        %v602 = vadd.f32 %v562, %v585
        %v603 = vadd.f32 %v563, %v585
        %v604 = vadd.f32 %v564, %v585
        %v605 = vadd.f32 %v565, %v585
        %v606 = vadd.f32 %v566, %v590
        %v607 = vadd.f32 %v567, %v590
        %v608 = vadd.f32 %v568, %v590
        %v609 = vadd.f32 %v569, %v590
        %v610 = vadd.f32 %v570, %v595
        %v611 = vadd.f32 %v571, %v595
        %v612 = vadd.f32 %v572, %v595
        %v613 = vadd.f32 %v573, %v595
        %v614 = vadd.f32 %v574, %v600
        %v615 = vadd.f32 %v575, %v600
        %v616 = vadd.f32 %v576, %v600
        %v617 = vadd.f32 %v577, %v600
        %v618 = vadd.f32 %v602, %v603
        %v619 = vadd.f32 %v618, %v604
        %v620 = vadd.f32 %v619, %v605
        %621 = vadd.xlane.f32.xlu0 %v620
        %v622 = vpop.xlane.xlu0 %621
        %v623 = vadd.f32 %v606, %v607
        %v624 = vadd.f32 %v623, %v608
        %v625 = vadd.f32 %v624, %v609
        %626 = vadd.xlane.f32.xlu0 %v625
        %v627 = vpop.xlane.xlu0 %626
        %v628 = vadd.f32 %v610, %v611
        %v629 = vadd.f32 %v628, %v612
        %v630 = vadd.f32 %v629, %v613
        %631 = vadd.xlane.f32.xlu0 %v630
        %v632 = vpop.xlane.xlu0 %631
        %v633 = vadd.f32 %v614, %v615
        %v634 = vadd.f32 %v633, %v616
        %v635 = vadd.f32 %v634, %v617
        %636 = vadd.xlane.f32.xlu0 %v635
        %v637 = vpop.xlane.xlu0 %636
        %vm638 = vcmask 7168
        %639 = vst.msk [vmem:[%s328] sm:$0xff] %vm638, %v622
        %640 = vst.msk [vmem:[%s328 + $0x8] sm:$0xff] %vm638, %v627
        %641 = vst.msk [vmem:[%s328 + $0x10] sm:$0xff] %vm638, %v632
        %642 = vst.msk [vmem:[%s328 + $0x18] sm:$0xff] %vm638, %v637
        %v643 = vmul.f32 %v602, %v602
        %v644 = vmul.f32 %v603, %v603
        %v645 = vmul.f32 %v604, %v604
        %v646 = vmul.f32 %v605, %v605
        %v647 = vmul.f32 %v606, %v606
        %v648 = vmul.f32 %v607, %v607
        %v649 = vmul.f32 %v608, %v608
        %v650 = vmul.f32 %v609, %v609
        %v651 = vmul.f32 %v610, %v610
        %v652 = vmul.f32 %v611, %v611
        %v653 = vmul.f32 %v612, %v612
        %v654 = vmul.f32 %v613, %v613
        %v655 = vmul.f32 %v614, %v614
        %v656 = vmul.f32 %v615, %v615
        %v657 = vmul.f32 %v616, %v616
        %v658 = vmul.f32 %v617, %v617
        %v659 = vadd.f32 %v643, %v644
        %v660 = vadd.f32 %v659, %v645
        %v661 = vadd.f32 %v660, %v646
        %662 = vadd.xlane.f32.xlu0 %v661
        %v663 = vpop.xlane.xlu0 %662
        %v664 = vadd.f32 %v647, %v648
        %v665 = vadd.f32 %v664, %v649
        %v666 = vadd.f32 %v665, %v650
        %667 = vadd.xlane.f32.xlu0 %v666
        %v668 = vpop.xlane.xlu0 %667
        %v669 = vadd.f32 %v651, %v652
        %v670 = vadd.f32 %v669, %v653
        %v671 = vadd.f32 %v670, %v654
        %672 = vadd.xlane.f32.xlu0 %v671
        %v673 = vpop.xlane.xlu0 %672
        %v674 = vadd.f32 %v655, %v656
        %v675 = vadd.f32 %v674, %v657
        %v676 = vadd.f32 %v675, %v658
        %677 = vadd.xlane.f32.xlu0 %v676
        %v678 = vpop.xlane.xlu0 %677
        %679 = vst.msk [vmem:[%s333] sm:$0xff] %vm638, %v663
        %680 = vst.msk [vmem:[%s333 + $0x8] sm:$0xff] %vm638, %v668
        %681 = vst.msk [vmem:[%s333 + $0x10] sm:$0xff] %vm638, %v673
        %682 = vst.msk [vmem:[%s333 + $0x18] sm:$0xff] %vm638, %v678
        %v683 = vpack.c.bf16 %v606, %v602
        %v684 = vpack.c.bf16 %v607, %v603
        %v685 = vpack.c.bf16 %v608, %v604
        %v686 = vpack.c.bf16 %v609, %v605
        %v687 = vpack.c.bf16 %v614, %v610
        %v688 = vpack.c.bf16 %v615, %v611
        %v689 = vpack.c.bf16 %v616, %v612
        %v690 = vpack.c.bf16 %v617, %v613
        %v699 = vunpack.c.l.b16 %v683
        %v700 = vunpack.c.l.b16 %v684
        %v701 = vunpack.c.l.b16 %v685
        %v702 = vunpack.c.l.b16 %v686
        %v703 = vunpack.c.h.b16 %v683
        %v704 = vunpack.c.h.b16 %v684
        %v705 = vunpack.c.h.b16 %v685
        %v706 = vunpack.c.h.b16 %v686
        %v707 = vunpack.c.l.b16 %v687
        %v708 = vunpack.c.l.b16 %v688
        %v709 = vunpack.c.l.b16 %v689
        %v710 = vunpack.c.l.b16 %v690
        %v711 = vunpack.c.h.b16 %v687
        %v712 = vunpack.c.h.b16 %v688
        %v713 = vunpack.c.h.b16 %v689
        %v714 = vunpack.c.h.b16 %v690
        %v715 = vpack.c.b16 %v700, %v699
        %v716 = vpack.c.b16 %v702, %v701
        %v717 = vpack.c.b16 %v704, %v703
        %v718 = vpack.c.b16 %v706, %v705
        %v719 = vpack.c.b16 %v708, %v707
        %v720 = vpack.c.b16 %v710, %v709
        %v721 = vpack.c.b16 %v712, %v711
        %v722 = vpack.c.b16 %v714, %v713
        %731 = vst [vmem:[%s322] sm:$0xff] %v715
        %732 = vst [vmem:[%s322 + $0x8] sm:$0xff] %v716
        %733 = vst [vmem:[%s322 + $0x10] sm:$0xff] %v717
        %734 = vst [vmem:[%s322 + $0x18] sm:$0xff] %v718
        %735 = vst [vmem:[%s322 + $0x20] sm:$0xff] %v719
        %736 = vst [vmem:[%s322 + $0x28] sm:$0xff] %v720
        %737 = vst [vmem:[%s322 + $0x30] sm:$0xff] %v721
        %738 = vst [vmem:[%s322 + $0x38] sm:$0xff] %v722
      $region40: #{generator_forward.17} parent=31 // pred_fallthru
        _
      %s739 = smul.u32 4, %s22
      %p740 = scmp.lt.s32.totalorder %s739, 3
      %s741 = scalar_select %p740, %s739, 3
      %s742 = smul.addr %s741, 4
      %s743 = scalar_lea.vmem %s3, %s742
      %p744 = scmp.lt.s32.totalorder %s22, 0
      %s745 = scalar_select %p744, %s22, 0
      %s746 = smul.addr %s745, 4
      %s747 = smul.addr %s746, 8
      %s748 = scalar_lea.vmem %s4, %s747
      %p749 = scmp.lt.s32.totalorder %s22, 0
      %s750 = scalar_select %p749, %s22, 0
      %s751 = smul.addr %s750, 4
      %s752 = smul.addr %s751, 8
      %s753 = scalar_lea.vmem %s5, %s752
      // Predicated region
      $region41: #{generator_forward.17} parent=31 // pred_check
        %p754 = pneg %p133
      $region42: #{generator_forward.17} parent=31 // pred_check_branch
        %756 = sbr.rel (%p754) target = $region44
      $region43: #{generator_forward.17} parent=31 // pred_region
        %s757 = smul.u32 4, %s22
      $region44: #{generator_forward.17} parent=31 // pred_fallthru
        _
      // Predicated region
      $region45: #{generator_forward.17} parent=31 // pred_check
        %p758 = pneg %p159
      $region46: #{generator_forward.17} parent=31 // pred_check_branch
        %760 = sbr.rel (%p758) target = $region48
      $region47: #{generator_forward.17} parent=31 // pred_region
        _
      $region48: #{generator_forward.17} parent=31 // pred_fallthru
        _
      // Predicated region
      $region49: #{generator_forward.17} parent=31 // pred_check
        %p761 = pneg %p185
      $region50: #{generator_forward.17} parent=31 // pred_check_branch
        %763 = sbr.rel (%p761) target = $region52
      $region51: #{generator_forward.17} parent=31 // pred_region
        _
      $region52: #{generator_forward.17} parent=31 // pred_fallthru
        _
      // Predicated region
      $region53: #{generator_forward.17} parent=31 // pred_check
        %p764 = pneg %p133
      $region54: #{generator_forward.17} parent=31 // pred_check_branch
        %766 = sbr.rel (%p764) target = $region56
      $region55: #{generator_forward.17} parent=31 // pred_region
        %s767 = smul.u32 4, %s22
        %p768 = scmp.lt.s32.totalorder %s767, 3
        %s769 = scalar_select %p768, %s767, 3
        %s770 = smul.addr %s769, 4
        %s771 = scalar_lea.vmem %s3, %s770
      $region56: #{generator_forward.17} parent=31 // pred_fallthru
        _
      // Predicated region
      $region57: #{generator_forward.17} parent=31 // pred_check
        %p772 = pneg %p159
      $region58: #{generator_forward.17} parent=31 // pred_check_branch
        %774 = sbr.rel (%p772) target = $region60
      $region59: #{generator_forward.17} parent=31 // pred_region
        %p775 = scmp.lt.s32.totalorder %s22, 0
        %s776 = scalar_select %p775, %s22, 0
        %s777 = smul.addr %s776, 4
        %s778 = smul.addr %s777, 8
        %s779 = scalar_lea.vmem %s4, %s778
      $region60: #{generator_forward.17} parent=31 // pred_fallthru
        _
      // Predicated region
      $region61: #{generator_forward.17} parent=31 // pred_check
        %p780 = pneg %p185
      $region62: #{generator_forward.17} parent=31 // pred_check_branch
        %782 = sbr.rel (%p780) target = $region64
      $region63: #{generator_forward.17} parent=31 // pred_region
        %p783 = scmp.lt.s32.totalorder %s22, 0
        %s784 = scalar_select %p783, %s22, 0
        %s785 = smul.addr %s784, 4
        %s786 = smul.addr %s785, 8
        %s787 = scalar_lea.vmem %s5, %s786
      $region64: #{generator_forward.17} parent=31 // pred_fallthru
        _
    $region32: #{generator_forward.17} parent=5 // pred_fallthru
      _
    %p788 = scmp.le.s32.totalorder 2, %s12
    // Predicated region
    $region65: #{generator_forward.17} parent=5 // pred_check
      %p789 = pneg %p788
    $region66: #{generator_forward.17} parent=5 // pred_check_branch
      %791 = sbr.rel (%p789) target = $region68
    $region67: #{generator_forward.17} parent=5 // pred_region
      %s792 = ssub.s32 %s12, 2
    $region68: #{generator_forward.17} parent=5 // pred_fallthru
      _
  $region6: #{generator_forward.17} parent=0 // loop_footer
    %s16 = sadd.s32 1, %s12
  $region7: #{generator_forward.17} parent=0 // loop_footer_branch
    %11 = sbr.rel target = $region3
  $region8: #{generator_forward.17} parent=0 // loop_exit
    _

// kernel: generator_forward.18
$region0: #{generator_forward.18}
  #allocation0 [shape = 'u32[]', space=smem, size = 0x4, offset = 0x4, fixed_abs, tag = 'smem constant byte address 0x4 - core index']
  #allocation1 [shape = 'u32[144,128]{1,0:T(1,128)}', space=vmem, size = 0x12000, scoped, tag = 'internal scratch']
  %s0 = inlined_call_operand.vmem [shape: bf16[32,512], index: 0, kind: input, shape index: {}]
  %s1 = inlined_call_operand.vmem [shape: f32[32,1], index: 1, kind: input, shape index: {}]
  %s2 = inlined_call_operand.vmem [shape: f32[32,1], index: 2, kind: input, shape index: {}]
  %s3 = inlined_call_operand.vmem [shape: bf16[32,512], index: 3, kind: output, shape index: {}]
  %s4 = sld [smem:[#allocation0]]
  $region22: #{generator_forward.18} parent=0
    _
  %s6 = ssub.s32 1, %s4
  %s7 = scalar_select 0, %s6, %s4
  // Predicated region
  $region2: #{generator_forward.18} parent=0 // pred_check
    _
  $region3: #{generator_forward.18} parent=0 // pred_check_branch
    %9 = sbr.rel (0) target = $region5
  $region4: #{generator_forward.18} parent=0 // pred_region
    _
  $region5: #{generator_forward.18} parent=0 // pred_fallthru
    _
  // Predicated region
  $region6: #{generator_forward.18} parent=0 // pred_check
    _
  $region7: #{generator_forward.18} parent=0 // pred_check_branch
    %11 = sbr.rel (0) target = $region9
  $region8: #{generator_forward.18} parent=0 // pred_region
    _
  $region9: #{generator_forward.18} parent=0 // pred_fallthru
    _
  // Predicated region
  $region10: #{generator_forward.18} parent=0 // pred_check
    _
  $region11: #{generator_forward.18} parent=0 // pred_check_branch
    %13 = sbr.rel (0) target = $region13
  $region12: #{generator_forward.18} parent=0 // pred_region
    _
  $region13: #{generator_forward.18} parent=0 // pred_fallthru
    _
  %v14 = vld [vmem:[%s0] sm:$0xff]
  %v15 = vld [vmem:[%s0 + $0x8] sm:$0xff]
  %v16 = vld [vmem:[%s0 + $0x10] sm:$0xff]
  %v17 = vld [vmem:[%s0 + $0x18] sm:$0xff]
  %v18 = vld [vmem:[%s0 + $0x20] sm:$0xff]
  %v19 = vld [vmem:[%s0 + $0x28] sm:$0xff]
  %v20 = vld [vmem:[%s0 + $0x30] sm:$0xff]
  %v21 = vld [vmem:[%s0 + $0x38] sm:$0xff]
  %v22 = vunpack.c.l.bf16 %v14
  %v23 = vunpack.c.h.bf16 %v14
  %v24 = vunpack.c.l.bf16 %v15
  %v25 = vunpack.c.h.bf16 %v15
  %v26 = vunpack.c.l.bf16 %v16
  %v27 = vunpack.c.h.bf16 %v16
  %v28 = vunpack.c.l.bf16 %v17
  %v29 = vunpack.c.h.bf16 %v17
  %v30 = vunpack.c.l.bf16 %v18
  %v31 = vunpack.c.h.bf16 %v18
  %v32 = vunpack.c.l.bf16 %v19
  %v33 = vunpack.c.h.bf16 %v19
  %v34 = vunpack.c.l.bf16 %v20
  %v35 = vunpack.c.h.bf16 %v20
  %v36 = vunpack.c.l.bf16 %v21
  %v37 = vunpack.c.h.bf16 %v21
  %v38 = vld [vmem:[%s1] sm:$0xff]
  %v39 = vld [vmem:[%s1 + $0x8] sm:$0xff]
  %v40 = vld [vmem:[%s1 + $0x10] sm:$0xff]
  %v41 = vld [vmem:[%s1 + $0x18] sm:$0xff]
  %43 = vset.pattern.permute.xlu0 0
  %44 = vperm.xlu0 %43, %v38
  %v45 = vpop.permute.xlu0 %44
  %48 = vset.pattern.permute.xlu0 0
  %49 = vperm.xlu0 %48, %v39
  %v50 = vpop.permute.xlu0 %49
  %53 = vset.pattern.permute.xlu0 0
  %54 = vperm.xlu0 %53, %v40
  %v55 = vpop.permute.xlu0 %54
  %58 = vset.pattern.permute.xlu0 0
  %59 = vperm.xlu0 %58, %v41
  %v60 = vpop.permute.xlu0 %59
  %v62 = vmul.f32 %v22, %v45
  %v63 = vmul.f32 %v23, %v45
  %v64 = vmul.f32 %v24, %v45
  %v65 = vmul.f32 %v25, %v45
  %v66 = vmul.f32 %v26, %v50
  %v67 = vmul.f32 %v27, %v50
  %v68 = vmul.f32 %v28, %v50
  %v69 = vmul.f32 %v29, %v50
  %v70 = vmul.f32 %v30, %v55
  %v71 = vmul.f32 %v31, %v55
  %v72 = vmul.f32 %v32, %v55
  %v73 = vmul.f32 %v33, %v55
  %v74 = vmul.f32 %v34, %v60
  %v75 = vmul.f32 %v35, %v60
  %v76 = vmul.f32 %v36, %v60
  %v77 = vmul.f32 %v37, %v60
  %v78 = vld [vmem:[%s2] sm:$0xff]
  %v79 = vld [vmem:[%s2 + $0x8] sm:$0xff]
  %v80 = vld [vmem:[%s2 + $0x10] sm:$0xff]
  %v81 = vld [vmem:[%s2 + $0x18] sm:$0xff]
  %83 = vset.pattern.permute.xlu0 0
  %84 = vperm.xlu0 %83, %v78
  %v85 = vpop.permute.xlu0 %84
  %88 = vset.pattern.permute.xlu0 0
  %89 = vperm.xlu0 %88, %v79
  %v90 = vpop.permute.xlu0 %89
  %93 = vset.pattern.permute.xlu0 0
  %94 = vperm.xlu0 %93, %v80
  %v95 = vpop.permute.xlu0 %94
  %98 = vset.pattern.permute.xlu0 0
  %99 = vperm.xlu0 %98, %v81
  %v100 = vpop.permute.xlu0 %99
  %v102 = vadd.f32 %v62, %v85
  %v103 = vadd.f32 %v63, %v85
  %v104 = vadd.f32 %v64, %v85
  %v105 = vadd.f32 %v65, %v85
  %v106 = vadd.f32 %v66, %v90
  %v107 = vadd.f32 %v67, %v90
  %v108 = vadd.f32 %v68, %v90
  %v109 = vadd.f32 %v69, %v90
  %v110 = vadd.f32 %v70, %v95
  %v111 = vadd.f32 %v71, %v95
  %v112 = vadd.f32 %v72, %v95
  %v113 = vadd.f32 %v73, %v95
  %v114 = vadd.f32 %v74, %v100
  %v115 = vadd.f32 %v75, %v100
  %v116 = vadd.f32 %v76, %v100
  %v117 = vadd.f32 %v77, %v100
  %vm118 = vcmp.ge.f32.partialorder %v102, 0.0
  %vm119 = vcmp.ge.f32.partialorder %v103, 0.0
  %vm120 = vcmp.ge.f32.partialorder %v104, 0.0
  %vm121 = vcmp.ge.f32.partialorder %v105, 0.0
  %vm122 = vcmp.ge.f32.partialorder %v106, 0.0
  %vm123 = vcmp.ge.f32.partialorder %v107, 0.0
  %vm124 = vcmp.ge.f32.partialorder %v108, 0.0
  %vm125 = vcmp.ge.f32.partialorder %v109, 0.0
  %vm126 = vcmp.ge.f32.partialorder %v110, 0.0
  %vm127 = vcmp.ge.f32.partialorder %v111, 0.0
  %vm128 = vcmp.ge.f32.partialorder %v112, 0.0
  %vm129 = vcmp.ge.f32.partialorder %v113, 0.0
  %vm130 = vcmp.ge.f32.partialorder %v114, 0.0
  %vm131 = vcmp.ge.f32.partialorder %v115, 0.0
  %vm132 = vcmp.ge.f32.partialorder %v116, 0.0
  %vm133 = vcmp.ge.f32.partialorder %v117, 0.0
  %v134 = vmul.f32 %v102, 0.2
  %v135 = vmul.f32 %v103, 0.2
  %v136 = vmul.f32 %v104, 0.2
  %v137 = vmul.f32 %v105, 0.2
  %v138 = vmul.f32 %v106, 0.2
  %v139 = vmul.f32 %v107, 0.2
  %v140 = vmul.f32 %v108, 0.2
  %v141 = vmul.f32 %v109, 0.2
  %v142 = vmul.f32 %v110, 0.2
  %v143 = vmul.f32 %v111, 0.2
  %v144 = vmul.f32 %v112, 0.2
  %v145 = vmul.f32 %v113, 0.2
  %v146 = vmul.f32 %v114, 0.2
  %v147 = vmul.f32 %v115, 0.2
  %v148 = vmul.f32 %v116, 0.2
  %v149 = vmul.f32 %v117, 0.2
  %v150 = vsel %vm118, %v102, %v134
  %v151 = vsel %vm119, %v103, %v135
  %v152 = vsel %vm120, %v104, %v136
  %v153 = vsel %vm121, %v105, %v137
  %v154 = vsel %vm122, %v106, %v138
  %v155 = vsel %vm123, %v107, %v139
  %v156 = vsel %vm124, %v108, %v140
  %v157 = vsel %vm125, %v109, %v141
  %v158 = vsel %vm126, %v110, %v142
  %v159 = vsel %vm127, %v111, %v143
  %v160 = vsel %vm128, %v112, %v144
  %v161 = vsel %vm129, %v113, %v145
  %v162 = vsel %vm130, %v114, %v146
  %v163 = vsel %vm131, %v115, %v147
  %v164 = vsel %vm132, %v116, %v148
  %v165 = vsel %vm133, %v117, %v149
  %v166 = vpack.c.bf16 %v154, %v150
  %v167 = vpack.c.bf16 %v155, %v151
  %v168 = vpack.c.bf16 %v156, %v152
  %v169 = vpack.c.bf16 %v157, %v153
  %v170 = vpack.c.bf16 %v162, %v158
  %v171 = vpack.c.bf16 %v163, %v159
  %v172 = vpack.c.bf16 %v164, %v160
  %v173 = vpack.c.bf16 %v165, %v161
  %v182 = vunpack.c.l.b16 %v166
  %v183 = vunpack.c.l.b16 %v167
  %v184 = vunpack.c.l.b16 %v168
  %v185 = vunpack.c.l.b16 %v169
  %v186 = vunpack.c.h.b16 %v166
  %v187 = vunpack.c.h.b16 %v167
  %v188 = vunpack.c.h.b16 %v168
  %v189 = vunpack.c.h.b16 %v169
  %v190 = vunpack.c.l.b16 %v170
  %v191 = vunpack.c.l.b16 %v171
  %v192 = vunpack.c.l.b16 %v172
  %v193 = vunpack.c.l.b16 %v173
  %v194 = vunpack.c.h.b16 %v170
  %v195 = vunpack.c.h.b16 %v171
  %v196 = vunpack.c.h.b16 %v172
  %v197 = vunpack.c.h.b16 %v173
  %v198 = vpack.c.b16 %v183, %v182
  %v199 = vpack.c.b16 %v185, %v184
  %v200 = vpack.c.b16 %v187, %v186
  %v201 = vpack.c.b16 %v189, %v188
  %v202 = vpack.c.b16 %v191, %v190
  %v203 = vpack.c.b16 %v193, %v192
  %v204 = vpack.c.b16 %v195, %v194
  %v205 = vpack.c.b16 %v197, %v196
  %214 = vst [vmem:[%s3] sm:$0xff] %v198
  %215 = vst [vmem:[%s3 + $0x8] sm:$0xff] %v199
  %216 = vst [vmem:[%s3 + $0x10] sm:$0xff] %v200
  %217 = vst [vmem:[%s3 + $0x18] sm:$0xff] %v201
  %218 = vst [vmem:[%s3 + $0x20] sm:$0xff] %v202
  %219 = vst [vmem:[%s3 + $0x28] sm:$0xff] %v203
  %220 = vst [vmem:[%s3 + $0x30] sm:$0xff] %v204
  %221 = vst [vmem:[%s3 + $0x38] sm:$0xff] %v205
  // Predicated region
  $region14: #{generator_forward.18} parent=0 // pred_check
    _
  $region15: #{generator_forward.18} parent=0 // pred_check_branch
    %223 = sbr.rel (0) target = $region17
  $region16: #{generator_forward.18} parent=0 // pred_region
    _
  $region17: #{generator_forward.18} parent=0 // pred_fallthru
    _
  // Predicated region
  $region18: #{generator_forward.18} parent=0 // pred_check
    _
  $region19: #{generator_forward.18} parent=0 // pred_check_branch
    %225 = sbr.rel (0) target = $region21
  $region20: #{generator_forward.18} parent=0 // pred_region
    _
  $region21: #{generator_forward.18} parent=0 // pred_fallthru
    _

// kernel: tile.123
$region0: #{tile.123}
  #allocation0 [shape = 's32[1]{0}', space=sflag, size = 0x4, scoped, tag = 'scoped memory for tile.123']
  %s0 = inlined_call_operand.vmem [shape: f32[4], index: 0, kind: input, shape index: {}]
  %s1 = inlined_call_operand.vmem [shape: f32[4,4], index: 1, kind: output, shape index: {}]
  // Predicated region
  $region2: #{tile.123} parent=0 // pred_check
    _
  $region3: #{tile.123} parent=0 // pred_check_branch
    %3 = sbr.rel (0) target = $region5
  $region4: #{tile.123} parent=0 // pred_region
    _
  $region5: #{tile.123} parent=0 // pred_fallthru
    _
  %v4 = vld [vmem:[%s0] ss:$0 sm:$0xff]
  %5 = vst [vmem:[%s1] sm:$0xf] %v4

// kernel: generator_forward.19
$region0: #{generator_forward.19}
  #allocation0 [shape = 'u32[]', space=smem, size = 0x4, offset = 0x4, fixed_abs, tag = 'smem constant byte address 0x4 - core index']
  #allocation1 [shape = 'u32[144,128]{1,0:T(1,128)}', space=vmem, size = 0x12000, scoped, tag = 'internal scratch']
  #allocation2 [shape = 'f32[16,2048]{1,0:T(8,128)}', space=vmem, size = 0x20000, scoped, tag = 'scratch operand']
  %s0 = inlined_call_operand.vmem [shape: bf16[3,3,8,2048], index: 0, kind: input, shape index: {}]
  %s1 = inlined_call_operand.vmem [shape: bf16[3,3,16,8], index: 1, kind: input, shape index: {}]
  %s2 = inlined_call_operand.vmem [shape: f32[16,1], index: 2, kind: input, shape index: {}]
  %s3 = inlined_call_operand.vmem [shape: bf16[16,2048], index: 3, kind: output, shape index: {0}]
  %s4 = inlined_call_operand.vmem [shape: f32[1,16,1], index: 4, kind: output, shape index: {1}]
  %s5 = inlined_call_operand.vmem [shape: f32[1,16,1], index: 5, kind: output, shape index: {2}]
  %6 = xla_tuple %s3, %s4, %s5
  %s7 = sld [smem:[#allocation0]]
  $region69: #{generator_forward.19} parent=0
    _
  %s9 = ssub.s32 1, %s7
  %s10 = scalar_select 0, %s9, %s7
  loop: start=0, step=1, limit=11
  $region2: #{generator_forward.19} parent=0 // loop_pre_header
    _
  $region3: #{generator_forward.19} parent=0 // loop_header
    %s12 = sphi 0, %s16
    %p13 = scmp.ge.s32.totalorder %s12, 11
    %s19 = sphi 0, %s38
    %s20 = sphi 0, %s34
    %s21 = sphi 0, %s30
    %s22 = sphi 0, %s19
    %s23 = sphi 0, %s20
    %s24 = sphi 0, %s21
    %s25 = sphi 0, %s22
    %s26 = sphi 0, %s23
    %s27 = sphi 0, %s24
    %s45 = sphi 0, %s47
    %s48 = sphi 0, %s45
    %s49 = sphi 0, %s48
    %s65 = sphi 0, %s49
    %s73 = sphi 0, %s75
    %s76 = sphi 0, %s73
    %s77 = sphi 0, %s76
    %s93 = sphi 0, %s77
    %s97 = sphi 0, %s97
    %s99 = sphi 0, %s97
    %s100 = sphi 0, %s99
    %s114 = sphi 0, %s100
    %s120 = sphi 0, %s122
    %s123 = sphi 0, %s120
    %s124 = sphi 0, %s123
    %s140 = sphi 0, %s124
    %s146 = sphi 0, %s148
    %s149 = sphi 0, %s146
    %s150 = sphi 0, %s149
    %s166 = sphi 0, %s150
    %s172 = sphi 0, %s174
    %s175 = sphi 0, %s172
    %s176 = sphi 0, %s175
    %s192 = sphi 0, %s176
  $region4: #{generator_forward.19} parent=0 // loop_header_branch
    %15 = sbr.rel (%p13) target = $region8
  $region5: #{generator_forward.19} parent=0 // loop_body
    %s17 = ssub.s32 %s12, 1
    %s18 = ssub.s32 %s12, 2
    %s28 = sadd.s32 1, %s21
    %p29 = scmp.ge.s32.totalorder %s28, 3
    %s30 = scalar_select %p29, 0, %s28
    %s31 = sadd.s32 1, %s20
    %s32 = scalar_select %p29, %s31, %s20
    %p33 = scmp.ge.s32.totalorder %s32, 3
    %s34 = scalar_select %p33, 0, %s32
    %s35 = sadd.s32 1, %s19
    %s36 = scalar_select %p33, %s35, %s19
    %p37 = scmp.ge.s32.totalorder %s36, 1
    %s38 = scalar_select %p37, 0, %s36
    %s39 = ssub.s32 %s20, %s34
    %s40 = ssub.s32 %s21, %s30
    %s41 = sor.u32 %s39, %s40
    %s42 = ssub.s32 %s19, %s38
    %s43 = sor.u32 %s41, %s42
    %p44 = scmp.eq.s32.totalorder %s43, 0
    %s46 = sadd.s32 %s45, 1
    %s47 = scalar_select %p44, %s45, %s46
    %p50 = pneg %p44
    %p51 = scmp.eq.s32.totalorder %s12, 8
    %p52 = por %p50, %p51
    %p53 = scmp.ne.s32.totalorder %s45, %s48
    %p54 = scmp.eq.s32.totalorder %s12, 0
    %p55 = por %p53, %p54
    %p56 = scmp.ne.s32.totalorder %s45, %s48
    %p57 = scmp.eq.s32.totalorder %s17, 8
    %p58 = por %p56, %p57
    %p59 = scmp.ne.s32.totalorder %s48, %s49
    %p60 = scmp.eq.s32.totalorder %s17, 0
    %p61 = por %p59, %p60
    %p62 = scmp.ne.s32.totalorder %s48, %s49
    %p63 = scmp.eq.s32.totalorder %s18, 8
    %p64 = por %p62, %p63
    %p66 = scmp.ne.s32.totalorder %s49, %s65
    %p67 = scmp.eq.s32.totalorder %s18, 0
    %p68 = por %p66, %p67
    %s69 = ssub.s32 %s20, %s34
    %s70 = ssub.s32 %s21, %s30
    %s71 = sor.u32 %s69, %s70
    %p72 = scmp.eq.s32.totalorder %s71, 0
    %s74 = sadd.s32 %s73, 1
    %s75 = scalar_select %p72, %s73, %s74
    %p78 = pneg %p72
    %p79 = scmp.eq.s32.totalorder %s12, 8
    %p80 = por %p78, %p79
    %p81 = scmp.ne.s32.totalorder %s73, %s76
    %p82 = scmp.eq.s32.totalorder %s12, 0
    %p83 = por %p81, %p82
    %p84 = scmp.ne.s32.totalorder %s73, %s76
    %p85 = scmp.eq.s32.totalorder %s17, 8
    %p86 = por %p84, %p85
    %p87 = scmp.ne.s32.totalorder %s76, %s77
    %p88 = scmp.eq.s32.totalorder %s17, 0
    %p89 = por %p87, %p88
    %p90 = scmp.ne.s32.totalorder %s76, %s77
    %p91 = scmp.eq.s32.totalorder %s18, 8
    %p92 = por %p90, %p91
    %p94 = scmp.ne.s32.totalorder %s77, %s93
    %p95 = scmp.eq.s32.totalorder %s18, 0
    %p96 = por %p94, %p95
    %s98 = sadd.s32 %s97, 1
    %p101 = scmp.eq.s32.totalorder %s12, 8
    %p102 = scmp.ne.s32.totalorder %s97, %s99
    %p103 = scmp.eq.s32.totalorder %s12, 0
    %p104 = por %p102, %p103
    %p105 = scmp.ne.s32.totalorder %s97, %s99
    %p106 = scmp.eq.s32.totalorder %s17, 8
    %p107 = por %p105, %p106
    %p108 = scmp.ne.s32.totalorder %s99, %s100
    %p109 = scmp.eq.s32.totalorder %s17, 0
    %p110 = por %p108, %p109
    %p111 = scmp.ne.s32.totalorder %s99, %s100
    %p112 = scmp.eq.s32.totalorder %s18, 8
    %p113 = por %p111, %p112
    %p115 = scmp.ne.s32.totalorder %s100, %s114
    %p116 = scmp.eq.s32.totalorder %s18, 0
    %p117 = por %p115, %p116
    %s118 = ssub.s32 %s19, %s38
    %p119 = scmp.eq.s32.totalorder %s118, 0
    %s121 = sadd.s32 %s120, 1
    %s122 = scalar_select %p119, %s120, %s121
    %p125 = pneg %p119
    %p126 = scmp.eq.s32.totalorder %s12, 8
    %p127 = por %p125, %p126
    %p128 = scmp.ne.s32.totalorder %s120, %s123
    %p129 = scmp.eq.s32.totalorder %s12, 0
    %p130 = por %p128, %p129
    %p131 = scmp.ne.s32.totalorder %s120, %s123
    %p132 = scmp.eq.s32.totalorder %s17, 8
    %p133 = por %p131, %p132
    %p134 = scmp.ne.s32.totalorder %s123, %s124
    %p135 = scmp.eq.s32.totalorder %s17, 0
    %p136 = por %p134, %p135
    %p137 = scmp.ne.s32.totalorder %s123, %s124
    %p138 = scmp.eq.s32.totalorder %s18, 8
    %p139 = por %p137, %p138
    %p141 = scmp.ne.s32.totalorder %s124, %s140
    %p142 = scmp.eq.s32.totalorder %s18, 0
    %p143 = por %p141, %p142
    %s144 = ssub.s32 %s19, %s38
    %p145 = scmp.eq.s32.totalorder %s144, 0
    %s147 = sadd.s32 %s146, 1
    %s148 = scalar_select %p145, %s146, %s147
    %p151 = pneg %p145
    %p152 = scmp.eq.s32.totalorder %s12, 8
    %p153 = por %p151, %p152
    %p154 = scmp.ne.s32.totalorder %s146, %s149
    %p155 = scmp.eq.s32.totalorder %s12, 0
    %p156 = por %p154, %p155
    %p157 = scmp.ne.s32.totalorder %s146, %s149
    %p158 = scmp.eq.s32.totalorder %s17, 8
    %p159 = por %p157, %p158
    %p160 = scmp.ne.s32.totalorder %s149, %s150
    %p161 = scmp.eq.s32.totalorder %s17, 0
    %p162 = por %p160, %p161
    %p163 = scmp.ne.s32.totalorder %s149, %s150
    %p164 = scmp.eq.s32.totalorder %s18, 8
    %p165 = por %p163, %p164
    %p167 = scmp.ne.s32.totalorder %s150, %s166
    %p168 = scmp.eq.s32.totalorder %s18, 0
    %p169 = por %p167, %p168
    %s170 = ssub.s32 %s19, %s38
    %p171 = scmp.eq.s32.totalorder %s170, 0
    %s173 = sadd.s32 %s172, 1
    %s174 = scalar_select %p171, %s172, %s173
    %p177 = pneg %p171
    %p178 = scmp.eq.s32.totalorder %s12, 8
    %p179 = por %p177, %p178
    %p180 = scmp.ne.s32.totalorder %s172, %s175
    %p181 = scmp.eq.s32.totalorder %s12, 0
    %p182 = por %p180, %p181
    %p183 = scmp.ne.s32.totalorder %s172, %s175
    %p184 = scmp.eq.s32.totalorder %s17, 8
    %p185 = por %p183, %p184
    %p186 = scmp.ne.s32.totalorder %s175, %s176
    %p187 = scmp.eq.s32.totalorder %s17, 0
    %p188 = por %p186, %p187
    %p189 = scmp.ne.s32.totalorder %s175, %s176
    %p190 = scmp.eq.s32.totalorder %s18, 8
    %p191 = por %p189, %p190
    %p193 = scmp.ne.s32.totalorder %s176, %s192
    %p194 = scmp.eq.s32.totalorder %s18, 0
    %p195 = por %p193, %p194
    %p196 = scmp.le.s32.totalorder 1, %s12
    %p197 = scmp.lt.s32.totalorder %s12, 10
    %p198 = pnand %p196, %p197
    %p199 = pneg %p198
    // Predicated region
    $region9: #{generator_forward.19} parent=5 // pred_check
      _
    $region10: #{generator_forward.19} parent=5 // pred_check_branch
      %201 = sbr.rel (%p198) target = $region12
    $region11: #{generator_forward.19} parent=5 // pred_region
      %s202 = ssub.s32 %s12, 1
      // Predicated region
      $region13: #{generator_forward.19} parent=11 // pred_check
        %p203 = pneg %p110
      $region14: #{generator_forward.19} parent=11 // pred_check_branch
        %205 = sbr.rel (%p203) target = $region16
      $region15: #{generator_forward.19} parent=11 // pred_region
        _
      $region16: #{generator_forward.19} parent=11 // pred_fallthru
        _
    $region12: #{generator_forward.19} parent=5 // pred_fallthru
      _
    %p206 = scmp.lt.s32.totalorder %s12, 9
    // Predicated region
    $region17: #{generator_forward.19} parent=5 // pred_check
      %p207 = pneg %p206
    $region18: #{generator_forward.19} parent=5 // pred_check_branch
      %209 = sbr.rel (%p207) target = $region20
    $region19: #{generator_forward.19} parent=5 // pred_region
      // Predicated region
      $region21: #{generator_forward.19} parent=19 // pred_check
        %p210 = pneg %p55
      $region22: #{generator_forward.19} parent=19 // pred_check_branch
        %212 = sbr.rel (%p210) target = $region24
      $region23: #{generator_forward.19} parent=19 // pred_region
        %s213 = smul.u32 16, %s19
        %p214 = scmp.lt.s32.totalorder %s20, 2
        %s215 = scalar_select %p214, %s20, 2
        %p216 = scmp.lt.s32.totalorder %s21, 2
        %s217 = scalar_select %p216, %s21, 2
        %p218 = scmp.lt.s32.totalorder %s213, 15
        %s219 = scalar_select %p218, %s213, 15
        %s220 = smul.addr %s217, 16
        %s221 = sadd.s32 %s219, %s220
        %s222 = smul.addr %s215, 48
        %s223 = sadd.s32 %s221, %s222
        %s224 = smul.addr %s223, 4
        %s225 = scalar_lea.vmem %s0, %s224
        %s226 = smul.u32 16, %s19
      $region24: #{generator_forward.19} parent=19 // pred_fallthru
        _
      // Predicated region
      $region25: #{generator_forward.19} parent=19 // pred_check
        %p227 = pneg %p83
      $region26: #{generator_forward.19} parent=19 // pred_check_branch
        %229 = sbr.rel (%p227) target = $region28
      $region27: #{generator_forward.19} parent=19 // pred_region
        %p230 = scmp.lt.s32.totalorder %s20, 2
        %s231 = scalar_select %p230, %s20, 2
        %p232 = scmp.lt.s32.totalorder %s21, 2
        %s233 = scalar_select %p232, %s21, 2
        %s234 = smul.addr %s233, 2
        %s235 = smul.addr %s231, 6
        %s236 = sadd.s32 %s234, %s235
        %s237 = smul.addr %s236, 4
        %s238 = scalar_lea.vmem %s1, %s237
      $region28: #{generator_forward.19} parent=19 // pred_fallthru
        _
    $region20: #{generator_forward.19} parent=5 // pred_fallthru
      _
    %p239 = scmp.le.s32.totalorder 1, %s12
    %p240 = scmp.lt.s32.totalorder %s12, 10
    %p241 = pnand %p239, %p240
    %p242 = pneg %p241
    // Predicated region
    $region29: #{generator_forward.19} parent=5 // pred_check
      _
    $region30: #{generator_forward.19} parent=5 // pred_check_branch
      %244 = sbr.rel (%p241) target = $region32
    $region31: #{generator_forward.19} parent=5 // pred_region
      %s245 = ssub.s32 %s12, 1
      %s246 = smul.u32 16, %s22
      %p247 = scmp.lt.s32.totalorder %s23, 2
      %s248 = scalar_select %p247, %s23, 2
      %p249 = scmp.lt.s32.totalorder %s24, 2
      %s250 = scalar_select %p249, %s24, 2
      %p251 = scmp.lt.s32.totalorder %s246, 15
      %s252 = scalar_select %p251, %s246, 15
      %s253 = smul.addr %s250, 16
      %s254 = sadd.s32 %s252, %s253
      %s255 = smul.addr %s248, 48
      %s256 = sadd.s32 %s254, %s255
      %s257 = smul.addr %s256, 4
      %s258 = scalar_lea.vmem %s0, %s257
      %p259 = pneg %p61
      %p260 = pneg %p58
      %p261 = scmp.lt.s32.totalorder %s23, 2
      %s262 = scalar_select %p261, %s23, 2
      %p263 = scmp.lt.s32.totalorder %s24, 2
      %s264 = scalar_select %p263, %s24, 2
      %s265 = smul.addr %s264, 2
      %s266 = smul.addr %s262, 6
      %s267 = sadd.s32 %s265, %s266
      %s268 = smul.addr %s267, 4
      %s269 = scalar_lea.vmem %s1, %s268
      %p270 = pneg %p89
      %p271 = pneg %p86
      %p272 = pneg %p110
      %p273 = pneg %p107
      %p274 = pneg %p136
      %p275 = pneg %p133
      %s276 = smul.u32 16, %s22
      %p277 = scmp.lt.s32.totalorder %s276, 15
      %s278 = scalar_select %p277, %s276, 15
      %s279 = smul.addr %s278, 4
      %s280 = scalar_lea.vmem %s3, %s279
      %p281 = pneg %p162
      %p282 = pneg %p159
      %p283 = scmp.lt.s32.totalorder %s22, 0
      %s284 = scalar_select %p283, %s22, 0
      %s285 = smul.addr %s284, 2
      %s286 = smul.addr %s285, 8
      %s287 = scalar_lea.vmem %s4, %s286
      %p288 = pneg %p188
      %p289 = pneg %p185
      %p290 = scmp.lt.s32.totalorder %s22, 0
      %s291 = scalar_select %p290, %s22, 0
      %s292 = smul.addr %s291, 2
      %s293 = smul.addr %s292, 8
      %s294 = scalar_lea.vmem %s5, %s293
      %s295 = smul.u32 16, %s22
      %p296 = scmp.lt.s32.totalorder %s23, 2
      %s297 = scalar_select %p296, %s23, 2
      %p298 = scmp.lt.s32.totalorder %s24, 2
      %s299 = scalar_select %p298, %s24, 2
      %p300 = scmp.lt.s32.totalorder %s295, 15
      %s301 = scalar_select %p300, %s295, 15
      %s302 = smul.addr %s299, 16
      %s303 = sadd.s32 %s301, %s302
      %s304 = smul.addr %s297, 48
      %s305 = sadd.s32 %s303, %s304
      %s306 = smul.addr %s305, 4
      %s307 = scalar_lea.vmem %s0, %s306
      %s308 = smul.u32 16, %s22
      %p309 = scmp.lt.s32.totalorder %s23, 2
      %s310 = scalar_select %p309, %s23, 2
      %p311 = scmp.lt.s32.totalorder %s24, 2
      %s312 = scalar_select %p311, %s24, 2
      %s313 = smul.addr %s312, 2
      %s314 = smul.addr %s310, 6
      %s315 = sadd.s32 %s313, %s314
      %s316 = smul.addr %s315, 4
      %s317 = scalar_lea.vmem %s1, %s316
      %s318 = smul.u32 16, %s22
      %p319 = scmp.lt.s32.totalorder %s318, 15
      %s320 = scalar_select %p319, %s318, 15
      %s321 = smul.addr %s320, 4
      %s322 = scalar_lea.vmem %s3, %s321
      %s323 = smul.u32 16, %s22
      %p324 = scmp.lt.s32.totalorder %s22, 0
      %s325 = scalar_select %p324, %s22, 0
      %s326 = smul.addr %s325, 2
      %s327 = smul.addr %s326, 8
      %s328 = scalar_lea.vmem %s4, %s327
      %p329 = scmp.lt.s32.totalorder %s22, 0
      %s330 = scalar_select %p329, %s22, 0
      %s331 = smul.addr %s330, 2
      %s332 = smul.addr %s331, 8
      %s333 = scalar_lea.vmem %s5, %s332
      %p335 = scmp.eq.s32.totalorder %s23, 0
      %p336 = scmp.eq.s32.totalorder %s24, 0
      %p337 = pnand %p335, %p336
      %p338 = pneg %p337
      // Predicated region
      $region33: #{generator_forward.19} parent=31 // pred_check
        _
      $region34: #{generator_forward.19} parent=31 // pred_check_branch
        %340 = sbr.rel (%p337) target = $region36
      $region35: #{generator_forward.19} parent=31 // pred_region
        %341 = vst [vmem:[#allocation2] sm:$0xff] 0.0
        %342 = vst [vmem:[#allocation2 + $0x8] sm:$0xff] 0.0
        %343 = vst [vmem:[#allocation2 + $0x10] sm:$0xff] 0.0
        %344 = vst [vmem:[#allocation2 + $0x18] sm:$0xff] 0.0
        %345 = vst [vmem:[#allocation2 + $0x20] sm:$0xff] 0.0
        %346 = vst [vmem:[#allocation2 + $0x28] sm:$0xff] 0.0
        %347 = vst [vmem:[#allocation2 + $0x30] sm:$0xff] 0.0
        %348 = vst [vmem:[#allocation2 + $0x38] sm:$0xff] 0.0
        %349 = vst [vmem:[#allocation2 + $0x40] sm:$0xff] 0.0
        %350 = vst [vmem:[#allocation2 + $0x48] sm:$0xff] 0.0
        %351 = vst [vmem:[#allocation2 + $0x50] sm:$0xff] 0.0
        %352 = vst [vmem:[#allocation2 + $0x58] sm:$0xff] 0.0
        %353 = vst [vmem:[#allocation2 + $0x60] sm:$0xff] 0.0
        %354 = vst [vmem:[#allocation2 + $0x68] sm:$0xff] 0.0
        %355 = vst [vmem:[#allocation2 + $0x70] sm:$0xff] 0.0
        %356 = vst [vmem:[#allocation2 + $0x78] sm:$0xff] 0.0
        %357 = vst [vmem:[#allocation2 + $0x80] sm:$0xff] 0.0
        %358 = vst [vmem:[#allocation2 + $0x88] sm:$0xff] 0.0
        %359 = vst [vmem:[#allocation2 + $0x90] sm:$0xff] 0.0
        %360 = vst [vmem:[#allocation2 + $0x98] sm:$0xff] 0.0
        %361 = vst [vmem:[#allocation2 + $0xa0] sm:$0xff] 0.0
        %362 = vst [vmem:[#allocation2 + $0xa8] sm:$0xff] 0.0
        %363 = vst [vmem:[#allocation2 + $0xb0] sm:$0xff] 0.0
        %364 = vst [vmem:[#allocation2 + $0xb8] sm:$0xff] 0.0
        %365 = vst [vmem:[#allocation2 + $0xc0] sm:$0xff] 0.0
        %366 = vst [vmem:[#allocation2 + $0xc8] sm:$0xff] 0.0
        %367 = vst [vmem:[#allocation2 + $0xd0] sm:$0xff] 0.0
        %368 = vst [vmem:[#allocation2 + $0xd8] sm:$0xff] 0.0
        %369 = vst [vmem:[#allocation2 + $0xe0] sm:$0xff] 0.0
        %370 = vst [vmem:[#allocation2 + $0xe8] sm:$0xff] 0.0
        %371 = vst [vmem:[#allocation2 + $0xf0] sm:$0xff] 0.0
        %372 = vst [vmem:[#allocation2 + $0xf8] sm:$0xff] 0.0
      $region36: #{generator_forward.19} parent=31 // pred_fallthru
        _
      %v373 = vld [vmem:[#allocation2] sm:$0xff]
      %v374 = vld [vmem:[#allocation2 + $0x8] sm:$0xff]
      %v375 = vld [vmem:[#allocation2 + $0x10] sm:$0xff]
      %v376 = vld [vmem:[#allocation2 + $0x18] sm:$0xff]
      %v377 = vld [vmem:[#allocation2 + $0x20] sm:$0xff]
      %v378 = vld [vmem:[#allocation2 + $0x28] sm:$0xff]
      %v379 = vld [vmem:[#allocation2 + $0x30] sm:$0xff]
      %v380 = vld [vmem:[#allocation2 + $0x38] sm:$0xff]
      %v381 = vld [vmem:[#allocation2 + $0x40] sm:$0xff]
      %v382 = vld [vmem:[#allocation2 + $0x48] sm:$0xff]
      %v383 = vld [vmem:[#allocation2 + $0x50] sm:$0xff]
      %v384 = vld [vmem:[#allocation2 + $0x58] sm:$0xff]
      %v385 = vld [vmem:[#allocation2 + $0x60] sm:$0xff]
      %v386 = vld [vmem:[#allocation2 + $0x68] sm:$0xff]
      %v387 = vld [vmem:[#allocation2 + $0x70] sm:$0xff]
      %v388 = vld [vmem:[#allocation2 + $0x78] sm:$0xff]
      %v389 = vld [vmem:[#allocation2 + $0x80] sm:$0xff]
      %v390 = vld [vmem:[#allocation2 + $0x88] sm:$0xff]
      %v391 = vld [vmem:[#allocation2 + $0x90] sm:$0xff]
      %v392 = vld [vmem:[#allocation2 + $0x98] sm:$0xff]
      %v393 = vld [vmem:[#allocation2 + $0xa0] sm:$0xff]
      %v394 = vld [vmem:[#allocation2 + $0xa8] sm:$0xff]
      %v395 = vld [vmem:[#allocation2 + $0xb0] sm:$0xff]
      %v396 = vld [vmem:[#allocation2 + $0xb8] sm:$0xff]
      %v397 = vld [vmem:[#allocation2 + $0xc0] sm:$0xff]
      %v398 = vld [vmem:[#allocation2 + $0xc8] sm:$0xff]
      %v399 = vld [vmem:[#allocation2 + $0xd0] sm:$0xff]
      %v400 = vld [vmem:[#allocation2 + $0xd8] sm:$0xff]
      %v401 = vld [vmem:[#allocation2 + $0xe0] sm:$0xff]
      %v402 = vld [vmem:[#allocation2 + $0xe8] sm:$0xff]
      %v403 = vld [vmem:[#allocation2 + $0xf0] sm:$0xff]
      %v404 = vld [vmem:[#allocation2 + $0xf8] sm:$0xff]
      %v405 = vld [vmem:[%s317] sm:$0xf]
      %v406 = vld [vmem:[%s317 + $0x4] sm:$0xf]
      %v407 = vld [vmem:[%s307] sm:$0xff]
      %v408 = vld [vmem:[%s307 + $0x8] sm:$0xff]
      %v409 = vld [vmem:[%s307 + $0x10] sm:$0xff]
      %v410 = vld [vmem:[%s307 + $0x18] sm:$0xff]
      %v411 = vld [vmem:[%s307 + $0x20] sm:$0xff]
      %v412 = vld [vmem:[%s307 + $0x28] sm:$0xff]
      %v413 = vld [vmem:[%s307 + $0x30] sm:$0xff]
      %v414 = vld [vmem:[%s307 + $0x38] sm:$0xff]
      %v417 = vunpack.c.l.b16 %v405
      %v418 = vunpack.c.l.b16 %v406
      %v419 = vpack.c.b16 %v418, %v417
      %v428 = vunpack.c.l.b16 %v407
      %v429 = vunpack.c.h.b16 %v407
      %v430 = vunpack.c.l.b16 %v408
      %v431 = vunpack.c.h.b16 %v408
      %v432 = vunpack.c.l.b16 %v409
      %v433 = vunpack.c.h.b16 %v409
      %v434 = vunpack.c.l.b16 %v410
      %v435 = vunpack.c.h.b16 %v410
      %v436 = vunpack.c.l.b16 %v411
      %v437 = vunpack.c.h.b16 %v411
      %v438 = vunpack.c.l.b16 %v412
      %v439 = vunpack.c.h.b16 %v412
      %v440 = vunpack.c.l.b16 %v413
      %v441 = vunpack.c.h.b16 %v413
      %v442 = vunpack.c.l.b16 %v414
      %v443 = vunpack.c.h.b16 %v414
      %v444 = vpack.c.b16 %v428, %v428
      %v445 = vpack.c.b16 %v429, %v429
      %v446 = vpack.c.b16 %v430, %v430
      %v447 = vpack.c.b16 %v431, %v431
      %v448 = vpack.c.b16 %v432, %v432
      %v449 = vpack.c.b16 %v433, %v433
      %v450 = vpack.c.b16 %v434, %v434
      %v451 = vpack.c.b16 %v435, %v435
      %v452 = vpack.c.b16 %v436, %v436
      %v453 = vpack.c.b16 %v437, %v437
      %v454 = vpack.c.b16 %v438, %v438
      %v455 = vpack.c.b16 %v439, %v439
      %v456 = vpack.c.b16 %v440, %v440
      %v457 = vpack.c.b16 %v441, %v441
      %v458 = vpack.c.b16 %v442, %v442
      %v459 = vpack.c.b16 %v443, %v443
      %vm460 = vcmask 64512
      %v462 = vsel %vm460, %v419, 0
      %vm464 = vcmask 1043456
      %v466 = vsel %vm464, %v444, 0
      %v469 = vsel %vm464, %v445, 0
      %v472 = vsel %vm464, %v446, 0
      %v475 = vsel %vm464, %v447, 0
      %v478 = vsel %vm464, %v448, 0
      %v481 = vsel %vm464, %v449, 0
      %v484 = vsel %vm464, %v450, 0
      %v487 = vsel %vm464, %v451, 0
      %v490 = vsel %vm464, %v452, 0
      %v493 = vsel %vm464, %v453, 0
      %v496 = vsel %vm464, %v454, 0
      %v499 = vsel %vm464, %v455, 0
      %v502 = vsel %vm464, %v456, 0
      %v505 = vsel %vm464, %v457, 0
      %v508 = vsel %vm464, %v458, 0
      %v511 = vsel %vm464, %v459, 0
      %513 = vmatprep.subr.bf16.mxu0 %v469
      %514 = vmatpush1.bf16.msra.mxu0 %v466
      %515 = vmatprep.subr.bf16.mxu0 0
      %516 = vmatpush1.bf16.msra.mxu0 0
      %517 = vmatprep.subr.bf16.mxu0 0
      %518 = vmatpush1.bf16.msra.mxu0 0
      %519 = vmatprep.subr.bf16.mxu0 0
      %520 = vmatpush1.bf16.msra.mxu0 0
      %521 = vmatprep.subr.bf16.mxu0 0
      %522 = vmatpush1.bf16.msra.mxu0 0
      %523 = vmatprep.subr.bf16.mxu0 0
      %524 = vmatpush1.bf16.msra.mxu0 0
      %525 = vmatprep.subr.bf16.mxu0 0
      %526 = vmatpush1.bf16.msra.mxu0 0
      %527 = vmatprep.subr.bf16.mxu0 0
      %528 = vmatpush1.bf16.msra.mxu0 0
      %529 = vmatprep.subr.bf16.mxu0 0
      %530 = vmatpush1.bf16.msra.mxu0 0
      %531 = vmatprep.subr.bf16.mxu0 0
      %532 = vmatpush1.bf16.msra.mxu0 0
      %533 = vmatprep.subr.bf16.mxu0 0
      %534 = vmatpush1.bf16.msra.mxu0 0
      %535 = vmatprep.subr.bf16.mxu0 0
      %536 = vmatpush1.bf16.msra.mxu0 0
      %537 = vmatprep.subr.bf16.mxu0 0
      %538 = vmatpush1.bf16.msra.mxu0 0
      %539 = vmatprep.subr.bf16.mxu0 0
      %540 = vmatpush1.bf16.msra.mxu0 0
      %541 = vmatprep.subr.bf16.mxu0 0
      %542 = vmatpush1.bf16.msra.mxu0 0
      %543 = vmatprep.subr.bf16.mxu0 0
      %544 = vmatpush1.bf16.msra.mxu0 0
      %545 = vmatprep.mubr.bf16.mxu0 0
      %546 = vmatmul.mubr.bf16.gmra.mrb[0].mxu0 %v462
      %v547 = vpop.f32.mrb[0].mxu0
      %v548 = vadd.f32 0.0, %v547
      %v549 = vpop.f32.mrb[0].mxu0
      %v550 = vadd.f32 0.0, %v549
      %v551 = vpop.f32.mrb[0].mxu0
      %v552 = vadd.f32 0.0, %v551
      %v553 = vpop.f32.mrb[0].mxu0
      %v554 = vadd.f32 0.0, %v553
      %555 = vdwg.mxu0
      %556 = vmatprep.subr.bf16.mxu0 %v475
      %557 = vmatpush1.bf16.msra.mxu0 %v472
      %558 = vmatprep.subr.bf16.mxu0 0
      %559 = vmatpush1.bf16.msra.mxu0 0
      %560 = vmatprep.subr.bf16.mxu0 0
      %561 = vmatpush1.bf16.msra.mxu0 0
      %562 = vmatprep.subr.bf16.mxu0 0
      %563 = vmatpush1.bf16.msra.mxu0 0
      %564 = vmatprep.subr.bf16.mxu0 0
      %565 = vmatpush1.bf16.msra.mxu0 0
      %566 = vmatprep.subr.bf16.mxu0 0
      %567 = vmatpush1.bf16.msra.mxu0 0
      %568 = vmatprep.subr.bf16.mxu0 0
      %569 = vmatpush1.bf16.msra.mxu0 0
      %570 = vmatprep.subr.bf16.mxu0 0
      %571 = vmatpush1.bf16.msra.mxu0 0
      %572 = vmatprep.subr.bf16.mxu0 0
      %573 = vmatpush1.bf16.msra.mxu0 0
      %574 = vmatprep.subr.bf16.mxu0 0
      %575 = vmatpush1.bf16.msra.mxu0 0
      %576 = vmatprep.subr.bf16.mxu0 0
      %577 = vmatpush1.bf16.msra.mxu0 0
      %578 = vmatprep.subr.bf16.mxu0 0
      %579 = vmatpush1.bf16.msra.mxu0 0
      %580 = vmatprep.subr.bf16.mxu0 0
      %581 = vmatpush1.bf16.msra.mxu0 0
      %582 = vmatprep.subr.bf16.mxu0 0
      %583 = vmatpush1.bf16.msra.mxu0 0
      %584 = vmatprep.subr.bf16.mxu0 0
      %585 = vmatpush1.bf16.msra.mxu0 0
      %586 = vmatprep.subr.bf16.mxu0 0
      %587 = vmatpush1.bf16.msra.mxu0 0
      %588 = vmatprep.mubr.bf16.mxu0 0
      %589 = vmatmul.mubr.bf16.gmra.mrb[0].mxu0 %v462
      %v590 = vpop.f32.mrb[0].mxu0
      %v591 = vadd.f32 0.0, %v590
      %v592 = vpop.f32.mrb[0].mxu0
      %v593 = vadd.f32 0.0, %v592
      %v594 = vpop.f32.mrb[0].mxu0
      %v595 = vadd.f32 0.0, %v594
      %v596 = vpop.f32.mrb[0].mxu0
      %v597 = vadd.f32 0.0, %v596
      %598 = vdwg.mxu0
      %599 = vmatprep.subr.bf16.mxu0 %v481
      %600 = vmatpush1.bf16.msra.mxu0 %v478
      %601 = vmatprep.subr.bf16.mxu0 0
      %602 = vmatpush1.bf16.msra.mxu0 0
      %603 = vmatprep.subr.bf16.mxu0 0
      %604 = vmatpush1.bf16.msra.mxu0 0
      %605 = vmatprep.subr.bf16.mxu0 0
      %606 = vmatpush1.bf16.msra.mxu0 0
      %607 = vmatprep.subr.bf16.mxu0 0
      %608 = vmatpush1.bf16.msra.mxu0 0
      %609 = vmatprep.subr.bf16.mxu0 0
      %610 = vmatpush1.bf16.msra.mxu0 0
      %611 = vmatprep.subr.bf16.mxu0 0
      %612 = vmatpush1.bf16.msra.mxu0 0
      %613 = vmatprep.subr.bf16.mxu0 0
      %614 = vmatpush1.bf16.msra.mxu0 0
      %615 = vmatprep.subr.bf16.mxu0 0
      %616 = vmatpush1.bf16.msra.mxu0 0
      %617 = vmatprep.subr.bf16.mxu0 0
      %618 = vmatpush1.bf16.msra.mxu0 0
      %619 = vmatprep.subr.bf16.mxu0 0
      %620 = vmatpush1.bf16.msra.mxu0 0
      %621 = vmatprep.subr.bf16.mxu0 0
      %622 = vmatpush1.bf16.msra.mxu0 0
      %623 = vmatprep.subr.bf16.mxu0 0
      %624 = vmatpush1.bf16.msra.mxu0 0
      %625 = vmatprep.subr.bf16.mxu0 0
      %626 = vmatpush1.bf16.msra.mxu0 0
      %627 = vmatprep.subr.bf16.mxu0 0
      %628 = vmatpush1.bf16.msra.mxu0 0
      %629 = vmatprep.subr.bf16.mxu0 0
      %630 = vmatpush1.bf16.msra.mxu0 0
      %631 = vmatprep.mubr.bf16.mxu0 0
      %632 = vmatmul.mubr.bf16.gmra.mrb[0].mxu0 %v462
      %v633 = vpop.f32.mrb[0].mxu0
      %v634 = vadd.f32 0.0, %v633
      %v635 = vpop.f32.mrb[0].mxu0
      %v636 = vadd.f32 0.0, %v635
      %v637 = vpop.f32.mrb[0].mxu0
      %v638 = vadd.f32 0.0, %v637
      %v639 = vpop.f32.mrb[0].mxu0
      %v640 = vadd.f32 0.0, %v639
      %641 = vdwg.mxu0
      %642 = vmatprep.subr.bf16.mxu0 %v487
      %643 = vmatpush1.bf16.msra.mxu0 %v484
      %644 = vmatprep.subr.bf16.mxu0 0
      %645 = vmatpush1.bf16.msra.mxu0 0
      %646 = vmatprep.subr.bf16.mxu0 0
      %647 = vmatpush1.bf16.msra.mxu0 0
      %648 = vmatprep.subr.bf16.mxu0 0
      %649 = vmatpush1.bf16.msra.mxu0 0
      %650 = vmatprep.subr.bf16.mxu0 0
      %651 = vmatpush1.bf16.msra.mxu0 0
      %652 = vmatprep.subr.bf16.mxu0 0
      %653 = vmatpush1.bf16.msra.mxu0 0
      %654 = vmatprep.subr.bf16.mxu0 0
      %655 = vmatpush1.bf16.msra.mxu0 0
      %656 = vmatprep.subr.bf16.mxu0 0
      %657 = vmatpush1.bf16.msra.mxu0 0
      %658 = vmatprep.subr.bf16.mxu0 0
      %659 = vmatpush1.bf16.msra.mxu0 0
      %660 = vmatprep.subr.bf16.mxu0 0
      %661 = vmatpush1.bf16.msra.mxu0 0
      %662 = vmatprep.subr.bf16.mxu0 0
      %663 = vmatpush1.bf16.msra.mxu0 0
      %664 = vmatprep.subr.bf16.mxu0 0
      %665 = vmatpush1.bf16.msra.mxu0 0
      %666 = vmatprep.subr.bf16.mxu0 0
      %667 = vmatpush1.bf16.msra.mxu0 0
      %668 = vmatprep.subr.bf16.mxu0 0
      %669 = vmatpush1.bf16.msra.mxu0 0
      %670 = vmatprep.subr.bf16.mxu0 0
      %671 = vmatpush1.bf16.msra.mxu0 0
      %672 = vmatprep.subr.bf16.mxu0 0
      %673 = vmatpush1.bf16.msra.mxu0 0
      %674 = vmatprep.mubr.bf16.mxu0 0
      %675 = vmatmul.mubr.bf16.gmra.mrb[0].mxu0 %v462
      %v676 = vpop.f32.mrb[0].mxu0
      %v677 = vadd.f32 0.0, %v676
      %v678 = vpop.f32.mrb[0].mxu0
      %v679 = vadd.f32 0.0, %v678
      %v680 = vpop.f32.mrb[0].mxu0
      %v681 = vadd.f32 0.0, %v680
      %v682 = vpop.f32.mrb[0].mxu0
      %v683 = vadd.f32 0.0, %v682
      %684 = vdwg.mxu0
      %685 = vmatprep.subr.bf16.mxu0 %v493
      %686 = vmatpush1.bf16.msra.mxu0 %v490
      %687 = vmatprep.subr.bf16.mxu0 0
      %688 = vmatpush1.bf16.msra.mxu0 0
      %689 = vmatprep.subr.bf16.mxu0 0
      %690 = vmatpush1.bf16.msra.mxu0 0
      %691 = vmatprep.subr.bf16.mxu0 0
      %692 = vmatpush1.bf16.msra.mxu0 0
      %693 = vmatprep.subr.bf16.mxu0 0
      %694 = vmatpush1.bf16.msra.mxu0 0
      %695 = vmatprep.subr.bf16.mxu0 0
      %696 = vmatpush1.bf16.msra.mxu0 0
      %697 = vmatprep.subr.bf16.mxu0 0
      %698 = vmatpush1.bf16.msra.mxu0 0
      %699 = vmatprep.subr.bf16.mxu0 0
      %700 = vmatpush1.bf16.msra.mxu0 0
      %701 = vmatprep.subr.bf16.mxu0 0
      %702 = vmatpush1.bf16.msra.mxu0 0
      %703 = vmatprep.subr.bf16.mxu0 0
      %704 = vmatpush1.bf16.msra.mxu0 0
      %705 = vmatprep.subr.bf16.mxu0 0
      %706 = vmatpush1.bf16.msra.mxu0 0
      %707 = vmatprep.subr.bf16.mxu0 0
      %708 = vmatpush1.bf16.msra.mxu0 0
      %709 = vmatprep.subr.bf16.mxu0 0
      %710 = vmatpush1.bf16.msra.mxu0 0
      %711 = vmatprep.subr.bf16.mxu0 0
      %712 = vmatpush1.bf16.msra.mxu0 0
      %713 = vmatprep.subr.bf16.mxu0 0
      %714 = vmatpush1.bf16.msra.mxu0 0
      %715 = vmatprep.subr.bf16.mxu0 0
      %716 = vmatpush1.bf16.msra.mxu0 0
      %717 = vmatprep.mubr.bf16.mxu0 0
      %718 = vmatmul.mubr.bf16.gmra.mrb[0].mxu0 %v462
      %v719 = vpop.f32.mrb[0].mxu0
      %v720 = vadd.f32 0.0, %v719
      %v721 = vpop.f32.mrb[0].mxu0
      %v722 = vadd.f32 0.0, %v721
      %v723 = vpop.f32.mrb[0].mxu0
      %v724 = vadd.f32 0.0, %v723
      %v725 = vpop.f32.mrb[0].mxu0
      %v726 = vadd.f32 0.0, %v725
      %727 = vdwg.mxu0
      %728 = vmatprep.subr.bf16.mxu0 %v499
      %729 = vmatpush1.bf16.msra.mxu0 %v496
      %730 = vmatprep.subr.bf16.mxu0 0
      %731 = vmatpush1.bf16.msra.mxu0 0
      %732 = vmatprep.subr.bf16.mxu0 0
      %733 = vmatpush1.bf16.msra.mxu0 0
      %734 = vmatprep.subr.bf16.mxu0 0
      %735 = vmatpush1.bf16.msra.mxu0 0
      %736 = vmatprep.subr.bf16.mxu0 0
      %737 = vmatpush1.bf16.msra.mxu0 0
      %738 = vmatprep.subr.bf16.mxu0 0
      %739 = vmatpush1.bf16.msra.mxu0 0
      %740 = vmatprep.subr.bf16.mxu0 0
      %741 = vmatpush1.bf16.msra.mxu0 0
      %742 = vmatprep.subr.bf16.mxu0 0
      %743 = vmatpush1.bf16.msra.mxu0 0
      %744 = vmatprep.subr.bf16.mxu0 0
      %745 = vmatpush1.bf16.msra.mxu0 0
      %746 = vmatprep.subr.bf16.mxu0 0
      %747 = vmatpush1.bf16.msra.mxu0 0
      %748 = vmatprep.subr.bf16.mxu0 0
      %749 = vmatpush1.bf16.msra.mxu0 0
      %750 = vmatprep.subr.bf16.mxu0 0
      %751 = vmatpush1.bf16.msra.mxu0 0
      %752 = vmatprep.subr.bf16.mxu0 0
      %753 = vmatpush1.bf16.msra.mxu0 0
      %754 = vmatprep.subr.bf16.mxu0 0
      %755 = vmatpush1.bf16.msra.mxu0 0
      %756 = vmatprep.subr.bf16.mxu0 0
      %757 = vmatpush1.bf16.msra.mxu0 0
      %758 = vmatprep.subr.bf16.mxu0 0
      %759 = vmatpush1.bf16.msra.mxu0 0
      %760 = vmatprep.mubr.bf16.mxu0 0
      %761 = vmatmul.mubr.bf16.gmra.mrb[0].mxu0 %v462
      %v762 = vpop.f32.mrb[0].mxu0
      %v763 = vadd.f32 0.0, %v762
      %v764 = vpop.f32.mrb[0].mxu0
      %v765 = vadd.f32 0.0, %v764
      %v766 = vpop.f32.mrb[0].mxu0
      %v767 = vadd.f32 0.0, %v766
      %v768 = vpop.f32.mrb[0].mxu0
      %v769 = vadd.f32 0.0, %v768
      %770 = vdwg.mxu0
      %771 = vmatprep.subr.bf16.mxu0 %v505
      %772 = vmatpush1.bf16.msra.mxu0 %v502
      %773 = vmatprep.subr.bf16.mxu0 0
      %774 = vmatpush1.bf16.msra.mxu0 0
      %775 = vmatprep.subr.bf16.mxu0 0
      %776 = vmatpush1.bf16.msra.mxu0 0
      %777 = vmatprep.subr.bf16.mxu0 0
      %778 = vmatpush1.bf16.msra.mxu0 0
      %779 = vmatprep.subr.bf16.mxu0 0
      %780 = vmatpush1.bf16.msra.mxu0 0
      %781 = vmatprep.subr.bf16.mxu0 0
      %782 = vmatpush1.bf16.msra.mxu0 0
      %783 = vmatprep.subr.bf16.mxu0 0
      %784 = vmatpush1.bf16.msra.mxu0 0
      %785 = vmatprep.subr.bf16.mxu0 0
      %786 = vmatpush1.bf16.msra.mxu0 0
      %787 = vmatprep.subr.bf16.mxu0 0
      %788 = vmatpush1.bf16.msra.mxu0 0
      %789 = vmatprep.subr.bf16.mxu0 0
      %790 = vmatpush1.bf16.msra.mxu0 0
      %791 = vmatprep.subr.bf16.mxu0 0
      %792 = vmatpush1.bf16.msra.mxu0 0
      %793 = vmatprep.subr.bf16.mxu0 0
      %794 = vmatpush1.bf16.msra.mxu0 0
      %795 = vmatprep.subr.bf16.mxu0 0
      %796 = vmatpush1.bf16.msra.mxu0 0
      %797 = vmatprep.subr.bf16.mxu0 0
      %798 = vmatpush1.bf16.msra.mxu0 0
      %799 = vmatprep.subr.bf16.mxu0 0
      %800 = vmatpush1.bf16.msra.mxu0 0
      %801 = vmatprep.subr.bf16.mxu0 0
      %802 = vmatpush1.bf16.msra.mxu0 0
      %803 = vmatprep.mubr.bf16.mxu0 0
      %804 = vmatmul.mubr.bf16.gmra.mrb[0].mxu0 %v462
      %v805 = vpop.f32.mrb[0].mxu0
      %v806 = vadd.f32 0.0, %v805
      %v807 = vpop.f32.mrb[0].mxu0
      %v808 = vadd.f32 0.0, %v807
      %v809 = vpop.f32.mrb[0].mxu0
      %v810 = vadd.f32 0.0, %v809
      %v811 = vpop.f32.mrb[0].mxu0
      %v812 = vadd.f32 0.0, %v811
      %813 = vdwg.mxu0
      %814 = vmatprep.subr.bf16.mxu0 %v511
      %815 = vmatpush1.bf16.msra.mxu0 %v508
      %816 = vmatprep.subr.bf16.mxu0 0
      %817 = vmatpush1.bf16.msra.mxu0 0
      %818 = vmatprep.subr.bf16.mxu0 0
      %819 = vmatpush1.bf16.msra.mxu0 0
      %820 = vmatprep.subr.bf16.mxu0 0
      %821 = vmatpush1.bf16.msra.mxu0 0
      %822 = vmatprep.subr.bf16.mxu0 0
      %823 = vmatpush1.bf16.msra.mxu0 0
      %824 = vmatprep.subr.bf16.mxu0 0
      %825 = vmatpush1.bf16.msra.mxu0 0
      %826 = vmatprep.subr.bf16.mxu0 0
      %827 = vmatpush1.bf16.msra.mxu0 0
      %828 = vmatprep.subr.bf16.mxu0 0
      %829 = vmatpush1.bf16.msra.mxu0 0
      %830 = vmatprep.subr.bf16.mxu0 0
      %831 = vmatpush1.bf16.msra.mxu0 0
      %832 = vmatprep.subr.bf16.mxu0 0
      %833 = vmatpush1.bf16.msra.mxu0 0
      %834 = vmatprep.subr.bf16.mxu0 0
      %835 = vmatpush1.bf16.msra.mxu0 0
      %836 = vmatprep.subr.bf16.mxu0 0
      %837 = vmatpush1.bf16.msra.mxu0 0
      %838 = vmatprep.subr.bf16.mxu0 0
      %839 = vmatpush1.bf16.msra.mxu0 0
      %840 = vmatprep.subr.bf16.mxu0 0
      %841 = vmatpush1.bf16.msra.mxu0 0
      %842 = vmatprep.subr.bf16.mxu0 0
      %843 = vmatpush1.bf16.msra.mxu0 0
      %844 = vmatprep.subr.bf16.mxu0 0
      %845 = vmatpush1.bf16.msra.mxu0 0
      %846 = vmatprep.mubr.bf16.mxu0 0
      %847 = vmatmul.mubr.bf16.gmra.mrb[0].mxu0 %v462
      %v848 = vpop.f32.mrb[0].mxu0
      %v849 = vadd.f32 0.0, %v848
      %v850 = vpop.f32.mrb[0].mxu0
      %v851 = vadd.f32 0.0, %v850
      %v852 = vpop.f32.mrb[0].mxu0
      %v853 = vadd.f32 0.0, %v852
      %v854 = vpop.f32.mrb[0].mxu0
      %v855 = vadd.f32 0.0, %v854
      %856 = vdwg.mxu0
      %v857 = vadd.f32 %v373, %v548
      %v858 = vadd.f32 %v374, %v550
      %v859 = vadd.f32 %v375, %v591
      %v860 = vadd.f32 %v376, %v593
      %v861 = vadd.f32 %v377, %v634
      %v862 = vadd.f32 %v378, %v636
      %v863 = vadd.f32 %v379, %v677
      %v864 = vadd.f32 %v380, %v679
      %v865 = vadd.f32 %v381, %v720
      %v866 = vadd.f32 %v382, %v722
      %v867 = vadd.f32 %v383, %v763
      %v868 = vadd.f32 %v384, %v765
      %v869 = vadd.f32 %v385, %v806
      %v870 = vadd.f32 %v386, %v808
      %v871 = vadd.f32 %v387, %v849
      %v872 = vadd.f32 %v388, %v851
      %v873 = vadd.f32 %v389, %v552
      %v874 = vadd.f32 %v390, %v554
      %v875 = vadd.f32 %v391, %v595
      %v876 = vadd.f32 %v392, %v597
      %v877 = vadd.f32 %v393, %v638
      %v878 = vadd.f32 %v394, %v640
      %v879 = vadd.f32 %v395, %v681
      %v880 = vadd.f32 %v396, %v683
      %v881 = vadd.f32 %v397, %v724
      %v882 = vadd.f32 %v398, %v726
      %v883 = vadd.f32 %v399, %v767
      %v884 = vadd.f32 %v400, %v769
      %v885 = vadd.f32 %v401, %v810
      %v886 = vadd.f32 %v402, %v812
      %v887 = vadd.f32 %v403, %v853
      %v888 = vadd.f32 %v404, %v855
      %889 = vst [vmem:[#allocation2] sm:$0xff] %v857
      %890 = vst [vmem:[#allocation2 + $0x8] sm:$0xff] %v858
      %891 = vst [vmem:[#allocation2 + $0x10] sm:$0xff] %v859
      %892 = vst [vmem:[#allocation2 + $0x18] sm:$0xff] %v860
      %893 = vst [vmem:[#allocation2 + $0x20] sm:$0xff] %v861
      %894 = vst [vmem:[#allocation2 + $0x28] sm:$0xff] %v862
      %895 = vst [vmem:[#allocation2 + $0x30] sm:$0xff] %v863
      %896 = vst [vmem:[#allocation2 + $0x38] sm:$0xff] %v864
      %897 = vst [vmem:[#allocation2 + $0x40] sm:$0xff] %v865
      %898 = vst [vmem:[#allocation2 + $0x48] sm:$0xff] %v866
      %899 = vst [vmem:[#allocation2 + $0x50] sm:$0xff] %v867
      %900 = vst [vmem:[#allocation2 + $0x58] sm:$0xff] %v868
      %901 = vst [vmem:[#allocation2 + $0x60] sm:$0xff] %v869
      %902 = vst [vmem:[#allocation2 + $0x68] sm:$0xff] %v870
      %903 = vst [vmem:[#allocation2 + $0x70] sm:$0xff] %v871
      %904 = vst [vmem:[#allocation2 + $0x78] sm:$0xff] %v872
      %905 = vst [vmem:[#allocation2 + $0x80] sm:$0xff] %v873
      %906 = vst [vmem:[#allocation2 + $0x88] sm:$0xff] %v874
      %907 = vst [vmem:[#allocation2 + $0x90] sm:$0xff] %v875
      %908 = vst [vmem:[#allocation2 + $0x98] sm:$0xff] %v876
      %909 = vst [vmem:[#allocation2 + $0xa0] sm:$0xff] %v877
      %910 = vst [vmem:[#allocation2 + $0xa8] sm:$0xff] %v878
      %911 = vst [vmem:[#allocation2 + $0xb0] sm:$0xff] %v879
      %912 = vst [vmem:[#allocation2 + $0xb8] sm:$0xff] %v880
      %913 = vst [vmem:[#allocation2 + $0xc0] sm:$0xff] %v881
      %914 = vst [vmem:[#allocation2 + $0xc8] sm:$0xff] %v882
      %915 = vst [vmem:[#allocation2 + $0xd0] sm:$0xff] %v883
      %916 = vst [vmem:[#allocation2 + $0xd8] sm:$0xff] %v884
      %917 = vst [vmem:[#allocation2 + $0xe0] sm:$0xff] %v885
      %918 = vst [vmem:[#allocation2 + $0xe8] sm:$0xff] %v886
      %919 = vst [vmem:[#allocation2 + $0xf0] sm:$0xff] %v887
      %920 = vst [vmem:[#allocation2 + $0xf8] sm:$0xff] %v888
      %p921 = scmp.eq.s32.totalorder %s23, 2
      %p922 = scmp.eq.s32.totalorder %s24, 2
      %p923 = pnand %p921, %p922
      %p924 = pneg %p923
      // Predicated region
      $region37: #{generator_forward.19} parent=31 // pred_check
        _
      $region38: #{generator_forward.19} parent=31 // pred_check_branch
        %926 = sbr.rel (%p923) target = $region40
      $region39: #{generator_forward.19} parent=31 // pred_region
        %v927 = vld [vmem:[#allocation2] sm:$0xff]
        %v928 = vld [vmem:[#allocation2 + $0x8] sm:$0xff]
        %v929 = vld [vmem:[#allocation2 + $0x10] sm:$0xff]
        %v930 = vld [vmem:[#allocation2 + $0x18] sm:$0xff]
        %v931 = vld [vmem:[#allocation2 + $0x20] sm:$0xff]
        %v932 = vld [vmem:[#allocation2 + $0x28] sm:$0xff]
        %v933 = vld [vmem:[#allocation2 + $0x30] sm:$0xff]
        %v934 = vld [vmem:[#allocation2 + $0x38] sm:$0xff]
        %v935 = vld [vmem:[#allocation2 + $0x40] sm:$0xff]
        %v936 = vld [vmem:[#allocation2 + $0x48] sm:$0xff]
        %v937 = vld [vmem:[#allocation2 + $0x50] sm:$0xff]
        %v938 = vld [vmem:[#allocation2 + $0x58] sm:$0xff]
        %v939 = vld [vmem:[#allocation2 + $0x60] sm:$0xff]
        %v940 = vld [vmem:[#allocation2 + $0x68] sm:$0xff]
        %v941 = vld [vmem:[#allocation2 + $0x70] sm:$0xff]
        %v942 = vld [vmem:[#allocation2 + $0x78] sm:$0xff]
        %v943 = vld [vmem:[#allocation2 + $0x80] sm:$0xff]
        %v944 = vld [vmem:[#allocation2 + $0x88] sm:$0xff]
        %v945 = vld [vmem:[#allocation2 + $0x90] sm:$0xff]
        %v946 = vld [vmem:[#allocation2 + $0x98] sm:$0xff]
        %v947 = vld [vmem:[#allocation2 + $0xa0] sm:$0xff]
        %v948 = vld [vmem:[#allocation2 + $0xa8] sm:$0xff]
        %v949 = vld [vmem:[#allocation2 + $0xb0] sm:$0xff]
        %v950 = vld [vmem:[#allocation2 + $0xb8] sm:$0xff]
        %v951 = vld [vmem:[#allocation2 + $0xc0] sm:$0xff]
        %v952 = vld [vmem:[#allocation2 + $0xc8] sm:$0xff]
        %v953 = vld [vmem:[#allocation2 + $0xd0] sm:$0xff]
        %v954 = vld [vmem:[#allocation2 + $0xd8] sm:$0xff]
        %v955 = vld [vmem:[#allocation2 + $0xe0] sm:$0xff]
        %v956 = vld [vmem:[#allocation2 + $0xe8] sm:$0xff]
        %v957 = vld [vmem:[#allocation2 + $0xf0] sm:$0xff]
        %v958 = vld [vmem:[#allocation2 + $0xf8] sm:$0xff]
        %v959 = vld [vmem:[%s2] sm:$0xff]
        %v960 = vld [vmem:[%s2 + $0x8] sm:$0xff]
        %962 = vset.pattern.permute.xlu0 0
        %963 = vperm.xlu0 %962, %v959
        %v964 = vpop.permute.xlu0 %963
        %967 = vset.pattern.permute.xlu0 0
        %968 = vperm.xlu0 %967, %v960
        %v969 = vpop.permute.xlu0 %968
        %v971 = vadd.f32 %v927, %v964
        %v972 = vadd.f32 %v928, %v964
        %v973 = vadd.f32 %v929, %v964
        %v974 = vadd.f32 %v930, %v964
        %v975 = vadd.f32 %v931, %v964
        %v976 = vadd.f32 %v932, %v964
        %v977 = vadd.f32 %v933, %v964
        %v978 = vadd.f32 %v934, %v964
        %v979 = vadd.f32 %v935, %v964
        %v980 = vadd.f32 %v936, %v964
        %v981 = vadd.f32 %v937, %v964
        %v982 = vadd.f32 %v938, %v964
        %v983 = vadd.f32 %v939, %v964
        %v984 = vadd.f32 %v940, %v964
        %v985 = vadd.f32 %v941, %v964
        %v986 = vadd.f32 %v942, %v964
        %v987 = vadd.f32 %v943, %v969
        %v988 = vadd.f32 %v944, %v969
        %v989 = vadd.f32 %v945, %v969
        %v990 = vadd.f32 %v946, %v969
        %v991 = vadd.f32 %v947, %v969
        %v992 = vadd.f32 %v948, %v969
        %v993 = vadd.f32 %v949, %v969
        %v994 = vadd.f32 %v950, %v969
        %v995 = vadd.f32 %v951, %v969
        %v996 = vadd.f32 %v952, %v969
        %v997 = vadd.f32 %v953, %v969
        %v998 = vadd.f32 %v954, %v969
        %v999 = vadd.f32 %v955, %v969
        %v1000 = vadd.f32 %v956, %v969
        %v1001 = vadd.f32 %v957, %v969
        %v1002 = vadd.f32 %v958, %v969
        %v1003 = vadd.f32 %v971, %v972
        %v1004 = vadd.f32 %v1003, %v973
        %v1005 = vadd.f32 %v1004, %v974
        %v1006 = vadd.f32 %v1005, %v975
        %v1007 = vadd.f32 %v1006, %v976
        %v1008 = vadd.f32 %v1007, %v977
        %v1009 = vadd.f32 %v1008, %v978
        %v1010 = vadd.f32 %v1009, %v979
        %v1011 = vadd.f32 %v1010, %v980
        %v1012 = vadd.f32 %v1011, %v981
        %v1013 = vadd.f32 %v1012, %v982
        %v1014 = vadd.f32 %v1013, %v983
        %v1015 = vadd.f32 %v1014, %v984
        %v1016 = vadd.f32 %v1015, %v985
        %v1017 = vadd.f32 %v1016, %v986
        %1018 = vadd.xlane.f32.xlu0 %v1017
        %v1019 = vpop.xlane.xlu0 %1018
        %v1020 = vadd.f32 %v987, %v988
        %v1021 = vadd.f32 %v1020, %v989
        %v1022 = vadd.f32 %v1021, %v990
        %v1023 = vadd.f32 %v1022, %v991
        %v1024 = vadd.f32 %v1023, %v992
        %v1025 = vadd.f32 %v1024, %v993
        %v1026 = vadd.f32 %v1025, %v994
        %v1027 = vadd.f32 %v1026, %v995
        %v1028 = vadd.f32 %v1027, %v996
        %v1029 = vadd.f32 %v1028, %v997
        %v1030 = vadd.f32 %v1029, %v998
        %v1031 = vadd.f32 %v1030, %v999
        %v1032 = vadd.f32 %v1031, %v1000
        %v1033 = vadd.f32 %v1032, %v1001
        %v1034 = vadd.f32 %v1033, %v1002
        %1035 = vadd.xlane.f32.xlu0 %v1034
        %v1036 = vpop.xlane.xlu0 %1035
        %vm1037 = vcmask 7168
        %1038 = vst.msk [vmem:[%s328] sm:$0xff] %vm1037, %v1019
        %1039 = vst.msk [vmem:[%s328 + $0x8] sm:$0xff] %vm1037, %v1036
        %v1040 = vmul.f32 %v971, %v971
        %v1041 = vmul.f32 %v972, %v972
        %v1042 = vmul.f32 %v973, %v973
        %v1043 = vmul.f32 %v974, %v974
        %v1044 = vmul.f32 %v975, %v975
        %v1045 = vmul.f32 %v976, %v976
        %v1046 = vmul.f32 %v977, %v977
        %v1047 = vmul.f32 %v978, %v978
        %v1048 = vmul.f32 %v979, %v979
        %v1049 = vmul.f32 %v980, %v980
        %v1050 = vmul.f32 %v981, %v981
        %v1051 = vmul.f32 %v982, %v982
        %v1052 = vmul.f32 %v983, %v983
        %v1053 = vmul.f32 %v984, %v984
        %v1054 = vmul.f32 %v985, %v985
        %v1055 = vmul.f32 %v986, %v986
        %v1056 = vmul.f32 %v987, %v987
        %v1057 = vmul.f32 %v988, %v988
        %v1058 = vmul.f32 %v989, %v989
        %v1059 = vmul.f32 %v990, %v990
        %v1060 = vmul.f32 %v991, %v991
        %v1061 = vmul.f32 %v992, %v992
        %v1062 = vmul.f32 %v993, %v993
        %v1063 = vmul.f32 %v994, %v994
        %v1064 = vmul.f32 %v995, %v995
        %v1065 = vmul.f32 %v996, %v996
        %v1066 = vmul.f32 %v997, %v997
        %v1067 = vmul.f32 %v998, %v998
        %v1068 = vmul.f32 %v999, %v999
        %v1069 = vmul.f32 %v1000, %v1000
        %v1070 = vmul.f32 %v1001, %v1001
        %v1071 = vmul.f32 %v1002, %v1002
        %v1072 = vadd.f32 %v1040, %v1041
        %v1073 = vadd.f32 %v1072, %v1042
        %v1074 = vadd.f32 %v1073, %v1043
        %v1075 = vadd.f32 %v1074, %v1044
        %v1076 = vadd.f32 %v1075, %v1045
        %v1077 = vadd.f32 %v1076, %v1046
        %v1078 = vadd.f32 %v1077, %v1047
        %v1079 = vadd.f32 %v1078, %v1048
        %v1080 = vadd.f32 %v1079, %v1049
        %v1081 = vadd.f32 %v1080, %v1050
        %v1082 = vadd.f32 %v1081, %v1051
        %v1083 = vadd.f32 %v1082, %v1052
        %v1084 = vadd.f32 %v1083, %v1053
        %v1085 = vadd.f32 %v1084, %v1054
        %v1086 = vadd.f32 %v1085, %v1055
        %1087 = vadd.xlane.f32.xlu0 %v1086
        %v1088 = vpop.xlane.xlu0 %1087
        %v1089 = vadd.f32 %v1056, %v1057
        %v1090 = vadd.f32 %v1089, %v1058
        %v1091 = vadd.f32 %v1090, %v1059
        %v1092 = vadd.f32 %v1091, %v1060
        %v1093 = vadd.f32 %v1092, %v1061
        %v1094 = vadd.f32 %v1093, %v1062
        %v1095 = vadd.f32 %v1094, %v1063
        %v1096 = vadd.f32 %v1095, %v1064
        %v1097 = vadd.f32 %v1096, %v1065
        %v1098 = vadd.f32 %v1097, %v1066
        %v1099 = vadd.f32 %v1098, %v1067
        %v1100 = vadd.f32 %v1099, %v1068
        %v1101 = vadd.f32 %v1100, %v1069
        %v1102 = vadd.f32 %v1101, %v1070
        %v1103 = vadd.f32 %v1102, %v1071
        %1104 = vadd.xlane.f32.xlu0 %v1103
        %v1105 = vpop.xlane.xlu0 %1104
        %1106 = vst.msk [vmem:[%s333] sm:$0xff] %vm1037, %v1088
        %1107 = vst.msk [vmem:[%s333 + $0x8] sm:$0xff] %vm1037, %v1105
        %v1108 = vpack.c.bf16 %v987, %v971
        %v1109 = vpack.c.bf16 %v988, %v972
        %v1110 = vpack.c.bf16 %v989, %v973
        %v1111 = vpack.c.bf16 %v990, %v974
        %v1112 = vpack.c.bf16 %v991, %v975
        %v1113 = vpack.c.bf16 %v992, %v976
        %v1114 = vpack.c.bf16 %v993, %v977
        %v1115 = vpack.c.bf16 %v994, %v978
        %v1116 = vpack.c.bf16 %v995, %v979
        %v1117 = vpack.c.bf16 %v996, %v980
        %v1118 = vpack.c.bf16 %v997, %v981
        %v1119 = vpack.c.bf16 %v998, %v982
        %v1120 = vpack.c.bf16 %v999, %v983
        %v1121 = vpack.c.bf16 %v1000, %v984
        %v1122 = vpack.c.bf16 %v1001, %v985
        %v1123 = vpack.c.bf16 %v1002, %v986
        %v1140 = vunpack.c.l.b16 %v1108
        %v1141 = vunpack.c.l.b16 %v1109
        %v1142 = vunpack.c.l.b16 %v1110
        %v1143 = vunpack.c.l.b16 %v1111
        %v1144 = vunpack.c.l.b16 %v1112
        %v1145 = vunpack.c.l.b16 %v1113
        %v1146 = vunpack.c.l.b16 %v1114
        %v1147 = vunpack.c.l.b16 %v1115
        %v1148 = vunpack.c.l.b16 %v1116
        %v1149 = vunpack.c.l.b16 %v1117
        %v1150 = vunpack.c.l.b16 %v1118
        %v1151 = vunpack.c.l.b16 %v1119
        %v1152 = vunpack.c.l.b16 %v1120
        %v1153 = vunpack.c.l.b16 %v1121
        %v1154 = vunpack.c.l.b16 %v1122
        %v1155 = vunpack.c.l.b16 %v1123
        %v1156 = vunpack.c.h.b16 %v1108
        %v1157 = vunpack.c.h.b16 %v1109
        %v1158 = vunpack.c.h.b16 %v1110
        %v1159 = vunpack.c.h.b16 %v1111
        %v1160 = vunpack.c.h.b16 %v1112
        %v1161 = vunpack.c.h.b16 %v1113
        %v1162 = vunpack.c.h.b16 %v1114
        %v1163 = vunpack.c.h.b16 %v1115
        %v1164 = vunpack.c.h.b16 %v1116
        %v1165 = vunpack.c.h.b16 %v1117
        %v1166 = vunpack.c.h.b16 %v1118
        %v1167 = vunpack.c.h.b16 %v1119
        %v1168 = vunpack.c.h.b16 %v1120
        %v1169 = vunpack.c.h.b16 %v1121
        %v1170 = vunpack.c.h.b16 %v1122
        %v1171 = vunpack.c.h.b16 %v1123
        %v1172 = vpack.c.b16 %v1141, %v1140
        %v1173 = vpack.c.b16 %v1143, %v1142
        %v1174 = vpack.c.b16 %v1145, %v1144
        %v1175 = vpack.c.b16 %v1147, %v1146
        %v1176 = vpack.c.b16 %v1149, %v1148
        %v1177 = vpack.c.b16 %v1151, %v1150
        %v1178 = vpack.c.b16 %v1153, %v1152
        %v1179 = vpack.c.b16 %v1155, %v1154
        %v1180 = vpack.c.b16 %v1157, %v1156
        %v1181 = vpack.c.b16 %v1159, %v1158
        %v1182 = vpack.c.b16 %v1161, %v1160
        %v1183 = vpack.c.b16 %v1163, %v1162
        %v1184 = vpack.c.b16 %v1165, %v1164
        %v1185 = vpack.c.b16 %v1167, %v1166
        %v1186 = vpack.c.b16 %v1169, %v1168
        %v1187 = vpack.c.b16 %v1171, %v1170
        %1204 = vst [vmem:[%s322] sm:$0xff] %v1172
        %1205 = vst [vmem:[%s322 + $0x8] sm:$0xff] %v1173
        %1206 = vst [vmem:[%s322 + $0x10] sm:$0xff] %v1174
        %1207 = vst [vmem:[%s322 + $0x18] sm:$0xff] %v1175
        %1208 = vst [vmem:[%s322 + $0x20] sm:$0xff] %v1176
        %1209 = vst [vmem:[%s322 + $0x28] sm:$0xff] %v1177
        %1210 = vst [vmem:[%s322 + $0x30] sm:$0xff] %v1178
        %1211 = vst [vmem:[%s322 + $0x38] sm:$0xff] %v1179
        %1212 = vst [vmem:[%s322 + $0x40] sm:$0xff] %v1180
        %1213 = vst [vmem:[%s322 + $0x48] sm:$0xff] %v1181
        %1214 = vst [vmem:[%s322 + $0x50] sm:$0xff] %v1182
        %1215 = vst [vmem:[%s322 + $0x58] sm:$0xff] %v1183
        %1216 = vst [vmem:[%s322 + $0x60] sm:$0xff] %v1184
        %1217 = vst [vmem:[%s322 + $0x68] sm:$0xff] %v1185
        %1218 = vst [vmem:[%s322 + $0x70] sm:$0xff] %v1186
        %1219 = vst [vmem:[%s322 + $0x78] sm:$0xff] %v1187
      $region40: #{generator_forward.19} parent=31 // pred_fallthru
        _
      %s1220 = smul.u32 16, %s22
      %p1221 = scmp.lt.s32.totalorder %s1220, 15
      %s1222 = scalar_select %p1221, %s1220, 15
      %s1223 = smul.addr %s1222, 4
      %s1224 = scalar_lea.vmem %s3, %s1223
      %p1225 = scmp.lt.s32.totalorder %s22, 0
      %s1226 = scalar_select %p1225, %s22, 0
      %s1227 = smul.addr %s1226, 2
      %s1228 = smul.addr %s1227, 8
      %s1229 = scalar_lea.vmem %s4, %s1228
      %p1230 = scmp.lt.s32.totalorder %s22, 0
      %s1231 = scalar_select %p1230, %s22, 0
      %s1232 = smul.addr %s1231, 2
      %s1233 = smul.addr %s1232, 8
      %s1234 = scalar_lea.vmem %s5, %s1233
      // Predicated region
      $region41: #{generator_forward.19} parent=31 // pred_check
        %p1235 = pneg %p133
      $region42: #{generator_forward.19} parent=31 // pred_check_branch
        %1237 = sbr.rel (%p1235) target = $region44
      $region43: #{generator_forward.19} parent=31 // pred_region
        %s1238 = smul.u32 16, %s22
      $region44: #{generator_forward.19} parent=31 // pred_fallthru
        _
      // Predicated region
      $region45: #{generator_forward.19} parent=31 // pred_check
        %p1239 = pneg %p159
      $region46: #{generator_forward.19} parent=31 // pred_check_branch
        %1241 = sbr.rel (%p1239) target = $region48
      $region47: #{generator_forward.19} parent=31 // pred_region
        _
      $region48: #{generator_forward.19} parent=31 // pred_fallthru
        _
      // Predicated region
      $region49: #{generator_forward.19} parent=31 // pred_check
        %p1242 = pneg %p185
      $region50: #{generator_forward.19} parent=31 // pred_check_branch
        %1244 = sbr.rel (%p1242) target = $region52
      $region51: #{generator_forward.19} parent=31 // pred_region
        _
      $region52: #{generator_forward.19} parent=31 // pred_fallthru
        _
      // Predicated region
      $region53: #{generator_forward.19} parent=31 // pred_check
        %p1245 = pneg %p133
      $region54: #{generator_forward.19} parent=31 // pred_check_branch
        %1247 = sbr.rel (%p1245) target = $region56
      $region55: #{generator_forward.19} parent=31 // pred_region
        %s1248 = smul.u32 16, %s22
        %p1249 = scmp.lt.s32.totalorder %s1248, 15
        %s1250 = scalar_select %p1249, %s1248, 15
        %s1251 = smul.addr %s1250, 4
        %s1252 = scalar_lea.vmem %s3, %s1251
      $region56: #{generator_forward.19} parent=31 // pred_fallthru
        _
      // Predicated region
      $region57: #{generator_forward.19} parent=31 // pred_check
        %p1253 = pneg %p159
      $region58: #{generator_forward.19} parent=31 // pred_check_branch
        %1255 = sbr.rel (%p1253) target = $region60
      $region59: #{generator_forward.19} parent=31 // pred_region
        %p1256 = scmp.lt.s32.totalorder %s22, 0
        %s1257 = scalar_select %p1256, %s22, 0
        %s1258 = smul.addr %s1257, 2
        %s1259 = smul.addr %s1258, 8
        %s1260 = scalar_lea.vmem %s4, %s1259
      $region60: #{generator_forward.19} parent=31 // pred_fallthru
        _
      // Predicated region
      $region61: #{generator_forward.19} parent=31 // pred_check
        %p1261 = pneg %p185
      $region62: #{generator_forward.19} parent=31 // pred_check_branch
        %1263 = sbr.rel (%p1261) target = $region64
      $region63: #{generator_forward.19} parent=31 // pred_region
        %p1264 = scmp.lt.s32.totalorder %s22, 0
        %s1265 = scalar_select %p1264, %s22, 0
        %s1266 = smul.addr %s1265, 2
        %s1267 = smul.addr %s1266, 8
        %s1268 = scalar_lea.vmem %s5, %s1267
      $region64: #{generator_forward.19} parent=31 // pred_fallthru
        _
    $region32: #{generator_forward.19} parent=5 // pred_fallthru
      _
    %p1269 = scmp.le.s32.totalorder 2, %s12
    // Predicated region
    $region65: #{generator_forward.19} parent=5 // pred_check
      %p1270 = pneg %p1269
    $region66: #{generator_forward.19} parent=5 // pred_check_branch
      %1272 = sbr.rel (%p1270) target = $region68
    $region67: #{generator_forward.19} parent=5 // pred_region
      %s1273 = ssub.s32 %s12, 2
    $region68: #{generator_forward.19} parent=5 // pred_fallthru
      _
  $region6: #{generator_forward.19} parent=0 // loop_footer
    %s16 = sadd.s32 1, %s12
  $region7: #{generator_forward.19} parent=0 // loop_footer_branch
    %11 = sbr.rel target = $region3
  $region8: #{generator_forward.19} parent=0 // loop_exit
    _

// kernel: generator_forward.20
$region0: #{generator_forward.20}
  #allocation0 [shape = 'u32[]', space=smem, size = 0x4, offset = 0x4, fixed_abs, tag = 'smem constant byte address 0x4 - core index']
  #allocation1 [shape = 'u32[144,128]{1,0:T(1,128)}', space=vmem, size = 0x12000, scoped, tag = 'internal scratch']
  %s0 = inlined_call_operand.vmem [shape: bf16[16,2048], index: 0, kind: input, shape index: {}]
  %s1 = inlined_call_operand.vmem [shape: f32[16,1], index: 1, kind: input, shape index: {}]
  %s2 = inlined_call_operand.vmem [shape: f32[16,1], index: 2, kind: input, shape index: {}]
  %s3 = inlined_call_operand.vmem [shape: bf16[16,2048], index: 3, kind: output, shape index: {}]
  %s4 = sld [smem:[#allocation0]]
  $region22: #{generator_forward.20} parent=0
    _
  %s6 = ssub.s32 1, %s4
  %s7 = scalar_select 0, %s6, %s4
  // Predicated region
  $region2: #{generator_forward.20} parent=0 // pred_check
    _
  $region3: #{generator_forward.20} parent=0 // pred_check_branch
    %9 = sbr.rel (0) target = $region5
  $region4: #{generator_forward.20} parent=0 // pred_region
    _
  $region5: #{generator_forward.20} parent=0 // pred_fallthru
    _
  // Predicated region
  $region6: #{generator_forward.20} parent=0 // pred_check
    _
  $region7: #{generator_forward.20} parent=0 // pred_check_branch
    %11 = sbr.rel (0) target = $region9
  $region8: #{generator_forward.20} parent=0 // pred_region
    _
  $region9: #{generator_forward.20} parent=0 // pred_fallthru
    _
  // Predicated region
  $region10: #{generator_forward.20} parent=0 // pred_check
    _
  $region11: #{generator_forward.20} parent=0 // pred_check_branch
    %13 = sbr.rel (0) target = $region13
  $region12: #{generator_forward.20} parent=0 // pred_region
    _
  $region13: #{generator_forward.20} parent=0 // pred_fallthru
    _
  %v14 = vld [vmem:[%s0] sm:$0xff]
  %v15 = vld [vmem:[%s0 + $0x8] sm:$0xff]
  %v16 = vld [vmem:[%s0 + $0x10] sm:$0xff]
  %v17 = vld [vmem:[%s0 + $0x18] sm:$0xff]
  %v18 = vld [vmem:[%s0 + $0x20] sm:$0xff]
  %v19 = vld [vmem:[%s0 + $0x28] sm:$0xff]
  %v20 = vld [vmem:[%s0 + $0x30] sm:$0xff]
  %v21 = vld [vmem:[%s0 + $0x38] sm:$0xff]
  %v22 = vld [vmem:[%s0 + $0x40] sm:$0xff]
  %v23 = vld [vmem:[%s0 + $0x48] sm:$0xff]
  %v24 = vld [vmem:[%s0 + $0x50] sm:$0xff]
  %v25 = vld [vmem:[%s0 + $0x58] sm:$0xff]
  %v26 = vld [vmem:[%s0 + $0x60] sm:$0xff]
  %v27 = vld [vmem:[%s0 + $0x68] sm:$0xff]
  %v28 = vld [vmem:[%s0 + $0x70] sm:$0xff]
  %v29 = vld [vmem:[%s0 + $0x78] sm:$0xff]
  %v30 = vunpack.c.l.bf16 %v14
  %v31 = vunpack.c.h.bf16 %v14
  %v32 = vunpack.c.l.bf16 %v15
  %v33 = vunpack.c.h.bf16 %v15
  %v34 = vunpack.c.l.bf16 %v16
  %v35 = vunpack.c.h.bf16 %v16
  %v36 = vunpack.c.l.bf16 %v17
  %v37 = vunpack.c.h.bf16 %v17
  %v38 = vunpack.c.l.bf16 %v18
  %v39 = vunpack.c.h.bf16 %v18
  %v40 = vunpack.c.l.bf16 %v19
  %v41 = vunpack.c.h.bf16 %v19
  %v42 = vunpack.c.l.bf16 %v20
  %v43 = vunpack.c.h.bf16 %v20
  %v44 = vunpack.c.l.bf16 %v21
  %v45 = vunpack.c.h.bf16 %v21
  %v46 = vunpack.c.l.bf16 %v22
  %v47 = vunpack.c.h.bf16 %v22
  %v48 = vunpack.c.l.bf16 %v23
  %v49 = vunpack.c.h.bf16 %v23
  %v50 = vunpack.c.l.bf16 %v24
  %v51 = vunpack.c.h.bf16 %v24
  %v52 = vunpack.c.l.bf16 %v25
  %v53 = vunpack.c.h.bf16 %v25
  %v54 = vunpack.c.l.bf16 %v26
  %v55 = vunpack.c.h.bf16 %v26
  %v56 = vunpack.c.l.bf16 %v27
  %v57 = vunpack.c.h.bf16 %v27
  %v58 = vunpack.c.l.bf16 %v28
  %v59 = vunpack.c.h.bf16 %v28
  %v60 = vunpack.c.l.bf16 %v29
  %v61 = vunpack.c.h.bf16 %v29
  %v62 = vld [vmem:[%s1] sm:$0xff]
  %v63 = vld [vmem:[%s1 + $0x8] sm:$0xff]
  %65 = vset.pattern.permute.xlu0 0
  %66 = vperm.xlu0 %65, %v62
  %v67 = vpop.permute.xlu0 %66
  %70 = vset.pattern.permute.xlu0 0
  %71 = vperm.xlu0 %70, %v63
  %v72 = vpop.permute.xlu0 %71
  %v74 = vmul.f32 %v30, %v67
  %v75 = vmul.f32 %v31, %v67
  %v76 = vmul.f32 %v32, %v67
  %v77 = vmul.f32 %v33, %v67
  %v78 = vmul.f32 %v34, %v67
  %v79 = vmul.f32 %v35, %v67
  %v80 = vmul.f32 %v36, %v67
  %v81 = vmul.f32 %v37, %v67
  %v82 = vmul.f32 %v38, %v67
  %v83 = vmul.f32 %v39, %v67
  %v84 = vmul.f32 %v40, %v67
  %v85 = vmul.f32 %v41, %v67
  %v86 = vmul.f32 %v42, %v67
  %v87 = vmul.f32 %v43, %v67
  %v88 = vmul.f32 %v44, %v67
  %v89 = vmul.f32 %v45, %v67
  %v90 = vmul.f32 %v46, %v72
  %v91 = vmul.f32 %v47, %v72
  %v92 = vmul.f32 %v48, %v72
  %v93 = vmul.f32 %v49, %v72
  %v94 = vmul.f32 %v50, %v72
  %v95 = vmul.f32 %v51, %v72
  %v96 = vmul.f32 %v52, %v72
  %v97 = vmul.f32 %v53, %v72
  %v98 = vmul.f32 %v54, %v72
  %v99 = vmul.f32 %v55, %v72
  %v100 = vmul.f32 %v56, %v72
  %v101 = vmul.f32 %v57, %v72
  %v102 = vmul.f32 %v58, %v72
  %v103 = vmul.f32 %v59, %v72
  %v104 = vmul.f32 %v60, %v72
  %v105 = vmul.f32 %v61, %v72
  %v106 = vld [vmem:[%s2] sm:$0xff]
  %v107 = vld [vmem:[%s2 + $0x8] sm:$0xff]
  %109 = vset.pattern.permute.xlu0 0
  %110 = vperm.xlu0 %109, %v106
  %v111 = vpop.permute.xlu0 %110
  %114 = vset.pattern.permute.xlu0 0
  %115 = vperm.xlu0 %114, %v107
  %v116 = vpop.permute.xlu0 %115
  %v118 = vadd.f32 %v74, %v111
  %v119 = vadd.f32 %v75, %v111
  %v120 = vadd.f32 %v76, %v111
  %v121 = vadd.f32 %v77, %v111
  %v122 = vadd.f32 %v78, %v111
  %v123 = vadd.f32 %v79, %v111
  %v124 = vadd.f32 %v80, %v111
  %v125 = vadd.f32 %v81, %v111
  %v126 = vadd.f32 %v82, %v111
  %v127 = vadd.f32 %v83, %v111
  %v128 = vadd.f32 %v84, %v111
  %v129 = vadd.f32 %v85, %v111
  %v130 = vadd.f32 %v86, %v111
  %v131 = vadd.f32 %v87, %v111
  %v132 = vadd.f32 %v88, %v111
  %v133 = vadd.f32 %v89, %v111
  %v134 = vadd.f32 %v90, %v116
  %v135 = vadd.f32 %v91, %v116
  %v136 = vadd.f32 %v92, %v116
  %v137 = vadd.f32 %v93, %v116
  %v138 = vadd.f32 %v94, %v116
  %v139 = vadd.f32 %v95, %v116
  %v140 = vadd.f32 %v96, %v116
  %v141 = vadd.f32 %v97, %v116
  %v142 = vadd.f32 %v98, %v116
  %v143 = vadd.f32 %v99, %v116
  %v144 = vadd.f32 %v100, %v116
  %v145 = vadd.f32 %v101, %v116
  %v146 = vadd.f32 %v102, %v116
  %v147 = vadd.f32 %v103, %v116
  %v148 = vadd.f32 %v104, %v116
  %v149 = vadd.f32 %v105, %v116
  %vm150 = vcmp.ge.f32.partialorder %v118, 0.0
  %vm151 = vcmp.ge.f32.partialorder %v119, 0.0
  %vm152 = vcmp.ge.f32.partialorder %v120, 0.0
  %vm153 = vcmp.ge.f32.partialorder %v121, 0.0
  %vm154 = vcmp.ge.f32.partialorder %v122, 0.0
  %vm155 = vcmp.ge.f32.partialorder %v123, 0.0
  %vm156 = vcmp.ge.f32.partialorder %v124, 0.0
  %vm157 = vcmp.ge.f32.partialorder %v125, 0.0
  %vm158 = vcmp.ge.f32.partialorder %v126, 0.0
  %vm159 = vcmp.ge.f32.partialorder %v127, 0.0
  %vm160 = vcmp.ge.f32.partialorder %v128, 0.0
  %vm161 = vcmp.ge.f32.partialorder %v129, 0.0
  %vm162 = vcmp.ge.f32.partialorder %v130, 0.0
  %vm163 = vcmp.ge.f32.partialorder %v131, 0.0
  %vm164 = vcmp.ge.f32.partialorder %v132, 0.0
  %vm165 = vcmp.ge.f32.partialorder %v133, 0.0
  %vm166 = vcmp.ge.f32.partialorder %v134, 0.0
  %vm167 = vcmp.ge.f32.partialorder %v135, 0.0
  %vm168 = vcmp.ge.f32.partialorder %v136, 0.0
  %vm169 = vcmp.ge.f32.partialorder %v137, 0.0
  %vm170 = vcmp.ge.f32.partialorder %v138, 0.0
  %vm171 = vcmp.ge.f32.partialorder %v139, 0.0
  %vm172 = vcmp.ge.f32.partialorder %v140, 0.0
  %vm173 = vcmp.ge.f32.partialorder %v141, 0.0
  %vm174 = vcmp.ge.f32.partialorder %v142, 0.0
  %vm175 = vcmp.ge.f32.partialorder %v143, 0.0
  %vm176 = vcmp.ge.f32.partialorder %v144, 0.0
  %vm177 = vcmp.ge.f32.partialorder %v145, 0.0
  %vm178 = vcmp.ge.f32.partialorder %v146, 0.0
  %vm179 = vcmp.ge.f32.partialorder %v147, 0.0
  %vm180 = vcmp.ge.f32.partialorder %v148, 0.0
  %vm181 = vcmp.ge.f32.partialorder %v149, 0.0
  %v182 = vmul.f32 %v118, 0.2
  %v183 = vmul.f32 %v119, 0.2
  %v184 = vmul.f32 %v120, 0.2
  %v185 = vmul.f32 %v121, 0.2
  %v186 = vmul.f32 %v122, 0.2
  %v187 = vmul.f32 %v123, 0.2
  %v188 = vmul.f32 %v124, 0.2
  %v189 = vmul.f32 %v125, 0.2
  %v190 = vmul.f32 %v126, 0.2
  %v191 = vmul.f32 %v127, 0.2
  %v192 = vmul.f32 %v128, 0.2
  %v193 = vmul.f32 %v129, 0.2
  %v194 = vmul.f32 %v130, 0.2
  %v195 = vmul.f32 %v131, 0.2
  %v196 = vmul.f32 %v132, 0.2
  %v197 = vmul.f32 %v133, 0.2
  %v198 = vmul.f32 %v134, 0.2
  %v199 = vmul.f32 %v135, 0.2
  %v200 = vmul.f32 %v136, 0.2
  %v201 = vmul.f32 %v137, 0.2
  %v202 = vmul.f32 %v138, 0.2
  %v203 = vmul.f32 %v139, 0.2
  %v204 = vmul.f32 %v140, 0.2
  %v205 = vmul.f32 %v141, 0.2
  %v206 = vmul.f32 %v142, 0.2
  %v207 = vmul.f32 %v143, 0.2
  %v208 = vmul.f32 %v144, 0.2
  %v209 = vmul.f32 %v145, 0.2
  %v210 = vmul.f32 %v146, 0.2
  %v211 = vmul.f32 %v147, 0.2
  %v212 = vmul.f32 %v148, 0.2
  %v213 = vmul.f32 %v149, 0.2
  %v214 = vsel %vm150, %v118, %v182
  %v215 = vsel %vm151, %v119, %v183
  %v216 = vsel %vm152, %v120, %v184
  %v217 = vsel %vm153, %v121, %v185
  %v218 = vsel %vm154, %v122, %v186
  %v219 = vsel %vm155, %v123, %v187
  %v220 = vsel %vm156, %v124, %v188
  %v221 = vsel %vm157, %v125, %v189
  %v222 = vsel %vm158, %v126, %v190
  %v223 = vsel %vm159, %v127, %v191
  %v224 = vsel %vm160, %v128, %v192
  %v225 = vsel %vm161, %v129, %v193
  %v226 = vsel %vm162, %v130, %v194
  %v227 = vsel %vm163, %v131, %v195
  %v228 = vsel %vm164, %v132, %v196
  %v229 = vsel %vm165, %v133, %v197
  %v230 = vsel %vm166, %v134, %v198
  %v231 = vsel %vm167, %v135, %v199
  %v232 = vsel %vm168, %v136, %v200
  %v233 = vsel %vm169, %v137, %v201
  %v234 = vsel %vm170, %v138, %v202
  %v235 = vsel %vm171, %v139, %v203
  %v236 = vsel %vm172, %v140, %v204
  %v237 = vsel %vm173, %v141, %v205
  %v238 = vsel %vm174, %v142, %v206
  %v239 = vsel %vm175, %v143, %v207
  %v240 = vsel %vm176, %v144, %v208
  %v241 = vsel %vm177, %v145, %v209
  %v242 = vsel %vm178, %v146, %v210
  %v243 = vsel %vm179, %v147, %v211
  %v244 = vsel %vm180, %v148, %v212
  %v245 = vsel %vm181, %v149, %v213
  %v246 = vpack.c.bf16 %v230, %v214
  %v247 = vpack.c.bf16 %v231, %v215
  %v248 = vpack.c.bf16 %v232, %v216
  %v249 = vpack.c.bf16 %v233, %v217
  %v250 = vpack.c.bf16 %v234, %v218
  %v251 = vpack.c.bf16 %v235, %v219
  %v252 = vpack.c.bf16 %v236, %v220
  %v253 = vpack.c.bf16 %v237, %v221
  %v254 = vpack.c.bf16 %v238, %v222
  %v255 = vpack.c.bf16 %v239, %v223
  %v256 = vpack.c.bf16 %v240, %v224
  %v257 = vpack.c.bf16 %v241, %v225
  %v258 = vpack.c.bf16 %v242, %v226
  %v259 = vpack.c.bf16 %v243, %v227
  %v260 = vpack.c.bf16 %v244, %v228
  %v261 = vpack.c.bf16 %v245, %v229
  %v278 = vunpack.c.l.b16 %v246
  %v279 = vunpack.c.l.b16 %v247
  %v280 = vunpack.c.l.b16 %v248
  %v281 = vunpack.c.l.b16 %v249
  %v282 = vunpack.c.l.b16 %v250
  %v283 = vunpack.c.l.b16 %v251
  %v284 = vunpack.c.l.b16 %v252
  %v285 = vunpack.c.l.b16 %v253
  %v286 = vunpack.c.l.b16 %v254
  %v287 = vunpack.c.l.b16 %v255
  %v288 = vunpack.c.l.b16 %v256
  %v289 = vunpack.c.l.b16 %v257
  %v290 = vunpack.c.l.b16 %v258
  %v291 = vunpack.c.l.b16 %v259
  %v292 = vunpack.c.l.b16 %v260
  %v293 = vunpack.c.l.b16 %v261
  %v294 = vunpack.c.h.b16 %v246
  %v295 = vunpack.c.h.b16 %v247
  %v296 = vunpack.c.h.b16 %v248
  %v297 = vunpack.c.h.b16 %v249
  %v298 = vunpack.c.h.b16 %v250
  %v299 = vunpack.c.h.b16 %v251
  %v300 = vunpack.c.h.b16 %v252
  %v301 = vunpack.c.h.b16 %v253
  %v302 = vunpack.c.h.b16 %v254
  %v303 = vunpack.c.h.b16 %v255
  %v304 = vunpack.c.h.b16 %v256
  %v305 = vunpack.c.h.b16 %v257
  %v306 = vunpack.c.h.b16 %v258
  %v307 = vunpack.c.h.b16 %v259
  %v308 = vunpack.c.h.b16 %v260
  %v309 = vunpack.c.h.b16 %v261
  %v310 = vpack.c.b16 %v279, %v278
  %v311 = vpack.c.b16 %v281, %v280
  %v312 = vpack.c.b16 %v283, %v282
  %v313 = vpack.c.b16 %v285, %v284
  %v314 = vpack.c.b16 %v287, %v286
  %v315 = vpack.c.b16 %v289, %v288
  %v316 = vpack.c.b16 %v291, %v290
  %v317 = vpack.c.b16 %v293, %v292
  %v318 = vpack.c.b16 %v295, %v294
  %v319 = vpack.c.b16 %v297, %v296
  %v320 = vpack.c.b16 %v299, %v298
  %v321 = vpack.c.b16 %v301, %v300
  %v322 = vpack.c.b16 %v303, %v302
  %v323 = vpack.c.b16 %v305, %v304
  %v324 = vpack.c.b16 %v307, %v306
  %v325 = vpack.c.b16 %v309, %v308
  %342 = vst [vmem:[%s3] sm:$0xff] %v310
  %343 = vst [vmem:[%s3 + $0x8] sm:$0xff] %v311
  %344 = vst [vmem:[%s3 + $0x10] sm:$0xff] %v312
  %345 = vst [vmem:[%s3 + $0x18] sm:$0xff] %v313
  %346 = vst [vmem:[%s3 + $0x20] sm:$0xff] %v314
  %347 = vst [vmem:[%s3 + $0x28] sm:$0xff] %v315
  %348 = vst [vmem:[%s3 + $0x30] sm:$0xff] %v316
  %349 = vst [vmem:[%s3 + $0x38] sm:$0xff] %v317
  %350 = vst [vmem:[%s3 + $0x40] sm:$0xff] %v318
  %351 = vst [vmem:[%s3 + $0x48] sm:$0xff] %v319
  %352 = vst [vmem:[%s3 + $0x50] sm:$0xff] %v320
  %353 = vst [vmem:[%s3 + $0x58] sm:$0xff] %v321
  %354 = vst [vmem:[%s3 + $0x60] sm:$0xff] %v322
  %355 = vst [vmem:[%s3 + $0x68] sm:$0xff] %v323
  %356 = vst [vmem:[%s3 + $0x70] sm:$0xff] %v324
  %357 = vst [vmem:[%s3 + $0x78] sm:$0xff] %v325
  // Predicated region
  $region14: #{generator_forward.20} parent=0 // pred_check
    _
  $region15: #{generator_forward.20} parent=0 // pred_check_branch
    %359 = sbr.rel (0) target = $region17
  $region16: #{generator_forward.20} parent=0 // pred_region
    _
  $region17: #{generator_forward.20} parent=0 // pred_fallthru
    _
  // Predicated region
  $region18: #{generator_forward.20} parent=0 // pred_check
    _
  $region19: #{generator_forward.20} parent=0 // pred_check_branch
    %361 = sbr.rel (0) target = $region21
  $region20: #{generator_forward.20} parent=0 // pred_region
    _
  $region21: #{generator_forward.20} parent=0 // pred_fallthru
    _

// kernel: generator_forward.21
$region0: #{generator_forward.21}
  #allocation0 [shape = 'u32[]', space=smem, size = 0x4, offset = 0x4, fixed_abs, tag = 'smem constant byte address 0x4 - core index']
  #allocation1 [shape = 'u32[144,128]{1,0:T(1,128)}', space=vmem, size = 0x12000, scoped, tag = 'internal scratch']
  #allocation2 [shape = 'f32[12,8192]{1,0:T(8,128)}', space=vmem, size = 0x80000, scoped, tag = 'scratch operand']
  %s0 = inlined_call_operand.vmem [shape: bf16[3,3,4,8192], index: 0, kind: input, shape index: {}]
  %s1 = inlined_call_operand.vmem [shape: bf16[3,3,12,4], index: 1, kind: input, shape index: {}]
  %s2 = inlined_call_operand.vmem [shape: f32[12,1], index: 2, kind: input, shape index: {}]
  %s3 = inlined_call_operand.vmem [shape: f32[12,8192], index: 3, kind: output, shape index: {}]
  %s4 = sld [smem:[#allocation0]]
  $region53: #{generator_forward.21} parent=0
    _
  %s6 = ssub.s32 1, %s4
  %s7 = scalar_select 0, %s6, %s4
  loop: start=0, step=1, limit=11
  $region2: #{generator_forward.21} parent=0 // loop_pre_header
    _
  $region3: #{generator_forward.21} parent=0 // loop_header
    %s9 = sphi 0, %s13
    %p10 = scmp.ge.s32.totalorder %s9, 11
    %s16 = sphi 0, %s35
    %s17 = sphi 0, %s31
    %s18 = sphi 0, %s27
    %s19 = sphi 0, %s16
    %s20 = sphi 0, %s17
    %s21 = sphi 0, %s18
    %s22 = sphi 0, %s19
    %s23 = sphi 0, %s20
    %s24 = sphi 0, %s21
    %s42 = sphi 0, %s44
    %s45 = sphi 0, %s42
    %s46 = sphi 0, %s45
    %s62 = sphi 0, %s46
    %s70 = sphi 0, %s72
    %s73 = sphi 0, %s70
    %s74 = sphi 0, %s73
    %s90 = sphi 0, %s74
    %s94 = sphi 0, %s94
    %s96 = sphi 0, %s94
    %s97 = sphi 0, %s96
    %s111 = sphi 0, %s97
    %s117 = sphi 0, %s119
    %s120 = sphi 0, %s117
    %s121 = sphi 0, %s120
    %s137 = sphi 0, %s121
  $region4: #{generator_forward.21} parent=0 // loop_header_branch
    %12 = sbr.rel (%p10) target = $region8
  $region5: #{generator_forward.21} parent=0 // loop_body
    %s14 = ssub.s32 %s9, 1
    %s15 = ssub.s32 %s9, 2
    %s25 = sadd.s32 1, %s18
    %p26 = scmp.ge.s32.totalorder %s25, 3
    %s27 = scalar_select %p26, 0, %s25
    %s28 = sadd.s32 1, %s17
    %s29 = scalar_select %p26, %s28, %s17
    %p30 = scmp.ge.s32.totalorder %s29, 3
    %s31 = scalar_select %p30, 0, %s29
    %s32 = sadd.s32 1, %s16
    %s33 = scalar_select %p30, %s32, %s16
    %p34 = scmp.ge.s32.totalorder %s33, 1
    %s35 = scalar_select %p34, 0, %s33
    %s36 = ssub.s32 %s17, %s31
    %s37 = ssub.s32 %s18, %s27
    %s38 = sor.u32 %s36, %s37
    %s39 = ssub.s32 %s16, %s35
    %s40 = sor.u32 %s38, %s39
    %p41 = scmp.eq.s32.totalorder %s40, 0
    %s43 = sadd.s32 %s42, 1
    %s44 = scalar_select %p41, %s42, %s43
    %p47 = pneg %p41
    %p48 = scmp.eq.s32.totalorder %s9, 8
    %p49 = por %p47, %p48
    %p50 = scmp.ne.s32.totalorder %s42, %s45
    %p51 = scmp.eq.s32.totalorder %s9, 0
    %p52 = por %p50, %p51
    %p53 = scmp.ne.s32.totalorder %s42, %s45
    %p54 = scmp.eq.s32.totalorder %s14, 8
    %p55 = por %p53, %p54
    %p56 = scmp.ne.s32.totalorder %s45, %s46
    %p57 = scmp.eq.s32.totalorder %s14, 0
    %p58 = por %p56, %p57
    %p59 = scmp.ne.s32.totalorder %s45, %s46
    %p60 = scmp.eq.s32.totalorder %s15, 8
    %p61 = por %p59, %p60
    %p63 = scmp.ne.s32.totalorder %s46, %s62
    %p64 = scmp.eq.s32.totalorder %s15, 0
    %p65 = por %p63, %p64
    %s66 = ssub.s32 %s17, %s31
    %s67 = ssub.s32 %s18, %s27
    %s68 = sor.u32 %s66, %s67
    %p69 = scmp.eq.s32.totalorder %s68, 0
    %s71 = sadd.s32 %s70, 1
    %s72 = scalar_select %p69, %s70, %s71
    %p75 = pneg %p69
    %p76 = scmp.eq.s32.totalorder %s9, 8
    %p77 = por %p75, %p76
    %p78 = scmp.ne.s32.totalorder %s70, %s73
    %p79 = scmp.eq.s32.totalorder %s9, 0
    %p80 = por %p78, %p79
    %p81 = scmp.ne.s32.totalorder %s70, %s73
    %p82 = scmp.eq.s32.totalorder %s14, 8
    %p83 = por %p81, %p82
    %p84 = scmp.ne.s32.totalorder %s73, %s74
    %p85 = scmp.eq.s32.totalorder %s14, 0
    %p86 = por %p84, %p85
    %p87 = scmp.ne.s32.totalorder %s73, %s74
    %p88 = scmp.eq.s32.totalorder %s15, 8
    %p89 = por %p87, %p88
    %p91 = scmp.ne.s32.totalorder %s74, %s90
    %p92 = scmp.eq.s32.totalorder %s15, 0
    %p93 = por %p91, %p92
    %s95 = sadd.s32 %s94, 1
    %p98 = scmp.eq.s32.totalorder %s9, 8
    %p99 = scmp.ne.s32.totalorder %s94, %s96
    %p100 = scmp.eq.s32.totalorder %s9, 0
    %p101 = por %p99, %p100
    %p102 = scmp.ne.s32.totalorder %s94, %s96
    %p103 = scmp.eq.s32.totalorder %s14, 8
    %p104 = por %p102, %p103
    %p105 = scmp.ne.s32.totalorder %s96, %s97
    %p106 = scmp.eq.s32.totalorder %s14, 0
    %p107 = por %p105, %p106
    %p108 = scmp.ne.s32.totalorder %s96, %s97
    %p109 = scmp.eq.s32.totalorder %s15, 8
    %p110 = por %p108, %p109
    %p112 = scmp.ne.s32.totalorder %s97, %s111
    %p113 = scmp.eq.s32.totalorder %s15, 0
    %p114 = por %p112, %p113
    %s115 = ssub.s32 %s16, %s35
    %p116 = scmp.eq.s32.totalorder %s115, 0
    %s118 = sadd.s32 %s117, 1
    %s119 = scalar_select %p116, %s117, %s118
    %p122 = pneg %p116
    %p123 = scmp.eq.s32.totalorder %s9, 8
    %p124 = por %p122, %p123
    %p125 = scmp.ne.s32.totalorder %s117, %s120
    %p126 = scmp.eq.s32.totalorder %s9, 0
    %p127 = por %p125, %p126
    %p128 = scmp.ne.s32.totalorder %s117, %s120
    %p129 = scmp.eq.s32.totalorder %s14, 8
    %p130 = por %p128, %p129
    %p131 = scmp.ne.s32.totalorder %s120, %s121
    %p132 = scmp.eq.s32.totalorder %s14, 0
    %p133 = por %p131, %p132
    %p134 = scmp.ne.s32.totalorder %s120, %s121
    %p135 = scmp.eq.s32.totalorder %s15, 8
    %p136 = por %p134, %p135
    %p138 = scmp.ne.s32.totalorder %s121, %s137
    %p139 = scmp.eq.s32.totalorder %s15, 0
    %p140 = por %p138, %p139
    %p141 = scmp.le.s32.totalorder 1, %s9
    %p142 = scmp.lt.s32.totalorder %s9, 10
    %p143 = pnand %p141, %p142
    %p144 = pneg %p143
    // Predicated region
    $region9: #{generator_forward.21} parent=5 // pred_check
      _
    $region10: #{generator_forward.21} parent=5 // pred_check_branch
      %146 = sbr.rel (%p143) target = $region12
    $region11: #{generator_forward.21} parent=5 // pred_region
      %s147 = ssub.s32 %s9, 1
      // Predicated region
      $region13: #{generator_forward.21} parent=11 // pred_check
        %p148 = pneg %p107
      $region14: #{generator_forward.21} parent=11 // pred_check_branch
        %150 = sbr.rel (%p148) target = $region16
      $region15: #{generator_forward.21} parent=11 // pred_region
        _
      $region16: #{generator_forward.21} parent=11 // pred_fallthru
        _
    $region12: #{generator_forward.21} parent=5 // pred_fallthru
      _
    %p151 = scmp.lt.s32.totalorder %s9, 9
    // Predicated region
    $region17: #{generator_forward.21} parent=5 // pred_check
      %p152 = pneg %p151
    $region18: #{generator_forward.21} parent=5 // pred_check_branch
      %154 = sbr.rel (%p152) target = $region20
    $region19: #{generator_forward.21} parent=5 // pred_region
      // Predicated region
      $region21: #{generator_forward.21} parent=19 // pred_check
        %p155 = pneg %p52
      $region22: #{generator_forward.21} parent=19 // pred_check_branch
        %157 = sbr.rel (%p155) target = $region24
      $region23: #{generator_forward.21} parent=19 // pred_region
        %s158 = smul.u32 64, %s16
        %p159 = scmp.lt.s32.totalorder %s17, 2
        %s160 = scalar_select %p159, %s17, 2
        %p161 = scmp.lt.s32.totalorder %s18, 2
        %s162 = scalar_select %p161, %s18, 2
        %p163 = scmp.lt.s32.totalorder %s158, 63
        %s164 = scalar_select %p163, %s158, 63
        %s165 = smul.addr %s162, 64
        %s166 = sadd.s32 %s164, %s165
        %s167 = smul.addr %s160, 192
        %s168 = sadd.s32 %s166, %s167
        %s169 = smul.addr %s168, 2
        %s170 = scalar_lea.vmem %s0, %s169
        %s171 = smul.u32 64, %s16
      $region24: #{generator_forward.21} parent=19 // pred_fallthru
        _
      // Predicated region
      $region25: #{generator_forward.21} parent=19 // pred_check
        %p172 = pneg %p80
      $region26: #{generator_forward.21} parent=19 // pred_check_branch
        %174 = sbr.rel (%p172) target = $region28
      $region27: #{generator_forward.21} parent=19 // pred_region
        %p175 = scmp.lt.s32.totalorder %s17, 2
        %s176 = scalar_select %p175, %s17, 2
        %p177 = scmp.lt.s32.totalorder %s18, 2
        %s178 = scalar_select %p177, %s18, 2
        %s179 = smul.addr %s178, 2
        %s180 = smul.addr %s176, 6
        %s181 = sadd.s32 %s179, %s180
        %s182 = smul.addr %s181, 4
        %s183 = scalar_lea.vmem %s1, %s182
      $region28: #{generator_forward.21} parent=19 // pred_fallthru
        _
    $region20: #{generator_forward.21} parent=5 // pred_fallthru
      _
    %p184 = scmp.le.s32.totalorder 1, %s9
    %p185 = scmp.lt.s32.totalorder %s9, 10
    %p186 = pnand %p184, %p185
    %p187 = pneg %p186
    // Predicated region
    $region29: #{generator_forward.21} parent=5 // pred_check
      _
    $region30: #{generator_forward.21} parent=5 // pred_check_branch
      %189 = sbr.rel (%p186) target = $region32
    $region31: #{generator_forward.21} parent=5 // pred_region
      %s190 = ssub.s32 %s9, 1
      %s191 = smul.u32 64, %s19
      %p192 = scmp.lt.s32.totalorder %s20, 2
      %s193 = scalar_select %p192, %s20, 2
      %p194 = scmp.lt.s32.totalorder %s21, 2
      %s195 = scalar_select %p194, %s21, 2
      %p196 = scmp.lt.s32.totalorder %s191, 63
      %s197 = scalar_select %p196, %s191, 63
      %s198 = smul.addr %s195, 64
      %s199 = sadd.s32 %s197, %s198
      %s200 = smul.addr %s193, 192
      %s201 = sadd.s32 %s199, %s200
      %s202 = smul.addr %s201, 2
      %s203 = scalar_lea.vmem %s0, %s202
      %p204 = pneg %p58
      %p205 = pneg %p55
      %p206 = scmp.lt.s32.totalorder %s20, 2
      %s207 = scalar_select %p206, %s20, 2
      %p208 = scmp.lt.s32.totalorder %s21, 2
      %s209 = scalar_select %p208, %s21, 2
      %s210 = smul.addr %s209, 2
      %s211 = smul.addr %s207, 6
      %s212 = sadd.s32 %s210, %s211
      %s213 = smul.addr %s212, 4
      %s214 = scalar_lea.vmem %s1, %s213
      %p215 = pneg %p86
      %p216 = pneg %p83
      %p217 = pneg %p107
      %p218 = pneg %p104
      %p219 = pneg %p133
      %p220 = pneg %p130
      %s221 = smul.u32 64, %s19
      %p222 = scmp.lt.s32.totalorder %s221, 63
      %s223 = scalar_select %p222, %s221, 63
      %s224 = smul.addr %s223, 8
      %s225 = scalar_lea.vmem %s3, %s224
      %s226 = smul.u32 64, %s19
      %p227 = scmp.lt.s32.totalorder %s20, 2
      %s228 = scalar_select %p227, %s20, 2
      %p229 = scmp.lt.s32.totalorder %s21, 2
      %s230 = scalar_select %p229, %s21, 2
      %p231 = scmp.lt.s32.totalorder %s226, 63
      %s232 = scalar_select %p231, %s226, 63
      %s233 = smul.addr %s230, 64
      %s234 = sadd.s32 %s232, %s233
      %s235 = smul.addr %s228, 192
      %s236 = sadd.s32 %s234, %s235
      %s237 = smul.addr %s236, 2
      %s238 = scalar_lea.vmem %s0, %s237
      %s239 = smul.u32 64, %s19
      %p240 = scmp.lt.s32.totalorder %s20, 2
      %s241 = scalar_select %p240, %s20, 2
      %p242 = scmp.lt.s32.totalorder %s21, 2
      %s243 = scalar_select %p242, %s21, 2
      %s244 = smul.addr %s243, 2
      %s245 = smul.addr %s241, 6
      %s246 = sadd.s32 %s244, %s245
      %s247 = smul.addr %s246, 4
      %s248 = scalar_lea.vmem %s1, %s247
      %s249 = smul.u32 64, %s19
      %p250 = scmp.lt.s32.totalorder %s249, 63
      %s251 = scalar_select %p250, %s249, 63
      %s252 = smul.addr %s251, 8
      %s253 = scalar_lea.vmem %s3, %s252
      %s254 = smul.u32 64, %s19
      %p256 = scmp.eq.s32.totalorder %s20, 0
      %p257 = scmp.eq.s32.totalorder %s21, 0
      %p258 = pnand %p256, %p257
      %p259 = pneg %p258
      // Predicated region
      $region33: #{generator_forward.21} parent=31 // pred_check
        _
      $region34: #{generator_forward.21} parent=31 // pred_check_branch
        %261 = sbr.rel (%p258) target = $region36
      $region35: #{generator_forward.21} parent=31 // pred_region
        %262 = vst [vmem:[#allocation2] sm:$0xff] 0.0
        %263 = vst [vmem:[#allocation2 + $0x8] sm:$0xff] 0.0
        %264 = vst [vmem:[#allocation2 + $0x10] sm:$0xff] 0.0
        %265 = vst [vmem:[#allocation2 + $0x18] sm:$0xff] 0.0
        %266 = vst [vmem:[#allocation2 + $0x20] sm:$0xff] 0.0
        %267 = vst [vmem:[#allocation2 + $0x28] sm:$0xff] 0.0
        %268 = vst [vmem:[#allocation2 + $0x30] sm:$0xff] 0.0
        %269 = vst [vmem:[#allocation2 + $0x38] sm:$0xff] 0.0
        %270 = vst [vmem:[#allocation2 + $0x40] sm:$0xff] 0.0
        %271 = vst [vmem:[#allocation2 + $0x48] sm:$0xff] 0.0
        %272 = vst [vmem:[#allocation2 + $0x50] sm:$0xff] 0.0
        %273 = vst [vmem:[#allocation2 + $0x58] sm:$0xff] 0.0
        %274 = vst [vmem:[#allocation2 + $0x60] sm:$0xff] 0.0
        %275 = vst [vmem:[#allocation2 + $0x68] sm:$0xff] 0.0
        %276 = vst [vmem:[#allocation2 + $0x70] sm:$0xff] 0.0
        %277 = vst [vmem:[#allocation2 + $0x78] sm:$0xff] 0.0
        %278 = vst [vmem:[#allocation2 + $0x80] sm:$0xff] 0.0
        %279 = vst [vmem:[#allocation2 + $0x88] sm:$0xff] 0.0
        %280 = vst [vmem:[#allocation2 + $0x90] sm:$0xff] 0.0
        %281 = vst [vmem:[#allocation2 + $0x98] sm:$0xff] 0.0
        %282 = vst [vmem:[#allocation2 + $0xa0] sm:$0xff] 0.0
        %283 = vst [vmem:[#allocation2 + $0xa8] sm:$0xff] 0.0
        %284 = vst [vmem:[#allocation2 + $0xb0] sm:$0xff] 0.0
        %285 = vst [vmem:[#allocation2 + $0xb8] sm:$0xff] 0.0
        %286 = vst [vmem:[#allocation2 + $0xc0] sm:$0xff] 0.0
        %287 = vst [vmem:[#allocation2 + $0xc8] sm:$0xff] 0.0
        %288 = vst [vmem:[#allocation2 + $0xd0] sm:$0xff] 0.0
        %289 = vst [vmem:[#allocation2 + $0xd8] sm:$0xff] 0.0
        %290 = vst [vmem:[#allocation2 + $0xe0] sm:$0xff] 0.0
        %291 = vst [vmem:[#allocation2 + $0xe8] sm:$0xff] 0.0
        %292 = vst [vmem:[#allocation2 + $0xf0] sm:$0xff] 0.0
        %293 = vst [vmem:[#allocation2 + $0xf8] sm:$0xff] 0.0
        %294 = vst [vmem:[#allocation2 + $0x100] sm:$0xff] 0.0
        %295 = vst [vmem:[#allocation2 + $0x108] sm:$0xff] 0.0
        %296 = vst [vmem:[#allocation2 + $0x110] sm:$0xff] 0.0
        %297 = vst [vmem:[#allocation2 + $0x118] sm:$0xff] 0.0
        %298 = vst [vmem:[#allocation2 + $0x120] sm:$0xff] 0.0
        %299 = vst [vmem:[#allocation2 + $0x128] sm:$0xff] 0.0
        %300 = vst [vmem:[#allocation2 + $0x130] sm:$0xff] 0.0
        %301 = vst [vmem:[#allocation2 + $0x138] sm:$0xff] 0.0
        %302 = vst [vmem:[#allocation2 + $0x140] sm:$0xff] 0.0
        %303 = vst [vmem:[#allocation2 + $0x148] sm:$0xff] 0.0
        %304 = vst [vmem:[#allocation2 + $0x150] sm:$0xff] 0.0
        %305 = vst [vmem:[#allocation2 + $0x158] sm:$0xff] 0.0
        %306 = vst [vmem:[#allocation2 + $0x160] sm:$0xff] 0.0
        %307 = vst [vmem:[#allocation2 + $0x168] sm:$0xff] 0.0
        %308 = vst [vmem:[#allocation2 + $0x170] sm:$0xff] 0.0
        %309 = vst [vmem:[#allocation2 + $0x178] sm:$0xff] 0.0
        %310 = vst [vmem:[#allocation2 + $0x180] sm:$0xff] 0.0
        %311 = vst [vmem:[#allocation2 + $0x188] sm:$0xff] 0.0
        %312 = vst [vmem:[#allocation2 + $0x190] sm:$0xff] 0.0
        %313 = vst [vmem:[#allocation2 + $0x198] sm:$0xff] 0.0
        %314 = vst [vmem:[#allocation2 + $0x1a0] sm:$0xff] 0.0
        %315 = vst [vmem:[#allocation2 + $0x1a8] sm:$0xff] 0.0
        %316 = vst [vmem:[#allocation2 + $0x1b0] sm:$0xff] 0.0
        %317 = vst [vmem:[#allocation2 + $0x1b8] sm:$0xff] 0.0
        %318 = vst [vmem:[#allocation2 + $0x1c0] sm:$0xff] 0.0
        %319 = vst [vmem:[#allocation2 + $0x1c8] sm:$0xff] 0.0
        %320 = vst [vmem:[#allocation2 + $0x1d0] sm:$0xff] 0.0
        %321 = vst [vmem:[#allocation2 + $0x1d8] sm:$0xff] 0.0
        %322 = vst [vmem:[#allocation2 + $0x1e0] sm:$0xff] 0.0
        %323 = vst [vmem:[#allocation2 + $0x1e8] sm:$0xff] 0.0
        %324 = vst [vmem:[#allocation2 + $0x1f0] sm:$0xff] 0.0
        %325 = vst [vmem:[#allocation2 + $0x1f8] sm:$0xff] 0.0
        %326 = vst [vmem:[#allocation2 + $0x200] sm:$0xf] 0.0
        %327 = vst [vmem:[#allocation2 + $0x208] sm:$0xf] 0.0
        %328 = vst [vmem:[#allocation2 + $0x210] sm:$0xf] 0.0
        %329 = vst [vmem:[#allocation2 + $0x218] sm:$0xf] 0.0
        %330 = vst [vmem:[#allocation2 + $0x220] sm:$0xf] 0.0
        %331 = vst [vmem:[#allocation2 + $0x228] sm:$0xf] 0.0
        %332 = vst [vmem:[#allocation2 + $0x230] sm:$0xf] 0.0
        %333 = vst [vmem:[#allocation2 + $0x238] sm:$0xf] 0.0
        %334 = vst [vmem:[#allocation2 + $0x240] sm:$0xf] 0.0
        %335 = vst [vmem:[#allocation2 + $0x248] sm:$0xf] 0.0
        %336 = vst [vmem:[#allocation2 + $0x250] sm:$0xf] 0.0
        %337 = vst [vmem:[#allocation2 + $0x258] sm:$0xf] 0.0
        %338 = vst [vmem:[#allocation2 + $0x260] sm:$0xf] 0.0
        %339 = vst [vmem:[#allocation2 + $0x268] sm:$0xf] 0.0
        %340 = vst [vmem:[#allocation2 + $0x270] sm:$0xf] 0.0
        %341 = vst [vmem:[#allocation2 + $0x278] sm:$0xf] 0.0
        %342 = vst [vmem:[#allocation2 + $0x280] sm:$0xf] 0.0
        %343 = vst [vmem:[#allocation2 + $0x288] sm:$0xf] 0.0
        %344 = vst [vmem:[#allocation2 + $0x290] sm:$0xf] 0.0
        %345 = vst [vmem:[#allocation2 + $0x298] sm:$0xf] 0.0
        %346 = vst [vmem:[#allocation2 + $0x2a0] sm:$0xf] 0.0
        %347 = vst [vmem:[#allocation2 + $0x2a8] sm:$0xf] 0.0
        %348 = vst [vmem:[#allocation2 + $0x2b0] sm:$0xf] 0.0
        %349 = vst [vmem:[#allocation2 + $0x2b8] sm:$0xf] 0.0
        %350 = vst [vmem:[#allocation2 + $0x2c0] sm:$0xf] 0.0
        %351 = vst [vmem:[#allocation2 + $0x2c8] sm:$0xf] 0.0
        %352 = vst [vmem:[#allocation2 + $0x2d0] sm:$0xf] 0.0
        %353 = vst [vmem:[#allocation2 + $0x2d8] sm:$0xf] 0.0
        %354 = vst [vmem:[#allocation2 + $0x2e0] sm:$0xf] 0.0
        %355 = vst [vmem:[#allocation2 + $0x2e8] sm:$0xf] 0.0
        %356 = vst [vmem:[#allocation2 + $0x2f0] sm:$0xf] 0.0
        %357 = vst [vmem:[#allocation2 + $0x2f8] sm:$0xf] 0.0
        %358 = vst [vmem:[#allocation2 + $0x300] sm:$0xf] 0.0
        %359 = vst [vmem:[#allocation2 + $0x308] sm:$0xf] 0.0
        %360 = vst [vmem:[#allocation2 + $0x310] sm:$0xf] 0.0
        %361 = vst [vmem:[#allocation2 + $0x318] sm:$0xf] 0.0
        %362 = vst [vmem:[#allocation2 + $0x320] sm:$0xf] 0.0
        %363 = vst [vmem:[#allocation2 + $0x328] sm:$0xf] 0.0
        %364 = vst [vmem:[#allocation2 + $0x330] sm:$0xf] 0.0
        %365 = vst [vmem:[#allocation2 + $0x338] sm:$0xf] 0.0
        %366 = vst [vmem:[#allocation2 + $0x340] sm:$0xf] 0.0
        %367 = vst [vmem:[#allocation2 + $0x348] sm:$0xf] 0.0
        %368 = vst [vmem:[#allocation2 + $0x350] sm:$0xf] 0.0
        %369 = vst [vmem:[#allocation2 + $0x358] sm:$0xf] 0.0
        %370 = vst [vmem:[#allocation2 + $0x360] sm:$0xf] 0.0
        %371 = vst [vmem:[#allocation2 + $0x368] sm:$0xf] 0.0
        %372 = vst [vmem:[#allocation2 + $0x370] sm:$0xf] 0.0
        %373 = vst [vmem:[#allocation2 + $0x378] sm:$0xf] 0.0
        %374 = vst [vmem:[#allocation2 + $0x380] sm:$0xf] 0.0
        %375 = vst [vmem:[#allocation2 + $0x388] sm:$0xf] 0.0
        %376 = vst [vmem:[#allocation2 + $0x390] sm:$0xf] 0.0
        %377 = vst [vmem:[#allocation2 + $0x398] sm:$0xf] 0.0
        %378 = vst [vmem:[#allocation2 + $0x3a0] sm:$0xf] 0.0
        %379 = vst [vmem:[#allocation2 + $0x3a8] sm:$0xf] 0.0
        %380 = vst [vmem:[#allocation2 + $0x3b0] sm:$0xf] 0.0
        %381 = vst [vmem:[#allocation2 + $0x3b8] sm:$0xf] 0.0
        %382 = vst [vmem:[#allocation2 + $0x3c0] sm:$0xf] 0.0
        %383 = vst [vmem:[#allocation2 + $0x3c8] sm:$0xf] 0.0
        %384 = vst [vmem:[#allocation2 + $0x3d0] sm:$0xf] 0.0
        %385 = vst [vmem:[#allocation2 + $0x3d8] sm:$0xf] 0.0
        %386 = vst [vmem:[#allocation2 + $0x3e0] sm:$0xf] 0.0
        %387 = vst [vmem:[#allocation2 + $0x3e8] sm:$0xf] 0.0
        %388 = vst [vmem:[#allocation2 + $0x3f0] sm:$0xf] 0.0
        %389 = vst [vmem:[#allocation2 + $0x3f8] sm:$0xf] 0.0
      $region36: #{generator_forward.21} parent=31 // pred_fallthru
        _
      %v390 = vld [vmem:[#allocation2] sm:$0xff]
      %v391 = vld [vmem:[#allocation2 + $0x8] sm:$0xff]
      %v392 = vld [vmem:[#allocation2 + $0x10] sm:$0xff]
      %v393 = vld [vmem:[#allocation2 + $0x18] sm:$0xff]
      %v394 = vld [vmem:[#allocation2 + $0x20] sm:$0xff]
      %v395 = vld [vmem:[#allocation2 + $0x28] sm:$0xff]
      %v396 = vld [vmem:[#allocation2 + $0x30] sm:$0xff]
      %v397 = vld [vmem:[#allocation2 + $0x38] sm:$0xff]
      %v398 = vld [vmem:[#allocation2 + $0x40] sm:$0xff]
      %v399 = vld [vmem:[#allocation2 + $0x48] sm:$0xff]
      %v400 = vld [vmem:[#allocation2 + $0x50] sm:$0xff]
      %v401 = vld [vmem:[#allocation2 + $0x58] sm:$0xff]
      %v402 = vld [vmem:[#allocation2 + $0x60] sm:$0xff]
      %v403 = vld [vmem:[#allocation2 + $0x68] sm:$0xff]
      %v404 = vld [vmem:[#allocation2 + $0x70] sm:$0xff]
      %v405 = vld [vmem:[#allocation2 + $0x78] sm:$0xff]
      %v406 = vld [vmem:[#allocation2 + $0x80] sm:$0xff]
      %v407 = vld [vmem:[#allocation2 + $0x88] sm:$0xff]
      %v408 = vld [vmem:[#allocation2 + $0x90] sm:$0xff]
      %v409 = vld [vmem:[#allocation2 + $0x98] sm:$0xff]
      %v410 = vld [vmem:[#allocation2 + $0xa0] sm:$0xff]
      %v411 = vld [vmem:[#allocation2 + $0xa8] sm:$0xff]
      %v412 = vld [vmem:[#allocation2 + $0xb0] sm:$0xff]
      %v413 = vld [vmem:[#allocation2 + $0xb8] sm:$0xff]
      %v414 = vld [vmem:[#allocation2 + $0xc0] sm:$0xff]
      %v415 = vld [vmem:[#allocation2 + $0xc8] sm:$0xff]
      %v416 = vld [vmem:[#allocation2 + $0xd0] sm:$0xff]
      %v417 = vld [vmem:[#allocation2 + $0xd8] sm:$0xff]
      %v418 = vld [vmem:[#allocation2 + $0xe0] sm:$0xff]
      %v419 = vld [vmem:[#allocation2 + $0xe8] sm:$0xff]
      %v420 = vld [vmem:[#allocation2 + $0xf0] sm:$0xff]
      %v421 = vld [vmem:[#allocation2 + $0xf8] sm:$0xff]
      %v422 = vld [vmem:[#allocation2 + $0x100] sm:$0xff]
      %v423 = vld [vmem:[#allocation2 + $0x108] sm:$0xff]
      %v424 = vld [vmem:[#allocation2 + $0x110] sm:$0xff]
      %v425 = vld [vmem:[#allocation2 + $0x118] sm:$0xff]
      %v426 = vld [vmem:[#allocation2 + $0x120] sm:$0xff]
      %v427 = vld [vmem:[#allocation2 + $0x128] sm:$0xff]
      %v428 = vld [vmem:[#allocation2 + $0x130] sm:$0xff]
      %v429 = vld [vmem:[#allocation2 + $0x138] sm:$0xff]
      %v430 = vld [vmem:[#allocation2 + $0x140] sm:$0xff]
      %v431 = vld [vmem:[#allocation2 + $0x148] sm:$0xff]
      %v432 = vld [vmem:[#allocation2 + $0x150] sm:$0xff]
      %v433 = vld [vmem:[#allocation2 + $0x158] sm:$0xff]
      %v434 = vld [vmem:[#allocation2 + $0x160] sm:$0xff]
      %v435 = vld [vmem:[#allocation2 + $0x168] sm:$0xff]
      %v436 = vld [vmem:[#allocation2 + $0x170] sm:$0xff]
      %v437 = vld [vmem:[#allocation2 + $0x178] sm:$0xff]
      %v438 = vld [vmem:[#allocation2 + $0x180] sm:$0xff]
      %v439 = vld [vmem:[#allocation2 + $0x188] sm:$0xff]
      %v440 = vld [vmem:[#allocation2 + $0x190] sm:$0xff]
      %v441 = vld [vmem:[#allocation2 + $0x198] sm:$0xff]
      %v442 = vld [vmem:[#allocation2 + $0x1a0] sm:$0xff]
      %v443 = vld [vmem:[#allocation2 + $0x1a8] sm:$0xff]
      %v444 = vld [vmem:[#allocation2 + $0x1b0] sm:$0xff]
      %v445 = vld [vmem:[#allocation2 + $0x1b8] sm:$0xff]
      %v446 = vld [vmem:[#allocation2 + $0x1c0] sm:$0xff]
      %v447 = vld [vmem:[#allocation2 + $0x1c8] sm:$0xff]
      %v448 = vld [vmem:[#allocation2 + $0x1d0] sm:$0xff]
      %v449 = vld [vmem:[#allocation2 + $0x1d8] sm:$0xff]
      %v450 = vld [vmem:[#allocation2 + $0x1e0] sm:$0xff]
      %v451 = vld [vmem:[#allocation2 + $0x1e8] sm:$0xff]
      %v452 = vld [vmem:[#allocation2 + $0x1f0] sm:$0xff]
      %v453 = vld [vmem:[#allocation2 + $0x1f8] sm:$0xff]
      %v454 = vld [vmem:[#allocation2 + $0x200] sm:$0xf]
      %v455 = vld [vmem:[#allocation2 + $0x208] sm:$0xf]
      %v456 = vld [vmem:[#allocation2 + $0x210] sm:$0xf]
      %v457 = vld [vmem:[#allocation2 + $0x218] sm:$0xf]
      %v458 = vld [vmem:[#allocation2 + $0x220] sm:$0xf]
      %v459 = vld [vmem:[#allocation2 + $0x228] sm:$0xf]
      %v460 = vld [vmem:[#allocation2 + $0x230] sm:$0xf]
      %v461 = vld [vmem:[#allocation2 + $0x238] sm:$0xf]
      %v462 = vld [vmem:[#allocation2 + $0x240] sm:$0xf]
      %v463 = vld [vmem:[#allocation2 + $0x248] sm:$0xf]
      %v464 = vld [vmem:[#allocation2 + $0x250] sm:$0xf]
      %v465 = vld [vmem:[#allocation2 + $0x258] sm:$0xf]
      %v466 = vld [vmem:[#allocation2 + $0x260] sm:$0xf]
      %v467 = vld [vmem:[#allocation2 + $0x268] sm:$0xf]
      %v468 = vld [vmem:[#allocation2 + $0x270] sm:$0xf]
      %v469 = vld [vmem:[#allocation2 + $0x278] sm:$0xf]
      %v470 = vld [vmem:[#allocation2 + $0x280] sm:$0xf]
      %v471 = vld [vmem:[#allocation2 + $0x288] sm:$0xf]
      %v472 = vld [vmem:[#allocation2 + $0x290] sm:$0xf]
      %v473 = vld [vmem:[#allocation2 + $0x298] sm:$0xf]
      %v474 = vld [vmem:[#allocation2 + $0x2a0] sm:$0xf]
      %v475 = vld [vmem:[#allocation2 + $0x2a8] sm:$0xf]
      %v476 = vld [vmem:[#allocation2 + $0x2b0] sm:$0xf]
      %v477 = vld [vmem:[#allocation2 + $0x2b8] sm:$0xf]
      %v478 = vld [vmem:[#allocation2 + $0x2c0] sm:$0xf]
      %v479 = vld [vmem:[#allocation2 + $0x2c8] sm:$0xf]
      %v480 = vld [vmem:[#allocation2 + $0x2d0] sm:$0xf]
      %v481 = vld [vmem:[#allocation2 + $0x2d8] sm:$0xf]
      %v482 = vld [vmem:[#allocation2 + $0x2e0] sm:$0xf]
      %v483 = vld [vmem:[#allocation2 + $0x2e8] sm:$0xf]
      %v484 = vld [vmem:[#allocation2 + $0x2f0] sm:$0xf]
      %v485 = vld [vmem:[#allocation2 + $0x2f8] sm:$0xf]
      %v486 = vld [vmem:[#allocation2 + $0x300] sm:$0xf]
      %v487 = vld [vmem:[#allocation2 + $0x308] sm:$0xf]
      %v488 = vld [vmem:[#allocation2 + $0x310] sm:$0xf]
      %v489 = vld [vmem:[#allocation2 + $0x318] sm:$0xf]
      %v490 = vld [vmem:[#allocation2 + $0x320] sm:$0xf]
      %v491 = vld [vmem:[#allocation2 + $0x328] sm:$0xf]
      %v492 = vld [vmem:[#allocation2 + $0x330] sm:$0xf]
      %v493 = vld [vmem:[#allocation2 + $0x338] sm:$0xf]
      %v494 = vld [vmem:[#allocation2 + $0x340] sm:$0xf]
      %v495 = vld [vmem:[#allocation2 + $0x348] sm:$0xf]
      %v496 = vld [vmem:[#allocation2 + $0x350] sm:$0xf]
      %v497 = vld [vmem:[#allocation2 + $0x358] sm:$0xf]
      %v498 = vld [vmem:[#allocation2 + $0x360] sm:$0xf]
      %v499 = vld [vmem:[#allocation2 + $0x368] sm:$0xf]
      %v500 = vld [vmem:[#allocation2 + $0x370] sm:$0xf]
      %v501 = vld [vmem:[#allocation2 + $0x378] sm:$0xf]
      %v502 = vld [vmem:[#allocation2 + $0x380] sm:$0xf]
      %v503 = vld [vmem:[#allocation2 + $0x388] sm:$0xf]
      %v504 = vld [vmem:[#allocation2 + $0x390] sm:$0xf]
      %v505 = vld [vmem:[#allocation2 + $0x398] sm:$0xf]
      %v506 = vld [vmem:[#allocation2 + $0x3a0] sm:$0xf]
      %v507 = vld [vmem:[#allocation2 + $0x3a8] sm:$0xf]
      %v508 = vld [vmem:[#allocation2 + $0x3b0] sm:$0xf]
      %v509 = vld [vmem:[#allocation2 + $0x3b8] sm:$0xf]
      %v510 = vld [vmem:[#allocation2 + $0x3c0] sm:$0xf]
      %v511 = vld [vmem:[#allocation2 + $0x3c8] sm:$0xf]
      %v512 = vld [vmem:[#allocation2 + $0x3d0] sm:$0xf]
      %v513 = vld [vmem:[#allocation2 + $0x3d8] sm:$0xf]
      %v514 = vld [vmem:[#allocation2 + $0x3e0] sm:$0xf]
      %v515 = vld [vmem:[#allocation2 + $0x3e8] sm:$0xf]
      %v516 = vld [vmem:[#allocation2 + $0x3f0] sm:$0xf]
      %v517 = vld [vmem:[#allocation2 + $0x3f8] sm:$0xf]
      %v518 = vld [vmem:[%s248] sm:$0xf]
      %v519 = vld [vmem:[%s248 + $0x4] sm:$0x3]
      %v520 = vld [vmem:[%s238] sm:$0xff]
      %v521 = vld [vmem:[%s238 + $0x8] sm:$0xff]
      %v522 = vld [vmem:[%s238 + $0x10] sm:$0xff]
      %v523 = vld [vmem:[%s238 + $0x18] sm:$0xff]
      %v524 = vld [vmem:[%s238 + $0x20] sm:$0xff]
      %v525 = vld [vmem:[%s238 + $0x28] sm:$0xff]
      %v526 = vld [vmem:[%s238 + $0x30] sm:$0xff]
      %v527 = vld [vmem:[%s238 + $0x38] sm:$0xff]
      %v528 = vld [vmem:[%s238 + $0x40] sm:$0xff]
      %v529 = vld [vmem:[%s238 + $0x48] sm:$0xff]
      %v530 = vld [vmem:[%s238 + $0x50] sm:$0xff]
      %v531 = vld [vmem:[%s238 + $0x58] sm:$0xff]
      %v532 = vld [vmem:[%s238 + $0x60] sm:$0xff]
      %v533 = vld [vmem:[%s238 + $0x68] sm:$0xff]
      %v534 = vld [vmem:[%s238 + $0x70] sm:$0xff]
      %v535 = vld [vmem:[%s238 + $0x78] sm:$0xff]
      %v538 = vunpack.c.l.b16 %v518
      %v539 = vunpack.c.l.b16 %v519
      %v540 = vpack.c.b16 %v539, %v538
      %v557 = vcombine.high %v520, %v520
      %v559 = vunpack.c.l.s4 1983009808
      %v560 = vunpack.c.0.s8 %v559
      %v561 = vlaneseq
      %v562 = vshrl.u32 %v561, 7
      %v563 = vsub.s32 %v560, %v562
      %v564 = vrot.slane %v520, %v563
      %v566 = vunpack.c.l.s4 1983009808
      %v567 = vunpack.c.0.s8 %v566
      %v568 = vlaneseq
      %v569 = vshrl.u32 %v568, 7
      %v570 = vsub.s32 %v567, %v569
      %v571 = vrot.slane %v557, %v570
      %v572 = vcombine.high %v564, %v564
      %v573 = vcombine.high %v571, %v571
      %v574 = vcombine.high %v521, %v521
      %v576 = vunpack.c.l.s4 1983009808
      %v577 = vunpack.c.0.s8 %v576
      %v578 = vlaneseq
      %v579 = vshrl.u32 %v578, 7
      %v580 = vsub.s32 %v577, %v579
      %v581 = vrot.slane %v521, %v580
      %v583 = vunpack.c.l.s4 1983009808
      %v584 = vunpack.c.0.s8 %v583
      %v585 = vlaneseq
      %v586 = vshrl.u32 %v585, 7
      %v587 = vsub.s32 %v584, %v586
      %v588 = vrot.slane %v574, %v587
      %v589 = vcombine.high %v581, %v581
      %v590 = vcombine.high %v588, %v588
      %v591 = vcombine.high %v522, %v522
      %v593 = vunpack.c.l.s4 1983009808
      %v594 = vunpack.c.0.s8 %v593
      %v595 = vlaneseq
      %v596 = vshrl.u32 %v595, 7
      %v597 = vsub.s32 %v594, %v596
      %v598 = vrot.slane %v522, %v597
      %v600 = vunpack.c.l.s4 1983009808
      %v601 = vunpack.c.0.s8 %v600
      %v602 = vlaneseq
      %v603 = vshrl.u32 %v602, 7
      %v604 = vsub.s32 %v601, %v603
      %v605 = vrot.slane %v591, %v604
      %v606 = vcombine.high %v598, %v598
      %v607 = vcombine.high %v605, %v605
      %v608 = vcombine.high %v523, %v523
      %v610 = vunpack.c.l.s4 1983009808
      %v611 = vunpack.c.0.s8 %v610
      %v612 = vlaneseq
      %v613 = vshrl.u32 %v612, 7
      %v614 = vsub.s32 %v611, %v613
      %v615 = vrot.slane %v523, %v614
      %v617 = vunpack.c.l.s4 1983009808
      %v618 = vunpack.c.0.s8 %v617
      %v619 = vlaneseq
      %v620 = vshrl.u32 %v619, 7
      %v621 = vsub.s32 %v618, %v620
      %v622 = vrot.slane %v608, %v621
      %v623 = vcombine.high %v615, %v615
      %v624 = vcombine.high %v622, %v622
      %v625 = vcombine.high %v524, %v524
      %v627 = vunpack.c.l.s4 1983009808
      %v628 = vunpack.c.0.s8 %v627
      %v629 = vlaneseq
      %v630 = vshrl.u32 %v629, 7
      %v631 = vsub.s32 %v628, %v630
      %v632 = vrot.slane %v524, %v631
      %v634 = vunpack.c.l.s4 1983009808
      %v635 = vunpack.c.0.s8 %v634
      %v636 = vlaneseq
      %v637 = vshrl.u32 %v636, 7
      %v638 = vsub.s32 %v635, %v637
      %v639 = vrot.slane %v625, %v638
      %v640 = vcombine.high %v632, %v632
      %v641 = vcombine.high %v639, %v639
      %v642 = vcombine.high %v525, %v525
      %v644 = vunpack.c.l.s4 1983009808
      %v645 = vunpack.c.0.s8 %v644
      %v646 = vlaneseq
      %v647 = vshrl.u32 %v646, 7
      %v648 = vsub.s32 %v645, %v647
      %v649 = vrot.slane %v525, %v648
      %v651 = vunpack.c.l.s4 1983009808
      %v652 = vunpack.c.0.s8 %v651
      %v653 = vlaneseq
      %v654 = vshrl.u32 %v653, 7
      %v655 = vsub.s32 %v652, %v654
      %v656 = vrot.slane %v642, %v655
      %v657 = vcombine.high %v649, %v649
      %v658 = vcombine.high %v656, %v656
      %v659 = vcombine.high %v526, %v526
      %v661 = vunpack.c.l.s4 1983009808
      %v662 = vunpack.c.0.s8 %v661
      %v663 = vlaneseq
      %v664 = vshrl.u32 %v663, 7
      %v665 = vsub.s32 %v662, %v664
      %v666 = vrot.slane %v526, %v665
      %v668 = vunpack.c.l.s4 1983009808
      %v669 = vunpack.c.0.s8 %v668
      %v670 = vlaneseq
      %v671 = vshrl.u32 %v670, 7
      %v672 = vsub.s32 %v669, %v671
      %v673 = vrot.slane %v659, %v672
      %v674 = vcombine.high %v666, %v666
      %v675 = vcombine.high %v673, %v673
      %v676 = vcombine.high %v527, %v527
      %v678 = vunpack.c.l.s4 1983009808
      %v679 = vunpack.c.0.s8 %v678
      %v680 = vlaneseq
      %v681 = vshrl.u32 %v680, 7
      %v682 = vsub.s32 %v679, %v681
      %v683 = vrot.slane %v527, %v682
      %v685 = vunpack.c.l.s4 1983009808
      %v686 = vunpack.c.0.s8 %v685
      %v687 = vlaneseq
      %v688 = vshrl.u32 %v687, 7
      %v689 = vsub.s32 %v686, %v688
      %v690 = vrot.slane %v676, %v689
      %v691 = vcombine.high %v683, %v683
      %v692 = vcombine.high %v690, %v690
      %v693 = vcombine.high %v528, %v528
      %v695 = vunpack.c.l.s4 1983009808
      %v696 = vunpack.c.0.s8 %v695
      %v697 = vlaneseq
      %v698 = vshrl.u32 %v697, 7
      %v699 = vsub.s32 %v696, %v698
      %v700 = vrot.slane %v528, %v699
      %v702 = vunpack.c.l.s4 1983009808
      %v703 = vunpack.c.0.s8 %v702
      %v704 = vlaneseq
      %v705 = vshrl.u32 %v704, 7
      %v706 = vsub.s32 %v703, %v705
      %v707 = vrot.slane %v693, %v706
      %v708 = vcombine.high %v700, %v700
      %v709 = vcombine.high %v707, %v707
      %v710 = vcombine.high %v529, %v529
      %v712 = vunpack.c.l.s4 1983009808
      %v713 = vunpack.c.0.s8 %v712
      %v714 = vlaneseq
      %v715 = vshrl.u32 %v714, 7
      %v716 = vsub.s32 %v713, %v715
      %v717 = vrot.slane %v529, %v716
      %v719 = vunpack.c.l.s4 1983009808
      %v720 = vunpack.c.0.s8 %v719
      %v721 = vlaneseq
      %v722 = vshrl.u32 %v721, 7
      %v723 = vsub.s32 %v720, %v722
      %v724 = vrot.slane %v710, %v723
      %v725 = vcombine.high %v717, %v717
      %v726 = vcombine.high %v724, %v724
      %v727 = vcombine.high %v530, %v530
      %v729 = vunpack.c.l.s4 1983009808
      %v730 = vunpack.c.0.s8 %v729
      %v731 = vlaneseq
      %v732 = vshrl.u32 %v731, 7
      %v733 = vsub.s32 %v730, %v732
      %v734 = vrot.slane %v530, %v733
      %v736 = vunpack.c.l.s4 1983009808
      %v737 = vunpack.c.0.s8 %v736
      %v738 = vlaneseq
      %v739 = vshrl.u32 %v738, 7
      %v740 = vsub.s32 %v737, %v739
      %v741 = vrot.slane %v727, %v740
      %v742 = vcombine.high %v734, %v734
      %v743 = vcombine.high %v741, %v741
      %v744 = vcombine.high %v531, %v531
      %v746 = vunpack.c.l.s4 1983009808
      %v747 = vunpack.c.0.s8 %v746
      %v748 = vlaneseq
      %v749 = vshrl.u32 %v748, 7
      %v750 = vsub.s32 %v747, %v749
      %v751 = vrot.slane %v531, %v750
      %v753 = vunpack.c.l.s4 1983009808
      %v754 = vunpack.c.0.s8 %v753
      %v755 = vlaneseq
      %v756 = vshrl.u32 %v755, 7
      %v757 = vsub.s32 %v754, %v756
      %v758 = vrot.slane %v744, %v757
      %v759 = vcombine.high %v751, %v751
      %v760 = vcombine.high %v758, %v758
      %v761 = vcombine.high %v532, %v532
      %v763 = vunpack.c.l.s4 1983009808
      %v764 = vunpack.c.0.s8 %v763
      %v765 = vlaneseq
      %v766 = vshrl.u32 %v765, 7
      %v767 = vsub.s32 %v764, %v766
      %v768 = vrot.slane %v532, %v767
      %v770 = vunpack.c.l.s4 1983009808
      %v771 = vunpack.c.0.s8 %v770
      %v772 = vlaneseq
      %v773 = vshrl.u32 %v772, 7
      %v774 = vsub.s32 %v771, %v773
      %v775 = vrot.slane %v761, %v774
      %v776 = vcombine.high %v768, %v768
      %v777 = vcombine.high %v775, %v775
      %v778 = vcombine.high %v533, %v533
      %v780 = vunpack.c.l.s4 1983009808
      %v781 = vunpack.c.0.s8 %v780
      %v782 = vlaneseq
      %v783 = vshrl.u32 %v782, 7
      %v784 = vsub.s32 %v781, %v783
      %v785 = vrot.slane %v533, %v784
      %v787 = vunpack.c.l.s4 1983009808
      %v788 = vunpack.c.0.s8 %v787
      %v789 = vlaneseq
      %v790 = vshrl.u32 %v789, 7
      %v791 = vsub.s32 %v788, %v790
      %v792 = vrot.slane %v778, %v791
      %v793 = vcombine.high %v785, %v785
      %v794 = vcombine.high %v792, %v792
      %v795 = vcombine.high %v534, %v534
      %v797 = vunpack.c.l.s4 1983009808
      %v798 = vunpack.c.0.s8 %v797
      %v799 = vlaneseq
      %v800 = vshrl.u32 %v799, 7
      %v801 = vsub.s32 %v798, %v800
      %v802 = vrot.slane %v534, %v801
      %v804 = vunpack.c.l.s4 1983009808
      %v805 = vunpack.c.0.s8 %v804
      %v806 = vlaneseq
      %v807 = vshrl.u32 %v806, 7
      %v808 = vsub.s32 %v805, %v807
      %v809 = vrot.slane %v795, %v808
      %v810 = vcombine.high %v802, %v802
      %v811 = vcombine.high %v809, %v809
      %v812 = vcombine.high %v535, %v535
      %v814 = vunpack.c.l.s4 1983009808
      %v815 = vunpack.c.0.s8 %v814
      %v816 = vlaneseq
      %v817 = vshrl.u32 %v816, 7
      %v818 = vsub.s32 %v815, %v817
      %v819 = vrot.slane %v535, %v818
      %v821 = vunpack.c.l.s4 1983009808
      %v822 = vunpack.c.0.s8 %v821
      %v823 = vlaneseq
      %v824 = vshrl.u32 %v823, 7
      %v825 = vsub.s32 %v822, %v824
      %v826 = vrot.slane %v812, %v825
      %v827 = vcombine.high %v819, %v819
      %v828 = vcombine.high %v826, %v826
      %vm829 = vcmask 31744
      %v831 = vsel %vm829, %v540, 0
      %vm833 = vcmask 1041408
      %v835 = vsel %vm833, %v564, 0
      %v838 = vsel %vm833, %v572, 0
      %v841 = vsel %vm833, %v571, 0
      %v844 = vsel %vm833, %v573, 0
      %v847 = vsel %vm833, %v581, 0
      %v850 = vsel %vm833, %v589, 0
      %v853 = vsel %vm833, %v588, 0
      %v856 = vsel %vm833, %v590, 0
      %v859 = vsel %vm833, %v598, 0
      %v862 = vsel %vm833, %v606, 0
      %v865 = vsel %vm833, %v605, 0
      %v868 = vsel %vm833, %v607, 0
      %v871 = vsel %vm833, %v615, 0
      %v874 = vsel %vm833, %v623, 0
      %v877 = vsel %vm833, %v622, 0
      %v880 = vsel %vm833, %v624, 0
      %v883 = vsel %vm833, %v632, 0
      %v886 = vsel %vm833, %v640, 0
      %v889 = vsel %vm833, %v639, 0
      %v892 = vsel %vm833, %v641, 0
      %v895 = vsel %vm833, %v649, 0
      %v898 = vsel %vm833, %v657, 0
      %v901 = vsel %vm833, %v656, 0
      %v904 = vsel %vm833, %v658, 0
      %v907 = vsel %vm833, %v666, 0
      %v910 = vsel %vm833, %v674, 0
      %v913 = vsel %vm833, %v673, 0
      %v916 = vsel %vm833, %v675, 0
      %v919 = vsel %vm833, %v683, 0
      %v922 = vsel %vm833, %v691, 0
      %v925 = vsel %vm833, %v690, 0
      %v928 = vsel %vm833, %v692, 0
      %v931 = vsel %vm833, %v700, 0
      %v934 = vsel %vm833, %v708, 0
      %v937 = vsel %vm833, %v707, 0
      %v940 = vsel %vm833, %v709, 0
      %v943 = vsel %vm833, %v717, 0
      %v946 = vsel %vm833, %v725, 0
      %v949 = vsel %vm833, %v724, 0
      %v952 = vsel %vm833, %v726, 0
      %v955 = vsel %vm833, %v734, 0
      %v958 = vsel %vm833, %v742, 0
      %v961 = vsel %vm833, %v741, 0
      %v964 = vsel %vm833, %v743, 0
      %v967 = vsel %vm833, %v751, 0
      %v970 = vsel %vm833, %v759, 0
      %v973 = vsel %vm833, %v758, 0
      %v976 = vsel %vm833, %v760, 0
      %v979 = vsel %vm833, %v768, 0
      %v982 = vsel %vm833, %v776, 0
      %v985 = vsel %vm833, %v775, 0
      %v988 = vsel %vm833, %v777, 0
      %v991 = vsel %vm833, %v785, 0
      %v994 = vsel %vm833, %v793, 0
      %v997 = vsel %vm833, %v792, 0
      %v1000 = vsel %vm833, %v794, 0
      %v1003 = vsel %vm833, %v802, 0
      %v1006 = vsel %vm833, %v810, 0
      %v1009 = vsel %vm833, %v809, 0
      %v1012 = vsel %vm833, %v811, 0
      %v1015 = vsel %vm833, %v819, 0
      %v1018 = vsel %vm833, %v827, 0
      %v1021 = vsel %vm833, %v826, 0
      %v1024 = vsel %vm833, %v828, 0
      %1026 = vmatprep.subr.bf16.mxu0 %v838
      %1027 = vmatpush1.bf16.msra.mxu0 %v835
      %1028 = vmatprep.subr.bf16.mxu0 0
      %1029 = vmatpush1.bf16.msra.mxu0 0
      %1030 = vmatprep.subr.bf16.mxu0 0
      %1031 = vmatpush1.bf16.msra.mxu0 0
      %1032 = vmatprep.subr.bf16.mxu0 0
      %1033 = vmatpush1.bf16.msra.mxu0 0
      %1034 = vmatprep.subr.bf16.mxu0 0
      %1035 = vmatpush1.bf16.msra.mxu0 0
      %1036 = vmatprep.subr.bf16.mxu0 0
      %1037 = vmatpush1.bf16.msra.mxu0 0
      %1038 = vmatprep.subr.bf16.mxu0 0
      %1039 = vmatpush1.bf16.msra.mxu0 0
      %1040 = vmatprep.subr.bf16.mxu0 0
      %1041 = vmatpush1.bf16.msra.mxu0 0
      %1042 = vmatprep.subr.bf16.mxu0 0
      %1043 = vmatpush1.bf16.msra.mxu0 0
      %1044 = vmatprep.subr.bf16.mxu0 0
      %1045 = vmatpush1.bf16.msra.mxu0 0
      %1046 = vmatprep.subr.bf16.mxu0 0
      %1047 = vmatpush1.bf16.msra.mxu0 0
      %1048 = vmatprep.subr.bf16.mxu0 0
      %1049 = vmatpush1.bf16.msra.mxu0 0
      %1050 = vmatprep.subr.bf16.mxu0 0
      %1051 = vmatpush1.bf16.msra.mxu0 0
      %1052 = vmatprep.subr.bf16.mxu0 0
      %1053 = vmatpush1.bf16.msra.mxu0 0
      %1054 = vmatprep.subr.bf16.mxu0 0
      %1055 = vmatpush1.bf16.msra.mxu0 0
      %1056 = vmatprep.subr.bf16.mxu0 0
      %1057 = vmatpush1.bf16.msra.mxu0 0
      %1058 = vmatprep.mubr.bf16.mxu0 0
      %1059 = vmatmul.mubr.bf16.gmra.mrb[0].mxu0 %v831
      %v1060 = vpop.f32.mrb[0].mxu0
      %v1061 = vadd.f32 0.0, %v1060
      %v1062 = vpop.f32.mrb[0].mxu0
      %v1063 = vadd.f32 0.0, %v1062
      %v1064 = vpop.f32.mrb[0].mxu0
      %v1065 = vadd.f32 0.0, %v1064
      %v1066 = vpop.f32.mrb[0].mxu0
      %v1067 = vadd.f32 0.0, %v1066
      %1068 = vdwg.mxu0
      %1069 = vmatprep.subr.bf16.mxu0 %v844
      %1070 = vmatpush1.bf16.msra.mxu0 %v841
      %1071 = vmatprep.subr.bf16.mxu0 0
      %1072 = vmatpush1.bf16.msra.mxu0 0
      %1073 = vmatprep.subr.bf16.mxu0 0
      %1074 = vmatpush1.bf16.msra.mxu0 0
      %1075 = vmatprep.subr.bf16.mxu0 0
      %1076 = vmatpush1.bf16.msra.mxu0 0
      %1077 = vmatprep.subr.bf16.mxu0 0
      %1078 = vmatpush1.bf16.msra.mxu0 0
      %1079 = vmatprep.subr.bf16.mxu0 0
      %1080 = vmatpush1.bf16.msra.mxu0 0
      %1081 = vmatprep.subr.bf16.mxu0 0
      %1082 = vmatpush1.bf16.msra.mxu0 0
      %1083 = vmatprep.subr.bf16.mxu0 0
      %1084 = vmatpush1.bf16.msra.mxu0 0
      %1085 = vmatprep.subr.bf16.mxu0 0
      %1086 = vmatpush1.bf16.msra.mxu0 0
      %1087 = vmatprep.subr.bf16.mxu0 0
      %1088 = vmatpush1.bf16.msra.mxu0 0
      %1089 = vmatprep.subr.bf16.mxu0 0
      %1090 = vmatpush1.bf16.msra.mxu0 0
      %1091 = vmatprep.subr.bf16.mxu0 0
      %1092 = vmatpush1.bf16.msra.mxu0 0
      %1093 = vmatprep.subr.bf16.mxu0 0
      %1094 = vmatpush1.bf16.msra.mxu0 0
      %1095 = vmatprep.subr.bf16.mxu0 0
      %1096 = vmatpush1.bf16.msra.mxu0 0
      %1097 = vmatprep.subr.bf16.mxu0 0
      %1098 = vmatpush1.bf16.msra.mxu0 0
      %1099 = vmatprep.subr.bf16.mxu0 0
      %1100 = vmatpush1.bf16.msra.mxu0 0
      %1101 = vmatprep.mubr.bf16.mxu0 0
      %1102 = vmatmul.mubr.bf16.gmra.mrb[0].mxu0 %v831
      %v1103 = vpop.f32.mrb[0].mxu0
      %v1104 = vadd.f32 0.0, %v1103
      %v1105 = vpop.f32.mrb[0].mxu0
      %v1106 = vadd.f32 0.0, %v1105
      %v1107 = vpop.f32.mrb[0].mxu0
      %v1108 = vadd.f32 0.0, %v1107
      %v1109 = vpop.f32.mrb[0].mxu0
      %v1110 = vadd.f32 0.0, %v1109
      %1111 = vdwg.mxu0
      %1112 = vmatprep.subr.bf16.mxu0 %v850
      %1113 = vmatpush1.bf16.msra.mxu0 %v847
      %1114 = vmatprep.subr.bf16.mxu0 0
      %1115 = vmatpush1.bf16.msra.mxu0 0
      %1116 = vmatprep.subr.bf16.mxu0 0
      %1117 = vmatpush1.bf16.msra.mxu0 0
      %1118 = vmatprep.subr.bf16.mxu0 0
      %1119 = vmatpush1.bf16.msra.mxu0 0
      %1120 = vmatprep.subr.bf16.mxu0 0
      %1121 = vmatpush1.bf16.msra.mxu0 0
      %1122 = vmatprep.subr.bf16.mxu0 0
      %1123 = vmatpush1.bf16.msra.mxu0 0
      %1124 = vmatprep.subr.bf16.mxu0 0
      %1125 = vmatpush1.bf16.msra.mxu0 0
      %1126 = vmatprep.subr.bf16.mxu0 0
      %1127 = vmatpush1.bf16.msra.mxu0 0
      %1128 = vmatprep.subr.bf16.mxu0 0
      %1129 = vmatpush1.bf16.msra.mxu0 0
      %1130 = vmatprep.subr.bf16.mxu0 0
      %1131 = vmatpush1.bf16.msra.mxu0 0
      %1132 = vmatprep.subr.bf16.mxu0 0
      %1133 = vmatpush1.bf16.msra.mxu0 0
      %1134 = vmatprep.subr.bf16.mxu0 0
      %1135 = vmatpush1.bf16.msra.mxu0 0
      %1136 = vmatprep.subr.bf16.mxu0 0
      %1137 = vmatpush1.bf16.msra.mxu0 0
      %1138 = vmatprep.subr.bf16.mxu0 0
      %1139 = vmatpush1.bf16.msra.mxu0 0
      %1140 = vmatprep.subr.bf16.mxu0 0
      %1141 = vmatpush1.bf16.msra.mxu0 0
      %1142 = vmatprep.subr.bf16.mxu0 0
      %1143 = vmatpush1.bf16.msra.mxu0 0
      %1144 = vmatprep.mubr.bf16.mxu0 0
      %1145 = vmatmul.mubr.bf16.gmra.mrb[0].mxu0 %v831
      %v1146 = vpop.f32.mrb[0].mxu0
      %v1147 = vadd.f32 0.0, %v1146
      %v1148 = vpop.f32.mrb[0].mxu0
      %v1149 = vadd.f32 0.0, %v1148
      %v1150 = vpop.f32.mrb[0].mxu0
      %v1151 = vadd.f32 0.0, %v1150
      %v1152 = vpop.f32.mrb[0].mxu0
      %v1153 = vadd.f32 0.0, %v1152
      %1154 = vdwg.mxu0
      %1155 = vmatprep.subr.bf16.mxu0 %v856
      %1156 = vmatpush1.bf16.msra.mxu0 %v853
      %1157 = vmatprep.subr.bf16.mxu0 0
      %1158 = vmatpush1.bf16.msra.mxu0 0
      %1159 = vmatprep.subr.bf16.mxu0 0
      %1160 = vmatpush1.bf16.msra.mxu0 0
      %1161 = vmatprep.subr.bf16.mxu0 0
      %1162 = vmatpush1.bf16.msra.mxu0 0
      %1163 = vmatprep.subr.bf16.mxu0 0
      %1164 = vmatpush1.bf16.msra.mxu0 0
      %1165 = vmatprep.subr.bf16.mxu0 0
      %1166 = vmatpush1.bf16.msra.mxu0 0
      %1167 = vmatprep.subr.bf16.mxu0 0
      %1168 = vmatpush1.bf16.msra.mxu0 0
      %1169 = vmatprep.subr.bf16.mxu0 0
      %1170 = vmatpush1.bf16.msra.mxu0 0
      %1171 = vmatprep.subr.bf16.mxu0 0
      %1172 = vmatpush1.bf16.msra.mxu0 0
      %1173 = vmatprep.subr.bf16.mxu0 0
      %1174 = vmatpush1.bf16.msra.mxu0 0
      %1175 = vmatprep.subr.bf16.mxu0 0
      %1176 = vmatpush1.bf16.msra.mxu0 0
      %1177 = vmatprep.subr.bf16.mxu0 0
      %1178 = vmatpush1.bf16.msra.mxu0 0
      %1179 = vmatprep.subr.bf16.mxu0 0
      %1180 = vmatpush1.bf16.msra.mxu0 0
      %1181 = vmatprep.subr.bf16.mxu0 0
      %1182 = vmatpush1.bf16.msra.mxu0 0
      %1183 = vmatprep.subr.bf16.mxu0 0
      %1184 = vmatpush1.bf16.msra.mxu0 0
      %1185 = vmatprep.subr.bf16.mxu0 0
      %1186 = vmatpush1.bf16.msra.mxu0 0
      %1187 = vmatprep.mubr.bf16.mxu0 0
      %1188 = vmatmul.mubr.bf16.gmra.mrb[0].mxu0 %v831
      %v1189 = vpop.f32.mrb[0].mxu0
      %v1190 = vadd.f32 0.0, %v1189
      %v1191 = vpop.f32.mrb[0].mxu0
      %v1192 = vadd.f32 0.0, %v1191
      %v1193 = vpop.f32.mrb[0].mxu0
      %v1194 = vadd.f32 0.0, %v1193
      %v1195 = vpop.f32.mrb[0].mxu0
      %v1196 = vadd.f32 0.0, %v1195
      %1197 = vdwg.mxu0
      %1198 = vmatprep.subr.bf16.mxu0 %v862
      %1199 = vmatpush1.bf16.msra.mxu0 %v859
      %1200 = vmatprep.subr.bf16.mxu0 0
      %1201 = vmatpush1.bf16.msra.mxu0 0
      %1202 = vmatprep.subr.bf16.mxu0 0
      %1203 = vmatpush1.bf16.msra.mxu0 0
      %1204 = vmatprep.subr.bf16.mxu0 0
      %1205 = vmatpush1.bf16.msra.mxu0 0
      %1206 = vmatprep.subr.bf16.mxu0 0
      %1207 = vmatpush1.bf16.msra.mxu0 0
      %1208 = vmatprep.subr.bf16.mxu0 0
      %1209 = vmatpush1.bf16.msra.mxu0 0
      %1210 = vmatprep.subr.bf16.mxu0 0
      %1211 = vmatpush1.bf16.msra.mxu0 0
      %1212 = vmatprep.subr.bf16.mxu0 0
      %1213 = vmatpush1.bf16.msra.mxu0 0
      %1214 = vmatprep.subr.bf16.mxu0 0
      %1215 = vmatpush1.bf16.msra.mxu0 0
      %1216 = vmatprep.subr.bf16.mxu0 0
      %1217 = vmatpush1.bf16.msra.mxu0 0
      %1218 = vmatprep.subr.bf16.mxu0 0
      %1219 = vmatpush1.bf16.msra.mxu0 0
      %1220 = vmatprep.subr.bf16.mxu0 0
      %1221 = vmatpush1.bf16.msra.mxu0 0
      %1222 = vmatprep.subr.bf16.mxu0 0
      %1223 = vmatpush1.bf16.msra.mxu0 0
      %1224 = vmatprep.subr.bf16.mxu0 0
      %1225 = vmatpush1.bf16.msra.mxu0 0
      %1226 = vmatprep.subr.bf16.mxu0 0
      %1227 = vmatpush1.bf16.msra.mxu0 0
      %1228 = vmatprep.subr.bf16.mxu0 0
      %1229 = vmatpush1.bf16.msra.mxu0 0
      %1230 = vmatprep.mubr.bf16.mxu0 0
      %1231 = vmatmul.mubr.bf16.gmra.mrb[0].mxu0 %v831
      %v1232 = vpop.f32.mrb[0].mxu0
      %v1233 = vadd.f32 0.0, %v1232
      %v1234 = vpop.f32.mrb[0].mxu0
      %v1235 = vadd.f32 0.0, %v1234
      %v1236 = vpop.f32.mrb[0].mxu0
      %v1237 = vadd.f32 0.0, %v1236
      %v1238 = vpop.f32.mrb[0].mxu0
      %v1239 = vadd.f32 0.0, %v1238
      %1240 = vdwg.mxu0
      %1241 = vmatprep.subr.bf16.mxu0 %v868
      %1242 = vmatpush1.bf16.msra.mxu0 %v865
      %1243 = vmatprep.subr.bf16.mxu0 0
      %1244 = vmatpush1.bf16.msra.mxu0 0
      %1245 = vmatprep.subr.bf16.mxu0 0
      %1246 = vmatpush1.bf16.msra.mxu0 0
      %1247 = vmatprep.subr.bf16.mxu0 0
      %1248 = vmatpush1.bf16.msra.mxu0 0
      %1249 = vmatprep.subr.bf16.mxu0 0
      %1250 = vmatpush1.bf16.msra.mxu0 0
      %1251 = vmatprep.subr.bf16.mxu0 0
      %1252 = vmatpush1.bf16.msra.mxu0 0
      %1253 = vmatprep.subr.bf16.mxu0 0
      %1254 = vmatpush1.bf16.msra.mxu0 0
      %1255 = vmatprep.subr.bf16.mxu0 0
      %1256 = vmatpush1.bf16.msra.mxu0 0
      %1257 = vmatprep.subr.bf16.mxu0 0
      %1258 = vmatpush1.bf16.msra.mxu0 0
      %1259 = vmatprep.subr.bf16.mxu0 0
      %1260 = vmatpush1.bf16.msra.mxu0 0
      %1261 = vmatprep.subr.bf16.mxu0 0
      %1262 = vmatpush1.bf16.msra.mxu0 0
      %1263 = vmatprep.subr.bf16.mxu0 0
      %1264 = vmatpush1.bf16.msra.mxu0 0
      %1265 = vmatprep.subr.bf16.mxu0 0
      %1266 = vmatpush1.bf16.msra.mxu0 0
      %1267 = vmatprep.subr.bf16.mxu0 0
      %1268 = vmatpush1.bf16.msra.mxu0 0
      %1269 = vmatprep.subr.bf16.mxu0 0
      %1270 = vmatpush1.bf16.msra.mxu0 0
      %1271 = vmatprep.subr.bf16.mxu0 0
      %1272 = vmatpush1.bf16.msra.mxu0 0
      %1273 = vmatprep.mubr.bf16.mxu0 0
      %1274 = vmatmul.mubr.bf16.gmra.mrb[0].mxu0 %v831
      %v1275 = vpop.f32.mrb[0].mxu0
      %v1276 = vadd.f32 0.0, %v1275
      %v1277 = vpop.f32.mrb[0].mxu0
      %v1278 = vadd.f32 0.0, %v1277
      %v1279 = vpop.f32.mrb[0].mxu0
      %v1280 = vadd.f32 0.0, %v1279
      %v1281 = vpop.f32.mrb[0].mxu0
      %v1282 = vadd.f32 0.0, %v1281
      %1283 = vdwg.mxu0
      %1284 = vmatprep.subr.bf16.mxu0 %v874
      %1285 = vmatpush1.bf16.msra.mxu0 %v871
      %1286 = vmatprep.subr.bf16.mxu0 0
      %1287 = vmatpush1.bf16.msra.mxu0 0
      %1288 = vmatprep.subr.bf16.mxu0 0
      %1289 = vmatpush1.bf16.msra.mxu0 0
      %1290 = vmatprep.subr.bf16.mxu0 0
      %1291 = vmatpush1.bf16.msra.mxu0 0
      %1292 = vmatprep.subr.bf16.mxu0 0
      %1293 = vmatpush1.bf16.msra.mxu0 0
      %1294 = vmatprep.subr.bf16.mxu0 0
      %1295 = vmatpush1.bf16.msra.mxu0 0
      %1296 = vmatprep.subr.bf16.mxu0 0
      %1297 = vmatpush1.bf16.msra.mxu0 0
      %1298 = vmatprep.subr.bf16.mxu0 0
      %1299 = vmatpush1.bf16.msra.mxu0 0
      %1300 = vmatprep.subr.bf16.mxu0 0
      %1301 = vmatpush1.bf16.msra.mxu0 0
      %1302 = vmatprep.subr.bf16.mxu0 0
      %1303 = vmatpush1.bf16.msra.mxu0 0
      %1304 = vmatprep.subr.bf16.mxu0 0
      %1305 = vmatpush1.bf16.msra.mxu0 0
      %1306 = vmatprep.subr.bf16.mxu0 0
      %1307 = vmatpush1.bf16.msra.mxu0 0
      %1308 = vmatprep.subr.bf16.mxu0 0
      %1309 = vmatpush1.bf16.msra.mxu0 0
      %1310 = vmatprep.subr.bf16.mxu0 0
      %1311 = vmatpush1.bf16.msra.mxu0 0
      %1312 = vmatprep.subr.bf16.mxu0 0
      %1313 = vmatpush1.bf16.msra.mxu0 0
      %1314 = vmatprep.subr.bf16.mxu0 0
      %1315 = vmatpush1.bf16.msra.mxu0 0
      %1316 = vmatprep.mubr.bf16.mxu0 0
      %1317 = vmatmul.mubr.bf16.gmra.mrb[0].mxu0 %v831
      %v1318 = vpop.f32.mrb[0].mxu0
      %v1319 = vadd.f32 0.0, %v1318
      %v1320 = vpop.f32.mrb[0].mxu0
      %v1321 = vadd.f32 0.0, %v1320
      %v1322 = vpop.f32.mrb[0].mxu0
      %v1323 = vadd.f32 0.0, %v1322
      %v1324 = vpop.f32.mrb[0].mxu0
      %v1325 = vadd.f32 0.0, %v1324
      %1326 = vdwg.mxu0
      %1327 = vmatprep.subr.bf16.mxu0 %v880
      %1328 = vmatpush1.bf16.msra.mxu0 %v877
      %1329 = vmatprep.subr.bf16.mxu0 0
      %1330 = vmatpush1.bf16.msra.mxu0 0
      %1331 = vmatprep.subr.bf16.mxu0 0
      %1332 = vmatpush1.bf16.msra.mxu0 0
      %1333 = vmatprep.subr.bf16.mxu0 0
      %1334 = vmatpush1.bf16.msra.mxu0 0
      %1335 = vmatprep.subr.bf16.mxu0 0
      %1336 = vmatpush1.bf16.msra.mxu0 0
      %1337 = vmatprep.subr.bf16.mxu0 0
      %1338 = vmatpush1.bf16.msra.mxu0 0
      %1339 = vmatprep.subr.bf16.mxu0 0
      %1340 = vmatpush1.bf16.msra.mxu0 0
      %1341 = vmatprep.subr.bf16.mxu0 0
      %1342 = vmatpush1.bf16.msra.mxu0 0
      %1343 = vmatprep.subr.bf16.mxu0 0
      %1344 = vmatpush1.bf16.msra.mxu0 0
      %1345 = vmatprep.subr.bf16.mxu0 0
      %1346 = vmatpush1.bf16.msra.mxu0 0
      %1347 = vmatprep.subr.bf16.mxu0 0
      %1348 = vmatpush1.bf16.msra.mxu0 0
      %1349 = vmatprep.subr.bf16.mxu0 0
      %1350 = vmatpush1.bf16.msra.mxu0 0
      %1351 = vmatprep.subr.bf16.mxu0 0
      %1352 = vmatpush1.bf16.msra.mxu0 0
      %1353 = vmatprep.subr.bf16.mxu0 0
      %1354 = vmatpush1.bf16.msra.mxu0 0
      %1355 = vmatprep.subr.bf16.mxu0 0
      %1356 = vmatpush1.bf16.msra.mxu0 0
      %1357 = vmatprep.subr.bf16.mxu0 0
      %1358 = vmatpush1.bf16.msra.mxu0 0
      %1359 = vmatprep.mubr.bf16.mxu0 0
      %1360 = vmatmul.mubr.bf16.gmra.mrb[0].mxu0 %v831
      %v1361 = vpop.f32.mrb[0].mxu0
      %v1362 = vadd.f32 0.0, %v1361
      %v1363 = vpop.f32.mrb[0].mxu0
      %v1364 = vadd.f32 0.0, %v1363
      %v1365 = vpop.f32.mrb[0].mxu0
      %v1366 = vadd.f32 0.0, %v1365
      %v1367 = vpop.f32.mrb[0].mxu0
      %v1368 = vadd.f32 0.0, %v1367
      %1369 = vdwg.mxu0
      %1370 = vmatprep.subr.bf16.mxu0 %v886
      %1371 = vmatpush1.bf16.msra.mxu0 %v883
      %1372 = vmatprep.subr.bf16.mxu0 0
      %1373 = vmatpush1.bf16.msra.mxu0 0
      %1374 = vmatprep.subr.bf16.mxu0 0
      %1375 = vmatpush1.bf16.msra.mxu0 0
      %1376 = vmatprep.subr.bf16.mxu0 0
      %1377 = vmatpush1.bf16.msra.mxu0 0
      %1378 = vmatprep.subr.bf16.mxu0 0
      %1379 = vmatpush1.bf16.msra.mxu0 0
      %1380 = vmatprep.subr.bf16.mxu0 0
      %1381 = vmatpush1.bf16.msra.mxu0 0
      %1382 = vmatprep.subr.bf16.mxu0 0
      %1383 = vmatpush1.bf16.msra.mxu0 0
      %1384 = vmatprep.subr.bf16.mxu0 0
      %1385 = vmatpush1.bf16.msra.mxu0 0
      %1386 = vmatprep.subr.bf16.mxu0 0
      %1387 = vmatpush1.bf16.msra.mxu0 0
      %1388 = vmatprep.subr.bf16.mxu0 0
      %1389 = vmatpush1.bf16.msra.mxu0 0
      %1390 = vmatprep.subr.bf16.mxu0 0
      %1391 = vmatpush1.bf16.msra.mxu0 0
      %1392 = vmatprep.subr.bf16.mxu0 0
      %1393 = vmatpush1.bf16.msra.mxu0 0
      %1394 = vmatprep.subr.bf16.mxu0 0
      %1395 = vmatpush1.bf16.msra.mxu0 0
      %1396 = vmatprep.subr.bf16.mxu0 0
      %1397 = vmatpush1.bf16.msra.mxu0 0
      %1398 = vmatprep.subr.bf16.mxu0 0
      %1399 = vmatpush1.bf16.msra.mxu0 0
      %1400 = vmatprep.subr.bf16.mxu0 0
      %1401 = vmatpush1.bf16.msra.mxu0 0
      %1402 = vmatprep.mubr.bf16.mxu0 0
      %1403 = vmatmul.mubr.bf16.gmra.mrb[0].mxu0 %v831
      %v1404 = vpop.f32.mrb[0].mxu0
      %v1405 = vadd.f32 0.0, %v1404
      %v1406 = vpop.f32.mrb[0].mxu0
      %v1407 = vadd.f32 0.0, %v1406
      %v1408 = vpop.f32.mrb[0].mxu0
      %v1409 = vadd.f32 0.0, %v1408
      %v1410 = vpop.f32.mrb[0].mxu0
      %v1411 = vadd.f32 0.0, %v1410
      %1412 = vdwg.mxu0
      %1413 = vmatprep.subr.bf16.mxu0 %v892
      %1414 = vmatpush1.bf16.msra.mxu0 %v889
      %1415 = vmatprep.subr.bf16.mxu0 0
      %1416 = vmatpush1.bf16.msra.mxu0 0
      %1417 = vmatprep.subr.bf16.mxu0 0
      %1418 = vmatpush1.bf16.msra.mxu0 0
      %1419 = vmatprep.subr.bf16.mxu0 0
      %1420 = vmatpush1.bf16.msra.mxu0 0
      %1421 = vmatprep.subr.bf16.mxu0 0
      %1422 = vmatpush1.bf16.msra.mxu0 0
      %1423 = vmatprep.subr.bf16.mxu0 0
      %1424 = vmatpush1.bf16.msra.mxu0 0
      %1425 = vmatprep.subr.bf16.mxu0 0
      %1426 = vmatpush1.bf16.msra.mxu0 0
      %1427 = vmatprep.subr.bf16.mxu0 0
      %1428 = vmatpush1.bf16.msra.mxu0 0
      %1429 = vmatprep.subr.bf16.mxu0 0
      %1430 = vmatpush1.bf16.msra.mxu0 0
      %1431 = vmatprep.subr.bf16.mxu0 0
      %1432 = vmatpush1.bf16.msra.mxu0 0
      %1433 = vmatprep.subr.bf16.mxu0 0
      %1434 = vmatpush1.bf16.msra.mxu0 0
      %1435 = vmatprep.subr.bf16.mxu0 0
      %1436 = vmatpush1.bf16.msra.mxu0 0
      %1437 = vmatprep.subr.bf16.mxu0 0
      %1438 = vmatpush1.bf16.msra.mxu0 0
      %1439 = vmatprep.subr.bf16.mxu0 0
      %1440 = vmatpush1.bf16.msra.mxu0 0
      %1441 = vmatprep.subr.bf16.mxu0 0
      %1442 = vmatpush1.bf16.msra.mxu0 0
      %1443 = vmatprep.subr.bf16.mxu0 0
      %1444 = vmatpush1.bf16.msra.mxu0 0
      %1445 = vmatprep.mubr.bf16.mxu0 0
      %1446 = vmatmul.mubr.bf16.gmra.mrb[0].mxu0 %v831
      %v1447 = vpop.f32.mrb[0].mxu0
      %v1448 = vadd.f32 0.0, %v1447
      %v1449 = vpop.f32.mrb[0].mxu0
      %v1450 = vadd.f32 0.0, %v1449
      %v1451 = vpop.f32.mrb[0].mxu0
      %v1452 = vadd.f32 0.0, %v1451
      %v1453 = vpop.f32.mrb[0].mxu0
      %v1454 = vadd.f32 0.0, %v1453
      %1455 = vdwg.mxu0
      %1456 = vmatprep.subr.bf16.mxu0 %v898
      %1457 = vmatpush1.bf16.msra.mxu0 %v895
      %1458 = vmatprep.subr.bf16.mxu0 0
      %1459 = vmatpush1.bf16.msra.mxu0 0
      %1460 = vmatprep.subr.bf16.mxu0 0
      %1461 = vmatpush1.bf16.msra.mxu0 0
      %1462 = vmatprep.subr.bf16.mxu0 0
      %1463 = vmatpush1.bf16.msra.mxu0 0
      %1464 = vmatprep.subr.bf16.mxu0 0
      %1465 = vmatpush1.bf16.msra.mxu0 0
      %1466 = vmatprep.subr.bf16.mxu0 0
      %1467 = vmatpush1.bf16.msra.mxu0 0
      %1468 = vmatprep.subr.bf16.mxu0 0
      %1469 = vmatpush1.bf16.msra.mxu0 0
      %1470 = vmatprep.subr.bf16.mxu0 0
      %1471 = vmatpush1.bf16.msra.mxu0 0
      %1472 = vmatprep.subr.bf16.mxu0 0
      %1473 = vmatpush1.bf16.msra.mxu0 0
      %1474 = vmatprep.subr.bf16.mxu0 0
      %1475 = vmatpush1.bf16.msra.mxu0 0
      %1476 = vmatprep.subr.bf16.mxu0 0
      %1477 = vmatpush1.bf16.msra.mxu0 0
      %1478 = vmatprep.subr.bf16.mxu0 0
      %1479 = vmatpush1.bf16.msra.mxu0 0
      %1480 = vmatprep.subr.bf16.mxu0 0
      %1481 = vmatpush1.bf16.msra.mxu0 0
      %1482 = vmatprep.subr.bf16.mxu0 0
      %1483 = vmatpush1.bf16.msra.mxu0 0
      %1484 = vmatprep.subr.bf16.mxu0 0
      %1485 = vmatpush1.bf16.msra.mxu0 0
      %1486 = vmatprep.subr.bf16.mxu0 0
      %1487 = vmatpush1.bf16.msra.mxu0 0
      %1488 = vmatprep.mubr.bf16.mxu0 0
      %1489 = vmatmul.mubr.bf16.gmra.mrb[0].mxu0 %v831
      %v1490 = vpop.f32.mrb[0].mxu0
      %v1491 = vadd.f32 0.0, %v1490
      %v1492 = vpop.f32.mrb[0].mxu0
      %v1493 = vadd.f32 0.0, %v1492
      %v1494 = vpop.f32.mrb[0].mxu0
      %v1495 = vadd.f32 0.0, %v1494
      %v1496 = vpop.f32.mrb[0].mxu0
      %v1497 = vadd.f32 0.0, %v1496
      %1498 = vdwg.mxu0
      %1499 = vmatprep.subr.bf16.mxu0 %v904
      %1500 = vmatpush1.bf16.msra.mxu0 %v901
      %1501 = vmatprep.subr.bf16.mxu0 0
      %1502 = vmatpush1.bf16.msra.mxu0 0
      %1503 = vmatprep.subr.bf16.mxu0 0
      %1504 = vmatpush1.bf16.msra.mxu0 0
      %1505 = vmatprep.subr.bf16.mxu0 0
      %1506 = vmatpush1.bf16.msra.mxu0 0
      %1507 = vmatprep.subr.bf16.mxu0 0
      %1508 = vmatpush1.bf16.msra.mxu0 0
      %1509 = vmatprep.subr.bf16.mxu0 0
      %1510 = vmatpush1.bf16.msra.mxu0 0
      %1511 = vmatprep.subr.bf16.mxu0 0
      %1512 = vmatpush1.bf16.msra.mxu0 0
      %1513 = vmatprep.subr.bf16.mxu0 0
      %1514 = vmatpush1.bf16.msra.mxu0 0
      %1515 = vmatprep.subr.bf16.mxu0 0
      %1516 = vmatpush1.bf16.msra.mxu0 0
      %1517 = vmatprep.subr.bf16.mxu0 0
      %1518 = vmatpush1.bf16.msra.mxu0 0
      %1519 = vmatprep.subr.bf16.mxu0 0
      %1520 = vmatpush1.bf16.msra.mxu0 0
      %1521 = vmatprep.subr.bf16.mxu0 0
      %1522 = vmatpush1.bf16.msra.mxu0 0
      %1523 = vmatprep.subr.bf16.mxu0 0
      %1524 = vmatpush1.bf16.msra.mxu0 0
      %1525 = vmatprep.subr.bf16.mxu0 0
      %1526 = vmatpush1.bf16.msra.mxu0 0
      %1527 = vmatprep.subr.bf16.mxu0 0
      %1528 = vmatpush1.bf16.msra.mxu0 0
      %1529 = vmatprep.subr.bf16.mxu0 0
      %1530 = vmatpush1.bf16.msra.mxu0 0
      %1531 = vmatprep.mubr.bf16.mxu0 0
      %1532 = vmatmul.mubr.bf16.gmra.mrb[0].mxu0 %v831
      %v1533 = vpop.f32.mrb[0].mxu0
      %v1534 = vadd.f32 0.0, %v1533
      %v1535 = vpop.f32.mrb[0].mxu0
      %v1536 = vadd.f32 0.0, %v1535
      %v1537 = vpop.f32.mrb[0].mxu0
      %v1538 = vadd.f32 0.0, %v1537
      %v1539 = vpop.f32.mrb[0].mxu0
      %v1540 = vadd.f32 0.0, %v1539
      %1541 = vdwg.mxu0
      %1542 = vmatprep.subr.bf16.mxu0 %v910
      %1543 = vmatpush1.bf16.msra.mxu0 %v907
      %1544 = vmatprep.subr.bf16.mxu0 0
      %1545 = vmatpush1.bf16.msra.mxu0 0
      %1546 = vmatprep.subr.bf16.mxu0 0
      %1547 = vmatpush1.bf16.msra.mxu0 0
      %1548 = vmatprep.subr.bf16.mxu0 0
      %1549 = vmatpush1.bf16.msra.mxu0 0
      %1550 = vmatprep.subr.bf16.mxu0 0
      %1551 = vmatpush1.bf16.msra.mxu0 0
      %1552 = vmatprep.subr.bf16.mxu0 0
      %1553 = vmatpush1.bf16.msra.mxu0 0
      %1554 = vmatprep.subr.bf16.mxu0 0
      %1555 = vmatpush1.bf16.msra.mxu0 0
      %1556 = vmatprep.subr.bf16.mxu0 0
      %1557 = vmatpush1.bf16.msra.mxu0 0
      %1558 = vmatprep.subr.bf16.mxu0 0
      %1559 = vmatpush1.bf16.msra.mxu0 0
      %1560 = vmatprep.subr.bf16.mxu0 0
      %1561 = vmatpush1.bf16.msra.mxu0 0
      %1562 = vmatprep.subr.bf16.mxu0 0
      %1563 = vmatpush1.bf16.msra.mxu0 0
      %1564 = vmatprep.subr.bf16.mxu0 0
      %1565 = vmatpush1.bf16.msra.mxu0 0
      %1566 = vmatprep.subr.bf16.mxu0 0
      %1567 = vmatpush1.bf16.msra.mxu0 0
      %1568 = vmatprep.subr.bf16.mxu0 0
      %1569 = vmatpush1.bf16.msra.mxu0 0
      %1570 = vmatprep.subr.bf16.mxu0 0
      %1571 = vmatpush1.bf16.msra.mxu0 0
      %1572 = vmatprep.subr.bf16.mxu0 0
      %1573 = vmatpush1.bf16.msra.mxu0 0
      %1574 = vmatprep.mubr.bf16.mxu0 0
      %1575 = vmatmul.mubr.bf16.gmra.mrb[0].mxu0 %v831
      %v1576 = vpop.f32.mrb[0].mxu0
      %v1577 = vadd.f32 0.0, %v1576
      %v1578 = vpop.f32.mrb[0].mxu0
      %v1579 = vadd.f32 0.0, %v1578
      %v1580 = vpop.f32.mrb[0].mxu0
      %v1581 = vadd.f32 0.0, %v1580
      %v1582 = vpop.f32.mrb[0].mxu0
      %v1583 = vadd.f32 0.0, %v1582
      %1584 = vdwg.mxu0
      %1585 = vmatprep.subr.bf16.mxu0 %v916
      %1586 = vmatpush1.bf16.msra.mxu0 %v913
      %1587 = vmatprep.subr.bf16.mxu0 0
      %1588 = vmatpush1.bf16.msra.mxu0 0
      %1589 = vmatprep.subr.bf16.mxu0 0
      %1590 = vmatpush1.bf16.msra.mxu0 0
      %1591 = vmatprep.subr.bf16.mxu0 0
      %1592 = vmatpush1.bf16.msra.mxu0 0
      %1593 = vmatprep.subr.bf16.mxu0 0
      %1594 = vmatpush1.bf16.msra.mxu0 0
      %1595 = vmatprep.subr.bf16.mxu0 0
      %1596 = vmatpush1.bf16.msra.mxu0 0
      %1597 = vmatprep.subr.bf16.mxu0 0
      %1598 = vmatpush1.bf16.msra.mxu0 0
      %1599 = vmatprep.subr.bf16.mxu0 0
      %1600 = vmatpush1.bf16.msra.mxu0 0
      %1601 = vmatprep.subr.bf16.mxu0 0
      %1602 = vmatpush1.bf16.msra.mxu0 0
      %1603 = vmatprep.subr.bf16.mxu0 0
      %1604 = vmatpush1.bf16.msra.mxu0 0
      %1605 = vmatprep.subr.bf16.mxu0 0
      %1606 = vmatpush1.bf16.msra.mxu0 0
      %1607 = vmatprep.subr.bf16.mxu0 0
      %1608 = vmatpush1.bf16.msra.mxu0 0
      %1609 = vmatprep.subr.bf16.mxu0 0
      %1610 = vmatpush1.bf16.msra.mxu0 0
      %1611 = vmatprep.subr.bf16.mxu0 0
      %1612 = vmatpush1.bf16.msra.mxu0 0
      %1613 = vmatprep.subr.bf16.mxu0 0
      %1614 = vmatpush1.bf16.msra.mxu0 0
      %1615 = vmatprep.subr.bf16.mxu0 0
      %1616 = vmatpush1.bf16.msra.mxu0 0
      %1617 = vmatprep.mubr.bf16.mxu0 0
      %1618 = vmatmul.mubr.bf16.gmra.mrb[0].mxu0 %v831
      %v1619 = vpop.f32.mrb[0].mxu0
      %v1620 = vadd.f32 0.0, %v1619
      %v1621 = vpop.f32.mrb[0].mxu0
      %v1622 = vadd.f32 0.0, %v1621
      %v1623 = vpop.f32.mrb[0].mxu0
      %v1624 = vadd.f32 0.0, %v1623
      %v1625 = vpop.f32.mrb[0].mxu0
      %v1626 = vadd.f32 0.0, %v1625
      %1627 = vdwg.mxu0
      %1628 = vmatprep.subr.bf16.mxu0 %v922
      %1629 = vmatpush1.bf16.msra.mxu0 %v919
      %1630 = vmatprep.subr.bf16.mxu0 0
      %1631 = vmatpush1.bf16.msra.mxu0 0
      %1632 = vmatprep.subr.bf16.mxu0 0
      %1633 = vmatpush1.bf16.msra.mxu0 0
      %1634 = vmatprep.subr.bf16.mxu0 0
      %1635 = vmatpush1.bf16.msra.mxu0 0
      %1636 = vmatprep.subr.bf16.mxu0 0
      %1637 = vmatpush1.bf16.msra.mxu0 0
      %1638 = vmatprep.subr.bf16.mxu0 0
      %1639 = vmatpush1.bf16.msra.mxu0 0
      %1640 = vmatprep.subr.bf16.mxu0 0
      %1641 = vmatpush1.bf16.msra.mxu0 0
      %1642 = vmatprep.subr.bf16.mxu0 0
      %1643 = vmatpush1.bf16.msra.mxu0 0
      %1644 = vmatprep.subr.bf16.mxu0 0
      %1645 = vmatpush1.bf16.msra.mxu0 0
      %1646 = vmatprep.subr.bf16.mxu0 0
      %1647 = vmatpush1.bf16.msra.mxu0 0
      %1648 = vmatprep.subr.bf16.mxu0 0
      %1649 = vmatpush1.bf16.msra.mxu0 0
      %1650 = vmatprep.subr.bf16.mxu0 0
      %1651 = vmatpush1.bf16.msra.mxu0 0
      %1652 = vmatprep.subr.bf16.mxu0 0
      %1653 = vmatpush1.bf16.msra.mxu0 0
      %1654 = vmatprep.subr.bf16.mxu0 0
      %1655 = vmatpush1.bf16.msra.mxu0 0
      %1656 = vmatprep.subr.bf16.mxu0 0
      %1657 = vmatpush1.bf16.msra.mxu0 0
      %1658 = vmatprep.subr.bf16.mxu0 0
      %1659 = vmatpush1.bf16.msra.mxu0 0
      %1660 = vmatprep.mubr.bf16.mxu0 0
      %1661 = vmatmul.mubr.bf16.gmra.mrb[0].mxu0 %v831
      %v1662 = vpop.f32.mrb[0].mxu0
      %v1663 = vadd.f32 0.0, %v1662
      %v1664 = vpop.f32.mrb[0].mxu0
      %v1665 = vadd.f32 0.0, %v1664
      %v1666 = vpop.f32.mrb[0].mxu0
      %v1667 = vadd.f32 0.0, %v1666
      %v1668 = vpop.f32.mrb[0].mxu0
      %v1669 = vadd.f32 0.0, %v1668
      %1670 = vdwg.mxu0
      %1671 = vmatprep.subr.bf16.mxu0 %v928
      %1672 = vmatpush1.bf16.msra.mxu0 %v925
      %1673 = vmatprep.subr.bf16.mxu0 0
      %1674 = vmatpush1.bf16.msra.mxu0 0
      %1675 = vmatprep.subr.bf16.mxu0 0
      %1676 = vmatpush1.bf16.msra.mxu0 0
      %1677 = vmatprep.subr.bf16.mxu0 0
      %1678 = vmatpush1.bf16.msra.mxu0 0
      %1679 = vmatprep.subr.bf16.mxu0 0
      %1680 = vmatpush1.bf16.msra.mxu0 0
      %1681 = vmatprep.subr.bf16.mxu0 0
      %1682 = vmatpush1.bf16.msra.mxu0 0
      %1683 = vmatprep.subr.bf16.mxu0 0
      %1684 = vmatpush1.bf16.msra.mxu0 0
      %1685 = vmatprep.subr.bf16.mxu0 0
      %1686 = vmatpush1.bf16.msra.mxu0 0
      %1687 = vmatprep.subr.bf16.mxu0 0
      %1688 = vmatpush1.bf16.msra.mxu0 0
      %1689 = vmatprep.subr.bf16.mxu0 0
      %1690 = vmatpush1.bf16.msra.mxu0 0
      %1691 = vmatprep.subr.bf16.mxu0 0
      %1692 = vmatpush1.bf16.msra.mxu0 0
      %1693 = vmatprep.subr.bf16.mxu0 0
      %1694 = vmatpush1.bf16.msra.mxu0 0
      %1695 = vmatprep.subr.bf16.mxu0 0
      %1696 = vmatpush1.bf16.msra.mxu0 0
      %1697 = vmatprep.subr.bf16.mxu0 0
      %1698 = vmatpush1.bf16.msra.mxu0 0
      %1699 = vmatprep.subr.bf16.mxu0 0
      %1700 = vmatpush1.bf16.msra.mxu0 0
      %1701 = vmatprep.subr.bf16.mxu0 0
      %1702 = vmatpush1.bf16.msra.mxu0 0
      %1703 = vmatprep.mubr.bf16.mxu0 0
      %1704 = vmatmul.mubr.bf16.gmra.mrb[0].mxu0 %v831
      %v1705 = vpop.f32.mrb[0].mxu0
      %v1706 = vadd.f32 0.0, %v1705
      %v1707 = vpop.f32.mrb[0].mxu0
      %v1708 = vadd.f32 0.0, %v1707
      %v1709 = vpop.f32.mrb[0].mxu0
      %v1710 = vadd.f32 0.0, %v1709
      %v1711 = vpop.f32.mrb[0].mxu0
      %v1712 = vadd.f32 0.0, %v1711
      %1713 = vdwg.mxu0
      %1714 = vmatprep.subr.bf16.mxu0 %v934
      %1715 = vmatpush1.bf16.msra.mxu0 %v931
      %1716 = vmatprep.subr.bf16.mxu0 0
      %1717 = vmatpush1.bf16.msra.mxu0 0
      %1718 = vmatprep.subr.bf16.mxu0 0
      %1719 = vmatpush1.bf16.msra.mxu0 0
      %1720 = vmatprep.subr.bf16.mxu0 0
      %1721 = vmatpush1.bf16.msra.mxu0 0
      %1722 = vmatprep.subr.bf16.mxu0 0
      %1723 = vmatpush1.bf16.msra.mxu0 0
      %1724 = vmatprep.subr.bf16.mxu0 0
      %1725 = vmatpush1.bf16.msra.mxu0 0
      %1726 = vmatprep.subr.bf16.mxu0 0
      %1727 = vmatpush1.bf16.msra.mxu0 0
      %1728 = vmatprep.subr.bf16.mxu0 0
      %1729 = vmatpush1.bf16.msra.mxu0 0
      %1730 = vmatprep.subr.bf16.mxu0 0
      %1731 = vmatpush1.bf16.msra.mxu0 0
      %1732 = vmatprep.subr.bf16.mxu0 0
      %1733 = vmatpush1.bf16.msra.mxu0 0
      %1734 = vmatprep.subr.bf16.mxu0 0
      %1735 = vmatpush1.bf16.msra.mxu0 0
      %1736 = vmatprep.subr.bf16.mxu0 0
      %1737 = vmatpush1.bf16.msra.mxu0 0
      %1738 = vmatprep.subr.bf16.mxu0 0
      %1739 = vmatpush1.bf16.msra.mxu0 0
      %1740 = vmatprep.subr.bf16.mxu0 0
      %1741 = vmatpush1.bf16.msra.mxu0 0
      %1742 = vmatprep.subr.bf16.mxu0 0
      %1743 = vmatpush1.bf16.msra.mxu0 0
      %1744 = vmatprep.subr.bf16.mxu0 0
      %1745 = vmatpush1.bf16.msra.mxu0 0
      %1746 = vmatprep.mubr.bf16.mxu0 0
      %1747 = vmatmul.mubr.bf16.gmra.mrb[0].mxu0 %v831
      %v1748 = vpop.f32.mrb[0].mxu0
      %v1749 = vadd.f32 0.0, %v1748
      %v1750 = vpop.f32.mrb[0].mxu0
      %v1751 = vadd.f32 0.0, %v1750
      %v1752 = vpop.f32.mrb[0].mxu0
      %v1753 = vadd.f32 0.0, %v1752
      %v1754 = vpop.f32.mrb[0].mxu0
      %v1755 = vadd.f32 0.0, %v1754
      %1756 = vdwg.mxu0
      %1757 = vmatprep.subr.bf16.mxu0 %v940
      %1758 = vmatpush1.bf16.msra.mxu0 %v937
      %1759 = vmatprep.subr.bf16.mxu0 0
      %1760 = vmatpush1.bf16.msra.mxu0 0
      %1761 = vmatprep.subr.bf16.mxu0 0
      %1762 = vmatpush1.bf16.msra.mxu0 0
      %1763 = vmatprep.subr.bf16.mxu0 0
      %1764 = vmatpush1.bf16.msra.mxu0 0
      %1765 = vmatprep.subr.bf16.mxu0 0
      %1766 = vmatpush1.bf16.msra.mxu0 0
      %1767 = vmatprep.subr.bf16.mxu0 0
      %1768 = vmatpush1.bf16.msra.mxu0 0
      %1769 = vmatprep.subr.bf16.mxu0 0
      %1770 = vmatpush1.bf16.msra.mxu0 0
      %1771 = vmatprep.subr.bf16.mxu0 0
      %1772 = vmatpush1.bf16.msra.mxu0 0
      %1773 = vmatprep.subr.bf16.mxu0 0
      %1774 = vmatpush1.bf16.msra.mxu0 0
      %1775 = vmatprep.subr.bf16.mxu0 0
      %1776 = vmatpush1.bf16.msra.mxu0 0
      %1777 = vmatprep.subr.bf16.mxu0 0
      %1778 = vmatpush1.bf16.msra.mxu0 0
      %1779 = vmatprep.subr.bf16.mxu0 0
      %1780 = vmatpush1.bf16.msra.mxu0 0
      %1781 = vmatprep.subr.bf16.mxu0 0
      %1782 = vmatpush1.bf16.msra.mxu0 0
      %1783 = vmatprep.subr.bf16.mxu0 0
      %1784 = vmatpush1.bf16.msra.mxu0 0
      %1785 = vmatprep.subr.bf16.mxu0 0
      %1786 = vmatpush1.bf16.msra.mxu0 0
      %1787 = vmatprep.subr.bf16.mxu0 0
      %1788 = vmatpush1.bf16.msra.mxu0 0
      %1789 = vmatprep.mubr.bf16.mxu0 0
      %1790 = vmatmul.mubr.bf16.gmra.mrb[0].mxu0 %v831
      %v1791 = vpop.f32.mrb[0].mxu0
      %v1792 = vadd.f32 0.0, %v1791
      %v1793 = vpop.f32.mrb[0].mxu0
      %v1794 = vadd.f32 0.0, %v1793
      %v1795 = vpop.f32.mrb[0].mxu0
      %v1796 = vadd.f32 0.0, %v1795
      %v1797 = vpop.f32.mrb[0].mxu0
      %v1798 = vadd.f32 0.0, %v1797
      %1799 = vdwg.mxu0
      %1800 = vmatprep.subr.bf16.mxu0 %v946
      %1801 = vmatpush1.bf16.msra.mxu0 %v943
      %1802 = vmatprep.subr.bf16.mxu0 0
      %1803 = vmatpush1.bf16.msra.mxu0 0
      %1804 = vmatprep.subr.bf16.mxu0 0
      %1805 = vmatpush1.bf16.msra.mxu0 0
      %1806 = vmatprep.subr.bf16.mxu0 0
      %1807 = vmatpush1.bf16.msra.mxu0 0
      %1808 = vmatprep.subr.bf16.mxu0 0
      %1809 = vmatpush1.bf16.msra.mxu0 0
      %1810 = vmatprep.subr.bf16.mxu0 0
      %1811 = vmatpush1.bf16.msra.mxu0 0
      %1812 = vmatprep.subr.bf16.mxu0 0
      %1813 = vmatpush1.bf16.msra.mxu0 0
      %1814 = vmatprep.subr.bf16.mxu0 0
      %1815 = vmatpush1.bf16.msra.mxu0 0
      %1816 = vmatprep.subr.bf16.mxu0 0
      %1817 = vmatpush1.bf16.msra.mxu0 0
      %1818 = vmatprep.subr.bf16.mxu0 0
      %1819 = vmatpush1.bf16.msra.mxu0 0
      %1820 = vmatprep.subr.bf16.mxu0 0
      %1821 = vmatpush1.bf16.msra.mxu0 0
      %1822 = vmatprep.subr.bf16.mxu0 0
      %1823 = vmatpush1.bf16.msra.mxu0 0
      %1824 = vmatprep.subr.bf16.mxu0 0
      %1825 = vmatpush1.bf16.msra.mxu0 0
      %1826 = vmatprep.subr.bf16.mxu0 0
      %1827 = vmatpush1.bf16.msra.mxu0 0
      %1828 = vmatprep.subr.bf16.mxu0 0
      %1829 = vmatpush1.bf16.msra.mxu0 0
      %1830 = vmatprep.subr.bf16.mxu0 0
      %1831 = vmatpush1.bf16.msra.mxu0 0
      %1832 = vmatprep.mubr.bf16.mxu0 0
      %1833 = vmatmul.mubr.bf16.gmra.mrb[0].mxu0 %v831
      %v1834 = vpop.f32.mrb[0].mxu0
      %v1835 = vadd.f32 0.0, %v1834
      %v1836 = vpop.f32.mrb[0].mxu0
      %v1837 = vadd.f32 0.0, %v1836
      %v1838 = vpop.f32.mrb[0].mxu0
      %v1839 = vadd.f32 0.0, %v1838
      %v1840 = vpop.f32.mrb[0].mxu0
      %v1841 = vadd.f32 0.0, %v1840
      %1842 = vdwg.mxu0
      %1843 = vmatprep.subr.bf16.mxu0 %v952
      %1844 = vmatpush1.bf16.msra.mxu0 %v949
      %1845 = vmatprep.subr.bf16.mxu0 0
      %1846 = vmatpush1.bf16.msra.mxu0 0
      %1847 = vmatprep.subr.bf16.mxu0 0
      %1848 = vmatpush1.bf16.msra.mxu0 0
      %1849 = vmatprep.subr.bf16.mxu0 0
      %1850 = vmatpush1.bf16.msra.mxu0 0
      %1851 = vmatprep.subr.bf16.mxu0 0
      %1852 = vmatpush1.bf16.msra.mxu0 0
      %1853 = vmatprep.subr.bf16.mxu0 0
      %1854 = vmatpush1.bf16.msra.mxu0 0
      %1855 = vmatprep.subr.bf16.mxu0 0
      %1856 = vmatpush1.bf16.msra.mxu0 0
      %1857 = vmatprep.subr.bf16.mxu0 0
      %1858 = vmatpush1.bf16.msra.mxu0 0
      %1859 = vmatprep.subr.bf16.mxu0 0
      %1860 = vmatpush1.bf16.msra.mxu0 0
      %1861 = vmatprep.subr.bf16.mxu0 0
      %1862 = vmatpush1.bf16.msra.mxu0 0
      %1863 = vmatprep.subr.bf16.mxu0 0
      %1864 = vmatpush1.bf16.msra.mxu0 0
      %1865 = vmatprep.subr.bf16.mxu0 0
      %1866 = vmatpush1.bf16.msra.mxu0 0
      %1867 = vmatprep.subr.bf16.mxu0 0
      %1868 = vmatpush1.bf16.msra.mxu0 0
      %1869 = vmatprep.subr.bf16.mxu0 0
      %1870 = vmatpush1.bf16.msra.mxu0 0
      %1871 = vmatprep.subr.bf16.mxu0 0
      %1872 = vmatpush1.bf16.msra.mxu0 0
      %1873 = vmatprep.subr.bf16.mxu0 0
      %1874 = vmatpush1.bf16.msra.mxu0 0
      %1875 = vmatprep.mubr.bf16.mxu0 0
      %1876 = vmatmul.mubr.bf16.gmra.mrb[0].mxu0 %v831
      %v1877 = vpop.f32.mrb[0].mxu0
      %v1878 = vadd.f32 0.0, %v1877
      %v1879 = vpop.f32.mrb[0].mxu0
      %v1880 = vadd.f32 0.0, %v1879
      %v1881 = vpop.f32.mrb[0].mxu0
      %v1882 = vadd.f32 0.0, %v1881
      %v1883 = vpop.f32.mrb[0].mxu0
      %v1884 = vadd.f32 0.0, %v1883
      %1885 = vdwg.mxu0
      %1886 = vmatprep.subr.bf16.mxu0 %v958
      %1887 = vmatpush1.bf16.msra.mxu0 %v955
      %1888 = vmatprep.subr.bf16.mxu0 0
      %1889 = vmatpush1.bf16.msra.mxu0 0
      %1890 = vmatprep.subr.bf16.mxu0 0
      %1891 = vmatpush1.bf16.msra.mxu0 0
      %1892 = vmatprep.subr.bf16.mxu0 0
      %1893 = vmatpush1.bf16.msra.mxu0 0
      %1894 = vmatprep.subr.bf16.mxu0 0
      %1895 = vmatpush1.bf16.msra.mxu0 0
      %1896 = vmatprep.subr.bf16.mxu0 0
      %1897 = vmatpush1.bf16.msra.mxu0 0
      %1898 = vmatprep.subr.bf16.mxu0 0
      %1899 = vmatpush1.bf16.msra.mxu0 0
      %1900 = vmatprep.subr.bf16.mxu0 0
      %1901 = vmatpush1.bf16.msra.mxu0 0
      %1902 = vmatprep.subr.bf16.mxu0 0
      %1903 = vmatpush1.bf16.msra.mxu0 0
      %1904 = vmatprep.subr.bf16.mxu0 0
      %1905 = vmatpush1.bf16.msra.mxu0 0
      %1906 = vmatprep.subr.bf16.mxu0 0
      %1907 = vmatpush1.bf16.msra.mxu0 0
      %1908 = vmatprep.subr.bf16.mxu0 0
      %1909 = vmatpush1.bf16.msra.mxu0 0
      %1910 = vmatprep.subr.bf16.mxu0 0
      %1911 = vmatpush1.bf16.msra.mxu0 0
      %1912 = vmatprep.subr.bf16.mxu0 0
      %1913 = vmatpush1.bf16.msra.mxu0 0
      %1914 = vmatprep.subr.bf16.mxu0 0
      %1915 = vmatpush1.bf16.msra.mxu0 0
      %1916 = vmatprep.subr.bf16.mxu0 0
      %1917 = vmatpush1.bf16.msra.mxu0 0
      %1918 = vmatprep.mubr.bf16.mxu0 0
      %1919 = vmatmul.mubr.bf16.gmra.mrb[0].mxu0 %v831
      %v1920 = vpop.f32.mrb[0].mxu0
      %v1921 = vadd.f32 0.0, %v1920
      %v1922 = vpop.f32.mrb[0].mxu0
      %v1923 = vadd.f32 0.0, %v1922
      %v1924 = vpop.f32.mrb[0].mxu0
      %v1925 = vadd.f32 0.0, %v1924
      %v1926 = vpop.f32.mrb[0].mxu0
      %v1927 = vadd.f32 0.0, %v1926
      %1928 = vdwg.mxu0
      %1929 = vmatprep.subr.bf16.mxu0 %v964
      %1930 = vmatpush1.bf16.msra.mxu0 %v961
      %1931 = vmatprep.subr.bf16.mxu0 0
      %1932 = vmatpush1.bf16.msra.mxu0 0
      %1933 = vmatprep.subr.bf16.mxu0 0
      %1934 = vmatpush1.bf16.msra.mxu0 0
      %1935 = vmatprep.subr.bf16.mxu0 0
      %1936 = vmatpush1.bf16.msra.mxu0 0
      %1937 = vmatprep.subr.bf16.mxu0 0
      %1938 = vmatpush1.bf16.msra.mxu0 0
      %1939 = vmatprep.subr.bf16.mxu0 0
      %1940 = vmatpush1.bf16.msra.mxu0 0
      %1941 = vmatprep.subr.bf16.mxu0 0
      %1942 = vmatpush1.bf16.msra.mxu0 0
      %1943 = vmatprep.subr.bf16.mxu0 0
      %1944 = vmatpush1.bf16.msra.mxu0 0
      %1945 = vmatprep.subr.bf16.mxu0 0
      %1946 = vmatpush1.bf16.msra.mxu0 0
      %1947 = vmatprep.subr.bf16.mxu0 0
      %1948 = vmatpush1.bf16.msra.mxu0 0
      %1949 = vmatprep.subr.bf16.mxu0 0
      %1950 = vmatpush1.bf16.msra.mxu0 0
      %1951 = vmatprep.subr.bf16.mxu0 0
      %1952 = vmatpush1.bf16.msra.mxu0 0
      %1953 = vmatprep.subr.bf16.mxu0 0
      %1954 = vmatpush1.bf16.msra.mxu0 0
      %1955 = vmatprep.subr.bf16.mxu0 0
      %1956 = vmatpush1.bf16.msra.mxu0 0
      %1957 = vmatprep.subr.bf16.mxu0 0
      %1958 = vmatpush1.bf16.msra.mxu0 0
      %1959 = vmatprep.subr.bf16.mxu0 0
      %1960 = vmatpush1.bf16.msra.mxu0 0
      %1961 = vmatprep.mubr.bf16.mxu0 0
      %1962 = vmatmul.mubr.bf16.gmra.mrb[0].mxu0 %v831
      %v1963 = vpop.f32.mrb[0].mxu0
      %v1964 = vadd.f32 0.0, %v1963
      %v1965 = vpop.f32.mrb[0].mxu0
      %v1966 = vadd.f32 0.0, %v1965
      %v1967 = vpop.f32.mrb[0].mxu0
      %v1968 = vadd.f32 0.0, %v1967
      %v1969 = vpop.f32.mrb[0].mxu0
      %v1970 = vadd.f32 0.0, %v1969
      %1971 = vdwg.mxu0
      %1972 = vmatprep.subr.bf16.mxu0 %v970
      %1973 = vmatpush1.bf16.msra.mxu0 %v967
      %1974 = vmatprep.subr.bf16.mxu0 0
      %1975 = vmatpush1.bf16.msra.mxu0 0
      %1976 = vmatprep.subr.bf16.mxu0 0
      %1977 = vmatpush1.bf16.msra.mxu0 0
      %1978 = vmatprep.subr.bf16.mxu0 0
      %1979 = vmatpush1.bf16.msra.mxu0 0
      %1980 = vmatprep.subr.bf16.mxu0 0
      %1981 = vmatpush1.bf16.msra.mxu0 0
      %1982 = vmatprep.subr.bf16.mxu0 0
      %1983 = vmatpush1.bf16.msra.mxu0 0
      %1984 = vmatprep.subr.bf16.mxu0 0
      %1985 = vmatpush1.bf16.msra.mxu0 0
      %1986 = vmatprep.subr.bf16.mxu0 0
      %1987 = vmatpush1.bf16.msra.mxu0 0
      %1988 = vmatprep.subr.bf16.mxu0 0
      %1989 = vmatpush1.bf16.msra.mxu0 0
      %1990 = vmatprep.subr.bf16.mxu0 0
      %1991 = vmatpush1.bf16.msra.mxu0 0
      %1992 = vmatprep.subr.bf16.mxu0 0
      %1993 = vmatpush1.bf16.msra.mxu0 0
      %1994 = vmatprep.subr.bf16.mxu0 0
      %1995 = vmatpush1.bf16.msra.mxu0 0
      %1996 = vmatprep.subr.bf16.mxu0 0
      %1997 = vmatpush1.bf16.msra.mxu0 0
      %1998 = vmatprep.subr.bf16.mxu0 0
      %1999 = vmatpush1.bf16.msra.mxu0 0
      %2000 = vmatprep.subr.bf16.mxu0 0
      %2001 = vmatpush1.bf16.msra.mxu0 0
      %2002 = vmatprep.subr.bf16.mxu0 0
      %2003 = vmatpush1.bf16.msra.mxu0 0
      %2004 = vmatprep.mubr.bf16.mxu0 0
      %2005 = vmatmul.mubr.bf16.gmra.mrb[0].mxu0 %v831
      %v2006 = vpop.f32.mrb[0].mxu0
      %v2007 = vadd.f32 0.0, %v2006
      %v2008 = vpop.f32.mrb[0].mxu0
      %v2009 = vadd.f32 0.0, %v2008
      %v2010 = vpop.f32.mrb[0].mxu0
      %v2011 = vadd.f32 0.0, %v2010
      %v2012 = vpop.f32.mrb[0].mxu0
      %v2013 = vadd.f32 0.0, %v2012
      %2014 = vdwg.mxu0
      %2015 = vmatprep.subr.bf16.mxu0 %v976
      %2016 = vmatpush1.bf16.msra.mxu0 %v973
      %2017 = vmatprep.subr.bf16.mxu0 0
      %2018 = vmatpush1.bf16.msra.mxu0 0
      %2019 = vmatprep.subr.bf16.mxu0 0
      %2020 = vmatpush1.bf16.msra.mxu0 0
      %2021 = vmatprep.subr.bf16.mxu0 0
      %2022 = vmatpush1.bf16.msra.mxu0 0
      %2023 = vmatprep.subr.bf16.mxu0 0
      %2024 = vmatpush1.bf16.msra.mxu0 0
      %2025 = vmatprep.subr.bf16.mxu0 0
      %2026 = vmatpush1.bf16.msra.mxu0 0
      %2027 = vmatprep.subr.bf16.mxu0 0
      %2028 = vmatpush1.bf16.msra.mxu0 0
      %2029 = vmatprep.subr.bf16.mxu0 0
      %2030 = vmatpush1.bf16.msra.mxu0 0
      %2031 = vmatprep.subr.bf16.mxu0 0
      %2032 = vmatpush1.bf16.msra.mxu0 0
      %2033 = vmatprep.subr.bf16.mxu0 0
      %2034 = vmatpush1.bf16.msra.mxu0 0
      %2035 = vmatprep.subr.bf16.mxu0 0
      %2036 = vmatpush1.bf16.msra.mxu0 0
      %2037 = vmatprep.subr.bf16.mxu0 0
      %2038 = vmatpush1.bf16.msra.mxu0 0
      %2039 = vmatprep.subr.bf16.mxu0 0
      %2040 = vmatpush1.bf16.msra.mxu0 0
      %2041 = vmatprep.subr.bf16.mxu0 0
      %2042 = vmatpush1.bf16.msra.mxu0 0
      %2043 = vmatprep.subr.bf16.mxu0 0
      %2044 = vmatpush1.bf16.msra.mxu0 0
      %2045 = vmatprep.subr.bf16.mxu0 0
      %2046 = vmatpush1.bf16.msra.mxu0 0
      %2047 = vmatprep.mubr.bf16.mxu0 0
      %2048 = vmatmul.mubr.bf16.gmra.mrb[0].mxu0 %v831
      %v2049 = vpop.f32.mrb[0].mxu0
      %v2050 = vadd.f32 0.0, %v2049
      %v2051 = vpop.f32.mrb[0].mxu0
      %v2052 = vadd.f32 0.0, %v2051
      %v2053 = vpop.f32.mrb[0].mxu0
      %v2054 = vadd.f32 0.0, %v2053
      %v2055 = vpop.f32.mrb[0].mxu0
      %v2056 = vadd.f32 0.0, %v2055
      %2057 = vdwg.mxu0
      %2058 = vmatprep.subr.bf16.mxu0 %v982
      %2059 = vmatpush1.bf16.msra.mxu0 %v979
      %2060 = vmatprep.subr.bf16.mxu0 0
      %2061 = vmatpush1.bf16.msra.mxu0 0
      %2062 = vmatprep.subr.bf16.mxu0 0
      %2063 = vmatpush1.bf16.msra.mxu0 0
      %2064 = vmatprep.subr.bf16.mxu0 0
      %2065 = vmatpush1.bf16.msra.mxu0 0
      %2066 = vmatprep.subr.bf16.mxu0 0
      %2067 = vmatpush1.bf16.msra.mxu0 0
      %2068 = vmatprep.subr.bf16.mxu0 0
      %2069 = vmatpush1.bf16.msra.mxu0 0
      %2070 = vmatprep.subr.bf16.mxu0 0
      %2071 = vmatpush1.bf16.msra.mxu0 0
      %2072 = vmatprep.subr.bf16.mxu0 0
      %2073 = vmatpush1.bf16.msra.mxu0 0
      %2074 = vmatprep.subr.bf16.mxu0 0
      %2075 = vmatpush1.bf16.msra.mxu0 0
      %2076 = vmatprep.subr.bf16.mxu0 0
      %2077 = vmatpush1.bf16.msra.mxu0 0
      %2078 = vmatprep.subr.bf16.mxu0 0
      %2079 = vmatpush1.bf16.msra.mxu0 0
      %2080 = vmatprep.subr.bf16.mxu0 0
      %2081 = vmatpush1.bf16.msra.mxu0 0
      %2082 = vmatprep.subr.bf16.mxu0 0
      %2083 = vmatpush1.bf16.msra.mxu0 0
      %2084 = vmatprep.subr.bf16.mxu0 0
      %2085 = vmatpush1.bf16.msra.mxu0 0
      %2086 = vmatprep.subr.bf16.mxu0 0
      %2087 = vmatpush1.bf16.msra.mxu0 0
      %2088 = vmatprep.subr.bf16.mxu0 0
      %2089 = vmatpush1.bf16.msra.mxu0 0
      %2090 = vmatprep.mubr.bf16.mxu0 0
      %2091 = vmatmul.mubr.bf16.gmra.mrb[0].mxu0 %v831
      %v2092 = vpop.f32.mrb[0].mxu0
      %v2093 = vadd.f32 0.0, %v2092
      %v2094 = vpop.f32.mrb[0].mxu0
      %v2095 = vadd.f32 0.0, %v2094
      %v2096 = vpop.f32.mrb[0].mxu0
      %v2097 = vadd.f32 0.0, %v2096
      %v2098 = vpop.f32.mrb[0].mxu0
      %v2099 = vadd.f32 0.0, %v2098
      %2100 = vdwg.mxu0
      %2101 = vmatprep.subr.bf16.mxu0 %v988
      %2102 = vmatpush1.bf16.msra.mxu0 %v985
      %2103 = vmatprep.subr.bf16.mxu0 0
      %2104 = vmatpush1.bf16.msra.mxu0 0
      %2105 = vmatprep.subr.bf16.mxu0 0
      %2106 = vmatpush1.bf16.msra.mxu0 0
      %2107 = vmatprep.subr.bf16.mxu0 0
      %2108 = vmatpush1.bf16.msra.mxu0 0
      %2109 = vmatprep.subr.bf16.mxu0 0
      %2110 = vmatpush1.bf16.msra.mxu0 0
      %2111 = vmatprep.subr.bf16.mxu0 0
      %2112 = vmatpush1.bf16.msra.mxu0 0
      %2113 = vmatprep.subr.bf16.mxu0 0
      %2114 = vmatpush1.bf16.msra.mxu0 0
      %2115 = vmatprep.subr.bf16.mxu0 0
      %2116 = vmatpush1.bf16.msra.mxu0 0
      %2117 = vmatprep.subr.bf16.mxu0 0
      %2118 = vmatpush1.bf16.msra.mxu0 0
      %2119 = vmatprep.subr.bf16.mxu0 0
      %2120 = vmatpush1.bf16.msra.mxu0 0
      %2121 = vmatprep.subr.bf16.mxu0 0
      %2122 = vmatpush1.bf16.msra.mxu0 0
      %2123 = vmatprep.subr.bf16.mxu0 0
      %2124 = vmatpush1.bf16.msra.mxu0 0
      %2125 = vmatprep.subr.bf16.mxu0 0
      %2126 = vmatpush1.bf16.msra.mxu0 0
      %2127 = vmatprep.subr.bf16.mxu0 0
      %2128 = vmatpush1.bf16.msra.mxu0 0
      %2129 = vmatprep.subr.bf16.mxu0 0
      %2130 = vmatpush1.bf16.msra.mxu0 0
      %2131 = vmatprep.subr.bf16.mxu0 0
      %2132 = vmatpush1.bf16.msra.mxu0 0
      %2133 = vmatprep.mubr.bf16.mxu0 0
      %2134 = vmatmul.mubr.bf16.gmra.mrb[0].mxu0 %v831
      %v2135 = vpop.f32.mrb[0].mxu0
      %v2136 = vadd.f32 0.0, %v2135
      %v2137 = vpop.f32.mrb[0].mxu0
      %v2138 = vadd.f32 0.0, %v2137
      %v2139 = vpop.f32.mrb[0].mxu0
      %v2140 = vadd.f32 0.0, %v2139
      %v2141 = vpop.f32.mrb[0].mxu0
      %v2142 = vadd.f32 0.0, %v2141
      %2143 = vdwg.mxu0
      %2144 = vmatprep.subr.bf16.mxu0 %v994
      %2145 = vmatpush1.bf16.msra.mxu0 %v991
      %2146 = vmatprep.subr.bf16.mxu0 0
      %2147 = vmatpush1.bf16.msra.mxu0 0
      %2148 = vmatprep.subr.bf16.mxu0 0
      %2149 = vmatpush1.bf16.msra.mxu0 0
      %2150 = vmatprep.subr.bf16.mxu0 0
      %2151 = vmatpush1.bf16.msra.mxu0 0
      %2152 = vmatprep.subr.bf16.mxu0 0
      %2153 = vmatpush1.bf16.msra.mxu0 0
      %2154 = vmatprep.subr.bf16.mxu0 0
      %2155 = vmatpush1.bf16.msra.mxu0 0
      %2156 = vmatprep.subr.bf16.mxu0 0
      %2157 = vmatpush1.bf16.msra.mxu0 0
      %2158 = vmatprep.subr.bf16.mxu0 0
      %2159 = vmatpush1.bf16.msra.mxu0 0
      %2160 = vmatprep.subr.bf16.mxu0 0
      %2161 = vmatpush1.bf16.msra.mxu0 0
      %2162 = vmatprep.subr.bf16.mxu0 0
      %2163 = vmatpush1.bf16.msra.mxu0 0
      %2164 = vmatprep.subr.bf16.mxu0 0
      %2165 = vmatpush1.bf16.msra.mxu0 0
      %2166 = vmatprep.subr.bf16.mxu0 0
      %2167 = vmatpush1.bf16.msra.mxu0 0
      %2168 = vmatprep.subr.bf16.mxu0 0
      %2169 = vmatpush1.bf16.msra.mxu0 0
      %2170 = vmatprep.subr.bf16.mxu0 0
      %2171 = vmatpush1.bf16.msra.mxu0 0
      %2172 = vmatprep.subr.bf16.mxu0 0
      %2173 = vmatpush1.bf16.msra.mxu0 0
      %2174 = vmatprep.subr.bf16.mxu0 0
      %2175 = vmatpush1.bf16.msra.mxu0 0
      %2176 = vmatprep.mubr.bf16.mxu0 0
      %2177 = vmatmul.mubr.bf16.gmra.mrb[0].mxu0 %v831
      %v2178 = vpop.f32.mrb[0].mxu0
      %v2179 = vadd.f32 0.0, %v2178
      %v2180 = vpop.f32.mrb[0].mxu0
      %v2181 = vadd.f32 0.0, %v2180
      %v2182 = vpop.f32.mrb[0].mxu0
      %v2183 = vadd.f32 0.0, %v2182
      %v2184 = vpop.f32.mrb[0].mxu0
      %v2185 = vadd.f32 0.0, %v2184
      %2186 = vdwg.mxu0
      %2187 = vmatprep.subr.bf16.mxu0 %v1000
      %2188 = vmatpush1.bf16.msra.mxu0 %v997
      %2189 = vmatprep.subr.bf16.mxu0 0
      %2190 = vmatpush1.bf16.msra.mxu0 0
      %2191 = vmatprep.subr.bf16.mxu0 0
      %2192 = vmatpush1.bf16.msra.mxu0 0
      %2193 = vmatprep.subr.bf16.mxu0 0
      %2194 = vmatpush1.bf16.msra.mxu0 0
      %2195 = vmatprep.subr.bf16.mxu0 0
      %2196 = vmatpush1.bf16.msra.mxu0 0
      %2197 = vmatprep.subr.bf16.mxu0 0
      %2198 = vmatpush1.bf16.msra.mxu0 0
      %2199 = vmatprep.subr.bf16.mxu0 0
      %2200 = vmatpush1.bf16.msra.mxu0 0
      %2201 = vmatprep.subr.bf16.mxu0 0
      %2202 = vmatpush1.bf16.msra.mxu0 0
      %2203 = vmatprep.subr.bf16.mxu0 0
      %2204 = vmatpush1.bf16.msra.mxu0 0
      %2205 = vmatprep.subr.bf16.mxu0 0
      %2206 = vmatpush1.bf16.msra.mxu0 0
      %2207 = vmatprep.subr.bf16.mxu0 0
      %2208 = vmatpush1.bf16.msra.mxu0 0
      %2209 = vmatprep.subr.bf16.mxu0 0
      %2210 = vmatpush1.bf16.msra.mxu0 0
      %2211 = vmatprep.subr.bf16.mxu0 0
      %2212 = vmatpush1.bf16.msra.mxu0 0
      %2213 = vmatprep.subr.bf16.mxu0 0
      %2214 = vmatpush1.bf16.msra.mxu0 0
      %2215 = vmatprep.subr.bf16.mxu0 0
      %2216 = vmatpush1.bf16.msra.mxu0 0
      %2217 = vmatprep.subr.bf16.mxu0 0
      %2218 = vmatpush1.bf16.msra.mxu0 0
      %2219 = vmatprep.mubr.bf16.mxu0 0
      %2220 = vmatmul.mubr.bf16.gmra.mrb[0].mxu0 %v831
      %v2221 = vpop.f32.mrb[0].mxu0
      %v2222 = vadd.f32 0.0, %v2221
      %v2223 = vpop.f32.mrb[0].mxu0
      %v2224 = vadd.f32 0.0, %v2223
      %v2225 = vpop.f32.mrb[0].mxu0
      %v2226 = vadd.f32 0.0, %v2225
      %v2227 = vpop.f32.mrb[0].mxu0
      %v2228 = vadd.f32 0.0, %v2227
      %2229 = vdwg.mxu0
      %2230 = vmatprep.subr.bf16.mxu0 %v1006
      %2231 = vmatpush1.bf16.msra.mxu0 %v1003
      %2232 = vmatprep.subr.bf16.mxu0 0
      %2233 = vmatpush1.bf16.msra.mxu0 0
      %2234 = vmatprep.subr.bf16.mxu0 0
      %2235 = vmatpush1.bf16.msra.mxu0 0
      %2236 = vmatprep.subr.bf16.mxu0 0
      %2237 = vmatpush1.bf16.msra.mxu0 0
      %2238 = vmatprep.subr.bf16.mxu0 0
      %2239 = vmatpush1.bf16.msra.mxu0 0
      %2240 = vmatprep.subr.bf16.mxu0 0
      %2241 = vmatpush1.bf16.msra.mxu0 0
      %2242 = vmatprep.subr.bf16.mxu0 0
      %2243 = vmatpush1.bf16.msra.mxu0 0
      %2244 = vmatprep.subr.bf16.mxu0 0
      %2245 = vmatpush1.bf16.msra.mxu0 0
      %2246 = vmatprep.subr.bf16.mxu0 0
      %2247 = vmatpush1.bf16.msra.mxu0 0
      %2248 = vmatprep.subr.bf16.mxu0 0
      %2249 = vmatpush1.bf16.msra.mxu0 0
      %2250 = vmatprep.subr.bf16.mxu0 0
      %2251 = vmatpush1.bf16.msra.mxu0 0
      %2252 = vmatprep.subr.bf16.mxu0 0
      %2253 = vmatpush1.bf16.msra.mxu0 0
      %2254 = vmatprep.subr.bf16.mxu0 0
      %2255 = vmatpush1.bf16.msra.mxu0 0
      %2256 = vmatprep.subr.bf16.mxu0 0
      %2257 = vmatpush1.bf16.msra.mxu0 0
      %2258 = vmatprep.subr.bf16.mxu0 0
      %2259 = vmatpush1.bf16.msra.mxu0 0
      %2260 = vmatprep.subr.bf16.mxu0 0
      %2261 = vmatpush1.bf16.msra.mxu0 0
      %2262 = vmatprep.mubr.bf16.mxu0 0
      %2263 = vmatmul.mubr.bf16.gmra.mrb[0].mxu0 %v831
      %v2264 = vpop.f32.mrb[0].mxu0
      %v2265 = vadd.f32 0.0, %v2264
      %v2266 = vpop.f32.mrb[0].mxu0
      %v2267 = vadd.f32 0.0, %v2266
      %v2268 = vpop.f32.mrb[0].mxu0
      %v2269 = vadd.f32 0.0, %v2268
      %v2270 = vpop.f32.mrb[0].mxu0
      %v2271 = vadd.f32 0.0, %v2270
      %2272 = vdwg.mxu0
      %2273 = vmatprep.subr.bf16.mxu0 %v1012
      %2274 = vmatpush1.bf16.msra.mxu0 %v1009
      %2275 = vmatprep.subr.bf16.mxu0 0
      %2276 = vmatpush1.bf16.msra.mxu0 0
      %2277 = vmatprep.subr.bf16.mxu0 0
      %2278 = vmatpush1.bf16.msra.mxu0 0
      %2279 = vmatprep.subr.bf16.mxu0 0
      %2280 = vmatpush1.bf16.msra.mxu0 0
      %2281 = vmatprep.subr.bf16.mxu0 0
      %2282 = vmatpush1.bf16.msra.mxu0 0
      %2283 = vmatprep.subr.bf16.mxu0 0
      %2284 = vmatpush1.bf16.msra.mxu0 0
      %2285 = vmatprep.subr.bf16.mxu0 0
      %2286 = vmatpush1.bf16.msra.mxu0 0
      %2287 = vmatprep.subr.bf16.mxu0 0
      %2288 = vmatpush1.bf16.msra.mxu0 0
      %2289 = vmatprep.subr.bf16.mxu0 0
      %2290 = vmatpush1.bf16.msra.mxu0 0
      %2291 = vmatprep.subr.bf16.mxu0 0
      %2292 = vmatpush1.bf16.msra.mxu0 0
      %2293 = vmatprep.subr.bf16.mxu0 0
      %2294 = vmatpush1.bf16.msra.mxu0 0
      %2295 = vmatprep.subr.bf16.mxu0 0
      %2296 = vmatpush1.bf16.msra.mxu0 0
      %2297 = vmatprep.subr.bf16.mxu0 0
      %2298 = vmatpush1.bf16.msra.mxu0 0
      %2299 = vmatprep.subr.bf16.mxu0 0
      %2300 = vmatpush1.bf16.msra.mxu0 0
      %2301 = vmatprep.subr.bf16.mxu0 0
      %2302 = vmatpush1.bf16.msra.mxu0 0
      %2303 = vmatprep.subr.bf16.mxu0 0
      %2304 = vmatpush1.bf16.msra.mxu0 0
      %2305 = vmatprep.mubr.bf16.mxu0 0
      %2306 = vmatmul.mubr.bf16.gmra.mrb[0].mxu0 %v831
      %v2307 = vpop.f32.mrb[0].mxu0
      %v2308 = vadd.f32 0.0, %v2307
      %v2309 = vpop.f32.mrb[0].mxu0
      %v2310 = vadd.f32 0.0, %v2309
      %v2311 = vpop.f32.mrb[0].mxu0
      %v2312 = vadd.f32 0.0, %v2311
      %v2313 = vpop.f32.mrb[0].mxu0
      %v2314 = vadd.f32 0.0, %v2313
      %2315 = vdwg.mxu0
      %2316 = vmatprep.subr.bf16.mxu0 %v1018
      %2317 = vmatpush1.bf16.msra.mxu0 %v1015
      %2318 = vmatprep.subr.bf16.mxu0 0
      %2319 = vmatpush1.bf16.msra.mxu0 0
      %2320 = vmatprep.subr.bf16.mxu0 0
      %2321 = vmatpush1.bf16.msra.mxu0 0
      %2322 = vmatprep.subr.bf16.mxu0 0
      %2323 = vmatpush1.bf16.msra.mxu0 0
      %2324 = vmatprep.subr.bf16.mxu0 0
      %2325 = vmatpush1.bf16.msra.mxu0 0
      %2326 = vmatprep.subr.bf16.mxu0 0
      %2327 = vmatpush1.bf16.msra.mxu0 0
      %2328 = vmatprep.subr.bf16.mxu0 0
      %2329 = vmatpush1.bf16.msra.mxu0 0
      %2330 = vmatprep.subr.bf16.mxu0 0
      %2331 = vmatpush1.bf16.msra.mxu0 0
      %2332 = vmatprep.subr.bf16.mxu0 0
      %2333 = vmatpush1.bf16.msra.mxu0 0
      %2334 = vmatprep.subr.bf16.mxu0 0
      %2335 = vmatpush1.bf16.msra.mxu0 0
      %2336 = vmatprep.subr.bf16.mxu0 0
      %2337 = vmatpush1.bf16.msra.mxu0 0
      %2338 = vmatprep.subr.bf16.mxu0 0
      %2339 = vmatpush1.bf16.msra.mxu0 0
      %2340 = vmatprep.subr.bf16.mxu0 0
      %2341 = vmatpush1.bf16.msra.mxu0 0
      %2342 = vmatprep.subr.bf16.mxu0 0
      %2343 = vmatpush1.bf16.msra.mxu0 0
      %2344 = vmatprep.subr.bf16.mxu0 0
      %2345 = vmatpush1.bf16.msra.mxu0 0
      %2346 = vmatprep.subr.bf16.mxu0 0
      %2347 = vmatpush1.bf16.msra.mxu0 0
      %2348 = vmatprep.mubr.bf16.mxu0 0
      %2349 = vmatmul.mubr.bf16.gmra.mrb[0].mxu0 %v831
      %v2350 = vpop.f32.mrb[0].mxu0
      %v2351 = vadd.f32 0.0, %v2350
      %v2352 = vpop.f32.mrb[0].mxu0
      %v2353 = vadd.f32 0.0, %v2352
      %v2354 = vpop.f32.mrb[0].mxu0
      %v2355 = vadd.f32 0.0, %v2354
      %v2356 = vpop.f32.mrb[0].mxu0
      %v2357 = vadd.f32 0.0, %v2356
      %2358 = vdwg.mxu0
      %2359 = vmatprep.subr.bf16.mxu0 %v1024
      %2360 = vmatpush1.bf16.msra.mxu0 %v1021
      %2361 = vmatprep.subr.bf16.mxu0 0
      %2362 = vmatpush1.bf16.msra.mxu0 0
      %2363 = vmatprep.subr.bf16.mxu0 0
      %2364 = vmatpush1.bf16.msra.mxu0 0
      %2365 = vmatprep.subr.bf16.mxu0 0
      %2366 = vmatpush1.bf16.msra.mxu0 0
      %2367 = vmatprep.subr.bf16.mxu0 0
      %2368 = vmatpush1.bf16.msra.mxu0 0
      %2369 = vmatprep.subr.bf16.mxu0 0
      %2370 = vmatpush1.bf16.msra.mxu0 0
      %2371 = vmatprep.subr.bf16.mxu0 0
      %2372 = vmatpush1.bf16.msra.mxu0 0
      %2373 = vmatprep.subr.bf16.mxu0 0
      %2374 = vmatpush1.bf16.msra.mxu0 0
      %2375 = vmatprep.subr.bf16.mxu0 0
      %2376 = vmatpush1.bf16.msra.mxu0 0
      %2377 = vmatprep.subr.bf16.mxu0 0
      %2378 = vmatpush1.bf16.msra.mxu0 0
      %2379 = vmatprep.subr.bf16.mxu0 0
      %2380 = vmatpush1.bf16.msra.mxu0 0
      %2381 = vmatprep.subr.bf16.mxu0 0
      %2382 = vmatpush1.bf16.msra.mxu0 0
      %2383 = vmatprep.subr.bf16.mxu0 0
      %2384 = vmatpush1.bf16.msra.mxu0 0
      %2385 = vmatprep.subr.bf16.mxu0 0
      %2386 = vmatpush1.bf16.msra.mxu0 0
      %2387 = vmatprep.subr.bf16.mxu0 0
      %2388 = vmatpush1.bf16.msra.mxu0 0
      %2389 = vmatprep.subr.bf16.mxu0 0
      %2390 = vmatpush1.bf16.msra.mxu0 0
      %2391 = vmatprep.mubr.bf16.mxu0 0
      %2392 = vmatmul.mubr.bf16.gmra.mrb[0].mxu0 %v831
      %v2393 = vpop.f32.mrb[0].mxu0
      %v2394 = vadd.f32 0.0, %v2393
      %v2395 = vpop.f32.mrb[0].mxu0
      %v2396 = vadd.f32 0.0, %v2395
      %v2397 = vpop.f32.mrb[0].mxu0
      %v2398 = vadd.f32 0.0, %v2397
      %v2399 = vpop.f32.mrb[0].mxu0
      %v2400 = vadd.f32 0.0, %v2399
      %2401 = vdwg.mxu0
      %v2402 = vadd.f32 %v390, %v1061
      %v2403 = vadd.f32 %v391, %v1063
      %v2404 = vadd.f32 %v392, %v1104
      %v2405 = vadd.f32 %v393, %v1106
      %v2406 = vadd.f32 %v394, %v1147
      %v2407 = vadd.f32 %v395, %v1149
      %v2408 = vadd.f32 %v396, %v1190
      %v2409 = vadd.f32 %v397, %v1192
      %v2410 = vadd.f32 %v398, %v1233
      %v2411 = vadd.f32 %v399, %v1235
      %v2412 = vadd.f32 %v400, %v1276
      %v2413 = vadd.f32 %v401, %v1278
      %v2414 = vadd.f32 %v402, %v1319
      %v2415 = vadd.f32 %v403, %v1321
      %v2416 = vadd.f32 %v404, %v1362
      %v2417 = vadd.f32 %v405, %v1364
      %v2418 = vadd.f32 %v406, %v1405
      %v2419 = vadd.f32 %v407, %v1407
      %v2420 = vadd.f32 %v408, %v1448
      %v2421 = vadd.f32 %v409, %v1450
      %v2422 = vadd.f32 %v410, %v1491
      %v2423 = vadd.f32 %v411, %v1493
      %v2424 = vadd.f32 %v412, %v1534
      %v2425 = vadd.f32 %v413, %v1536
      %v2426 = vadd.f32 %v414, %v1577
      %v2427 = vadd.f32 %v415, %v1579
      %v2428 = vadd.f32 %v416, %v1620
      %v2429 = vadd.f32 %v417, %v1622
      %v2430 = vadd.f32 %v418, %v1663
      %v2431 = vadd.f32 %v419, %v1665
      %v2432 = vadd.f32 %v420, %v1706
      %v2433 = vadd.f32 %v421, %v1708
      %v2434 = vadd.f32 %v422, %v1749
      %v2435 = vadd.f32 %v423, %v1751
      %v2436 = vadd.f32 %v424, %v1792
      %v2437 = vadd.f32 %v425, %v1794
      %v2438 = vadd.f32 %v426, %v1835
      %v2439 = vadd.f32 %v427, %v1837
      %v2440 = vadd.f32 %v428, %v1878
      %v2441 = vadd.f32 %v429, %v1880
      %v2442 = vadd.f32 %v430, %v1921
      %v2443 = vadd.f32 %v431, %v1923
      %v2444 = vadd.f32 %v432, %v1964
      %v2445 = vadd.f32 %v433, %v1966
      %v2446 = vadd.f32 %v434, %v2007
      %v2447 = vadd.f32 %v435, %v2009
      %v2448 = vadd.f32 %v436, %v2050
      %v2449 = vadd.f32 %v437, %v2052
      %v2450 = vadd.f32 %v438, %v2093
      %v2451 = vadd.f32 %v439, %v2095
      %v2452 = vadd.f32 %v440, %v2136
      %v2453 = vadd.f32 %v441, %v2138
      %v2454 = vadd.f32 %v442, %v2179
      %v2455 = vadd.f32 %v443, %v2181
      %v2456 = vadd.f32 %v444, %v2222
      %v2457 = vadd.f32 %v445, %v2224
      %v2458 = vadd.f32 %v446, %v2265
      %v2459 = vadd.f32 %v447, %v2267
      %v2460 = vadd.f32 %v448, %v2308
      %v2461 = vadd.f32 %v449, %v2310
      %v2462 = vadd.f32 %v450, %v2351
      %v2463 = vadd.f32 %v451, %v2353
      %v2464 = vadd.f32 %v452, %v2394
      %v2465 = vadd.f32 %v453, %v2396
      %v2466 = vadd.f32 %v454, %v1065
      %v2467 = vadd.f32 %v455, %v1067
      %v2468 = vadd.f32 %v456, %v1108
      %v2469 = vadd.f32 %v457, %v1110
      %v2470 = vadd.f32 %v458, %v1151
      %v2471 = vadd.f32 %v459, %v1153
      %v2472 = vadd.f32 %v460, %v1194
      %v2473 = vadd.f32 %v461, %v1196
      %v2474 = vadd.f32 %v462, %v1237
      %v2475 = vadd.f32 %v463, %v1239
      %v2476 = vadd.f32 %v464, %v1280
      %v2477 = vadd.f32 %v465, %v1282
      %v2478 = vadd.f32 %v466, %v1323
      %v2479 = vadd.f32 %v467, %v1325
      %v2480 = vadd.f32 %v468, %v1366
      %v2481 = vadd.f32 %v469, %v1368
      %v2482 = vadd.f32 %v470, %v1409
      %v2483 = vadd.f32 %v471, %v1411
      %v2484 = vadd.f32 %v472, %v1452
      %v2485 = vadd.f32 %v473, %v1454
      %v2486 = vadd.f32 %v474, %v1495
      %v2487 = vadd.f32 %v475, %v1497
      %v2488 = vadd.f32 %v476, %v1538
      %v2489 = vadd.f32 %v477, %v1540
      %v2490 = vadd.f32 %v478, %v1581
      %v2491 = vadd.f32 %v479, %v1583
      %v2492 = vadd.f32 %v480, %v1624
      %v2493 = vadd.f32 %v481, %v1626
      %v2494 = vadd.f32 %v482, %v1667
      %v2495 = vadd.f32 %v483, %v1669
      %v2496 = vadd.f32 %v484, %v1710
      %v2497 = vadd.f32 %v485, %v1712
      %v2498 = vadd.f32 %v486, %v1753
      %v2499 = vadd.f32 %v487, %v1755
      %v2500 = vadd.f32 %v488, %v1796
      %v2501 = vadd.f32 %v489, %v1798
      %v2502 = vadd.f32 %v490, %v1839
      %v2503 = vadd.f32 %v491, %v1841
      %v2504 = vadd.f32 %v492, %v1882
      %v2505 = vadd.f32 %v493, %v1884
      %v2506 = vadd.f32 %v494, %v1925
      %v2507 = vadd.f32 %v495, %v1927
      %v2508 = vadd.f32 %v496, %v1968
      %v2509 = vadd.f32 %v497, %v1970
      %v2510 = vadd.f32 %v498, %v2011
      %v2511 = vadd.f32 %v499, %v2013
      %v2512 = vadd.f32 %v500, %v2054
      %v2513 = vadd.f32 %v501, %v2056
      %v2514 = vadd.f32 %v502, %v2097
      %v2515 = vadd.f32 %v503, %v2099
      %v2516 = vadd.f32 %v504, %v2140
      %v2517 = vadd.f32 %v505, %v2142
      %v2518 = vadd.f32 %v506, %v2183
      %v2519 = vadd.f32 %v507, %v2185
      %v2520 = vadd.f32 %v508, %v2226
      %v2521 = vadd.f32 %v509, %v2228
      %v2522 = vadd.f32 %v510, %v2269
      %v2523 = vadd.f32 %v511, %v2271
      %v2524 = vadd.f32 %v512, %v2312
      %v2525 = vadd.f32 %v513, %v2314
      %v2526 = vadd.f32 %v514, %v2355
      %v2527 = vadd.f32 %v515, %v2357
      %v2528 = vadd.f32 %v516, %v2398
      %v2529 = vadd.f32 %v517, %v2400
      %2530 = vst [vmem:[#allocation2] sm:$0xff] %v2402
      %2531 = vst [vmem:[#allocation2 + $0x8] sm:$0xff] %v2403
      %2532 = vst [vmem:[#allocation2 + $0x10] sm:$0xff] %v2404
      %2533 = vst [vmem:[#allocation2 + $0x18] sm:$0xff] %v2405
      %2534 = vst [vmem:[#allocation2 + $0x20] sm:$0xff] %v2406
      %2535 = vst [vmem:[#allocation2 + $0x28] sm:$0xff] %v2407
      %2536 = vst [vmem:[#allocation2 + $0x30] sm:$0xff] %v2408
      %2537 = vst [vmem:[#allocation2 + $0x38] sm:$0xff] %v2409
      %2538 = vst [vmem:[#allocation2 + $0x40] sm:$0xff] %v2410
      %2539 = vst [vmem:[#allocation2 + $0x48] sm:$0xff] %v2411
      %2540 = vst [vmem:[#allocation2 + $0x50] sm:$0xff] %v2412
      %2541 = vst [vmem:[#allocation2 + $0x58] sm:$0xff] %v2413
      %2542 = vst [vmem:[#allocation2 + $0x60] sm:$0xff] %v2414
      %2543 = vst [vmem:[#allocation2 + $0x68] sm:$0xff] %v2415
      %2544 = vst [vmem:[#allocation2 + $0x70] sm:$0xff] %v2416
      %2545 = vst [vmem:[#allocation2 + $0x78] sm:$0xff] %v2417
      %2546 = vst [vmem:[#allocation2 + $0x80] sm:$0xff] %v2418
      %2547 = vst [vmem:[#allocation2 + $0x88] sm:$0xff] %v2419
      %2548 = vst [vmem:[#allocation2 + $0x90] sm:$0xff] %v2420
      %2549 = vst [vmem:[#allocation2 + $0x98] sm:$0xff] %v2421
      %2550 = vst [vmem:[#allocation2 + $0xa0] sm:$0xff] %v2422
      %2551 = vst [vmem:[#allocation2 + $0xa8] sm:$0xff] %v2423
      %2552 = vst [vmem:[#allocation2 + $0xb0] sm:$0xff] %v2424
      %2553 = vst [vmem:[#allocation2 + $0xb8] sm:$0xff] %v2425
      %2554 = vst [vmem:[#allocation2 + $0xc0] sm:$0xff] %v2426
      %2555 = vst [vmem:[#allocation2 + $0xc8] sm:$0xff] %v2427
      %2556 = vst [vmem:[#allocation2 + $0xd0] sm:$0xff] %v2428
      %2557 = vst [vmem:[#allocation2 + $0xd8] sm:$0xff] %v2429
      %2558 = vst [vmem:[#allocation2 + $0xe0] sm:$0xff] %v2430
      %2559 = vst [vmem:[#allocation2 + $0xe8] sm:$0xff] %v2431
      %2560 = vst [vmem:[#allocation2 + $0xf0] sm:$0xff] %v2432
      %2561 = vst [vmem:[#allocation2 + $0xf8] sm:$0xff] %v2433
      %2562 = vst [vmem:[#allocation2 + $0x100] sm:$0xff] %v2434
      %2563 = vst [vmem:[#allocation2 + $0x108] sm:$0xff] %v2435
      %2564 = vst [vmem:[#allocation2 + $0x110] sm:$0xff] %v2436
      %2565 = vst [vmem:[#allocation2 + $0x118] sm:$0xff] %v2437
      %2566 = vst [vmem:[#allocation2 + $0x120] sm:$0xff] %v2438
      %2567 = vst [vmem:[#allocation2 + $0x128] sm:$0xff] %v2439
      %2568 = vst [vmem:[#allocation2 + $0x130] sm:$0xff] %v2440
      %2569 = vst [vmem:[#allocation2 + $0x138] sm:$0xff] %v2441
      %2570 = vst [vmem:[#allocation2 + $0x140] sm:$0xff] %v2442
      %2571 = vst [vmem:[#allocation2 + $0x148] sm:$0xff] %v2443
      %2572 = vst [vmem:[#allocation2 + $0x150] sm:$0xff] %v2444
      %2573 = vst [vmem:[#allocation2 + $0x158] sm:$0xff] %v2445
      %2574 = vst [vmem:[#allocation2 + $0x160] sm:$0xff] %v2446
      %2575 = vst [vmem:[#allocation2 + $0x168] sm:$0xff] %v2447
      %2576 = vst [vmem:[#allocation2 + $0x170] sm:$0xff] %v2448
      %2577 = vst [vmem:[#allocation2 + $0x178] sm:$0xff] %v2449
      %2578 = vst [vmem:[#allocation2 + $0x180] sm:$0xff] %v2450
      %2579 = vst [vmem:[#allocation2 + $0x188] sm:$0xff] %v2451
      %2580 = vst [vmem:[#allocation2 + $0x190] sm:$0xff] %v2452
      %2581 = vst [vmem:[#allocation2 + $0x198] sm:$0xff] %v2453
      %2582 = vst [vmem:[#allocation2 + $0x1a0] sm:$0xff] %v2454
      %2583 = vst [vmem:[#allocation2 + $0x1a8] sm:$0xff] %v2455
      %2584 = vst [vmem:[#allocation2 + $0x1b0] sm:$0xff] %v2456
      %2585 = vst [vmem:[#allocation2 + $0x1b8] sm:$0xff] %v2457
      %2586 = vst [vmem:[#allocation2 + $0x1c0] sm:$0xff] %v2458
      %2587 = vst [vmem:[#allocation2 + $0x1c8] sm:$0xff] %v2459
      %2588 = vst [vmem:[#allocation2 + $0x1d0] sm:$0xff] %v2460
      %2589 = vst [vmem:[#allocation2 + $0x1d8] sm:$0xff] %v2461
      %2590 = vst [vmem:[#allocation2 + $0x1e0] sm:$0xff] %v2462
      %2591 = vst [vmem:[#allocation2 + $0x1e8] sm:$0xff] %v2463
      %2592 = vst [vmem:[#allocation2 + $0x1f0] sm:$0xff] %v2464
      %2593 = vst [vmem:[#allocation2 + $0x1f8] sm:$0xff] %v2465
      %2594 = vst [vmem:[#allocation2 + $0x200] sm:$0xf] %v2466
      %2595 = vst [vmem:[#allocation2 + $0x208] sm:$0xf] %v2467
      %2596 = vst [vmem:[#allocation2 + $0x210] sm:$0xf] %v2468
      %2597 = vst [vmem:[#allocation2 + $0x218] sm:$0xf] %v2469
      %2598 = vst [vmem:[#allocation2 + $0x220] sm:$0xf] %v2470
      %2599 = vst [vmem:[#allocation2 + $0x228] sm:$0xf] %v2471
      %2600 = vst [vmem:[#allocation2 + $0x230] sm:$0xf] %v2472
      %2601 = vst [vmem:[#allocation2 + $0x238] sm:$0xf] %v2473
      %2602 = vst [vmem:[#allocation2 + $0x240] sm:$0xf] %v2474
      %2603 = vst [vmem:[#allocation2 + $0x248] sm:$0xf] %v2475
      %2604 = vst [vmem:[#allocation2 + $0x250] sm:$0xf] %v2476
      %2605 = vst [vmem:[#allocation2 + $0x258] sm:$0xf] %v2477
      %2606 = vst [vmem:[#allocation2 + $0x260] sm:$0xf] %v2478
      %2607 = vst [vmem:[#allocation2 + $0x268] sm:$0xf] %v2479
      %2608 = vst [vmem:[#allocation2 + $0x270] sm:$0xf] %v2480
      %2609 = vst [vmem:[#allocation2 + $0x278] sm:$0xf] %v2481
      %2610 = vst [vmem:[#allocation2 + $0x280] sm:$0xf] %v2482
      %2611 = vst [vmem:[#allocation2 + $0x288] sm:$0xf] %v2483
      %2612 = vst [vmem:[#allocation2 + $0x290] sm:$0xf] %v2484
      %2613 = vst [vmem:[#allocation2 + $0x298] sm:$0xf] %v2485
      %2614 = vst [vmem:[#allocation2 + $0x2a0] sm:$0xf] %v2486
      %2615 = vst [vmem:[#allocation2 + $0x2a8] sm:$0xf] %v2487
      %2616 = vst [vmem:[#allocation2 + $0x2b0] sm:$0xf] %v2488
      %2617 = vst [vmem:[#allocation2 + $0x2b8] sm:$0xf] %v2489
      %2618 = vst [vmem:[#allocation2 + $0x2c0] sm:$0xf] %v2490
      %2619 = vst [vmem:[#allocation2 + $0x2c8] sm:$0xf] %v2491
      %2620 = vst [vmem:[#allocation2 + $0x2d0] sm:$0xf] %v2492
      %2621 = vst [vmem:[#allocation2 + $0x2d8] sm:$0xf] %v2493
      %2622 = vst [vmem:[#allocation2 + $0x2e0] sm:$0xf] %v2494
      %2623 = vst [vmem:[#allocation2 + $0x2e8] sm:$0xf] %v2495
      %2624 = vst [vmem:[#allocation2 + $0x2f0] sm:$0xf] %v2496
      %2625 = vst [vmem:[#allocation2 + $0x2f8] sm:$0xf] %v2497
      %2626 = vst [vmem:[#allocation2 + $0x300] sm:$0xf] %v2498
      %2627 = vst [vmem:[#allocation2 + $0x308] sm:$0xf] %v2499
      %2628 = vst [vmem:[#allocation2 + $0x310] sm:$0xf] %v2500
      %2629 = vst [vmem:[#allocation2 + $0x318] sm:$0xf] %v2501
      %2630 = vst [vmem:[#allocation2 + $0x320] sm:$0xf] %v2502
      %2631 = vst [vmem:[#allocation2 + $0x328] sm:$0xf] %v2503
      %2632 = vst [vmem:[#allocation2 + $0x330] sm:$0xf] %v2504
      %2633 = vst [vmem:[#allocation2 + $0x338] sm:$0xf] %v2505
      %2634 = vst [vmem:[#allocation2 + $0x340] sm:$0xf] %v2506
      %2635 = vst [vmem:[#allocation2 + $0x348] sm:$0xf] %v2507
      %2636 = vst [vmem:[#allocation2 + $0x350] sm:$0xf] %v2508
      %2637 = vst [vmem:[#allocation2 + $0x358] sm:$0xf] %v2509
      %2638 = vst [vmem:[#allocation2 + $0x360] sm:$0xf] %v2510
      %2639 = vst [vmem:[#allocation2 + $0x368] sm:$0xf] %v2511
      %2640 = vst [vmem:[#allocation2 + $0x370] sm:$0xf] %v2512
      %2641 = vst [vmem:[#allocation2 + $0x378] sm:$0xf] %v2513
      %2642 = vst [vmem:[#allocation2 + $0x380] sm:$0xf] %v2514
      %2643 = vst [vmem:[#allocation2 + $0x388] sm:$0xf] %v2515
      %2644 = vst [vmem:[#allocation2 + $0x390] sm:$0xf] %v2516
      %2645 = vst [vmem:[#allocation2 + $0x398] sm:$0xf] %v2517
      %2646 = vst [vmem:[#allocation2 + $0x3a0] sm:$0xf] %v2518
      %2647 = vst [vmem:[#allocation2 + $0x3a8] sm:$0xf] %v2519
      %2648 = vst [vmem:[#allocation2 + $0x3b0] sm:$0xf] %v2520
      %2649 = vst [vmem:[#allocation2 + $0x3b8] sm:$0xf] %v2521
      %2650 = vst [vmem:[#allocation2 + $0x3c0] sm:$0xf] %v2522
      %2651 = vst [vmem:[#allocation2 + $0x3c8] sm:$0xf] %v2523
      %2652 = vst [vmem:[#allocation2 + $0x3d0] sm:$0xf] %v2524
      %2653 = vst [vmem:[#allocation2 + $0x3d8] sm:$0xf] %v2525
      %2654 = vst [vmem:[#allocation2 + $0x3e0] sm:$0xf] %v2526
      %2655 = vst [vmem:[#allocation2 + $0x3e8] sm:$0xf] %v2527
      %2656 = vst [vmem:[#allocation2 + $0x3f0] sm:$0xf] %v2528
      %2657 = vst [vmem:[#allocation2 + $0x3f8] sm:$0xf] %v2529
      %p2658 = scmp.eq.s32.totalorder %s20, 2
      %p2659 = scmp.eq.s32.totalorder %s21, 2
      %p2660 = pnand %p2658, %p2659
      %p2661 = pneg %p2660
      // Predicated region
      $region37: #{generator_forward.21} parent=31 // pred_check
        _
      $region38: #{generator_forward.21} parent=31 // pred_check_branch
        %2663 = sbr.rel (%p2660) target = $region40
      $region39: #{generator_forward.21} parent=31 // pred_region
        %v2664 = vld [vmem:[#allocation2] sm:$0xff]
        %v2665 = vld [vmem:[#allocation2 + $0x8] sm:$0xff]
        %v2666 = vld [vmem:[#allocation2 + $0x10] sm:$0xff]
        %v2667 = vld [vmem:[#allocation2 + $0x18] sm:$0xff]
        %v2668 = vld [vmem:[#allocation2 + $0x20] sm:$0xff]
        %v2669 = vld [vmem:[#allocation2 + $0x28] sm:$0xff]
        %v2670 = vld [vmem:[#allocation2 + $0x30] sm:$0xff]
        %v2671 = vld [vmem:[#allocation2 + $0x38] sm:$0xff]
        %v2672 = vld [vmem:[#allocation2 + $0x40] sm:$0xff]
        %v2673 = vld [vmem:[#allocation2 + $0x48] sm:$0xff]
        %v2674 = vld [vmem:[#allocation2 + $0x50] sm:$0xff]
        %v2675 = vld [vmem:[#allocation2 + $0x58] sm:$0xff]
        %v2676 = vld [vmem:[#allocation2 + $0x60] sm:$0xff]
        %v2677 = vld [vmem:[#allocation2 + $0x68] sm:$0xff]
        %v2678 = vld [vmem:[#allocation2 + $0x70] sm:$0xff]
        %v2679 = vld [vmem:[#allocation2 + $0x78] sm:$0xff]
        %v2680 = vld [vmem:[#allocation2 + $0x80] sm:$0xff]
        %v2681 = vld [vmem:[#allocation2 + $0x88] sm:$0xff]
        %v2682 = vld [vmem:[#allocation2 + $0x90] sm:$0xff]
        %v2683 = vld [vmem:[#allocation2 + $0x98] sm:$0xff]
        %v2684 = vld [vmem:[#allocation2 + $0xa0] sm:$0xff]
        %v2685 = vld [vmem:[#allocation2 + $0xa8] sm:$0xff]
        %v2686 = vld [vmem:[#allocation2 + $0xb0] sm:$0xff]
        %v2687 = vld [vmem:[#allocation2 + $0xb8] sm:$0xff]
        %v2688 = vld [vmem:[#allocation2 + $0xc0] sm:$0xff]
        %v2689 = vld [vmem:[#allocation2 + $0xc8] sm:$0xff]
        %v2690 = vld [vmem:[#allocation2 + $0xd0] sm:$0xff]
        %v2691 = vld [vmem:[#allocation2 + $0xd8] sm:$0xff]
        %v2692 = vld [vmem:[#allocation2 + $0xe0] sm:$0xff]
        %v2693 = vld [vmem:[#allocation2 + $0xe8] sm:$0xff]
        %v2694 = vld [vmem:[#allocation2 + $0xf0] sm:$0xff]
        %v2695 = vld [vmem:[#allocation2 + $0xf8] sm:$0xff]
        %v2696 = vld [vmem:[#allocation2 + $0x100] sm:$0xff]
        %v2697 = vld [vmem:[#allocation2 + $0x108] sm:$0xff]
        %v2698 = vld [vmem:[#allocation2 + $0x110] sm:$0xff]
        %v2699 = vld [vmem:[#allocation2 + $0x118] sm:$0xff]
        %v2700 = vld [vmem:[#allocation2 + $0x120] sm:$0xff]
        %v2701 = vld [vmem:[#allocation2 + $0x128] sm:$0xff]
        %v2702 = vld [vmem:[#allocation2 + $0x130] sm:$0xff]
        %v2703 = vld [vmem:[#allocation2 + $0x138] sm:$0xff]
        %v2704 = vld [vmem:[#allocation2 + $0x140] sm:$0xff]
        %v2705 = vld [vmem:[#allocation2 + $0x148] sm:$0xff]
        %v2706 = vld [vmem:[#allocation2 + $0x150] sm:$0xff]
        %v2707 = vld [vmem:[#allocation2 + $0x158] sm:$0xff]
        %v2708 = vld [vmem:[#allocation2 + $0x160] sm:$0xff]
        %v2709 = vld [vmem:[#allocation2 + $0x168] sm:$0xff]
        %v2710 = vld [vmem:[#allocation2 + $0x170] sm:$0xff]
        %v2711 = vld [vmem:[#allocation2 + $0x178] sm:$0xff]
        %v2712 = vld [vmem:[#allocation2 + $0x180] sm:$0xff]
        %v2713 = vld [vmem:[#allocation2 + $0x188] sm:$0xff]
        %v2714 = vld [vmem:[#allocation2 + $0x190] sm:$0xff]
        %v2715 = vld [vmem:[#allocation2 + $0x198] sm:$0xff]
        %v2716 = vld [vmem:[#allocation2 + $0x1a0] sm:$0xff]
        %v2717 = vld [vmem:[#allocation2 + $0x1a8] sm:$0xff]
        %v2718 = vld [vmem:[#allocation2 + $0x1b0] sm:$0xff]
        %v2719 = vld [vmem:[#allocation2 + $0x1b8] sm:$0xff]
        %v2720 = vld [vmem:[#allocation2 + $0x1c0] sm:$0xff]
        %v2721 = vld [vmem:[#allocation2 + $0x1c8] sm:$0xff]
        %v2722 = vld [vmem:[#allocation2 + $0x1d0] sm:$0xff]
        %v2723 = vld [vmem:[#allocation2 + $0x1d8] sm:$0xff]
        %v2724 = vld [vmem:[#allocation2 + $0x1e0] sm:$0xff]
        %v2725 = vld [vmem:[#allocation2 + $0x1e8] sm:$0xff]
        %v2726 = vld [vmem:[#allocation2 + $0x1f0] sm:$0xff]
        %v2727 = vld [vmem:[#allocation2 + $0x1f8] sm:$0xff]
        %v2728 = vld [vmem:[#allocation2 + $0x200] sm:$0xf]
        %v2729 = vld [vmem:[#allocation2 + $0x208] sm:$0xf]
        %v2730 = vld [vmem:[#allocation2 + $0x210] sm:$0xf]
        %v2731 = vld [vmem:[#allocation2 + $0x218] sm:$0xf]
        %v2732 = vld [vmem:[#allocation2 + $0x220] sm:$0xf]
        %v2733 = vld [vmem:[#allocation2 + $0x228] sm:$0xf]
        %v2734 = vld [vmem:[#allocation2 + $0x230] sm:$0xf]
        %v2735 = vld [vmem:[#allocation2 + $0x238] sm:$0xf]
        %v2736 = vld [vmem:[#allocation2 + $0x240] sm:$0xf]
        %v2737 = vld [vmem:[#allocation2 + $0x248] sm:$0xf]
        %v2738 = vld [vmem:[#allocation2 + $0x250] sm:$0xf]
        %v2739 = vld [vmem:[#allocation2 + $0x258] sm:$0xf]
        %v2740 = vld [vmem:[#allocation2 + $0x260] sm:$0xf]
        %v2741 = vld [vmem:[#allocation2 + $0x268] sm:$0xf]
        %v2742 = vld [vmem:[#allocation2 + $0x270] sm:$0xf]
        %v2743 = vld [vmem:[#allocation2 + $0x278] sm:$0xf]
        %v2744 = vld [vmem:[#allocation2 + $0x280] sm:$0xf]
        %v2745 = vld [vmem:[#allocation2 + $0x288] sm:$0xf]
        %v2746 = vld [vmem:[#allocation2 + $0x290] sm:$0xf]
        %v2747 = vld [vmem:[#allocation2 + $0x298] sm:$0xf]
        %v2748 = vld [vmem:[#allocation2 + $0x2a0] sm:$0xf]
        %v2749 = vld [vmem:[#allocation2 + $0x2a8] sm:$0xf]
        %v2750 = vld [vmem:[#allocation2 + $0x2b0] sm:$0xf]
        %v2751 = vld [vmem:[#allocation2 + $0x2b8] sm:$0xf]
        %v2752 = vld [vmem:[#allocation2 + $0x2c0] sm:$0xf]
        %v2753 = vld [vmem:[#allocation2 + $0x2c8] sm:$0xf]
        %v2754 = vld [vmem:[#allocation2 + $0x2d0] sm:$0xf]
        %v2755 = vld [vmem:[#allocation2 + $0x2d8] sm:$0xf]
        %v2756 = vld [vmem:[#allocation2 + $0x2e0] sm:$0xf]
        %v2757 = vld [vmem:[#allocation2 + $0x2e8] sm:$0xf]
        %v2758 = vld [vmem:[#allocation2 + $0x2f0] sm:$0xf]
        %v2759 = vld [vmem:[#allocation2 + $0x2f8] sm:$0xf]
        %v2760 = vld [vmem:[#allocation2 + $0x300] sm:$0xf]
        %v2761 = vld [vmem:[#allocation2 + $0x308] sm:$0xf]
        %v2762 = vld [vmem:[#allocation2 + $0x310] sm:$0xf]
        %v2763 = vld [vmem:[#allocation2 + $0x318] sm:$0xf]
        %v2764 = vld [vmem:[#allocation2 + $0x320] sm:$0xf]
        %v2765 = vld [vmem:[#allocation2 + $0x328] sm:$0xf]
        %v2766 = vld [vmem:[#allocation2 + $0x330] sm:$0xf]
        %v2767 = vld [vmem:[#allocation2 + $0x338] sm:$0xf]
        %v2768 = vld [vmem:[#allocation2 + $0x340] sm:$0xf]
        %v2769 = vld [vmem:[#allocation2 + $0x348] sm:$0xf]
        %v2770 = vld [vmem:[#allocation2 + $0x350] sm:$0xf]
        %v2771 = vld [vmem:[#allocation2 + $0x358] sm:$0xf]
        %v2772 = vld [vmem:[#allocation2 + $0x360] sm:$0xf]
        %v2773 = vld [vmem:[#allocation2 + $0x368] sm:$0xf]
        %v2774 = vld [vmem:[#allocation2 + $0x370] sm:$0xf]
        %v2775 = vld [vmem:[#allocation2 + $0x378] sm:$0xf]
        %v2776 = vld [vmem:[#allocation2 + $0x380] sm:$0xf]
        %v2777 = vld [vmem:[#allocation2 + $0x388] sm:$0xf]
        %v2778 = vld [vmem:[#allocation2 + $0x390] sm:$0xf]
        %v2779 = vld [vmem:[#allocation2 + $0x398] sm:$0xf]
        %v2780 = vld [vmem:[#allocation2 + $0x3a0] sm:$0xf]
        %v2781 = vld [vmem:[#allocation2 + $0x3a8] sm:$0xf]
        %v2782 = vld [vmem:[#allocation2 + $0x3b0] sm:$0xf]
        %v2783 = vld [vmem:[#allocation2 + $0x3b8] sm:$0xf]
        %v2784 = vld [vmem:[#allocation2 + $0x3c0] sm:$0xf]
        %v2785 = vld [vmem:[#allocation2 + $0x3c8] sm:$0xf]
        %v2786 = vld [vmem:[#allocation2 + $0x3d0] sm:$0xf]
        %v2787 = vld [vmem:[#allocation2 + $0x3d8] sm:$0xf]
        %v2788 = vld [vmem:[#allocation2 + $0x3e0] sm:$0xf]
        %v2789 = vld [vmem:[#allocation2 + $0x3e8] sm:$0xf]
        %v2790 = vld [vmem:[#allocation2 + $0x3f0] sm:$0xf]
        %v2791 = vld [vmem:[#allocation2 + $0x3f8] sm:$0xf]
        %v2792 = vld [vmem:[%s2] sm:$0xff]
        %v2793 = vld [vmem:[%s2 + $0x8] sm:$0xf]
        %2795 = vset.pattern.permute.xlu0 0
        %2796 = vperm.xlu0 %2795, %v2792
        %v2797 = vpop.permute.xlu0 %2796
        %2800 = vset.pattern.permute.xlu0 0
        %2801 = vperm.xlu0 %2800, %v2793
        %v2802 = vpop.permute.xlu0 %2801
        %v2804 = vadd.f32 %v2664, %v2797
        %v2805 = vadd.f32 %v2665, %v2797
        %v2806 = vadd.f32 %v2666, %v2797
        %v2807 = vadd.f32 %v2667, %v2797
        %v2808 = vadd.f32 %v2668, %v2797
        %v2809 = vadd.f32 %v2669, %v2797
        %v2810 = vadd.f32 %v2670, %v2797
        %v2811 = vadd.f32 %v2671, %v2797
        %v2812 = vadd.f32 %v2672, %v2797
        %v2813 = vadd.f32 %v2673, %v2797
        %v2814 = vadd.f32 %v2674, %v2797
        %v2815 = vadd.f32 %v2675, %v2797
        %v2816 = vadd.f32 %v2676, %v2797
        %v2817 = vadd.f32 %v2677, %v2797
        %v2818 = vadd.f32 %v2678, %v2797
        %v2819 = vadd.f32 %v2679, %v2797
        %v2820 = vadd.f32 %v2680, %v2797
        %v2821 = vadd.f32 %v2681, %v2797
        %v2822 = vadd.f32 %v2682, %v2797
        %v2823 = vadd.f32 %v2683, %v2797
        %v2824 = vadd.f32 %v2684, %v2797
        %v2825 = vadd.f32 %v2685, %v2797
        %v2826 = vadd.f32 %v2686, %v2797
        %v2827 = vadd.f32 %v2687, %v2797
        %v2828 = vadd.f32 %v2688, %v2797
        %v2829 = vadd.f32 %v2689, %v2797
        %v2830 = vadd.f32 %v2690, %v2797
        %v2831 = vadd.f32 %v2691, %v2797
        %v2832 = vadd.f32 %v2692, %v2797
        %v2833 = vadd.f32 %v2693, %v2797
        %v2834 = vadd.f32 %v2694, %v2797
        %v2835 = vadd.f32 %v2695, %v2797
        %v2836 = vadd.f32 %v2696, %v2797
        %v2837 = vadd.f32 %v2697, %v2797
        %v2838 = vadd.f32 %v2698, %v2797
        %v2839 = vadd.f32 %v2699, %v2797
        %v2840 = vadd.f32 %v2700, %v2797
        %v2841 = vadd.f32 %v2701, %v2797
        %v2842 = vadd.f32 %v2702, %v2797
        %v2843 = vadd.f32 %v2703, %v2797
        %v2844 = vadd.f32 %v2704, %v2797
        %v2845 = vadd.f32 %v2705, %v2797
        %v2846 = vadd.f32 %v2706, %v2797
        %v2847 = vadd.f32 %v2707, %v2797
        %v2848 = vadd.f32 %v2708, %v2797
        %v2849 = vadd.f32 %v2709, %v2797
        %v2850 = vadd.f32 %v2710, %v2797
        %v2851 = vadd.f32 %v2711, %v2797
        %v2852 = vadd.f32 %v2712, %v2797
        %v2853 = vadd.f32 %v2713, %v2797
        %v2854 = vadd.f32 %v2714, %v2797
        %v2855 = vadd.f32 %v2715, %v2797
        %v2856 = vadd.f32 %v2716, %v2797
        %v2857 = vadd.f32 %v2717, %v2797
        %v2858 = vadd.f32 %v2718, %v2797
        %v2859 = vadd.f32 %v2719, %v2797
        %v2860 = vadd.f32 %v2720, %v2797
        %v2861 = vadd.f32 %v2721, %v2797
        %v2862 = vadd.f32 %v2722, %v2797
        %v2863 = vadd.f32 %v2723, %v2797
        %v2864 = vadd.f32 %v2724, %v2797
        %v2865 = vadd.f32 %v2725, %v2797
        %v2866 = vadd.f32 %v2726, %v2797
        %v2867 = vadd.f32 %v2727, %v2797
        %v2868 = vadd.f32 %v2728, %v2802
        %v2869 = vadd.f32 %v2729, %v2802
        %v2870 = vadd.f32 %v2730, %v2802
        %v2871 = vadd.f32 %v2731, %v2802
        %v2872 = vadd.f32 %v2732, %v2802
        %v2873 = vadd.f32 %v2733, %v2802
        %v2874 = vadd.f32 %v2734, %v2802
        %v2875 = vadd.f32 %v2735, %v2802
        %v2876 = vadd.f32 %v2736, %v2802
        %v2877 = vadd.f32 %v2737, %v2802
        %v2878 = vadd.f32 %v2738, %v2802
        %v2879 = vadd.f32 %v2739, %v2802
        %v2880 = vadd.f32 %v2740, %v2802
        %v2881 = vadd.f32 %v2741, %v2802
        %v2882 = vadd.f32 %v2742, %v2802
        %v2883 = vadd.f32 %v2743, %v2802
        %v2884 = vadd.f32 %v2744, %v2802
        %v2885 = vadd.f32 %v2745, %v2802
        %v2886 = vadd.f32 %v2746, %v2802
        %v2887 = vadd.f32 %v2747, %v2802
        %v2888 = vadd.f32 %v2748, %v2802
        %v2889 = vadd.f32 %v2749, %v2802
        %v2890 = vadd.f32 %v2750, %v2802
        %v2891 = vadd.f32 %v2751, %v2802
        %v2892 = vadd.f32 %v2752, %v2802
        %v2893 = vadd.f32 %v2753, %v2802
        %v2894 = vadd.f32 %v2754, %v2802
        %v2895 = vadd.f32 %v2755, %v2802
        %v2896 = vadd.f32 %v2756, %v2802
        %v2897 = vadd.f32 %v2757, %v2802
        %v2898 = vadd.f32 %v2758, %v2802
        %v2899 = vadd.f32 %v2759, %v2802
        %v2900 = vadd.f32 %v2760, %v2802
        %v2901 = vadd.f32 %v2761, %v2802
        %v2902 = vadd.f32 %v2762, %v2802
        %v2903 = vadd.f32 %v2763, %v2802
        %v2904 = vadd.f32 %v2764, %v2802
        %v2905 = vadd.f32 %v2765, %v2802
        %v2906 = vadd.f32 %v2766, %v2802
        %v2907 = vadd.f32 %v2767, %v2802
        %v2908 = vadd.f32 %v2768, %v2802
        %v2909 = vadd.f32 %v2769, %v2802
        %v2910 = vadd.f32 %v2770, %v2802
        %v2911 = vadd.f32 %v2771, %v2802
        %v2912 = vadd.f32 %v2772, %v2802
        %v2913 = vadd.f32 %v2773, %v2802
        %v2914 = vadd.f32 %v2774, %v2802
        %v2915 = vadd.f32 %v2775, %v2802
        %v2916 = vadd.f32 %v2776, %v2802
        %v2917 = vadd.f32 %v2777, %v2802
        %v2918 = vadd.f32 %v2778, %v2802
        %v2919 = vadd.f32 %v2779, %v2802
        %v2920 = vadd.f32 %v2780, %v2802
        %v2921 = vadd.f32 %v2781, %v2802
        %v2922 = vadd.f32 %v2782, %v2802
        %v2923 = vadd.f32 %v2783, %v2802
        %v2924 = vadd.f32 %v2784, %v2802
        %v2925 = vadd.f32 %v2785, %v2802
        %v2926 = vadd.f32 %v2786, %v2802
        %v2927 = vadd.f32 %v2787, %v2802
        %v2928 = vadd.f32 %v2788, %v2802
        %v2929 = vadd.f32 %v2789, %v2802
        %v2930 = vadd.f32 %v2790, %v2802
        %v2931 = vadd.f32 %v2791, %v2802
        %v2932 = vtanh.pop %v2804
        %v2933 = vtanh.pop %v2805
        %v2934 = vtanh.pop %v2806
        %v2935 = vtanh.pop %v2807
        %v2936 = vtanh.pop %v2808
        %v2937 = vtanh.pop %v2809
        %v2938 = vtanh.pop %v2810
        %v2939 = vtanh.pop %v2811
        %v2940 = vtanh.pop %v2812
        %v2941 = vtanh.pop %v2813
        %v2942 = vtanh.pop %v2814
        %v2943 = vtanh.pop %v2815
        %v2944 = vtanh.pop %v2816
        %v2945 = vtanh.pop %v2817
        %v2946 = vtanh.pop %v2818
        %v2947 = vtanh.pop %v2819
        %v2948 = vtanh.pop %v2820
        %v2949 = vtanh.pop %v2821
        %v2950 = vtanh.pop %v2822
        %v2951 = vtanh.pop %v2823
        %v2952 = vtanh.pop %v2824
        %v2953 = vtanh.pop %v2825
        %v2954 = vtanh.pop %v2826
        %v2955 = vtanh.pop %v2827
        %v2956 = vtanh.pop %v2828
        %v2957 = vtanh.pop %v2829
        %v2958 = vtanh.pop %v2830
        %v2959 = vtanh.pop %v2831
        %v2960 = vtanh.pop %v2832
        %v2961 = vtanh.pop %v2833
        %v2962 = vtanh.pop %v2834
        %v2963 = vtanh.pop %v2835
        %v2964 = vtanh.pop %v2836
        %v2965 = vtanh.pop %v2837
        %v2966 = vtanh.pop %v2838
        %v2967 = vtanh.pop %v2839
        %v2968 = vtanh.pop %v2840
        %v2969 = vtanh.pop %v2841
        %v2970 = vtanh.pop %v2842
        %v2971 = vtanh.pop %v2843
        %v2972 = vtanh.pop %v2844
        %v2973 = vtanh.pop %v2845
        %v2974 = vtanh.pop %v2846
        %v2975 = vtanh.pop %v2847
        %v2976 = vtanh.pop %v2848
        %v2977 = vtanh.pop %v2849
        %v2978 = vtanh.pop %v2850
        %v2979 = vtanh.pop %v2851
        %v2980 = vtanh.pop %v2852
        %v2981 = vtanh.pop %v2853
        %v2982 = vtanh.pop %v2854
        %v2983 = vtanh.pop %v2855
        %v2984 = vtanh.pop %v2856
        %v2985 = vtanh.pop %v2857
        %v2986 = vtanh.pop %v2858
        %v2987 = vtanh.pop %v2859
        %v2988 = vtanh.pop %v2860
        %v2989 = vtanh.pop %v2861
        %v2990 = vtanh.pop %v2862
        %v2991 = vtanh.pop %v2863
        %v2992 = vtanh.pop %v2864
        %v2993 = vtanh.pop %v2865
        %v2994 = vtanh.pop %v2866
        %v2995 = vtanh.pop %v2867
        %v2996 = vtanh.pop %v2868
        %v2997 = vtanh.pop %v2869
        %v2998 = vtanh.pop %v2870
        %v2999 = vtanh.pop %v2871
        %v3000 = vtanh.pop %v2872
        %v3001 = vtanh.pop %v2873
        %v3002 = vtanh.pop %v2874
        %v3003 = vtanh.pop %v2875
        %v3004 = vtanh.pop %v2876
        %v3005 = vtanh.pop %v2877
        %v3006 = vtanh.pop %v2878
        %v3007 = vtanh.pop %v2879
        %v3008 = vtanh.pop %v2880
        %v3009 = vtanh.pop %v2881
        %v3010 = vtanh.pop %v2882
        %v3011 = vtanh.pop %v2883
        %v3012 = vtanh.pop %v2884
        %v3013 = vtanh.pop %v2885
        %v3014 = vtanh.pop %v2886
        %v3015 = vtanh.pop %v2887
        %v3016 = vtanh.pop %v2888
        %v3017 = vtanh.pop %v2889
        %v3018 = vtanh.pop %v2890
        %v3019 = vtanh.pop %v2891
        %v3020 = vtanh.pop %v2892
        %v3021 = vtanh.pop %v2893
        %v3022 = vtanh.pop %v2894
        %v3023 = vtanh.pop %v2895
        %v3024 = vtanh.pop %v2896
        %v3025 = vtanh.pop %v2897
        %v3026 = vtanh.pop %v2898
        %v3027 = vtanh.pop %v2899
        %v3028 = vtanh.pop %v2900
        %v3029 = vtanh.pop %v2901
        %v3030 = vtanh.pop %v2902
        %v3031 = vtanh.pop %v2903
        %v3032 = vtanh.pop %v2904
        %v3033 = vtanh.pop %v2905
        %v3034 = vtanh.pop %v2906
        %v3035 = vtanh.pop %v2907
        %v3036 = vtanh.pop %v2908
        %v3037 = vtanh.pop %v2909
        %v3038 = vtanh.pop %v2910
        %v3039 = vtanh.pop %v2911
        %v3040 = vtanh.pop %v2912
        %v3041 = vtanh.pop %v2913
        %v3042 = vtanh.pop %v2914
        %v3043 = vtanh.pop %v2915
        %v3044 = vtanh.pop %v2916
        %v3045 = vtanh.pop %v2917
        %v3046 = vtanh.pop %v2918
        %v3047 = vtanh.pop %v2919
        %v3048 = vtanh.pop %v2920
        %v3049 = vtanh.pop %v2921
        %v3050 = vtanh.pop %v2922
        %v3051 = vtanh.pop %v2923
        %v3052 = vtanh.pop %v2924
        %v3053 = vtanh.pop %v2925
        %v3054 = vtanh.pop %v2926
        %v3055 = vtanh.pop %v2927
        %v3056 = vtanh.pop %v2928
        %v3057 = vtanh.pop %v2929
        %v3058 = vtanh.pop %v2930
        %v3059 = vtanh.pop %v2931
        %3060 = vst [vmem:[%s253] sm:$0xff] %v2932
        %3061 = vst [vmem:[%s253 + $0x8] sm:$0xff] %v2933
        %3062 = vst [vmem:[%s253 + $0x10] sm:$0xff] %v2934
        %3063 = vst [vmem:[%s253 + $0x18] sm:$0xff] %v2935
        %3064 = vst [vmem:[%s253 + $0x20] sm:$0xff] %v2936
        %3065 = vst [vmem:[%s253 + $0x28] sm:$0xff] %v2937
        %3066 = vst [vmem:[%s253 + $0x30] sm:$0xff] %v2938
        %3067 = vst [vmem:[%s253 + $0x38] sm:$0xff] %v2939
        %3068 = vst [vmem:[%s253 + $0x40] sm:$0xff] %v2940
        %3069 = vst [vmem:[%s253 + $0x48] sm:$0xff] %v2941
        %3070 = vst [vmem:[%s253 + $0x50] sm:$0xff] %v2942
        %3071 = vst [vmem:[%s253 + $0x58] sm:$0xff] %v2943
        %3072 = vst [vmem:[%s253 + $0x60] sm:$0xff] %v2944
        %3073 = vst [vmem:[%s253 + $0x68] sm:$0xff] %v2945
        %3074 = vst [vmem:[%s253 + $0x70] sm:$0xff] %v2946
        %3075 = vst [vmem:[%s253 + $0x78] sm:$0xff] %v2947
        %3076 = vst [vmem:[%s253 + $0x80] sm:$0xff] %v2948
        %3077 = vst [vmem:[%s253 + $0x88] sm:$0xff] %v2949
        %3078 = vst [vmem:[%s253 + $0x90] sm:$0xff] %v2950
        %3079 = vst [vmem:[%s253 + $0x98] sm:$0xff] %v2951
        %3080 = vst [vmem:[%s253 + $0xa0] sm:$0xff] %v2952
        %3081 = vst [vmem:[%s253 + $0xa8] sm:$0xff] %v2953
        %3082 = vst [vmem:[%s253 + $0xb0] sm:$0xff] %v2954
        %3083 = vst [vmem:[%s253 + $0xb8] sm:$0xff] %v2955
        %3084 = vst [vmem:[%s253 + $0xc0] sm:$0xff] %v2956
        %3085 = vst [vmem:[%s253 + $0xc8] sm:$0xff] %v2957
        %3086 = vst [vmem:[%s253 + $0xd0] sm:$0xff] %v2958
        %3087 = vst [vmem:[%s253 + $0xd8] sm:$0xff] %v2959
        %3088 = vst [vmem:[%s253 + $0xe0] sm:$0xff] %v2960
        %3089 = vst [vmem:[%s253 + $0xe8] sm:$0xff] %v2961
        %3090 = vst [vmem:[%s253 + $0xf0] sm:$0xff] %v2962
        %3091 = vst [vmem:[%s253 + $0xf8] sm:$0xff] %v2963
        %3092 = vst [vmem:[%s253 + $0x100] sm:$0xff] %v2964
        %3093 = vst [vmem:[%s253 + $0x108] sm:$0xff] %v2965
        %3094 = vst [vmem:[%s253 + $0x110] sm:$0xff] %v2966
        %3095 = vst [vmem:[%s253 + $0x118] sm:$0xff] %v2967
        %3096 = vst [vmem:[%s253 + $0x120] sm:$0xff] %v2968
        %3097 = vst [vmem:[%s253 + $0x128] sm:$0xff] %v2969
        %3098 = vst [vmem:[%s253 + $0x130] sm:$0xff] %v2970
        %3099 = vst [vmem:[%s253 + $0x138] sm:$0xff] %v2971
        %3100 = vst [vmem:[%s253 + $0x140] sm:$0xff] %v2972
        %3101 = vst [vmem:[%s253 + $0x148] sm:$0xff] %v2973
        %3102 = vst [vmem:[%s253 + $0x150] sm:$0xff] %v2974
        %3103 = vst [vmem:[%s253 + $0x158] sm:$0xff] %v2975
        %3104 = vst [vmem:[%s253 + $0x160] sm:$0xff] %v2976
        %3105 = vst [vmem:[%s253 + $0x168] sm:$0xff] %v2977
        %3106 = vst [vmem:[%s253 + $0x170] sm:$0xff] %v2978
        %3107 = vst [vmem:[%s253 + $0x178] sm:$0xff] %v2979
        %3108 = vst [vmem:[%s253 + $0x180] sm:$0xff] %v2980
        %3109 = vst [vmem:[%s253 + $0x188] sm:$0xff] %v2981
        %3110 = vst [vmem:[%s253 + $0x190] sm:$0xff] %v2982
        %3111 = vst [vmem:[%s253 + $0x198] sm:$0xff] %v2983
        %3112 = vst [vmem:[%s253 + $0x1a0] sm:$0xff] %v2984
        %3113 = vst [vmem:[%s253 + $0x1a8] sm:$0xff] %v2985
        %3114 = vst [vmem:[%s253 + $0x1b0] sm:$0xff] %v2986
        %3115 = vst [vmem:[%s253 + $0x1b8] sm:$0xff] %v2987
        %3116 = vst [vmem:[%s253 + $0x1c0] sm:$0xff] %v2988
        %3117 = vst [vmem:[%s253 + $0x1c8] sm:$0xff] %v2989
        %3118 = vst [vmem:[%s253 + $0x1d0] sm:$0xff] %v2990
        %3119 = vst [vmem:[%s253 + $0x1d8] sm:$0xff] %v2991
        %3120 = vst [vmem:[%s253 + $0x1e0] sm:$0xff] %v2992
        %3121 = vst [vmem:[%s253 + $0x1e8] sm:$0xff] %v2993
        %3122 = vst [vmem:[%s253 + $0x1f0] sm:$0xff] %v2994
        %3123 = vst [vmem:[%s253 + $0x1f8] sm:$0xff] %v2995
        %3124 = vst [vmem:[%s253 + $0x200] sm:$0xf] %v2996
        %3125 = vst [vmem:[%s253 + $0x208] sm:$0xf] %v2997
        %3126 = vst [vmem:[%s253 + $0x210] sm:$0xf] %v2998
        %3127 = vst [vmem:[%s253 + $0x218] sm:$0xf] %v2999
        %3128 = vst [vmem:[%s253 + $0x220] sm:$0xf] %v3000
        %3129 = vst [vmem:[%s253 + $0x228] sm:$0xf] %v3001
        %3130 = vst [vmem:[%s253 + $0x230] sm:$0xf] %v3002
        %3131 = vst [vmem:[%s253 + $0x238] sm:$0xf] %v3003
        %3132 = vst [vmem:[%s253 + $0x240] sm:$0xf] %v3004
        %3133 = vst [vmem:[%s253 + $0x248] sm:$0xf] %v3005
        %3134 = vst [vmem:[%s253 + $0x250] sm:$0xf] %v3006
        %3135 = vst [vmem:[%s253 + $0x258] sm:$0xf] %v3007
        %3136 = vst [vmem:[%s253 + $0x260] sm:$0xf] %v3008
        %3137 = vst [vmem:[%s253 + $0x268] sm:$0xf] %v3009
        %3138 = vst [vmem:[%s253 + $0x270] sm:$0xf] %v3010
        %3139 = vst [vmem:[%s253 + $0x278] sm:$0xf] %v3011
        %3140 = vst [vmem:[%s253 + $0x280] sm:$0xf] %v3012
        %3141 = vst [vmem:[%s253 + $0x288] sm:$0xf] %v3013
        %3142 = vst [vmem:[%s253 + $0x290] sm:$0xf] %v3014
        %3143 = vst [vmem:[%s253 + $0x298] sm:$0xf] %v3015
        %3144 = vst [vmem:[%s253 + $0x2a0] sm:$0xf] %v3016
        %3145 = vst [vmem:[%s253 + $0x2a8] sm:$0xf] %v3017
        %3146 = vst [vmem:[%s253 + $0x2b0] sm:$0xf] %v3018
        %3147 = vst [vmem:[%s253 + $0x2b8] sm:$0xf] %v3019
        %3148 = vst [vmem:[%s253 + $0x2c0] sm:$0xf] %v3020
        %3149 = vst [vmem:[%s253 + $0x2c8] sm:$0xf] %v3021
        %3150 = vst [vmem:[%s253 + $0x2d0] sm:$0xf] %v3022
        %3151 = vst [vmem:[%s253 + $0x2d8] sm:$0xf] %v3023
        %3152 = vst [vmem:[%s253 + $0x2e0] sm:$0xf] %v3024
        %3153 = vst [vmem:[%s253 + $0x2e8] sm:$0xf] %v3025
        %3154 = vst [vmem:[%s253 + $0x2f0] sm:$0xf] %v3026
        %3155 = vst [vmem:[%s253 + $0x2f8] sm:$0xf] %v3027
        %3156 = vst [vmem:[%s253 + $0x300] sm:$0xf] %v3028
        %3157 = vst [vmem:[%s253 + $0x308] sm:$0xf] %v3029
        %3158 = vst [vmem:[%s253 + $0x310] sm:$0xf] %v3030
        %3159 = vst [vmem:[%s253 + $0x318] sm:$0xf] %v3031
        %3160 = vst [vmem:[%s253 + $0x320] sm:$0xf] %v3032
        %3161 = vst [vmem:[%s253 + $0x328] sm:$0xf] %v3033
        %3162 = vst [vmem:[%s253 + $0x330] sm:$0xf] %v3034
        %3163 = vst [vmem:[%s253 + $0x338] sm:$0xf] %v3035
        %3164 = vst [vmem:[%s253 + $0x340] sm:$0xf] %v3036
        %3165 = vst [vmem:[%s253 + $0x348] sm:$0xf] %v3037
        %3166 = vst [vmem:[%s253 + $0x350] sm:$0xf] %v3038
        %3167 = vst [vmem:[%s253 + $0x358] sm:$0xf] %v3039
        %3168 = vst [vmem:[%s253 + $0x360] sm:$0xf] %v3040
        %3169 = vst [vmem:[%s253 + $0x368] sm:$0xf] %v3041
        %3170 = vst [vmem:[%s253 + $0x370] sm:$0xf] %v3042
        %3171 = vst [vmem:[%s253 + $0x378] sm:$0xf] %v3043
        %3172 = vst [vmem:[%s253 + $0x380] sm:$0xf] %v3044
        %3173 = vst [vmem:[%s253 + $0x388] sm:$0xf] %v3045
        %3174 = vst [vmem:[%s253 + $0x390] sm:$0xf] %v3046
        %3175 = vst [vmem:[%s253 + $0x398] sm:$0xf] %v3047
        %3176 = vst [vmem:[%s253 + $0x3a0] sm:$0xf] %v3048
        %3177 = vst [vmem:[%s253 + $0x3a8] sm:$0xf] %v3049
        %3178 = vst [vmem:[%s253 + $0x3b0] sm:$0xf] %v3050
        %3179 = vst [vmem:[%s253 + $0x3b8] sm:$0xf] %v3051
        %3180 = vst [vmem:[%s253 + $0x3c0] sm:$0xf] %v3052
        %3181 = vst [vmem:[%s253 + $0x3c8] sm:$0xf] %v3053
        %3182 = vst [vmem:[%s253 + $0x3d0] sm:$0xf] %v3054
        %3183 = vst [vmem:[%s253 + $0x3d8] sm:$0xf] %v3055
        %3184 = vst [vmem:[%s253 + $0x3e0] sm:$0xf] %v3056
        %3185 = vst [vmem:[%s253 + $0x3e8] sm:$0xf] %v3057
        %3186 = vst [vmem:[%s253 + $0x3f0] sm:$0xf] %v3058
        %3187 = vst [vmem:[%s253 + $0x3f8] sm:$0xf] %v3059
      $region40: #{generator_forward.21} parent=31 // pred_fallthru
        _
      %s3188 = smul.u32 64, %s19
      %p3189 = scmp.lt.s32.totalorder %s3188, 63
      %s3190 = scalar_select %p3189, %s3188, 63
      %s3191 = smul.addr %s3190, 8
      %s3192 = scalar_lea.vmem %s3, %s3191
      // Predicated region
      $region41: #{generator_forward.21} parent=31 // pred_check
        %p3193 = pneg %p130
      $region42: #{generator_forward.21} parent=31 // pred_check_branch
        %3195 = sbr.rel (%p3193) target = $region44
      $region43: #{generator_forward.21} parent=31 // pred_region
        %s3196 = smul.u32 64, %s19
      $region44: #{generator_forward.21} parent=31 // pred_fallthru
        _
      // Predicated region
      $region45: #{generator_forward.21} parent=31 // pred_check
        %p3197 = pneg %p130
      $region46: #{generator_forward.21} parent=31 // pred_check_branch
        %3199 = sbr.rel (%p3197) target = $region48
      $region47: #{generator_forward.21} parent=31 // pred_region
        %s3200 = smul.u32 64, %s19
        %p3201 = scmp.lt.s32.totalorder %s3200, 63
        %s3202 = scalar_select %p3201, %s3200, 63
        %s3203 = smul.addr %s3202, 8
        %s3204 = scalar_lea.vmem %s3, %s3203
      $region48: #{generator_forward.21} parent=31 // pred_fallthru
        _
    $region32: #{generator_forward.21} parent=5 // pred_fallthru
      _
    %p3205 = scmp.le.s32.totalorder 2, %s9
    // Predicated region
    $region49: #{generator_forward.21} parent=5 // pred_check
      %p3206 = pneg %p3205
    $region50: #{generator_forward.21} parent=5 // pred_check_branch
      %3208 = sbr.rel (%p3206) target = $region52
    $region51: #{generator_forward.21} parent=5 // pred_region
      %s3209 = ssub.s32 %s9, 2
    $region52: #{generator_forward.21} parent=5 // pred_fallthru
      _
  $region6: #{generator_forward.21} parent=0 // loop_footer
    %s13 = sadd.s32 1, %s9
  $region7: #{generator_forward.21} parent=0 // loop_footer_branch
    %8 = sbr.rel target = $region3
  $region8: #{generator_forward.21} parent=0 // loop_exit
    _

</llo_original>
